<compile_context>
chip_gen: v6e
topology: v6e:2x2x1
jax: 0.10.0
libtpu: 0.0.40
codegen_flags: <defaults>
</compile_context>

<pallas_src>
import functools

import jax
import jax.numpy as jnp
from jax.experimental import pallas as pl
from jax.experimental.pallas import tpu as pltpu


# ----------------------------------------------------------------------------
# helpers
# ----------------------------------------------------------------------------
def _round_up(n, m):
    return ((n + m - 1) // m) * m


def _block_of_8(total, cap):
    """Largest divisor of `total` that is a multiple of 8 and <= cap.

    Assumes total % 8 == 0 (we pad to guarantee this).
    """
    q = total // 8
    cap_q = max(cap // 8, 1)
    for d in range(min(q, cap_q), 0, -1):
        if q % d == 0:
            return 8 * d
    return 8


def _largest_divisor_leq(n, cap):
    for d in range(min(n, cap), 0, -1):
        if n % d == 0:
            return d
    return 1


# ----------------------------------------------------------------------------
# Kernel 1: hoisted input projection  xg = X @ W_ih_T + b   (one big GEMM)
# ----------------------------------------------------------------------------
def _in_proj_kernel(x_ref, w_ref, b_ref, o_ref):
    o_ref[...] = (
        jnp.dot(x_ref[...], w_ref[...], preferred_element_type=jnp.float32)
        + b_ref[...]
    )


def input_projection(x_2d, w_t, b, *, row_block=256):
    """x_2d: (R, Din);  w_t: (Din, 4Hp);  b: (1, 4Hp)  ->  (R, 4Hp)."""
    R, Din = x_2d.shape
    G = w_t.shape[1]
    rb = _block_of_8(R, row_block)
    return pl.pallas_call(
        _in_proj_kernel,
        out_shape=jax.ShapeDtypeStruct((R, G), jnp.float32),
        grid_spec=pltpu.PrefetchScalarGridSpec(
            num_scalar_prefetch=0,
            grid=(R // rb,),
            in_specs=[
                pl.BlockSpec((rb, Din), lambda r: (r, 0)),
                pl.BlockSpec((Din, G), lambda r: (0, 0)),
                pl.BlockSpec((1, G), lambda r: (0, 0)),
            ],
            out_specs=pl.BlockSpec((rb, G), lambda r: (r, 0)),
        ),
        compiler_params=pltpu.CompilerParams(
            dimension_semantics=("parallel",)),
    )(x_2d, w_t, b)


# ----------------------------------------------------------------------------
# Kernel 2: LSTM recurrence over a chunk of timesteps.
#   gates_t = xg[t] + h_{t-1} @ W_hh      (PyTorch gate order i, f, g, o)
# h/c state carried in VMEM scratch across the sequential ("arbitrary") t axis.
# ----------------------------------------------------------------------------
def _lstm_recurrence_kernel(xg_ref, whh_ref, o_ref, h_sc, c_sc, *, seq_out):
    ti = pl.program_id(1)

    @pl.when(ti == 0)
    def _():
        h_sc[...] = jnp.zeros_like(h_sc)
        c_sc[...] = jnp.zeros_like(c_sc)

    TC = xg_ref.shape[0]
    Hp = h_sc.shape[1]

    # Statically unrolled loop over the time chunk (TC is a compile-time block size).
    for tt in range(TC):
        g = xg_ref[tt] + jnp.dot(
            h_sc[...], whh_ref[...], preferred_element_type=jnp.float32)
        i_g = jax.nn.sigmoid(g[:, 0:Hp])
        f_g = jax.nn.sigmoid(g[:, Hp:2 * Hp])
        g_g = jnp.tanh(g[:, 2 * Hp:3 * Hp])
        o_g = jax.nn.sigmoid(g[:, 3 * Hp:4 * Hp])
        c_new = f_g * c_sc[...] + i_g * g_g
        h_new = o_g * jnp.tanh(c_new)
        c_sc[...] = c_new
        h_sc[...] = h_new
        if seq_out:
            o_ref[tt] = h_new

    if not seq_out:
        # Constant output block index along t: stays VMEM-resident, written back once.
        o_ref[...] = h_sc[...]


def lstm_recurrence(xg, w_hh_t, *, return_sequence, time_chunk=32, batch_block=128):
    """xg: (T, Bp, 4Hp) pre-projected inputs;  w_hh_t: (Hp, 4Hp).

    Returns (T, Bp, Hp) if return_sequence else (Bp, Hp) (the final hidden state).
    """
    T, Bp, G = xg.shape
    Hp = G // 4
    TC = _largest_divisor_leq(T, time_chunk)
    Bb = _block_of_8(Bp, batch_block)
    nb, nt = Bp // Bb, T // TC

    in_specs = [
        pl.BlockSpec((TC, Bb, G), lambda bi, ti: (ti, bi, 0)),
        pl.BlockSpec((Hp, G), lambda bi, ti: (0, 0)),
    ]
    if return_sequence:
        out_shape = jax.ShapeDtypeStruct((T, Bp, Hp), jnp.float32)
        out_spec = pl.BlockSpec((TC, Bb, Hp), lambda bi, ti: (ti, bi, 0))
    else:
        out_shape = jax.ShapeDtypeStruct((Bp, Hp), jnp.float32)
        out_spec = pl.BlockSpec((Bb, Hp), lambda bi, ti: (bi, 0))

    kernel = functools.partial(_lstm_recurrence_kernel, seq_out=return_sequence)
    return pl.pallas_call(
        kernel,
        out_shape=out_shape,
        grid_spec=pltpu.PrefetchScalarGridSpec(
            num_scalar_prefetch=0,
            grid=(nb, nt),
            in_specs=in_specs,
            out_specs=out_spec,
            scratch_shapes=[
                pltpu.VMEM((Bb, Hp), jnp.float32),  # h state
                pltpu.VMEM((Bb, Hp), jnp.float32),  # c state
            ],
        ),
        compiler_params=pltpu.CompilerParams(
            dimension_semantics=("parallel", "arbitrary")),
    )(xg, w_hh_t)


# ----------------------------------------------------------------------------
# Kernel 3: final Linear + Softmax(dim=1) on the last hidden state.
# ----------------------------------------------------------------------------
def _fc_softmax_kernel(h_ref, w_ref, b_ref, o_ref):
    logits = (
        jnp.dot(h_ref[...], w_ref[...], preferred_element_type=jnp.float32)
        + b_ref[...]
    )
    m = jnp.max(logits, axis=1, keepdims=True)
    e = jnp.exp(logits - m)
    o_ref[...] = e / jnp.sum(e, axis=1, keepdims=True)


def fc_softmax(h_last, w, b):
    """h_last: (Bp, Hp); w: (Hp, O); b: (1, O) -> (Bp, O) softmax probabilities."""
    Bp, Hp = h_last.shape
    O = w.shape[1]
    return pl.pallas_call(
        _fc_softmax_kernel,
        out_shape=jax.ShapeDtypeStruct((Bp, O), jnp.float32),
        in_specs=[
            pl.BlockSpec((Bp, Hp), lambda: (0, 0)),
            pl.BlockSpec((Hp, O), lambda: (0, 0)),
            pl.BlockSpec((1, O), lambda: (0, 0)),
        ],
        out_specs=pl.BlockSpec((Bp, O), lambda: (0, 0)),
    )(h_last, w, b)


# ----------------------------------------------------------------------------
# Weight packing: transpose + zero-pad the hidden/gate dims to Hp = round_up(H,128).
# Zero padding is exact for an LSTM (padded hidden units stay identically 0).
# ----------------------------------------------------------------------------
def _prepare_lstm_weights(w_ih, w_hh, b, H, Hp, pad_input_dim):
    def pad_gate_axis(w):  # (4H, K) -> (4Hp, K), per-gate zero padding
        k = w.shape[1]
        g = w.reshape(4, H, k)
        g = jnp.pad(g, ((0, 0), (0, Hp - H), (0, 0)))
        return g.reshape(4 * Hp, k)

    w_ih_p = pad_gate_axis(w_ih)                            # (4Hp, Din)
    if pad_input_dim:                                       # layers > 0: Din == H -> Hp
        w_ih_p = jnp.pad(w_ih_p, ((0, 0), (0, Hp - H)))
    w_hh_p = pad_gate_axis(w_hh)                            # (4Hp, H)
    w_hh_p = jnp.pad(w_hh_p, ((0, 0), (0, Hp - H)))         # (4Hp, Hp)
    b_p = jnp.pad(b.reshape(4, H), ((0, 0), (0, Hp - H))).reshape(1, 4 * Hp)
    # Store transposed so in-kernel matmuls need no relayout.
    return w_ih_p.T, w_hh_p.T, b_p                          # (Din,4Hp), (Hp,4Hp), (1,4Hp)


# ----------------------------------------------------------------------------
# Full module forward:  x (B, T, input_size)  ->  probs (B, output_dim)
# ----------------------------------------------------------------------------
@jax.jit
def lstm_forward(x, params):
    B, T, _ = x.shape
    H = params["lstm"][0]["w_hh"].shape[1]
    Hp = _round_up(H, 128)   # lane-dense gate slices / hidden stores
    Bp = _round_up(B, 8)     # sublane-dense batch

    x_p = jnp.pad(x.astype(jnp.float32), ((0, Bp - B), (0, 0), (0, 0)))
    x_tm = jnp.transpose(x_p, (1, 0, 2))          # (T, Bp, Din) time-major

    n_layers = len(params["lstm"])
    for li, layer in enumerate(params["lstm"]):
        w_ih_t, w_hh_t, b_p = _prepare_lstm_weights(
            layer["w_ih"], layer["w_hh"], layer["b"], H, Hp,
            pad_input_dim=(li > 0))
        T_, Bp_, Din_ = x_tm.shape
        # Hoisted input projection: one big GEMM over all T*B rows.
        xg = input_projection(x_tm.reshape(T_ * Bp_, Din_), w_ih_t, b_p)
        xg = xg.reshape(T_, Bp_, 4 * Hp)
        # Last layer only needs h_T; intermediate layers feed the full sequence.
        x_tm = lstm_recurrence(xg, w_hh_t,
                               return_sequence=(li != n_layers - 1))

    h_last = x_tm                                  # (Bp, Hp)
    fc_w_p = jnp.pad(params["fc_w"], ((0, Hp - H), (0, 0)))
    probs = fc_softmax(h_last, fc_w_p, params["fc_b"])
    return probs[:B]


def init_params(key, input_size, hidden_size, num_layers, output_dim):
    """PyTorch-shaped params (U(-1/sqrt(H), 1/sqrt(H)), gate order i,f,g,o)."""
    k = 1.0 / jnp.sqrt(jnp.float32(hidden_size))
    layers = []
    for layer_idx in range(num_layers):
        d_in = input_size if layer_idx == 0 else hidden_size
        key, k1, k2, k3, k4 = jax.random.split(key, 5)
        w_ih = jax.random.uniform(k1, (4 * hidden_size, d_in), jnp.float32, -k, k)
        w_hh = jax.random.uniform(k2, (4 * hidden_size, hidden_size), jnp.float32, -k, k)
        b_ih = jax.random.uniform(k3, (4 * hidden_size,), jnp.float32, -k, k)
        b_hh = jax.random.uniform(k4, (4 * hidden_size,), jnp.float32, -k, k)
        layers.append({
            "w_ih": w_ih,
            "w_hh": w_hh,
            "b": (b_ih + b_hh).reshape(1, 4 * hidden_size),
        })
    key, k5, k6 = jax.random.split(key, 3)
    kf = 1.0 / jnp.sqrt(jnp.float32(hidden_size))
    fc_w = jax.random.uniform(k5, (hidden_size, output_dim), jnp.float32, -kf, kf)
    fc_b = jax.random.uniform(k6, (1, output_dim), jnp.float32, -kf, kf)
    return {"lstm": layers, "fc_w": fc_w, "fc_b": fc_b}


# Pure-JAX reference (mirrors torch.nn.LSTM + Linear + Softmax) for a sanity check.
def _reference_forward(x, params):
    x_tm = jnp.transpose(x, (1, 0, 2))
    for layer in params["lstm"]:
        T, B, _ = x_tm.shape
        H = layer["w_hh"].shape[1]
        h = jnp.zeros((B, H), jnp.float32)
        c = jnp.zeros((B, H), jnp.float32)
        outs = []
        for t in range(T):
            g = x_tm[t] @ layer["w_ih"].T + h @ layer["w_hh"].T + layer["b"]
            i = jax.nn.sigmoid(g[:, 0:H])
            f = jax.nn.sigmoid(g[:, H:2 * H])
            gg = jnp.tanh(g[:, 2 * H:3 * H])
            o = jax.nn.sigmoid(g[:, 3 * H:4 * H])
            c = f * c + i * gg
            h = o * jnp.tanh(c)
            outs.append(h)
        x_tm = jnp.stack(outs, axis=0)
    logits = x_tm[-1] @ params["fc_w"] + params["fc_b"]
    return jax.nn.softmax(logits, axis=1)


if __name__ == "__main__":
    input_size, hidden_size, num_layers, output_dim = 8, 32, 2, 4
    batch, seq = 2, 8

    key = jax.random.PRNGKey(0)
    key, xkey = jax.random.split(key)
    x = jax.random.normal(xkey, (batch, seq, input_size), jnp.float32)
    params = init_params(key, input_size, hidden_size, num_layers, output_dim)

    out = lstm_forward(x, params)
    out = jax.block_until_ready(out)

    ref = _reference_forward(x, params)
    assert out.shape == (batch, output_dim)
    assert jnp.allclose(out, ref, atol=1e-5, rtol=1e-5), "mismatch vs reference"
    assert jnp.allclose(jnp.sum(out, axis=1), 1.0, atol=1e-5)

    print("KERNEL_OK")
</pallas_src>

<mosaic_0001>
module attributes {stable_mosaic.version = 11 : i64} {
  func.func @_in_proj_kernel(%arg0: i32, %arg1: memref<64x8xf32, #tpu.memory_space<vmem>>, %arg2: memref<8x512xf32, #tpu.memory_space<vmem>>, %arg3: memref<1x512xf32, #tpu.memory_space<vmem>>, %arg4: memref<64x512xf32, #tpu.memory_space<vmem>>) attributes {dimension_semantics = [#tpu.dimension_semantics<parallel>], iteration_bounds = array<i64: 1>, scalar_prefetch = 0 : i64, scratch_operands = 0 : i64, tpu.core_type = #tpu.core_type<tc>, window_params = [{transform_indices = @transform_0, window_bounds = array<i64: 64, 8>}, {pipeline_mode = #tpu.pipeline_mode<synchronous>, transform_indices = @transform_1, window_bounds = array<i64: 8, 512>}, {pipeline_mode = #tpu.pipeline_mode<synchronous>, transform_indices = @transform_2, window_bounds = array<i64: 1, 512>}, {transform_indices = @transform_3, window_bounds = array<i64: 64, 512>}]} {
    %c0 = arith.constant 0 : index
    %c0_0 = arith.constant 0 : index
    %0 = vector.load %arg1[%c0, %c0_0] : memref<64x8xf32, #tpu.memory_space<vmem>>, vector<64x8xf32>
    %c0_1 = arith.constant 0 : index
    %c0_2 = arith.constant 0 : index
    %1 = vector.load %arg2[%c0_1, %c0_2] : memref<8x512xf32, #tpu.memory_space<vmem>>, vector<8x512xf32>
    %cst = arith.constant dense<0.000000e+00> : vector<64x512xf32>
    %2 = tpu.matmul %0, %1, %cst {dimension_numbers = #tpu.dot_dimension_numbers<[1], [0], [0], [1], [0, 0, 1, 1], [], []>} : vector<64x8xf32>, vector<8x512xf32>, vector<64x512xf32> -> vector<64x512xf32>
    %c0_3 = arith.constant 0 : index
    %c0_4 = arith.constant 0 : index
    %3 = vector.load %arg3[%c0_3, %c0_4] : memref<1x512xf32, #tpu.memory_space<vmem>>, vector<1x512xf32>
    %4 = vector.broadcast %3 : vector<1x512xf32> to vector<64x512xf32>
    %5 = arith.addf %2, %4 : vector<64x512xf32>
    %c0_5 = arith.constant 0 : index
    %c0_6 = arith.constant 0 : index
    %6 = vector.load %arg4[%c0_5, %c0_6] : memref<64x512xf32, #tpu.memory_space<vmem>>, vector<64x512xf32>
    tpu.vector_store %arg4[%c0_5, %c0_6], %5 {strides = array<i32>} : memref<64x512xf32, #tpu.memory_space<vmem>>, vector<64x512xf32>,
    return
  }
  func.func @transform_0(%arg0: i32) -> (i32, i32) {
    %c0_i32 = arith.constant 0 : i32
    %c0_i32_0 = arith.constant 0 : i32
    return %arg0, %c0_i32 : i32, i32
  }
  func.func @transform_1(%arg0: i32) -> (i32, i32) {
    %c0_i32 = arith.constant 0 : i32
    %c0_i32_0 = arith.constant 0 : i32
    %c0_i32_1 = arith.constant 0 : i32
    return %c0_i32, %c0_i32_0 : i32, i32
  }
  func.func @transform_2(%arg0: i32) -> (i32, i32) {
    %c0_i32 = arith.constant 0 : i32
    %c0_i32_0 = arith.constant 0 : i32
    %c0_i32_1 = arith.constant 0 : i32
    return %c0_i32, %c0_i32_0 : i32, i32
  }
  func.func @transform_3(%arg0: i32) -> (i32, i32) {
    %c0_i32 = arith.constant 0 : i32
    %c0_i32_0 = arith.constant 0 : i32
    return %arg0, %c0_i32 : i32, i32
  }
}

module attributes {stable_mosaic.version = 11 : i64} {
  func.func @_in_proj_kernel(%arg0: i32, %arg1: memref<64x128xf32, #tpu.memory_space<vmem>>, %arg2: memref<128x512xf32, #tpu.memory_space<vmem>>, %arg3: memref<1x512xf32, #tpu.memory_space<vmem>>, %arg4: memref<64x512xf32, #tpu.memory_space<vmem>>) attributes {dimension_semantics = [#tpu.dimension_semantics<parallel>], iteration_bounds = array<i64: 1>, scalar_prefetch = 0 : i64, scratch_operands = 0 : i64, tpu.core_type = #tpu.core_type<tc>, window_params = [{transform_indices = @transform_0, window_bounds = array<i64: 64, 128>}, {pipeline_mode = #tpu.pipeline_mode<synchronous>, transform_indices = @transform_1, window_bounds = array<i64: 128, 512>}, {pipeline_mode = #tpu.pipeline_mode<synchronous>, transform_indices = @transform_2, window_bounds = array<i64: 1, 512>}, {transform_indices = @transform_3, window_bounds = array<i64: 64, 512>}]} {
    %c0 = arith.constant 0 : index
    %c0_0 = arith.constant 0 : index
    %0 = vector.load %arg1[%c0, %c0_0] : memref<64x128xf32, #tpu.memory_space<vmem>>, vector<64x128xf32>
    %c0_1 = arith.constant 0 : index
    %c0_2 = arith.constant 0 : index
    %1 = vector.load %arg2[%c0_1, %c0_2] : memref<128x512xf32, #tpu.memory_space<vmem>>, vector<128x512xf32>
    %cst = arith.constant dense<0.000000e+00> : vector<64x512xf32>
    %2 = tpu.matmul %0, %1, %cst {dimension_numbers = #tpu.dot_dimension_numbers<[1], [0], [0], [1], [0, 0, 1, 1], [], []>} : vector<64x128xf32>, vector<128x512xf32>, vector<64x512xf32> -> vector<64x512xf32>
    %c0_3 = arith.constant 0 : index
    %c0_4 = arith.constant 0 : index
    %3 = vector.load %arg3[%c0_3, %c0_4] : memref<1x512xf32, #tpu.memory_space<vmem>>, vector<1x512xf32>
    %4 = vector.broadcast %3 : vector<1x512xf32> to vector<64x512xf32>
    %5 = arith.addf %2, %4 : vector<64x512xf32>
    %c0_5 = arith.constant 0 : index
    %c0_6 = arith.constant 0 : index
    %6 = vector.load %arg4[%c0_5, %c0_6] : memref<64x512xf32, #tpu.memory_space<vmem>>, vector<64x512xf32>
    tpu.vector_store %arg4[%c0_5, %c0_6], %5 {strides = array<i32>} : memref<64x512xf32, #tpu.memory_space<vmem>>, vector<64x512xf32>,
    return
  }
  func.func @transform_0(%arg0: i32) -> (i32, i32) {
    %c0_i32 = arith.constant 0 : i32
    %c0_i32_0 = arith.constant 0 : i32
    return %arg0, %c0_i32 : i32, i32
  }
  func.func @transform_1(%arg0: i32) -> (i32, i32) {
    %c0_i32 = arith.constant 0 : i32
    %c0_i32_0 = arith.constant 0 : i32
    %c0_i32_1 = arith.constant 0 : i32
    return %c0_i32, %c0_i32_0 : i32, i32
  }
  func.func @transform_2(%arg0: i32) -> (i32, i32) {
    %c0_i32 = arith.constant 0 : i32
    %c0_i32_0 = arith.constant 0 : i32
    %c0_i32_1 = arith.constant 0 : i32
    return %c0_i32, %c0_i32_0 : i32, i32
  }
  func.func @transform_3(%arg0: i32) -> (i32, i32) {
    %c0_i32 = arith.constant 0 : i32
    %c0_i32_0 = arith.constant 0 : i32
    return %arg0, %c0_i32 : i32, i32
  }
}

module attributes {stable_mosaic.version = 11 : i64} {
  func.func @_lstm_recurrence_kernel(%arg0: i32, %arg1: i32, %arg2: memref<8x8x512xf32, #tpu.memory_space<vmem>>, %arg3: memref<128x512xf32, #tpu.memory_space<vmem>>, %arg4: memref<8x8x128xf32, #tpu.memory_space<vmem>>, %arg5: memref<8x128xf32, #tpu.memory_space<vmem>>, %arg6: memref<8x128xf32, #tpu.memory_space<vmem>>) attributes {dimension_semantics = [#tpu.dimension_semantics<parallel>, #tpu.dimension_semantics<arbitrary>], iteration_bounds = array<i64: 1, 1>, scalar_prefetch = 0 : i64, scratch_operands = 2 : i64, tpu.core_type = #tpu.core_type<tc>, window_params = [{transform_indices = @transform_0, window_bounds = array<i64: 8, 8, 512>}, {pipeline_mode = #tpu.pipeline_mode<synchronous>, transform_indices = @transform_1, window_bounds = array<i64: 128, 512>}, {transform_indices = @transform_2, window_bounds = array<i64: 8, 8, 128>}]} {
    %c0_i32 = arith.constant 0 : i32
    %0 = arith.cmpi eq, %arg1, %c0_i32 : i32
    %1 = arith.extui %0 : i1 to i32
    %c0_i32_0 = arith.constant 0 : i32
    %2 = arith.cmpi ne, %1, %c0_i32_0 : i32
    scf.if %2 {
      %cst_152 = arith.constant 0.000000e+00 : f32
      %299 = vector.broadcast %cst_152 : f32 to vector<8x128xf32>
      %c0_153 = arith.constant 0 : index
      %c0_154 = arith.constant 0 : index
      %300 = vector.load %arg5[%c0_153, %c0_154] : memref<8x128xf32, #tpu.memory_space<vmem>>, vector<8x128xf32>
      tpu.vector_store %arg5[%c0_153, %c0_154], %299 {strides = array<i32>} : memref<8x128xf32, #tpu.memory_space<vmem>>, vector<8x128xf32>,
      %cst_155 = arith.constant 0.000000e+00 : f32
      %301 = vector.broadcast %cst_155 : f32 to vector<8x128xf32>
      %c0_156 = arith.constant 0 : index
      %c0_157 = arith.constant 0 : index
      %302 = vector.load %arg6[%c0_156, %c0_157] : memref<8x128xf32, #tpu.memory_space<vmem>>, vector<8x128xf32>
      tpu.vector_store %arg6[%c0_156, %c0_157], %301 {strides = array<i32>} : memref<8x128xf32, #tpu.memory_space<vmem>>, vector<8x128xf32>,
    } else {
    }
    %c0 = arith.constant 0 : index
    %c0_1 = arith.constant 0 : index
    %c0_2 = arith.constant 0 : index
    %3 = vector.load %arg2[%c0, %c0_1, %c0_2] : memref<8x8x512xf32, #tpu.memory_space<vmem>>, vector<1x8x512xf32>
    %4 = vector.shape_cast %3 : vector<1x8x512xf32> to vector<8x512xf32>
    %c0_3 = arith.constant 0 : index
    %c0_4 = arith.constant 0 : index
    %5 = vector.load %arg5[%c0_3, %c0_4] : memref<8x128xf32, #tpu.memory_space<vmem>>, vector<8x128xf32>
    %c0_5 = arith.constant 0 : index
    %c0_6 = arith.constant 0 : index
    %6 = vector.load %arg3[%c0_5, %c0_6] : memref<128x512xf32, #tpu.memory_space<vmem>>, vector<128x512xf32>
    %cst = arith.constant dense<0.000000e+00> : vector<8x512xf32>
    %7 = tpu.matmul %5, %6, %cst {dimension_numbers = #tpu.dot_dimension_numbers<[1], [0], [0], [1], [0, 0, 1, 1], [], []>} : vector<8x128xf32>, vector<128x512xf32>, vector<8x512xf32> -> vector<8x512xf32>
    %8 = arith.addf %4, %7 : vector<8x512xf32>
    %9 = vector.extract_strided_slice %8 {offsets = [0, 0], sizes = [8, 128], strides = [1, 1]} : vector<8x512xf32> to vector<8x128xf32>
    %10 = arith.negf %9 : vector<8x128xf32>
    %11 = math.exp %10 : vector<8x128xf32>
    %cst_7 = arith.constant 1.000000e+00 : f32
    %12 = vector.broadcast %cst_7 : f32 to vector<8x128xf32>
    %13 = arith.addf %12, %11 : vector<8x128xf32>
    %14 = arith.divf %12, %13 : vector<8x128xf32>
    %15 = vector.extract_strided_slice %8 {offsets = [0, 128], sizes = [8, 128], strides = [1, 1]} : vector<8x512xf32> to vector<8x128xf32>
    %16 = arith.negf %15 : vector<8x128xf32>
    %17 = math.exp %16 : vector<8x128xf32>
    %cst_8 = arith.constant 1.000000e+00 : f32
    %18 = vector.broadcast %cst_8 : f32 to vector<8x128xf32>
    %19 = arith.addf %18, %17 : vector<8x128xf32>
    %20 = arith.divf %18, %19 : vector<8x128xf32>
    %21 = vector.extract_strided_slice %8 {offsets = [0, 256], sizes = [8, 128], strides = [1, 1]} : vector<8x512xf32> to vector<8x128xf32>
    %22 = math.tanh %21 : vector<8x128xf32>
    %23 = vector.extract_strided_slice %8 {offsets = [0, 384], sizes = [8, 128], strides = [1, 1]} : vector<8x512xf32> to vector<8x128xf32>
    %24 = arith.negf %23 : vector<8x128xf32>
    %25 = math.exp %24 : vector<8x128xf32>
    %cst_9 = arith.constant 1.000000e+00 : f32
    %26 = vector.broadcast %cst_9 : f32 to vector<8x128xf32>
    %27 = arith.addf %26, %25 : vector<8x128xf32>
    %28 = arith.divf %26, %27 : vector<8x128xf32>
    %c0_10 = arith.constant 0 : index
    %c0_11 = arith.constant 0 : index
    %29 = vector.load %arg6[%c0_10, %c0_11] : memref<8x128xf32, #tpu.memory_space<vmem>>, vector<8x128xf32>
    %30 = arith.mulf %20, %29 : vector<8x128xf32>
    %31 = arith.mulf %14, %22 : vector<8x128xf32>
    %32 = arith.addf %30, %31 : vector<8x128xf32>
    %33 = math.tanh %32 : vector<8x128xf32>
    %34 = arith.mulf %28, %33 : vector<8x128xf32>
    %c0_12 = arith.constant 0 : index
    %c0_13 = arith.constant 0 : index
    %35 = vector.load %arg6[%c0_12, %c0_13] : memref<8x128xf32, #tpu.memory_space<vmem>>, vector<8x128xf32>
    tpu.vector_store %arg6[%c0_12, %c0_13], %32 {strides = array<i32>} : memref<8x128xf32, #tpu.memory_space<vmem>>, vector<8x128xf32>,
    %c0_14 = arith.constant 0 : index
    %c0_15 = arith.constant 0 : index
    %36 = vector.load %arg5[%c0_14, %c0_15] : memref<8x128xf32, #tpu.memory_space<vmem>>, vector<8x128xf32>
    tpu.vector_store %arg5[%c0_14, %c0_15], %34 {strides = array<i32>} : memref<8x128xf32, #tpu.memory_space<vmem>>, vector<8x128xf32>,
    %c0_16 = arith.constant 0 : index
    %c0_17 = arith.constant 0 : index
    %c0_18 = arith.constant 0 : index
    %37 = vector.load %arg4[%c0_16, %c0_17, %c0_18] : memref<8x8x128xf32, #tpu.memory_space<vmem>>, vector<1x8x128xf32>
    %38 = vector.shape_cast %37 : vector<1x8x128xf32> to vector<8x128xf32>
    %39 = vector.shape_cast %34 : vector<8x128xf32> to vector<1x8x128xf32>
    tpu.vector_store %arg4[%c0_16, %c0_17, %c0_18], %39 {strides = array<i32>} : memref<8x8x128xf32, #tpu.memory_space<vmem>>, vector<1x8x128xf32>,
    %c1 = arith.constant 1 : index
    %c0_19 = arith.constant 0 : index
    %c0_20 = arith.constant 0 : index
    %40 = vector.load %arg2[%c1, %c0_19, %c0_20] : memref<8x8x512xf32, #tpu.memory_space<vmem>>, vector<1x8x512xf32>
    %41 = vector.shape_cast %40 : vector<1x8x512xf32> to vector<8x512xf32>
    %c0_21 = arith.constant 0 : index
    %c0_22 = arith.constant 0 : index
    %42 = vector.load %arg5[%c0_21, %c0_22] : memref<8x128xf32, #tpu.memory_space<vmem>>, vector<8x128xf32>
    %c0_23 = arith.constant 0 : index
    %c0_24 = arith.constant 0 : index
    %43 = vector.load %arg3[%c0_23, %c0_24] : memref<128x512xf32, #tpu.memory_space<vmem>>, vector<128x512xf32>
    %cst_25 = arith.constant dense<0.000000e+00> : vector<8x512xf32>
    %44 = tpu.matmul %42, %43, %cst_25 {dimension_numbers = #tpu.dot_dimension_numbers<[1], [0], [0], [1], [0, 0, 1, 1], [], []>} : vector<8x128xf32>, vector<128x512xf32>, vector<8x512xf32> -> vector<8x512xf32>
    %45 = arith.addf %41, %44 : vector<8x512xf32>
    %46 = vector.extract_strided_slice %45 {offsets = [0, 0], sizes = [8, 128], strides = [1, 1]} : vector<8x512xf32> to vector<8x128xf32>
    %47 = arith.negf %46 : vector<8x128xf32>
    %48 = math.exp %47 : vector<8x128xf32>
    %cst_26 = arith.constant 1.000000e+00 : f32
    %49 = vector.broadcast %cst_26 : f32 to vector<8x128xf32>
    %50 = arith.addf %49, %48 : vector<8x128xf32>
    %51 = arith.divf %49, %50 : vector<8x128xf32>
    %52 = vector.extract_strided_slice %45 {offsets = [0, 128], sizes = [8, 128], strides = [1, 1]} : vector<8x512xf32> to vector<8x128xf32>
    %53 = arith.negf %52 : vector<8x128xf32>
    %54 = math.exp %53 : vector<8x128xf32>
    %cst_27 = arith.constant 1.000000e+00 : f32
    %55 = vector.broadcast %cst_27 : f32 to vector<8x128xf32>
    %56 = arith.addf %55, %54 : vector<8x128xf32>
    %57 = arith.divf %55, %56 : vector<8x128xf32>
    %58 = vector.extract_strided_slice %45 {offsets = [0, 256], sizes = [8, 128], strides = [1, 1]} : vector<8x512xf32> to vector<8x128xf32>
    %59 = math.tanh %58 : vector<8x128xf32>
    %60 = vector.extract_strided_slice %45 {offsets = [0, 384], sizes = [8, 128], strides = [1, 1]} : vector<8x512xf32> to vector<8x128xf32>
    %61 = arith.negf %60 : vector<8x128xf32>
    %62 = math.exp %61 : vector<8x128xf32>
    %cst_28 = arith.constant 1.000000e+00 : f32
    %63 = vector.broadcast %cst_28 : f32 to vector<8x128xf32>
    %64 = arith.addf %63, %62 : vector<8x128xf32>
    %65 = arith.divf %63, %64 : vector<8x128xf32>
    %c0_29 = arith.constant 0 : index
    %c0_30 = arith.constant 0 : index
    %66 = vector.load %arg6[%c0_29, %c0_30] : memref<8x128xf32, #tpu.memory_space<vmem>>, vector<8x128xf32>
    %67 = arith.mulf %57, %66 : vector<8x128xf32>
    %68 = arith.mulf %51, %59 : vector<8x128xf32>
    %69 = arith.addf %67, %68 : vector<8x128xf32>
    %70 = math.tanh %69 : vector<8x128xf32>
    %71 = arith.mulf %65, %70 : vector<8x128xf32>
    %c0_31 = arith.constant 0 : index
    %c0_32 = arith.constant 0 : index
    %72 = vector.load %arg6[%c0_31, %c0_32] : memref<8x128xf32, #tpu.memory_space<vmem>>, vector<8x128xf32>
    tpu.vector_store %arg6[%c0_31, %c0_32], %69 {strides = array<i32>} : memref<8x128xf32, #tpu.memory_space<vmem>>, vector<8x128xf32>,
    %c0_33 = arith.constant 0 : index
    %c0_34 = arith.constant 0 : index
    %73 = vector.load %arg5[%c0_33, %c0_34] : memref<8x128xf32, #tpu.memory_space<vmem>>, vector<8x128xf32>
    tpu.vector_store %arg5[%c0_33, %c0_34], %71 {strides = array<i32>} : memref<8x128xf32, #tpu.memory_space<vmem>>, vector<8x128xf32>,
    %c1_35 = arith.constant 1 : index
    %c0_36 = arith.constant 0 : index
    %c0_37 = arith.constant 0 : index
    %74 = vector.load %arg4[%c1_35, %c0_36, %c0_37] : memref<8x8x128xf32, #tpu.memory_space<vmem>>, vector<1x8x128xf32>
    %75 = vector.shape_cast %74 : vector<1x8x128xf32> to vector<8x128xf32>
    %76 = vector.shape_cast %71 : vector<8x128xf32> to vector<1x8x128xf32>
    tpu.vector_store %arg4[%c1_35, %c0_36, %c0_37], %76 {strides = array<i32>} : memref<8x8x128xf32, #tpu.memory_space<vmem>>, vector<1x8x128xf32>,
    %c2 = arith.constant 2 : index
    %c0_38 = arith.constant 0 : index
    %c0_39 = arith.constant 0 : index
    %77 = vector.load %arg2[%c2, %c0_38, %c0_39] : memref<8x8x512xf32, #tpu.memory_space<vmem>>, vector<1x8x512xf32>
    %78 = vector.shape_cast %77 : vector<1x8x512xf32> to vector<8x512xf32>
    %c0_40 = arith.constant 0 : index
    %c0_41 = arith.constant 0 : index
    %79 = vector.load %arg5[%c0_40, %c0_41] : memref<8x128xf32, #tpu.memory_space<vmem>>, vector<8x128xf32>
    %c0_42 = arith.constant 0 : index
    %c0_43 = arith.constant 0 : index
    %80 = vector.load %arg3[%c0_42, %c0_43] : memref<128x512xf32, #tpu.memory_space<vmem>>, vector<128x512xf32>
    %cst_44 = arith.constant dense<0.000000e+00> : vector<8x512xf32>
    %81 = tpu.matmul %79, %80, %cst_44 {dimension_numbers = #tpu.dot_dimension_numbers<[1], [0], [0], [1], [0, 0, 1, 1], [], []>} : vector<8x128xf32>, vector<128x512xf32>, vector<8x512xf32> -> vector<8x512xf32>
    %82 = arith.addf %78, %81 : vector<8x512xf32>
    %83 = vector.extract_strided_slice %82 {offsets = [0, 0], sizes = [8, 128], strides = [1, 1]} : vector<8x512xf32> to vector<8x128xf32>
    %84 = arith.negf %83 : vector<8x128xf32>
    %85 = math.exp %84 : vector<8x128xf32>
    %cst_45 = arith.constant 1.000000e+00 : f32
    %86 = vector.broadcast %cst_45 : f32 to vector<8x128xf32>
    %87 = arith.addf %86, %85 : vector<8x128xf32>
    %88 = arith.divf %86, %87 : vector<8x128xf32>
    %89 = vector.extract_strided_slice %82 {offsets = [0, 128], sizes = [8, 128], strides = [1, 1]} : vector<8x512xf32> to vector<8x128xf32>
    %90 = arith.negf %89 : vector<8x128xf32>
    %91 = math.exp %90 : vector<8x128xf32>
    %cst_46 = arith.constant 1.000000e+00 : f32
    %92 = vector.broadcast %cst_46 : f32 to vector<8x128xf32>
    %93 = arith.addf %92, %91 : vector<8x128xf32>
    %94 = arith.divf %92, %93 : vector<8x128xf32>
    %95 = vector.extract_strided_slice %82 {offsets = [0, 256], sizes = [8, 128], strides = [1, 1]} : vector<8x512xf32> to vector<8x128xf32>
    %96 = math.tanh %95 : vector<8x128xf32>
    %97 = vector.extract_strided_slice %82 {offsets = [0, 384], sizes = [8, 128], strides = [1, 1]} : vector<8x512xf32> to vector<8x128xf32>
    %98 = arith.negf %97 : vector<8x128xf32>
    %99 = math.exp %98 : vector<8x128xf32>
    %cst_47 = arith.constant 1.000000e+00 : f32
    %100 = vector.broadcast %cst_47 : f32 to vector<8x128xf32>
    %101 = arith.addf %100, %99 : vector<8x128xf32>
    %102 = arith.divf %100, %101 : vector<8x128xf32>
    %c0_48 = arith.constant 0 : index
    %c0_49 = arith.constant 0 : index
    %103 = vector.load %arg6[%c0_48, %c0_49] : memref<8x128xf32, #tpu.memory_space<vmem>>, vector<8x128xf32>
    %104 = arith.mulf %94, %103 : vector<8x128xf32>
    %105 = arith.mulf %88, %96 : vector<8x128xf32>
    %106 = arith.addf %104, %105 : vector<8x128xf32>
    %107 = math.tanh %106 : vector<8x128xf32>
    %108 = arith.mulf %102, %107 : vector<8x128xf32>
    %c0_50 = arith.constant 0 : index
    %c0_51 = arith.constant 0 : index
    %109 = vector.load %arg6[%c0_50, %c0_51] : memref<8x128xf32, #tpu.memory_space<vmem>>, vector<8x128xf32>
    tpu.vector_store %arg6[%c0_50, %c0_51], %106 {strides = array<i32>} : memref<8x128xf32, #tpu.memory_space<vmem>>, vector<8x128xf32>,
    %c0_52 = arith.constant 0 : index
    %c0_53 = arith.constant 0 : index
    %110 = vector.load %arg5[%c0_52, %c0_53] : memref<8x128xf32, #tpu.memory_space<vmem>>, vector<8x128xf32>
    tpu.vector_store %arg5[%c0_52, %c0_53], %108 {strides = array<i32>} : memref<8x128xf32, #tpu.memory_space<vmem>>, vector<8x128xf32>,
    %c2_54 = arith.constant 2 : index
    %c0_55 = arith.constant 0 : index
    %c0_56 = arith.constant 0 : index
    %111 = vector.load %arg4[%c2_54, %c0_55, %c0_56] : memref<8x8x128xf32, #tpu.memory_space<vmem>>, vector<1x8x128xf32>
    %112 = vector.shape_cast %111 : vector<1x8x128xf32> to vector<8x128xf32>
    %113 = vector.shape_cast %108 : vector<8x128xf32> to vector<1x8x128xf32>
    tpu.vector_store %arg4[%c2_54, %c0_55, %c0_56], %113 {strides = array<i32>} : memref<8x8x128xf32, #tpu.memory_space<vmem>>, vector<1x8x128xf32>,
    %c3 = arith.constant 3 : index
    %c0_57 = arith.constant 0 : index
    %c0_58 = arith.constant 0 : index
    %114 = vector.load %arg2[%c3, %c0_57, %c0_58] : memref<8x8x512xf32, #tpu.memory_space<vmem>>, vector<1x8x512xf32>
    %115 = vector.shape_cast %114 : vector<1x8x512xf32> to vector<8x512xf32>
    %c0_59 = arith.constant 0 : index
    %c0_60 = arith.constant 0 : index
    %116 = vector.load %arg5[%c0_59, %c0_60] : memref<8x128xf32, #tpu.memory_space<vmem>>, vector<8x128xf32>
    %c0_61 = arith.constant 0 : index
    %c0_62 = arith.constant 0 : index
    %117 = vector.load %arg3[%c0_61, %c0_62] : memref<128x512xf32, #tpu.memory_space<vmem>>, vector<128x512xf32>
    %cst_63 = arith.constant dense<0.000000e+00> : vector<8x512xf32>
    %118 = tpu.matmul %116, %117, %cst_63 {dimension_numbers = #tpu.dot_dimension_numbers<[1], [0], [0], [1], [0, 0, 1, 1], [], []>} : vector<8x128xf32>, vector<128x512xf32>, vector<8x512xf32> -> vector<8x512xf32>
    %119 = arith.addf %115, %118 : vector<8x512xf32>
    %120 = vector.extract_strided_slice %119 {offsets = [0, 0], sizes = [8, 128], strides = [1, 1]} : vector<8x512xf32> to vector<8x128xf32>
    %121 = arith.negf %120 : vector<8x128xf32>
    %122 = math.exp %121 : vector<8x128xf32>
    %cst_64 = arith.constant 1.000000e+00 : f32
    %123 = vector.broadcast %cst_64 : f32 to vector<8x128xf32>
    %124 = arith.addf %123, %122 : vector<8x128xf32>
    %125 = arith.divf %123, %124 : vector<8x128xf32>
    %126 = vector.extract_strided_slice %119 {offsets = [0, 128], sizes = [8, 128], strides = [1, 1]} : vector<8x512xf32> to vector<8x128xf32>
    %127 = arith.negf %126 : vector<8x128xf32>
    %128 = math.exp %127 : vector<8x128xf32>
    %cst_65 = arith.constant 1.000000e+00 : f32
    %129 = vector.broadcast %cst_65 : f32 to vector<8x128xf32>
    %130 = arith.addf %129, %128 : vector<8x128xf32>
    %131 = arith.divf %129, %130 : vector<8x128xf32>
    %132 = vector.extract_strided_slice %119 {offsets = [0, 256], sizes = [8, 128], strides = [1, 1]} : vector<8x512xf32> to vector<8x128xf32>
    %133 = math.tanh %132 : vector<8x128xf32>
    %134 = vector.extract_strided_slice %119 {offsets = [0, 384], sizes = [8, 128], strides = [1, 1]} : vector<8x512xf32> to vector<8x128xf32>
    %135 = arith.negf %134 : vector<8x128xf32>
    %136 = math.exp %135 : vector<8x128xf32>
    %cst_66 = arith.constant 1.000000e+00 : f32
    %137 = vector.broadcast %cst_66 : f32 to vector<8x128xf32>
    %138 = arith.addf %137, %136 : vector<8x128xf32>
    %139 = arith.divf %137, %138 : vector<8x128xf32>
    %c0_67 = arith.constant 0 : index
    %c0_68 = arith.constant 0 : index
    %140 = vector.load %arg6[%c0_67, %c0_68] : memref<8x128xf32, #tpu.memory_space<vmem>>, vector<8x128xf32>
    %141 = arith.mulf %131, %140 : vector<8x128xf32>
    %142 = arith.mulf %125, %133 : vector<8x128xf32>
    %143 = arith.addf %141, %142 : vector<8x128xf32>
    %144 = math.tanh %143 : vector<8x128xf32>
    %145 = arith.mulf %139, %144 : vector<8x128xf32>
    %c0_69 = arith.constant 0 : index
    %c0_70 = arith.constant 0 : index
    %146 = vector.load %arg6[%c0_69, %c0_70] : memref<8x128xf32, #tpu.memory_space<vmem>>, vector<8x128xf32>
    tpu.vector_store %arg6[%c0_69, %c0_70], %143 {strides = array<i32>} : memref<8x128xf32, #tpu.memory_space<vmem>>, vector<8x128xf32>,
    %c0_71 = arith.constant 0 : index
    %c0_72 = arith.constant 0 : index
    %147 = vector.load %arg5[%c0_71, %c0_72] : memref<8x128xf32, #tpu.memory_space<vmem>>, vector<8x128xf32>
    tpu.vector_store %arg5[%c0_71, %c0_72], %145 {strides = array<i32>} : memref<8x128xf32, #tpu.memory_space<vmem>>, vector<8x128xf32>,
    %c3_73 = arith.constant 3 : index
    %c0_74 = arith.constant 0 : index
    %c0_75 = arith.constant 0 : index
    %148 = vector.load %arg4[%c3_73, %c0_74, %c0_75] : memref<8x8x128xf32, #tpu.memory_space<vmem>>, vector<1x8x128xf32>
    %149 = vector.shape_cast %148 : vector<1x8x128xf32> to vector<8x128xf32>
    %150 = vector.shape_cast %145 : vector<8x128xf32> to vector<1x8x128xf32>
    tpu.vector_store %arg4[%c3_73, %c0_74, %c0_75], %150 {strides = array<i32>} : memref<8x8x128xf32, #tpu.memory_space<vmem>>, vector<1x8x128xf32>,
    %c4 = arith.constant 4 : index
    %c0_76 = arith.constant 0 : index
    %c0_77 = arith.constant 0 : index
    %151 = vector.load %arg2[%c4, %c0_76, %c0_77] : memref<8x8x512xf32, #tpu.memory_space<vmem>>, vector<1x8x512xf32>
    %152 = vector.shape_cast %151 : vector<1x8x512xf32> to vector<8x512xf32>
    %c0_78 = arith.constant 0 : index
    %c0_79 = arith.constant 0 : index
    %153 = vector.load %arg5[%c0_78, %c0_79] : memref<8x128xf32, #tpu.memory_space<vmem>>, vector<8x128xf32>
    %c0_80 = arith.constant 0 : index
    %c0_81 = arith.constant 0 : index
    %154 = vector.load %arg3[%c0_80, %c0_81] : memref<128x512xf32, #tpu.memory_space<vmem>>, vector<128x512xf32>
    %cst_82 = arith.constant dense<0.000000e+00> : vector<8x512xf32>
    %155 = tpu.matmul %153, %154, %cst_82 {dimension_numbers = #tpu.dot_dimension_numbers<[1], [0], [0], [1], [0, 0, 1, 1], [], []>} : vector<8x128xf32>, vector<128x512xf32>, vector<8x512xf32> -> vector<8x512xf32>
    %156 = arith.addf %152, %155 : vector<8x512xf32>
    %157 = vector.extract_strided_slice %156 {offsets = [0, 0], sizes = [8, 128], strides = [1, 1]} : vector<8x512xf32> to vector<8x128xf32>
    %158 = arith.negf %157 : vector<8x128xf32>
    %159 = math.exp %158 : vector<8x128xf32>
    %cst_83 = arith.constant 1.000000e+00 : f32
    %160 = vector.broadcast %cst_83 : f32 to vector<8x128xf32>
    %161 = arith.addf %160, %159 : vector<8x128xf32>
    %162 = arith.divf %160, %161 : vector<8x128xf32>
    %163 = vector.extract_strided_slice %156 {offsets = [0, 128], sizes = [8, 128], strides = [1, 1]} : vector<8x512xf32> to vector<8x128xf32>
    %164 = arith.negf %163 : vector<8x128xf32>
    %165 = math.exp %164 : vector<8x128xf32>
    %cst_84 = arith.constant 1.000000e+00 : f32
    %166 = vector.broadcast %cst_84 : f32 to vector<8x128xf32>
    %167 = arith.addf %166, %165 : vector<8x128xf32>
    %168 = arith.divf %166, %167 : vector<8x128xf32>
    %169 = vector.extract_strided_slice %156 {offsets = [0, 256], sizes = [8, 128], strides = [1, 1]} : vector<8x512xf32> to vector<8x128xf32>
    %170 = math.tanh %169 : vector<8x128xf32>
    %171 = vector.extract_strided_slice %156 {offsets = [0, 384], sizes = [8, 128], strides = [1, 1]} : vector<8x512xf32> to vector<8x128xf32>
    %172 = arith.negf %171 : vector<8x128xf32>
    %173 = math.exp %172 : vector<8x128xf32>
    %cst_85 = arith.constant 1.000000e+00 : f32
    %174 = vector.broadcast %cst_85 : f32 to vector<8x128xf32>
    %175 = arith.addf %174, %173 : vector<8x128xf32>
    %176 = arith.divf %174, %175 : vector<8x128xf32>
    %c0_86 = arith.constant 0 : index
    %c0_87 = arith.constant 0 : index
    %177 = vector.load %arg6[%c0_86, %c0_87] : memref<8x128xf32, #tpu.memory_space<vmem>>, vector<8x128xf32>
    %178 = arith.mulf %168, %177 : vector<8x128xf32>
    %179 = arith.mulf %162, %170 : vector<8x128xf32>
    %180 = arith.addf %178, %179 : vector<8x128xf32>
    %181 = math.tanh %180 : vector<8x128xf32>
    %182 = arith.mulf %176, %181 : vector<8x128xf32>
    %c0_88 = arith.constant 0 : index
    %c0_89 = arith.constant 0 : index
    %183 = vector.load %arg6[%c0_88, %c0_89] : memref<8x128xf32, #tpu.memory_space<vmem>>, vector<8x128xf32>
    tpu.vector_store %arg6[%c0_88, %c0_89], %180 {strides = array<i32>} : memref<8x128xf32, #tpu.memory_space<vmem>>, vector<8x128xf32>,
    %c0_90 = arith.constant 0 : index
    %c0_91 = arith.constant 0 : index
    %184 = vector.load %arg5[%c0_90, %c0_91] : memref<8x128xf32, #tpu.memory_space<vmem>>, vector<8x128xf32>
    tpu.vector_store %arg5[%c0_90, %c0_91], %182 {strides = array<i32>} : memref<8x128xf32, #tpu.memory_space<vmem>>, vector<8x128xf32>,
    %c4_92 = arith.constant 4 : index
    %c0_93 = arith.constant 0 : index
    %c0_94 = arith.constant 0 : index
    %185 = vector.load %arg4[%c4_92, %c0_93, %c0_94] : memref<8x8x128xf32, #tpu.memory_space<vmem>>, vector<1x8x128xf32>
    %186 = vector.shape_cast %185 : vector<1x8x128xf32> to vector<8x128xf32>
    %187 = vector.shape_cast %182 : vector<8x128xf32> to vector<1x8x128xf32>
    tpu.vector_store %arg4[%c4_92, %c0_93, %c0_94], %187 {strides = array<i32>} : memref<8x8x128xf32, #tpu.memory_space<vmem>>, vector<1x8x128xf32>,
    %c5 = arith.constant 5 : index
    %c0_95 = arith.constant 0 : index
    %c0_96 = arith.constant 0 : index
    %188 = vector.load %arg2[%c5, %c0_95, %c0_96] : memref<8x8x512xf32, #tpu.memory_space<vmem>>, vector<1x8x512xf32>
    %189 = vector.shape_cast %188 : vector<1x8x512xf32> to vector<8x512xf32>
    %c0_97 = arith.constant 0 : index
    %c0_98 = arith.constant 0 : index
    %190 = vector.load %arg5[%c0_97, %c0_98] : memref<8x128xf32, #tpu.memory_space<vmem>>, vector<8x128xf32>
    %c0_99 = arith.constant 0 : index
    %c0_100 = arith.constant 0 : index
    %191 = vector.load %arg3[%c0_99, %c0_100] : memref<128x512xf32, #tpu.memory_space<vmem>>, vector<128x512xf32>
    %cst_101 = arith.constant dense<0.000000e+00> : vector<8x512xf32>
    %192 = tpu.matmul %190, %191, %cst_101 {dimension_numbers = #tpu.dot_dimension_numbers<[1], [0], [0], [1], [0, 0, 1, 1], [], []>} : vector<8x128xf32>, vector<128x512xf32>, vector<8x512xf32> -> vector<8x512xf32>
    %193 = arith.addf %189, %192 : vector<8x512xf32>
    %194 = vector.extract_strided_slice %193 {offsets = [0, 0], sizes = [8, 128], strides = [1, 1]} : vector<8x512xf32> to vector<8x128xf32>
    %195 = arith.negf %194 : vector<8x128xf32>
    %196 = math.exp %195 : vector<8x128xf32>
    %cst_102 = arith.constant 1.000000e+00 : f32
    %197 = vector.broadcast %cst_102 : f32 to vector<8x128xf32>
    %198 = arith.addf %197, %196 : vector<8x128xf32>
    %199 = arith.divf %197, %198 : vector<8x128xf32>
    %200 = vector.extract_strided_slice %193 {offsets = [0, 128], sizes = [8, 128], strides = [1, 1]} : vector<8x512xf32> to vector<8x128xf32>
    %201 = arith.negf %200 : vector<8x128xf32>
    %202 = math.exp %201 : vector<8x128xf32>
    %cst_103 = arith.constant 1.000000e+00 : f32
    %203 = vector.broadcast %cst_103 : f32 to vector<8x128xf32>
    %204 = arith.addf %203, %202 : vector<8x128xf32>
    %205 = arith.divf %203, %204 : vector<8x128xf32>
    %206 = vector.extract_strided_slice %193 {offsets = [0, 256], sizes = [8, 128], strides = [1, 1]} : vector<8x512xf32> to vector<8x128xf32>
    %207 = math.tanh %206 : vector<8x128xf32>
    %208 = vector.extract_strided_slice %193 {offsets = [0, 384], sizes = [8, 128], strides = [1, 1]} : vector<8x512xf32> to vector<8x128xf32>
    %209 = arith.negf %208 : vector<8x128xf32>
    %210 = math.exp %209 : vector<8x128xf32>
    %cst_104 = arith.constant 1.000000e+00 : f32
    %211 = vector.broadcast %cst_104 : f32 to vector<8x128xf32>
    %212 = arith.addf %211, %210 : vector<8x128xf32>
    %213 = arith.divf %211, %212 : vector<8x128xf32>
    %c0_105 = arith.constant 0 : index
    %c0_106 = arith.constant 0 : index
    %214 = vector.load %arg6[%c0_105, %c0_106] : memref<8x128xf32, #tpu.memory_space<vmem>>, vector<8x128xf32>
    %215 = arith.mulf %205, %214 : vector<8x128xf32>
    %216 = arith.mulf %199, %207 : vector<8x128xf32>
    %217 = arith.addf %215, %216 : vector<8x128xf32>
    %218 = math.tanh %217 : vector<8x128xf32>
    %219 = arith.mulf %213, %218 : vector<8x128xf32>
    %c0_107 = arith.constant 0 : index
    %c0_108 = arith.constant 0 : index
    %220 = vector.load %arg6[%c0_107, %c0_108] : memref<8x128xf32, #tpu.memory_space<vmem>>, vector<8x128xf32>
    tpu.vector_store %arg6[%c0_107, %c0_108], %217 {strides = array<i32>} : memref<8x128xf32, #tpu.memory_space<vmem>>, vector<8x128xf32>,
    %c0_109 = arith.constant 0 : index
    %c0_110 = arith.constant 0 : index
    %221 = vector.load %arg5[%c0_109, %c0_110] : memref<8x128xf32, #tpu.memory_space<vmem>>, vector<8x128xf32>
    tpu.vector_store %arg5[%c0_109, %c0_110], %219 {strides = array<i32>} : memref<8x128xf32, #tpu.memory_space<vmem>>, vector<8x128xf32>,
    %c5_111 = arith.constant 5 : index
    %c0_112 = arith.constant 0 : index
    %c0_113 = arith.constant 0 : index
    %222 = vector.load %arg4[%c5_111, %c0_112, %c0_113] : memref<8x8x128xf32, #tpu.memory_space<vmem>>, vector<1x8x128xf32>
    %223 = vector.shape_cast %222 : vector<1x8x128xf32> to vector<8x128xf32>
    %224 = vector.shape_cast %219 : vector<8x128xf32> to vector<1x8x128xf32>
    tpu.vector_store %arg4[%c5_111, %c0_112, %c0_113], %224 {strides = array<i32>} : memref<8x8x128xf32, #tpu.memory_space<vmem>>, vector<1x8x128xf32>,
    %c6 = arith.constant 6 : index
    %c0_114 = arith.constant 0 : index
    %c0_115 = arith.constant 0 : index
    %225 = vector.load %arg2[%c6, %c0_114, %c0_115] : memref<8x8x512xf32, #tpu.memory_space<vmem>>, vector<1x8x512xf32>
    %226 = vector.shape_cast %225 : vector<1x8x512xf32> to vector<8x512xf32>
    %c0_116 = arith.constant 0 : index
    %c0_117 = arith.constant 0 : index
    %227 = vector.load %arg5[%c0_116, %c0_117] : memref<8x128xf32, #tpu.memory_space<vmem>>, vector<8x128xf32>
    %c0_118 = arith.constant 0 : index
    %c0_119 = arith.constant 0 : index
    %228 = vector.load %arg3[%c0_118, %c0_119] : memref<128x512xf32, #tpu.memory_space<vmem>>, vector<128x512xf32>
    %cst_120 = arith.constant dense<0.000000e+00> : vector<8x512xf32>
    %229 = tpu.matmul %227, %228, %cst_120 {dimension_numbers = #tpu.dot_dimension_numbers<[1], [0], [0], [1], [0, 0, 1, 1], [], []>} : vector<8x128xf32>, vector<128x512xf32>, vector<8x512xf32> -> vector<8x512xf32>
    %230 = arith.addf %226, %229 : vector<8x512xf32>
    %231 = vector.extract_strided_slice %230 {offsets = [0, 0], sizes = [8, 128], strides = [1, 1]} : vector<8x512xf32> to vector<8x128xf32>
    %232 = arith.negf %231 : vector<8x128xf32>
    %233 = math.exp %232 : vector<8x128xf32>
    %cst_121 = arith.constant 1.000000e+00 : f32
    %234 = vector.broadcast %cst_121 : f32 to vector<8x128xf32>
    %235 = arith.addf %234, %233 : vector<8x128xf32>
    %236 = arith.divf %234, %235 : vector<8x128xf32>
    %237 = vector.extract_strided_slice %230 {offsets = [0, 128], sizes = [8, 128], strides = [1, 1]} : vector<8x512xf32> to vector<8x128xf32>
    %238 = arith.negf %237 : vector<8x128xf32>
    %239 = math.exp %238 : vector<8x128xf32>
    %cst_122 = arith.constant 1.000000e+00 : f32
    %240 = vector.broadcast %cst_122 : f32 to vector<8x128xf32>
    %241 = arith.addf %240, %239 : vector<8x128xf32>
    %242 = arith.divf %240, %241 : vector<8x128xf32>
    %243 = vector.extract_strided_slice %230 {offsets = [0, 256], sizes = [8, 128], strides = [1, 1]} : vector<8x512xf32> to vector<8x128xf32>
    %244 = math.tanh %243 : vector<8x128xf32>
    %245 = vector.extract_strided_slice %230 {offsets = [0, 384], sizes = [8, 128], strides = [1, 1]} : vector<8x512xf32> to vector<8x128xf32>
    %246 = arith.negf %245 : vector<8x128xf32>
    %247 = math.exp %246 : vector<8x128xf32>
    %cst_123 = arith.constant 1.000000e+00 : f32
    %248 = vector.broadcast %cst_123 : f32 to vector<8x128xf32>
    %249 = arith.addf %248, %247 : vector<8x128xf32>
    %250 = arith.divf %248, %249 : vector<8x128xf32>
    %c0_124 = arith.constant 0 : index
    %c0_125 = arith.constant 0 : index
    %251 = vector.load %arg6[%c0_124, %c0_125] : memref<8x128xf32, #tpu.memory_space<vmem>>, vector<8x128xf32>
    %252 = arith.mulf %242, %251 : vector<8x128xf32>
    %253 = arith.mulf %236, %244 : vector<8x128xf32>
    %254 = arith.addf %252, %253 : vector<8x128xf32>
    %255 = math.tanh %254 : vector<8x128xf32>
    %256 = arith.mulf %250, %255 : vector<8x128xf32>
    %c0_126 = arith.constant 0 : index
    %c0_127 = arith.constant 0 : index
    %257 = vector.load %arg6[%c0_126, %c0_127] : memref<8x128xf32, #tpu.memory_space<vmem>>, vector<8x128xf32>
    tpu.vector_store %arg6[%c0_126, %c0_127], %254 {strides = array<i32>} : memref<8x128xf32, #tpu.memory_space<vmem>>, vector<8x128xf32>,
    %c0_128 = arith.constant 0 : index
    %c0_129 = arith.constant 0 : index
    %258 = vector.load %arg5[%c0_128, %c0_129] : memref<8x128xf32, #tpu.memory_space<vmem>>, vector<8x128xf32>
    tpu.vector_store %arg5[%c0_128, %c0_129], %256 {strides = array<i32>} : memref<8x128xf32, #tpu.memory_space<vmem>>, vector<8x128xf32>,
    %c6_130 = arith.constant 6 : index
    %c0_131 = arith.constant 0 : index
    %c0_132 = arith.constant 0 : index
    %259 = vector.load %arg4[%c6_130, %c0_131, %c0_132] : memref<8x8x128xf32, #tpu.memory_space<vmem>>, vector<1x8x128xf32>
    %260 = vector.shape_cast %259 : vector<1x8x128xf32> to vector<8x128xf32>
    %261 = vector.shape_cast %256 : vector<8x128xf32> to vector<1x8x128xf32>
    tpu.vector_store %arg4[%c6_130, %c0_131, %c0_132], %261 {strides = array<i32>} : memref<8x8x128xf32, #tpu.memory_space<vmem>>, vector<1x8x128xf32>,
    %c7 = arith.constant 7 : index
    %c0_133 = arith.constant 0 : index
    %c0_134 = arith.constant 0 : index
    %262 = vector.load %arg2[%c7, %c0_133, %c0_134] : memref<8x8x512xf32, #tpu.memory_space<vmem>>, vector<1x8x512xf32>
    %263 = vector.shape_cast %262 : vector<1x8x512xf32> to vector<8x512xf32>
    %c0_135 = arith.constant 0 : index
    %c0_136 = arith.constant 0 : index
    %264 = vector.load %arg5[%c0_135, %c0_136] : memref<8x128xf32, #tpu.memory_space<vmem>>, vector<8x128xf32>
    %c0_137 = arith.constant 0 : index
    %c0_138 = arith.constant 0 : index
    %265 = vector.load %arg3[%c0_137, %c0_138] : memref<128x512xf32, #tpu.memory_space<vmem>>, vector<128x512xf32>
    %cst_139 = arith.constant dense<0.000000e+00> : vector<8x512xf32>
    %266 = tpu.matmul %264, %265, %cst_139 {dimension_numbers = #tpu.dot_dimension_numbers<[1], [0], [0], [1], [0, 0, 1, 1], [], []>} : vector<8x128xf32>, vector<128x512xf32>, vector<8x512xf32> -> vector<8x512xf32>
    %267 = arith.addf %263, %266 : vector<8x512xf32>
    %268 = vector.extract_strided_slice %267 {offsets = [0, 0], sizes = [8, 128], strides = [1, 1]} : vector<8x512xf32> to vector<8x128xf32>
    %269 = arith.negf %268 : vector<8x128xf32>
    %270 = math.exp %269 : vector<8x128xf32>
    %cst_140 = arith.constant 1.000000e+00 : f32
    %271 = vector.broadcast %cst_140 : f32 to vector<8x128xf32>
    %272 = arith.addf %271, %270 : vector<8x128xf32>
    %273 = arith.divf %271, %272 : vector<8x128xf32>
    %274 = vector.extract_strided_slice %267 {offsets = [0, 128], sizes = [8, 128], strides = [1, 1]} : vector<8x512xf32> to vector<8x128xf32>
    %275 = arith.negf %274 : vector<8x128xf32>
    %276 = math.exp %275 : vector<8x128xf32>
    %cst_141 = arith.constant 1.000000e+00 : f32
    %277 = vector.broadcast %cst_141 : f32 to vector<8x128xf32>
    %278 = arith.addf %277, %276 : vector<8x128xf32>
    %279 = arith.divf %277, %278 : vector<8x128xf32>
    %280 = vector.extract_strided_slice %267 {offsets = [0, 256], sizes = [8, 128], strides = [1, 1]} : vector<8x512xf32> to vector<8x128xf32>
    %281 = math.tanh %280 : vector<8x128xf32>
    %282 = vector.extract_strided_slice %267 {offsets = [0, 384], sizes = [8, 128], strides = [1, 1]} : vector<8x512xf32> to vector<8x128xf32>
    %283 = arith.negf %282 : vector<8x128xf32>
    %284 = math.exp %283 : vector<8x128xf32>
    %cst_142 = arith.constant 1.000000e+00 : f32
    %285 = vector.broadcast %cst_142 : f32 to vector<8x128xf32>
    %286 = arith.addf %285, %284 : vector<8x128xf32>
    %287 = arith.divf %285, %286 : vector<8x128xf32>
    %c0_143 = arith.constant 0 : index
    %c0_144 = arith.constant 0 : index
    %288 = vector.load %arg6[%c0_143, %c0_144] : memref<8x128xf32, #tpu.memory_space<vmem>>, vector<8x128xf32>
    %289 = arith.mulf %279, %288 : vector<8x128xf32>
    %290 = arith.mulf %273, %281 : vector<8x128xf32>
    %291 = arith.addf %289, %290 : vector<8x128xf32>
    %292 = math.tanh %291 : vector<8x128xf32>
    %293 = arith.mulf %287, %292 : vector<8x128xf32>
    %c0_145 = arith.constant 0 : index
    %c0_146 = arith.constant 0 : index
    %294 = vector.load %arg6[%c0_145, %c0_146] : memref<8x128xf32, #tpu.memory_space<vmem>>, vector<8x128xf32>
    tpu.vector_store %arg6[%c0_145, %c0_146], %291 {strides = array<i32>} : memref<8x128xf32, #tpu.memory_space<vmem>>, vector<8x128xf32>,
    %c0_147 = arith.constant 0 : index
    %c0_148 = arith.constant 0 : index
    %295 = vector.load %arg5[%c0_147, %c0_148] : memref<8x128xf32, #tpu.memory_space<vmem>>, vector<8x128xf32>
    tpu.vector_store %arg5[%c0_147, %c0_148], %293 {strides = array<i32>} : memref<8x128xf32, #tpu.memory_space<vmem>>, vector<8x128xf32>,
    %c7_149 = arith.constant 7 : index
    %c0_150 = arith.constant 0 : index
    %c0_151 = arith.constant 0 : index
    %296 = vector.load %arg4[%c7_149, %c0_150, %c0_151] : memref<8x8x128xf32, #tpu.memory_space<vmem>>, vector<1x8x128xf32>
    %297 = vector.shape_cast %296 : vector<1x8x128xf32> to vector<8x128xf32>
    %298 = vector.shape_cast %293 : vector<8x128xf32> to vector<1x8x128xf32>
    tpu.vector_store %arg4[%c7_149, %c0_150, %c0_151], %298 {strides = array<i32>} : memref<8x8x128xf32, #tpu.memory_space<vmem>>, vector<1x8x128xf32>,
    return
  }
  func.func @transform_0(%arg0: i32, %arg1: i32) -> (i32, i32, i32) {
    %c0_i32 = arith.constant 0 : i32
    %c0_i32_0 = arith.constant 0 : i32
    return %arg1, %arg0, %c0_i32 : i32, i32, i32
  }
  func.func @transform_1(%arg0: i32, %arg1: i32) -> (i32, i32) {
    %c0_i32 = arith.constant 0 : i32
    %c0_i32_0 = arith.constant 0 : i32
    %c0_i32_1 = arith.constant 0 : i32
    return %c0_i32, %c0_i32_0 : i32, i32
  }
  func.func @transform_2(%arg0: i32, %arg1: i32) -> (i32, i32, i32) {
    %c0_i32 = arith.constant 0 : i32
    %c0_i32_0 = arith.constant 0 : i32
    return %arg1, %arg0, %c0_i32 : i32, i32, i32
  }
}

module attributes {stable_mosaic.version = 11 : i64} {
  func.func @_lstm_recurrence_kernel(%arg0: i32, %arg1: i32, %arg2: memref<8x8x512xf32, #tpu.memory_space<vmem>>, %arg3: memref<128x512xf32, #tpu.memory_space<vmem>>, %arg4: memref<8x128xf32, #tpu.memory_space<vmem>>, %arg5: memref<8x128xf32, #tpu.memory_space<vmem>>, %arg6: memref<8x128xf32, #tpu.memory_space<vmem>>) attributes {dimension_semantics = [#tpu.dimension_semantics<parallel>, #tpu.dimension_semantics<arbitrary>], iteration_bounds = array<i64: 1, 1>, scalar_prefetch = 0 : i64, scratch_operands = 2 : i64, tpu.core_type = #tpu.core_type<tc>, window_params = [{transform_indices = @transform_0, window_bounds = array<i64: 8, 8, 512>}, {pipeline_mode = #tpu.pipeline_mode<synchronous>, transform_indices = @transform_1, window_bounds = array<i64: 128, 512>}, {transform_indices = @transform_2, window_bounds = array<i64: 8, 128>}]} {
    %c0_i32 = arith.constant 0 : i32
    %0 = arith.cmpi eq, %arg1, %c0_i32 : i32
    %1 = arith.extui %0 : i1 to i32
    %c0_i32_0 = arith.constant 0 : i32
    %2 = arith.cmpi ne, %1, %c0_i32_0 : i32
    scf.if %2 {
      %cst_132 = arith.constant 0.000000e+00 : f32
      %277 = vector.broadcast %cst_132 : f32 to vector<8x128xf32>
      %c0_133 = arith.constant 0 : index
      %c0_134 = arith.constant 0 : index
      %278 = vector.load %arg5[%c0_133, %c0_134] : memref<8x128xf32, #tpu.memory_space<vmem>>, vector<8x128xf32>
      tpu.vector_store %arg5[%c0_133, %c0_134], %277 {strides = array<i32>} : memref<8x128xf32, #tpu.memory_space<vmem>>, vector<8x128xf32>,
      %cst_135 = arith.constant 0.000000e+00 : f32
      %279 = vector.broadcast %cst_135 : f32 to vector<8x128xf32>
      %c0_136 = arith.constant 0 : index
      %c0_137 = arith.constant 0 : index
      %280 = vector.load %arg6[%c0_136, %c0_137] : memref<8x128xf32, #tpu.memory_space<vmem>>, vector<8x128xf32>
      tpu.vector_store %arg6[%c0_136, %c0_137], %279 {strides = array<i32>} : memref<8x128xf32, #tpu.memory_space<vmem>>, vector<8x128xf32>,
    } else {
    }
    %c0 = arith.constant 0 : index
    %c0_1 = arith.constant 0 : index
    %c0_2 = arith.constant 0 : index
    %3 = vector.load %arg2[%c0, %c0_1, %c0_2] : memref<8x8x512xf32, #tpu.memory_space<vmem>>, vector<1x8x512xf32>
    %4 = vector.shape_cast %3 : vector<1x8x512xf32> to vector<8x512xf32>
    %c0_3 = arith.constant 0 : index
    %c0_4 = arith.constant 0 : index
    %5 = vector.load %arg5[%c0_3, %c0_4] : memref<8x128xf32, #tpu.memory_space<vmem>>, vector<8x128xf32>
    %c0_5 = arith.constant 0 : index
    %c0_6 = arith.constant 0 : index
    %6 = vector.load %arg3[%c0_5, %c0_6] : memref<128x512xf32, #tpu.memory_space<vmem>>, vector<128x512xf32>
    %cst = arith.constant dense<0.000000e+00> : vector<8x512xf32>
    %7 = tpu.matmul %5, %6, %cst {dimension_numbers = #tpu.dot_dimension_numbers<[1], [0], [0], [1], [0, 0, 1, 1], [], []>} : vector<8x128xf32>, vector<128x512xf32>, vector<8x512xf32> -> vector<8x512xf32>
    %8 = arith.addf %4, %7 : vector<8x512xf32>
    %9 = vector.extract_strided_slice %8 {offsets = [0, 0], sizes = [8, 128], strides = [1, 1]} : vector<8x512xf32> to vector<8x128xf32>
    %10 = arith.negf %9 : vector<8x128xf32>
    %11 = math.exp %10 : vector<8x128xf32>
    %cst_7 = arith.constant 1.000000e+00 : f32
    %12 = vector.broadcast %cst_7 : f32 to vector<8x128xf32>
    %13 = arith.addf %12, %11 : vector<8x128xf32>
    %14 = arith.divf %12, %13 : vector<8x128xf32>
    %15 = vector.extract_strided_slice %8 {offsets = [0, 128], sizes = [8, 128], strides = [1, 1]} : vector<8x512xf32> to vector<8x128xf32>
    %16 = arith.negf %15 : vector<8x128xf32>
    %17 = math.exp %16 : vector<8x128xf32>
    %cst_8 = arith.constant 1.000000e+00 : f32
    %18 = vector.broadcast %cst_8 : f32 to vector<8x128xf32>
    %19 = arith.addf %18, %17 : vector<8x128xf32>
    %20 = arith.divf %18, %19 : vector<8x128xf32>
    %21 = vector.extract_strided_slice %8 {offsets = [0, 256], sizes = [8, 128], strides = [1, 1]} : vector<8x512xf32> to vector<8x128xf32>
    %22 = math.tanh %21 : vector<8x128xf32>
    %23 = vector.extract_strided_slice %8 {offsets = [0, 384], sizes = [8, 128], strides = [1, 1]} : vector<8x512xf32> to vector<8x128xf32>
    %24 = arith.negf %23 : vector<8x128xf32>
    %25 = math.exp %24 : vector<8x128xf32>
    %cst_9 = arith.constant 1.000000e+00 : f32
    %26 = vector.broadcast %cst_9 : f32 to vector<8x128xf32>
    %27 = arith.addf %26, %25 : vector<8x128xf32>
    %28 = arith.divf %26, %27 : vector<8x128xf32>
    %c0_10 = arith.constant 0 : index
    %c0_11 = arith.constant 0 : index
    %29 = vector.load %arg6[%c0_10, %c0_11] : memref<8x128xf32, #tpu.memory_space<vmem>>, vector<8x128xf32>
    %30 = arith.mulf %20, %29 : vector<8x128xf32>
    %31 = arith.mulf %14, %22 : vector<8x128xf32>
    %32 = arith.addf %30, %31 : vector<8x128xf32>
    %33 = math.tanh %32 : vector<8x128xf32>
    %34 = arith.mulf %28, %33 : vector<8x128xf32>
    %c0_12 = arith.constant 0 : index
    %c0_13 = arith.constant 0 : index
    %35 = vector.load %arg6[%c0_12, %c0_13] : memref<8x128xf32, #tpu.memory_space<vmem>>, vector<8x128xf32>
    tpu.vector_store %arg6[%c0_12, %c0_13], %32 {strides = array<i32>} : memref<8x128xf32, #tpu.memory_space<vmem>>, vector<8x128xf32>,
    %c0_14 = arith.constant 0 : index
    %c0_15 = arith.constant 0 : index
    %36 = vector.load %arg5[%c0_14, %c0_15] : memref<8x128xf32, #tpu.memory_space<vmem>>, vector<8x128xf32>
    tpu.vector_store %arg5[%c0_14, %c0_15], %34 {strides = array<i32>} : memref<8x128xf32, #tpu.memory_space<vmem>>, vector<8x128xf32>,
    %c1 = arith.constant 1 : index
    %c0_16 = arith.constant 0 : index
    %c0_17 = arith.constant 0 : index
    %37 = vector.load %arg2[%c1, %c0_16, %c0_17] : memref<8x8x512xf32, #tpu.memory_space<vmem>>, vector<1x8x512xf32>
    %38 = vector.shape_cast %37 : vector<1x8x512xf32> to vector<8x512xf32>
    %c0_18 = arith.constant 0 : index
    %c0_19 = arith.constant 0 : index
    %39 = vector.load %arg5[%c0_18, %c0_19] : memref<8x128xf32, #tpu.memory_space<vmem>>, vector<8x128xf32>
    %c0_20 = arith.constant 0 : index
    %c0_21 = arith.constant 0 : index
    %40 = vector.load %arg3[%c0_20, %c0_21] : memref<128x512xf32, #tpu.memory_space<vmem>>, vector<128x512xf32>
    %cst_22 = arith.constant dense<0.000000e+00> : vector<8x512xf32>
    %41 = tpu.matmul %39, %40, %cst_22 {dimension_numbers = #tpu.dot_dimension_numbers<[1], [0], [0], [1], [0, 0, 1, 1], [], []>} : vector<8x128xf32>, vector<128x512xf32>, vector<8x512xf32> -> vector<8x512xf32>
    %42 = arith.addf %38, %41 : vector<8x512xf32>
    %43 = vector.extract_strided_slice %42 {offsets = [0, 0], sizes = [8, 128], strides = [1, 1]} : vector<8x512xf32> to vector<8x128xf32>
    %44 = arith.negf %43 : vector<8x128xf32>
    %45 = math.exp %44 : vector<8x128xf32>
    %cst_23 = arith.constant 1.000000e+00 : f32
    %46 = vector.broadcast %cst_23 : f32 to vector<8x128xf32>
    %47 = arith.addf %46, %45 : vector<8x128xf32>
    %48 = arith.divf %46, %47 : vector<8x128xf32>
    %49 = vector.extract_strided_slice %42 {offsets = [0, 128], sizes = [8, 128], strides = [1, 1]} : vector<8x512xf32> to vector<8x128xf32>
    %50 = arith.negf %49 : vector<8x128xf32>
    %51 = math.exp %50 : vector<8x128xf32>
    %cst_24 = arith.constant 1.000000e+00 : f32
    %52 = vector.broadcast %cst_24 : f32 to vector<8x128xf32>
    %53 = arith.addf %52, %51 : vector<8x128xf32>
    %54 = arith.divf %52, %53 : vector<8x128xf32>
    %55 = vector.extract_strided_slice %42 {offsets = [0, 256], sizes = [8, 128], strides = [1, 1]} : vector<8x512xf32> to vector<8x128xf32>
    %56 = math.tanh %55 : vector<8x128xf32>
    %57 = vector.extract_strided_slice %42 {offsets = [0, 384], sizes = [8, 128], strides = [1, 1]} : vector<8x512xf32> to vector<8x128xf32>
    %58 = arith.negf %57 : vector<8x128xf32>
    %59 = math.exp %58 : vector<8x128xf32>
    %cst_25 = arith.constant 1.000000e+00 : f32
    %60 = vector.broadcast %cst_25 : f32 to vector<8x128xf32>
    %61 = arith.addf %60, %59 : vector<8x128xf32>
    %62 = arith.divf %60, %61 : vector<8x128xf32>
    %c0_26 = arith.constant 0 : index
    %c0_27 = arith.constant 0 : index
    %63 = vector.load %arg6[%c0_26, %c0_27] : memref<8x128xf32, #tpu.memory_space<vmem>>, vector<8x128xf32>
    %64 = arith.mulf %54, %63 : vector<8x128xf32>
    %65 = arith.mulf %48, %56 : vector<8x128xf32>
    %66 = arith.addf %64, %65 : vector<8x128xf32>
    %67 = math.tanh %66 : vector<8x128xf32>
    %68 = arith.mulf %62, %67 : vector<8x128xf32>
    %c0_28 = arith.constant 0 : index
    %c0_29 = arith.constant 0 : index
    %69 = vector.load %arg6[%c0_28, %c0_29] : memref<8x128xf32, #tpu.memory_space<vmem>>, vector<8x128xf32>
    tpu.vector_store %arg6[%c0_28, %c0_29], %66 {strides = array<i32>} : memref<8x128xf32, #tpu.memory_space<vmem>>, vector<8x128xf32>,
    %c0_30 = arith.constant 0 : index
    %c0_31 = arith.constant 0 : index
    %70 = vector.load %arg5[%c0_30, %c0_31] : memref<8x128xf32, #tpu.memory_space<vmem>>, vector<8x128xf32>
    tpu.vector_store %arg5[%c0_30, %c0_31], %68 {strides = array<i32>} : memref<8x128xf32, #tpu.memory_space<vmem>>, vector<8x128xf32>,
    %c2 = arith.constant 2 : index
    %c0_32 = arith.constant 0 : index
    %c0_33 = arith.constant 0 : index
    %71 = vector.load %arg2[%c2, %c0_32, %c0_33] : memref<8x8x512xf32, #tpu.memory_space<vmem>>, vector<1x8x512xf32>
    %72 = vector.shape_cast %71 : vector<1x8x512xf32> to vector<8x512xf32>
    %c0_34 = arith.constant 0 : index
    %c0_35 = arith.constant 0 : index
    %73 = vector.load %arg5[%c0_34, %c0_35] : memref<8x128xf32, #tpu.memory_space<vmem>>, vector<8x128xf32>
    %c0_36 = arith.constant 0 : index
    %c0_37 = arith.constant 0 : index
    %74 = vector.load %arg3[%c0_36, %c0_37] : memref<128x512xf32, #tpu.memory_space<vmem>>, vector<128x512xf32>
    %cst_38 = arith.constant dense<0.000000e+00> : vector<8x512xf32>
    %75 = tpu.matmul %73, %74, %cst_38 {dimension_numbers = #tpu.dot_dimension_numbers<[1], [0], [0], [1], [0, 0, 1, 1], [], []>} : vector<8x128xf32>, vector<128x512xf32>, vector<8x512xf32> -> vector<8x512xf32>
    %76 = arith.addf %72, %75 : vector<8x512xf32>
    %77 = vector.extract_strided_slice %76 {offsets = [0, 0], sizes = [8, 128], strides = [1, 1]} : vector<8x512xf32> to vector<8x128xf32>
    %78 = arith.negf %77 : vector<8x128xf32>
    %79 = math.exp %78 : vector<8x128xf32>
    %cst_39 = arith.constant 1.000000e+00 : f32
    %80 = vector.broadcast %cst_39 : f32 to vector<8x128xf32>
    %81 = arith.addf %80, %79 : vector<8x128xf32>
    %82 = arith.divf %80, %81 : vector<8x128xf32>
    %83 = vector.extract_strided_slice %76 {offsets = [0, 128], sizes = [8, 128], strides = [1, 1]} : vector<8x512xf32> to vector<8x128xf32>
    %84 = arith.negf %83 : vector<8x128xf32>
    %85 = math.exp %84 : vector<8x128xf32>
    %cst_40 = arith.constant 1.000000e+00 : f32
    %86 = vector.broadcast %cst_40 : f32 to vector<8x128xf32>
    %87 = arith.addf %86, %85 : vector<8x128xf32>
    %88 = arith.divf %86, %87 : vector<8x128xf32>
    %89 = vector.extract_strided_slice %76 {offsets = [0, 256], sizes = [8, 128], strides = [1, 1]} : vector<8x512xf32> to vector<8x128xf32>
    %90 = math.tanh %89 : vector<8x128xf32>
    %91 = vector.extract_strided_slice %76 {offsets = [0, 384], sizes = [8, 128], strides = [1, 1]} : vector<8x512xf32> to vector<8x128xf32>
    %92 = arith.negf %91 : vector<8x128xf32>
    %93 = math.exp %92 : vector<8x128xf32>
    %cst_41 = arith.constant 1.000000e+00 : f32
    %94 = vector.broadcast %cst_41 : f32 to vector<8x128xf32>
    %95 = arith.addf %94, %93 : vector<8x128xf32>
    %96 = arith.divf %94, %95 : vector<8x128xf32>
    %c0_42 = arith.constant 0 : index
    %c0_43 = arith.constant 0 : index
    %97 = vector.load %arg6[%c0_42, %c0_43] : memref<8x128xf32, #tpu.memory_space<vmem>>, vector<8x128xf32>
    %98 = arith.mulf %88, %97 : vector<8x128xf32>
    %99 = arith.mulf %82, %90 : vector<8x128xf32>
    %100 = arith.addf %98, %99 : vector<8x128xf32>
    %101 = math.tanh %100 : vector<8x128xf32>
    %102 = arith.mulf %96, %101 : vector<8x128xf32>
    %c0_44 = arith.constant 0 : index
    %c0_45 = arith.constant 0 : index
    %103 = vector.load %arg6[%c0_44, %c0_45] : memref<8x128xf32, #tpu.memory_space<vmem>>, vector<8x128xf32>
    tpu.vector_store %arg6[%c0_44, %c0_45], %100 {strides = array<i32>} : memref<8x128xf32, #tpu.memory_space<vmem>>, vector<8x128xf32>,
    %c0_46 = arith.constant 0 : index
    %c0_47 = arith.constant 0 : index
    %104 = vector.load %arg5[%c0_46, %c0_47] : memref<8x128xf32, #tpu.memory_space<vmem>>, vector<8x128xf32>
    tpu.vector_store %arg5[%c0_46, %c0_47], %102 {strides = array<i32>} : memref<8x128xf32, #tpu.memory_space<vmem>>, vector<8x128xf32>,
    %c3 = arith.constant 3 : index
    %c0_48 = arith.constant 0 : index
    %c0_49 = arith.constant 0 : index
    %105 = vector.load %arg2[%c3, %c0_48, %c0_49] : memref<8x8x512xf32, #tpu.memory_space<vmem>>, vector<1x8x512xf32>
    %106 = vector.shape_cast %105 : vector<1x8x512xf32> to vector<8x512xf32>
    %c0_50 = arith.constant 0 : index
    %c0_51 = arith.constant 0 : index
    %107 = vector.load %arg5[%c0_50, %c0_51] : memref<8x128xf32, #tpu.memory_space<vmem>>, vector<8x128xf32>
    %c0_52 = arith.constant 0 : index
    %c0_53 = arith.constant 0 : index
    %108 = vector.load %arg3[%c0_52, %c0_53] : memref<128x512xf32, #tpu.memory_space<vmem>>, vector<128x512xf32>
    %cst_54 = arith.constant dense<0.000000e+00> : vector<8x512xf32>
    %109 = tpu.matmul %107, %108, %cst_54 {dimension_numbers = #tpu.dot_dimension_numbers<[1], [0], [0], [1], [0, 0, 1, 1], [], []>} : vector<8x128xf32>, vector<128x512xf32>, vector<8x512xf32> -> vector<8x512xf32>
    %110 = arith.addf %106, %109 : vector<8x512xf32>
    %111 = vector.extract_strided_slice %110 {offsets = [0, 0], sizes = [8, 128], strides = [1, 1]} : vector<8x512xf32> to vector<8x128xf32>
    %112 = arith.negf %111 : vector<8x128xf32>
    %113 = math.exp %112 : vector<8x128xf32>
    %cst_55 = arith.constant 1.000000e+00 : f32
    %114 = vector.broadcast %cst_55 : f32 to vector<8x128xf32>
    %115 = arith.addf %114, %113 : vector<8x128xf32>
    %116 = arith.divf %114, %115 : vector<8x128xf32>
    %117 = vector.extract_strided_slice %110 {offsets = [0, 128], sizes = [8, 128], strides = [1, 1]} : vector<8x512xf32> to vector<8x128xf32>
    %118 = arith.negf %117 : vector<8x128xf32>
    %119 = math.exp %118 : vector<8x128xf32>
    %cst_56 = arith.constant 1.000000e+00 : f32
    %120 = vector.broadcast %cst_56 : f32 to vector<8x128xf32>
    %121 = arith.addf %120, %119 : vector<8x128xf32>
    %122 = arith.divf %120, %121 : vector<8x128xf32>
    %123 = vector.extract_strided_slice %110 {offsets = [0, 256], sizes = [8, 128], strides = [1, 1]} : vector<8x512xf32> to vector<8x128xf32>
    %124 = math.tanh %123 : vector<8x128xf32>
    %125 = vector.extract_strided_slice %110 {offsets = [0, 384], sizes = [8, 128], strides = [1, 1]} : vector<8x512xf32> to vector<8x128xf32>
    %126 = arith.negf %125 : vector<8x128xf32>
    %127 = math.exp %126 : vector<8x128xf32>
    %cst_57 = arith.constant 1.000000e+00 : f32
    %128 = vector.broadcast %cst_57 : f32 to vector<8x128xf32>
    %129 = arith.addf %128, %127 : vector<8x128xf32>
    %130 = arith.divf %128, %129 : vector<8x128xf32>
    %c0_58 = arith.constant 0 : index
    %c0_59 = arith.constant 0 : index
    %131 = vector.load %arg6[%c0_58, %c0_59] : memref<8x128xf32, #tpu.memory_space<vmem>>, vector<8x128xf32>
    %132 = arith.mulf %122, %131 : vector<8x128xf32>
    %133 = arith.mulf %116, %124 : vector<8x128xf32>
    %134 = arith.addf %132, %133 : vector<8x128xf32>
    %135 = math.tanh %134 : vector<8x128xf32>
    %136 = arith.mulf %130, %135 : vector<8x128xf32>
    %c0_60 = arith.constant 0 : index
    %c0_61 = arith.constant 0 : index
    %137 = vector.load %arg6[%c0_60, %c0_61] : memref<8x128xf32, #tpu.memory_space<vmem>>, vector<8x128xf32>
    tpu.vector_store %arg6[%c0_60, %c0_61], %134 {strides = array<i32>} : memref<8x128xf32, #tpu.memory_space<vmem>>, vector<8x128xf32>,
    %c0_62 = arith.constant 0 : index
    %c0_63 = arith.constant 0 : index
    %138 = vector.load %arg5[%c0_62, %c0_63] : memref<8x128xf32, #tpu.memory_space<vmem>>, vector<8x128xf32>
    tpu.vector_store %arg5[%c0_62, %c0_63], %136 {strides = array<i32>} : memref<8x128xf32, #tpu.memory_space<vmem>>, vector<8x128xf32>,
    %c4 = arith.constant 4 : index
    %c0_64 = arith.constant 0 : index
    %c0_65 = arith.constant 0 : index
    %139 = vector.load %arg2[%c4, %c0_64, %c0_65] : memref<8x8x512xf32, #tpu.memory_space<vmem>>, vector<1x8x512xf32>
    %140 = vector.shape_cast %139 : vector<1x8x512xf32> to vector<8x512xf32>
    %c0_66 = arith.constant 0 : index
    %c0_67 = arith.constant 0 : index
    %141 = vector.load %arg5[%c0_66, %c0_67] : memref<8x128xf32, #tpu.memory_space<vmem>>, vector<8x128xf32>
    %c0_68 = arith.constant 0 : index
    %c0_69 = arith.constant 0 : index
    %142 = vector.load %arg3[%c0_68, %c0_69] : memref<128x512xf32, #tpu.memory_space<vmem>>, vector<128x512xf32>
    %cst_70 = arith.constant dense<0.000000e+00> : vector<8x512xf32>
    %143 = tpu.matmul %141, %142, %cst_70 {dimension_numbers = #tpu.dot_dimension_numbers<[1], [0], [0], [1], [0, 0, 1, 1], [], []>} : vector<8x128xf32>, vector<128x512xf32>, vector<8x512xf32> -> vector<8x512xf32>
    %144 = arith.addf %140, %143 : vector<8x512xf32>
    %145 = vector.extract_strided_slice %144 {offsets = [0, 0], sizes = [8, 128], strides = [1, 1]} : vector<8x512xf32> to vector<8x128xf32>
    %146 = arith.negf %145 : vector<8x128xf32>
    %147 = math.exp %146 : vector<8x128xf32>
    %cst_71 = arith.constant 1.000000e+00 : f32
    %148 = vector.broadcast %cst_71 : f32 to vector<8x128xf32>
    %149 = arith.addf %148, %147 : vector<8x128xf32>
    %150 = arith.divf %148, %149 : vector<8x128xf32>
    %151 = vector.extract_strided_slice %144 {offsets = [0, 128], sizes = [8, 128], strides = [1, 1]} : vector<8x512xf32> to vector<8x128xf32>
    %152 = arith.negf %151 : vector<8x128xf32>
    %153 = math.exp %152 : vector<8x128xf32>
    %cst_72 = arith.constant 1.000000e+00 : f32
    %154 = vector.broadcast %cst_72 : f32 to vector<8x128xf32>
    %155 = arith.addf %154, %153 : vector<8x128xf32>
    %156 = arith.divf %154, %155 : vector<8x128xf32>
    %157 = vector.extract_strided_slice %144 {offsets = [0, 256], sizes = [8, 128], strides = [1, 1]} : vector<8x512xf32> to vector<8x128xf32>
    %158 = math.tanh %157 : vector<8x128xf32>
    %159 = vector.extract_strided_slice %144 {offsets = [0, 384], sizes = [8, 128], strides = [1, 1]} : vector<8x512xf32> to vector<8x128xf32>
    %160 = arith.negf %159 : vector<8x128xf32>
    %161 = math.exp %160 : vector<8x128xf32>
    %cst_73 = arith.constant 1.000000e+00 : f32
    %162 = vector.broadcast %cst_73 : f32 to vector<8x128xf32>
    %163 = arith.addf %162, %161 : vector<8x128xf32>
    %164 = arith.divf %162, %163 : vector<8x128xf32>
    %c0_74 = arith.constant 0 : index
    %c0_75 = arith.constant 0 : index
    %165 = vector.load %arg6[%c0_74, %c0_75] : memref<8x128xf32, #tpu.memory_space<vmem>>, vector<8x128xf32>
    %166 = arith.mulf %156, %165 : vector<8x128xf32>
    %167 = arith.mulf %150, %158 : vector<8x128xf32>
    %168 = arith.addf %166, %167 : vector<8x128xf32>
    %169 = math.tanh %168 : vector<8x128xf32>
    %170 = arith.mulf %164, %169 : vector<8x128xf32>
    %c0_76 = arith.constant 0 : index
    %c0_77 = arith.constant 0 : index
    %171 = vector.load %arg6[%c0_76, %c0_77] : memref<8x128xf32, #tpu.memory_space<vmem>>, vector<8x128xf32>
    tpu.vector_store %arg6[%c0_76, %c0_77], %168 {strides = array<i32>} : memref<8x128xf32, #tpu.memory_space<vmem>>, vector<8x128xf32>,
    %c0_78 = arith.constant 0 : index
    %c0_79 = arith.constant 0 : index
    %172 = vector.load %arg5[%c0_78, %c0_79] : memref<8x128xf32, #tpu.memory_space<vmem>>, vector<8x128xf32>
    tpu.vector_store %arg5[%c0_78, %c0_79], %170 {strides = array<i32>} : memref<8x128xf32, #tpu.memory_space<vmem>>, vector<8x128xf32>,
    %c5 = arith.constant 5 : index
    %c0_80 = arith.constant 0 : index
    %c0_81 = arith.constant 0 : index
    %173 = vector.load %arg2[%c5, %c0_80, %c0_81] : memref<8x8x512xf32, #tpu.memory_space<vmem>>, vector<1x8x512xf32>
    %174 = vector.shape_cast %173 : vector<1x8x512xf32> to vector<8x512xf32>
    %c0_82 = arith.constant 0 : index
    %c0_83 = arith.constant 0 : index
    %175 = vector.load %arg5[%c0_82, %c0_83] : memref<8x128xf32, #tpu.memory_space<vmem>>, vector<8x128xf32>
    %c0_84 = arith.constant 0 : index
    %c0_85 = arith.constant 0 : index
    %176 = vector.load %arg3[%c0_84, %c0_85] : memref<128x512xf32, #tpu.memory_space<vmem>>, vector<128x512xf32>
    %cst_86 = arith.constant dense<0.000000e+00> : vector<8x512xf32>
    %177 = tpu.matmul %175, %176, %cst_86 {dimension_numbers = #tpu.dot_dimension_numbers<[1], [0], [0], [1], [0, 0, 1, 1], [], []>} : vector<8x128xf32>, vector<128x512xf32>, vector<8x512xf32> -> vector<8x512xf32>
    %178 = arith.addf %174, %177 : vector<8x512xf32>
    %179 = vector.extract_strided_slice %178 {offsets = [0, 0], sizes = [8, 128], strides = [1, 1]} : vector<8x512xf32> to vector<8x128xf32>
    %180 = arith.negf %179 : vector<8x128xf32>
    %181 = math.exp %180 : vector<8x128xf32>
    %cst_87 = arith.constant 1.000000e+00 : f32
    %182 = vector.broadcast %cst_87 : f32 to vector<8x128xf32>
    %183 = arith.addf %182, %181 : vector<8x128xf32>
    %184 = arith.divf %182, %183 : vector<8x128xf32>
    %185 = vector.extract_strided_slice %178 {offsets = [0, 128], sizes = [8, 128], strides = [1, 1]} : vector<8x512xf32> to vector<8x128xf32>
    %186 = arith.negf %185 : vector<8x128xf32>
    %187 = math.exp %186 : vector<8x128xf32>
    %cst_88 = arith.constant 1.000000e+00 : f32
    %188 = vector.broadcast %cst_88 : f32 to vector<8x128xf32>
    %189 = arith.addf %188, %187 : vector<8x128xf32>
    %190 = arith.divf %188, %189 : vector<8x128xf32>
    %191 = vector.extract_strided_slice %178 {offsets = [0, 256], sizes = [8, 128], strides = [1, 1]} : vector<8x512xf32> to vector<8x128xf32>
    %192 = math.tanh %191 : vector<8x128xf32>
    %193 = vector.extract_strided_slice %178 {offsets = [0, 384], sizes = [8, 128], strides = [1, 1]} : vector<8x512xf32> to vector<8x128xf32>
    %194 = arith.negf %193 : vector<8x128xf32>
    %195 = math.exp %194 : vector<8x128xf32>
    %cst_89 = arith.constant 1.000000e+00 : f32
    %196 = vector.broadcast %cst_89 : f32 to vector<8x128xf32>
    %197 = arith.addf %196, %195 : vector<8x128xf32>
    %198 = arith.divf %196, %197 : vector<8x128xf32>
    %c0_90 = arith.constant 0 : index
    %c0_91 = arith.constant 0 : index
    %199 = vector.load %arg6[%c0_90, %c0_91] : memref<8x128xf32, #tpu.memory_space<vmem>>, vector<8x128xf32>
    %200 = arith.mulf %190, %199 : vector<8x128xf32>
    %201 = arith.mulf %184, %192 : vector<8x128xf32>
    %202 = arith.addf %200, %201 : vector<8x128xf32>
    %203 = math.tanh %202 : vector<8x128xf32>
    %204 = arith.mulf %198, %203 : vector<8x128xf32>
    %c0_92 = arith.constant 0 : index
    %c0_93 = arith.constant 0 : index
    %205 = vector.load %arg6[%c0_92, %c0_93] : memref<8x128xf32, #tpu.memory_space<vmem>>, vector<8x128xf32>
    tpu.vector_store %arg6[%c0_92, %c0_93], %202 {strides = array<i32>} : memref<8x128xf32, #tpu.memory_space<vmem>>, vector<8x128xf32>,
    %c0_94 = arith.constant 0 : index
    %c0_95 = arith.constant 0 : index
    %206 = vector.load %arg5[%c0_94, %c0_95] : memref<8x128xf32, #tpu.memory_space<vmem>>, vector<8x128xf32>
    tpu.vector_store %arg5[%c0_94, %c0_95], %204 {strides = array<i32>} : memref<8x128xf32, #tpu.memory_space<vmem>>, vector<8x128xf32>,
    %c6 = arith.constant 6 : index
    %c0_96 = arith.constant 0 : index
    %c0_97 = arith.constant 0 : index
    %207 = vector.load %arg2[%c6, %c0_96, %c0_97] : memref<8x8x512xf32, #tpu.memory_space<vmem>>, vector<1x8x512xf32>
    %208 = vector.shape_cast %207 : vector<1x8x512xf32> to vector<8x512xf32>
    %c0_98 = arith.constant 0 : index
    %c0_99 = arith.constant 0 : index
    %209 = vector.load %arg5[%c0_98, %c0_99] : memref<8x128xf32, #tpu.memory_space<vmem>>, vector<8x128xf32>
    %c0_100 = arith.constant 0 : index
    %c0_101 = arith.constant 0 : index
    %210 = vector.load %arg3[%c0_100, %c0_101] : memref<128x512xf32, #tpu.memory_space<vmem>>, vector<128x512xf32>
    %cst_102 = arith.constant dense<0.000000e+00> : vector<8x512xf32>
    %211 = tpu.matmul %209, %210, %cst_102 {dimension_numbers = #tpu.dot_dimension_numbers<[1], [0], [0], [1], [0, 0, 1, 1], [], []>} : vector<8x128xf32>, vector<128x512xf32>, vector<8x512xf32> -> vector<8x512xf32>
    %212 = arith.addf %208, %211 : vector<8x512xf32>
    %213 = vector.extract_strided_slice %212 {offsets = [0, 0], sizes = [8, 128], strides = [1, 1]} : vector<8x512xf32> to vector<8x128xf32>
    %214 = arith.negf %213 : vector<8x128xf32>
    %215 = math.exp %214 : vector<8x128xf32>
    %cst_103 = arith.constant 1.000000e+00 : f32
    %216 = vector.broadcast %cst_103 : f32 to vector<8x128xf32>
    %217 = arith.addf %216, %215 : vector<8x128xf32>
    %218 = arith.divf %216, %217 : vector<8x128xf32>
    %219 = vector.extract_strided_slice %212 {offsets = [0, 128], sizes = [8, 128], strides = [1, 1]} : vector<8x512xf32> to vector<8x128xf32>
    %220 = arith.negf %219 : vector<8x128xf32>
    %221 = math.exp %220 : vector<8x128xf32>
    %cst_104 = arith.constant 1.000000e+00 : f32
    %222 = vector.broadcast %cst_104 : f32 to vector<8x128xf32>
    %223 = arith.addf %222, %221 : vector<8x128xf32>
    %224 = arith.divf %222, %223 : vector<8x128xf32>
    %225 = vector.extract_strided_slice %212 {offsets = [0, 256], sizes = [8, 128], strides = [1, 1]} : vector<8x512xf32> to vector<8x128xf32>
    %226 = math.tanh %225 : vector<8x128xf32>
    %227 = vector.extract_strided_slice %212 {offsets = [0, 384], sizes = [8, 128], strides = [1, 1]} : vector<8x512xf32> to vector<8x128xf32>
    %228 = arith.negf %227 : vector<8x128xf32>
    %229 = math.exp %228 : vector<8x128xf32>
    %cst_105 = arith.constant 1.000000e+00 : f32
    %230 = vector.broadcast %cst_105 : f32 to vector<8x128xf32>
    %231 = arith.addf %230, %229 : vector<8x128xf32>
    %232 = arith.divf %230, %231 : vector<8x128xf32>
    %c0_106 = arith.constant 0 : index
    %c0_107 = arith.constant 0 : index
    %233 = vector.load %arg6[%c0_106, %c0_107] : memref<8x128xf32, #tpu.memory_space<vmem>>, vector<8x128xf32>
    %234 = arith.mulf %224, %233 : vector<8x128xf32>
    %235 = arith.mulf %218, %226 : vector<8x128xf32>
    %236 = arith.addf %234, %235 : vector<8x128xf32>
    %237 = math.tanh %236 : vector<8x128xf32>
    %238 = arith.mulf %232, %237 : vector<8x128xf32>
    %c0_108 = arith.constant 0 : index
    %c0_109 = arith.constant 0 : index
    %239 = vector.load %arg6[%c0_108, %c0_109] : memref<8x128xf32, #tpu.memory_space<vmem>>, vector<8x128xf32>
    tpu.vector_store %arg6[%c0_108, %c0_109], %236 {strides = array<i32>} : memref<8x128xf32, #tpu.memory_space<vmem>>, vector<8x128xf32>,
    %c0_110 = arith.constant 0 : index
    %c0_111 = arith.constant 0 : index
    %240 = vector.load %arg5[%c0_110, %c0_111] : memref<8x128xf32, #tpu.memory_space<vmem>>, vector<8x128xf32>
    tpu.vector_store %arg5[%c0_110, %c0_111], %238 {strides = array<i32>} : memref<8x128xf32, #tpu.memory_space<vmem>>, vector<8x128xf32>,
    %c7 = arith.constant 7 : index
    %c0_112 = arith.constant 0 : index
    %c0_113 = arith.constant 0 : index
    %241 = vector.load %arg2[%c7, %c0_112, %c0_113] : memref<8x8x512xf32, #tpu.memory_space<vmem>>, vector<1x8x512xf32>
    %242 = vector.shape_cast %241 : vector<1x8x512xf32> to vector<8x512xf32>
    %c0_114 = arith.constant 0 : index
    %c0_115 = arith.constant 0 : index
    %243 = vector.load %arg5[%c0_114, %c0_115] : memref<8x128xf32, #tpu.memory_space<vmem>>, vector<8x128xf32>
    %c0_116 = arith.constant 0 : index
    %c0_117 = arith.constant 0 : index
    %244 = vector.load %arg3[%c0_116, %c0_117] : memref<128x512xf32, #tpu.memory_space<vmem>>, vector<128x512xf32>
    %cst_118 = arith.constant dense<0.000000e+00> : vector<8x512xf32>
    %245 = tpu.matmul %243, %244, %cst_118 {dimension_numbers = #tpu.dot_dimension_numbers<[1], [0], [0], [1], [0, 0, 1, 1], [], []>} : vector<8x128xf32>, vector<128x512xf32>, vector<8x512xf32> -> vector<8x512xf32>
    %246 = arith.addf %242, %245 : vector<8x512xf32>
    %247 = vector.extract_strided_slice %246 {offsets = [0, 0], sizes = [8, 128], strides = [1, 1]} : vector<8x512xf32> to vector<8x128xf32>
    %248 = arith.negf %247 : vector<8x128xf32>
    %249 = math.exp %248 : vector<8x128xf32>
    %cst_119 = arith.constant 1.000000e+00 : f32
    %250 = vector.broadcast %cst_119 : f32 to vector<8x128xf32>
    %251 = arith.addf %250, %249 : vector<8x128xf32>
    %252 = arith.divf %250, %251 : vector<8x128xf32>
    %253 = vector.extract_strided_slice %246 {offsets = [0, 128], sizes = [8, 128], strides = [1, 1]} : vector<8x512xf32> to vector<8x128xf32>
    %254 = arith.negf %253 : vector<8x128xf32>
    %255 = math.exp %254 : vector<8x128xf32>
    %cst_120 = arith.constant 1.000000e+00 : f32
    %256 = vector.broadcast %cst_120 : f32 to vector<8x128xf32>
    %257 = arith.addf %256, %255 : vector<8x128xf32>
    %258 = arith.divf %256, %257 : vector<8x128xf32>
    %259 = vector.extract_strided_slice %246 {offsets = [0, 256], sizes = [8, 128], strides = [1, 1]} : vector<8x512xf32> to vector<8x128xf32>
    %260 = math.tanh %259 : vector<8x128xf32>
    %261 = vector.extract_strided_slice %246 {offsets = [0, 384], sizes = [8, 128], strides = [1, 1]} : vector<8x512xf32> to vector<8x128xf32>
    %262 = arith.negf %261 : vector<8x128xf32>
    %263 = math.exp %262 : vector<8x128xf32>
    %cst_121 = arith.constant 1.000000e+00 : f32
    %264 = vector.broadcast %cst_121 : f32 to vector<8x128xf32>
    %265 = arith.addf %264, %263 : vector<8x128xf32>
    %266 = arith.divf %264, %265 : vector<8x128xf32>
    %c0_122 = arith.constant 0 : index
    %c0_123 = arith.constant 0 : index
    %267 = vector.load %arg6[%c0_122, %c0_123] : memref<8x128xf32, #tpu.memory_space<vmem>>, vector<8x128xf32>
    %268 = arith.mulf %258, %267 : vector<8x128xf32>
    %269 = arith.mulf %252, %260 : vector<8x128xf32>
    %270 = arith.addf %268, %269 : vector<8x128xf32>
    %271 = math.tanh %270 : vector<8x128xf32>
    %272 = arith.mulf %266, %271 : vector<8x128xf32>
    %c0_124 = arith.constant 0 : index
    %c0_125 = arith.constant 0 : index
    %273 = vector.load %arg6[%c0_124, %c0_125] : memref<8x128xf32, #tpu.memory_space<vmem>>, vector<8x128xf32>
    tpu.vector_store %arg6[%c0_124, %c0_125], %270 {strides = array<i32>} : memref<8x128xf32, #tpu.memory_space<vmem>>, vector<8x128xf32>,
    %c0_126 = arith.constant 0 : index
    %c0_127 = arith.constant 0 : index
    %274 = vector.load %arg5[%c0_126, %c0_127] : memref<8x128xf32, #tpu.memory_space<vmem>>, vector<8x128xf32>
    tpu.vector_store %arg5[%c0_126, %c0_127], %272 {strides = array<i32>} : memref<8x128xf32, #tpu.memory_space<vmem>>, vector<8x128xf32>,
    %c0_128 = arith.constant 0 : index
    %c0_129 = arith.constant 0 : index
    %275 = vector.load %arg5[%c0_128, %c0_129] : memref<8x128xf32, #tpu.memory_space<vmem>>, vector<8x128xf32>
    %c0_130 = arith.constant 0 : index
    %c0_131 = arith.constant 0 : index
    %276 = vector.load %arg4[%c0_130, %c0_131] : memref<8x128xf32, #tpu.memory_space<vmem>>, vector<8x128xf32>
    tpu.vector_store %arg4[%c0_130, %c0_131], %275 {strides = array<i32>} : memref<8x128xf32, #tpu.memory_space<vmem>>, vector<8x128xf32>,
    return
  }
  func.func @transform_0(%arg0: i32, %arg1: i32) -> (i32, i32, i32) {
    %c0_i32 = arith.constant 0 : i32
    %c0_i32_0 = arith.constant 0 : i32
    return %arg1, %arg0, %c0_i32 : i32, i32, i32
  }
  func.func @transform_1(%arg0: i32, %arg1: i32) -> (i32, i32) {
    %c0_i32 = arith.constant 0 : i32
    %c0_i32_0 = arith.constant 0 : i32
    %c0_i32_1 = arith.constant 0 : i32
    return %c0_i32, %c0_i32_0 : i32, i32
  }
  func.func @transform_2(%arg0: i32, %arg1: i32) -> (i32, i32) {
    %c0_i32 = arith.constant 0 : i32
    %c0_i32_0 = arith.constant 0 : i32
    return %arg0, %c0_i32 : i32, i32
  }
}

module attributes {stable_mosaic.version = 11 : i64} {
  func.func @_fc_softmax_kernel(%arg0: memref<8x128xf32, #tpu.memory_space<vmem>>, %arg1: memref<128x4xf32, #tpu.memory_space<vmem>>, %arg2: memref<1x4xf32, #tpu.memory_space<vmem>>, %arg3: memref<8x4xf32, #tpu.memory_space<vmem>>) attributes {dimension_semantics = [], scalar_prefetch = 0 : i64, scratch_operands = 0 : i64, tpu.core_type = #tpu.core_type<tc>} {
    %c0 = arith.constant 0 : index
    %c0_0 = arith.constant 0 : index
    %0 = vector.load %arg0[%c0, %c0_0] : memref<8x128xf32, #tpu.memory_space<vmem>>, vector<8x128xf32>
    %c0_1 = arith.constant 0 : index
    %c0_2 = arith.constant 0 : index
    %1 = vector.load %arg1[%c0_1, %c0_2] : memref<128x4xf32, #tpu.memory_space<vmem>>, vector<128x4xf32>
    %cst = arith.constant dense<0.000000e+00> : vector<8x4xf32>
    %2 = tpu.matmul %0, %1, %cst {dimension_numbers = #tpu.dot_dimension_numbers<[1], [0], [0], [1], [0, 0, 1, 1], [], []>} : vector<8x128xf32>, vector<128x4xf32>, vector<8x4xf32> -> vector<8x4xf32>
    %c0_3 = arith.constant 0 : index
    %c0_4 = arith.constant 0 : index
    %3 = vector.load %arg2[%c0_3, %c0_4] : memref<1x4xf32, #tpu.memory_space<vmem>>, vector<1x4xf32>
    %4 = vector.broadcast %3 : vector<1x4xf32> to vector<8x4xf32>
    %5 = arith.addf %2, %4 : vector<8x4xf32>
    %cst_5 = arith.constant dense<0xFF800000> : vector<8xf32>
    %6 = vector.multi_reduction <maximumf>, %5, %cst_5 [1] : vector<8x4xf32> to vector<8xf32>
    %7 = vector.shape_cast %6 : vector<8xf32> to vector<8x1xf32>
    %8 = vector.broadcast %7 : vector<8x1xf32> to vector<8x4xf32>
    %9 = arith.subf %5, %8 : vector<8x4xf32>
    %10 = math.exp %9 : vector<8x4xf32>
    %cst_6 = arith.constant dense<0.000000e+00> : vector<8xf32>
    %11 = vector.multi_reduction <add>, %10, %cst_6 [1] : vector<8x4xf32> to vector<8xf32>
    %12 = vector.shape_cast %11 : vector<8xf32> to vector<8x1xf32>
    %13 = vector.broadcast %12 : vector<8x1xf32> to vector<8x4xf32>
    %14 = arith.divf %10, %13 : vector<8x4xf32>
    %c0_7 = arith.constant 0 : index
    %c0_8 = arith.constant 0 : index
    %15 = vector.load %arg3[%c0_7, %c0_8] : memref<8x4xf32, #tpu.memory_space<vmem>>, vector<8x4xf32>
    tpu.vector_store %arg3[%c0_7, %c0_8], %14 {strides = array<i32>} : memref<8x4xf32, #tpu.memory_space<vmem>>, vector<8x4xf32>,
    return
  }
}

</mosaic_0001>

<llo_original>
// kernel: lstm_forward.5
$region0: #{lstm_forward.5}
  #allocation0 [shape = 'u32[]', space=smem, size = 0x4, offset = 0x4, fixed_abs, tag = 'smem constant byte address 0x4 - core index']
  #allocation1 [shape = 'u32[144,128]{1,0:T(1,128)}', space=vmem, size = 0x12000, scoped, tag = 'internal scratch']
  %s0 = inlined_call_operand.vmem [shape: f32[64,8], index: 0, kind: input, shape index: {}]
  %s1 = inlined_call_operand.vmem [shape: f32[8,512], index: 1, kind: input, shape index: {}]
  %s2 = inlined_call_operand.vmem [shape: f32[1,512], index: 2, kind: input, shape index: {}]
  %s3 = inlined_call_operand.vmem [shape: f32[64,512], index: 3, kind: output, shape index: {}]
  %s4 = sld [smem:[#allocation0]]
  $region22: #{lstm_forward.5} parent=0
    _
  %s6 = ssub.s32 1, %s4
  %s7 = scalar_select 0, %s6, %s4
  // Predicated region
  $region2: #{lstm_forward.5} parent=0 // pred_check
    _
  $region3: #{lstm_forward.5} parent=0 // pred_check_branch
    %9 = sbr.rel (0) target = $region5
  $region4: #{lstm_forward.5} parent=0 // pred_region
    _
  $region5: #{lstm_forward.5} parent=0 // pred_fallthru
    _
  // Predicated region
  $region6: #{lstm_forward.5} parent=0 // pred_check
    _
  $region7: #{lstm_forward.5} parent=0 // pred_check_branch
    %11 = sbr.rel (0) target = $region9
  $region8: #{lstm_forward.5} parent=0 // pred_region
    _
  $region9: #{lstm_forward.5} parent=0 // pred_fallthru
    _
  // Predicated region
  $region10: #{lstm_forward.5} parent=0 // pred_check
    _
  $region11: #{lstm_forward.5} parent=0 // pred_check_branch
    %13 = sbr.rel (0) target = $region13
  $region12: #{lstm_forward.5} parent=0 // pred_region
    _
  $region13: #{lstm_forward.5} parent=0 // pred_fallthru
    _
  %v14 = vld [vmem:[%s0] sm:$0xff]
  %v15 = vld [vmem:[%s0 + $0x8] sm:$0xff]
  %v16 = vld [vmem:[%s0 + $0x10] sm:$0xff]
  %v17 = vld [vmem:[%s0 + $0x18] sm:$0xff]
  %v18 = vld [vmem:[%s0 + $0x20] sm:$0xff]
  %v19 = vld [vmem:[%s0 + $0x28] sm:$0xff]
  %v20 = vld [vmem:[%s0 + $0x30] sm:$0xff]
  %v21 = vld [vmem:[%s0 + $0x38] sm:$0xff]
  %v22 = vld [vmem:[%s1] sm:$0xff]
  %v23 = vld [vmem:[%s1 + $0x8] sm:$0xff]
  %v24 = vld [vmem:[%s1 + $0x10] sm:$0xff]
  %v25 = vld [vmem:[%s1 + $0x18] sm:$0xff]
  %v26 = vld [vmem:[%s2] sm:$0xf]
  %v28 = vlaneseq
  %v29 = vshrl.u32 %v28, 7
  %v30 = vsub.s32 0, %v29
  %v31 = vrot.slane %v26, %v30
  %v32 = vlaneseq
  %v33 = vshrl.u32 %v32, 7
  %v34 = vsub.s32 1, %v33
  %v35 = vrot.slane %v26, %v34
  %v36 = vlaneseq
  %v37 = vshrl.u32 %v36, 7
  %v38 = vsub.s32 2, %v37
  %v39 = vrot.slane %v26, %v38
  %v40 = vlaneseq
  %v41 = vshrl.u32 %v40, 7
  %v42 = vsub.s32 3, %v41
  %v43 = vrot.slane %v26, %v42
  %vm48 = vcmask 64512
  %v50 = vsel %vm48, %v14, 0
  %v53 = vsel %vm48, %v15, 0
  %v56 = vsel %vm48, %v16, 0
  %v59 = vsel %vm48, %v17, 0
  %v62 = vsel %vm48, %v18, 0
  %v65 = vsel %vm48, %v19, 0
  %v68 = vsel %vm48, %v20, 0
  %v71 = vsel %vm48, %v21, 0
  %73 = vmatprep.subr.mxu0 0.0
  %74 = vmatpush1.msra.mxu0 0.0
  %75 = vmatprep.subr.mxu0 0.0
  %76 = vmatpush1.msra.mxu0 0.0
  %77 = vmatprep.subr.mxu0 0.0
  %78 = vmatpush1.msra.mxu0 0.0
  %79 = vmatprep.subr.mxu0 0.0
  %80 = vmatpush1.msra.mxu0 0.0
  %81 = vmatprep.subr.mxu0 0.0
  %82 = vmatpush1.msra.mxu0 0.0
  %83 = vmatprep.subr.mxu0 0.0
  %84 = vmatpush1.msra.mxu0 0.0
  %85 = vmatprep.subr.mxu0 0.0
  %86 = vmatpush1.msra.mxu0 0.0
  %87 = vmatprep.subr.mxu0 0.0
  %88 = vmatpush1.msra.mxu0 0.0
  %89 = vmatprep.subr.mxu0 0.0
  %90 = vmatpush1.msra.mxu0 0.0
  %91 = vmatprep.subr.mxu0 0.0
  %92 = vmatpush1.msra.mxu0 0.0
  %93 = vmatprep.subr.mxu0 0.0
  %94 = vmatpush1.msra.mxu0 0.0
  %95 = vmatprep.subr.mxu0 0.0
  %96 = vmatpush1.msra.mxu0 0.0
  %97 = vmatprep.subr.mxu0 0.0
  %98 = vmatpush1.msra.mxu0 0.0
  %99 = vmatprep.subr.mxu0 0.0
  %100 = vmatpush1.msra.mxu0 0.0
  %101 = vmatprep.subr.mxu0 0.0
  %102 = vmatpush1.msra.mxu0 0.0
  %103 = vmatprep.subr.mxu0 %v23
  %104 = vmatpush1.msra.mxu0 %v22
  %105 = vmatprep.subr.mxu0 0.0
  %106 = vmatpush2.msra.mxu0 0.0
  %107 = vmatprep.subr.mxu0 0.0
  %108 = vmatpush2.msra.mxu0 0.0
  %109 = vmatprep.subr.mxu0 0.0
  %110 = vmatpush2.msra.mxu0 0.0
  %111 = vmatprep.subr.mxu0 0.0
  %112 = vmatpush2.msra.mxu0 0.0
  %113 = vmatprep.subr.mxu0 0.0
  %114 = vmatpush2.msra.mxu0 0.0
  %115 = vmatprep.subr.mxu0 0.0
  %116 = vmatpush2.msra.mxu0 0.0
  %117 = vmatprep.subr.mxu0 0.0
  %118 = vmatpush2.msra.mxu0 0.0
  %119 = vmatprep.subr.mxu0 0.0
  %120 = vmatpush2.msra.mxu0 0.0
  %121 = vmatprep.subr.mxu0 0.0
  %122 = vmatpush2.msra.mxu0 0.0
  %123 = vmatprep.subr.mxu0 0.0
  %124 = vmatpush2.msra.mxu0 0.0
  %125 = vmatprep.subr.mxu0 0.0
  %126 = vmatpush2.msra.mxu0 0.0
  %127 = vmatprep.subr.mxu0 0.0
  %128 = vmatpush2.msra.mxu0 0.0
  %129 = vmatprep.subr.mxu0 0.0
  %130 = vmatpush2.msra.mxu0 0.0
  %131 = vmatprep.subr.mxu0 0.0
  %132 = vmatpush2.msra.mxu0 0.0
  %133 = vmatprep.subr.mxu0 0.0
  %134 = vmatpush2.msra.mxu0 0.0
  %135 = vmatprep.subr.mxu0 0.0
  %136 = vmatpush2.msra.mxu0 0.0
  %137 = vmatprep.mubr.f32.mxu0 0.0
  %138 = vmatmul.mubr.f32.gmra.mxu0 %v50
  %v139 = vpop.f32.mrf.mxu0
  %v140 = vadd.f32 %v31, %v139
  %v141 = vpop.f32.mrf.mxu0
  %v142 = vadd.f32 %v35, %v141
  %143 = vmatprep.mubr.f32.mxu0 0.0
  %144 = vmatmul.mubr.f32.gmra.mxu0 %v53
  %v145 = vpop.f32.mrf.mxu0
  %v146 = vadd.f32 %v31, %v145
  %v147 = vpop.f32.mrf.mxu0
  %v148 = vadd.f32 %v35, %v147
  %149 = vmatprep.mubr.f32.mxu0 0.0
  %150 = vmatmul.mubr.f32.gmra.mxu0 %v56
  %v151 = vpop.f32.mrf.mxu0
  %v152 = vadd.f32 %v31, %v151
  %v153 = vpop.f32.mrf.mxu0
  %v154 = vadd.f32 %v35, %v153
  %155 = vmatprep.mubr.f32.mxu0 0.0
  %156 = vmatmul.mubr.f32.gmra.mxu0 %v59
  %v157 = vpop.f32.mrf.mxu0
  %v158 = vadd.f32 %v31, %v157
  %v159 = vpop.f32.mrf.mxu0
  %v160 = vadd.f32 %v35, %v159
  %161 = vmatprep.mubr.f32.mxu0 0.0
  %162 = vmatmul.mubr.f32.gmra.mxu0 %v62
  %v163 = vpop.f32.mrf.mxu0
  %v164 = vadd.f32 %v31, %v163
  %v165 = vpop.f32.mrf.mxu0
  %v166 = vadd.f32 %v35, %v165
  %167 = vmatprep.mubr.f32.mxu0 0.0
  %168 = vmatmul.mubr.f32.gmra.mxu0 %v65
  %v169 = vpop.f32.mrf.mxu0
  %v170 = vadd.f32 %v31, %v169
  %v171 = vpop.f32.mrf.mxu0
  %v172 = vadd.f32 %v35, %v171
  %173 = vmatprep.mubr.f32.mxu0 0.0
  %174 = vmatmul.mubr.f32.gmra.mxu0 %v68
  %v175 = vpop.f32.mrf.mxu0
  %v176 = vadd.f32 %v31, %v175
  %v177 = vpop.f32.mrf.mxu0
  %v178 = vadd.f32 %v35, %v177
  %179 = vmatprep.mubr.f32.mxu0 0.0
  %180 = vmatmul.mubr.f32.gmra.mxu0 %v71
  %v181 = vpop.f32.mrf.mxu0
  %v182 = vadd.f32 %v31, %v181
  %v183 = vpop.f32.mrf.mxu0
  %v184 = vadd.f32 %v35, %v183
  %185 = vdwg.mxu0
  %186 = vmatprep.subr.mxu0 0.0
  %187 = vmatpush1.msra.mxu0 0.0
  %188 = vmatprep.subr.mxu0 0.0
  %189 = vmatpush1.msra.mxu0 0.0
  %190 = vmatprep.subr.mxu0 0.0
  %191 = vmatpush1.msra.mxu0 0.0
  %192 = vmatprep.subr.mxu0 0.0
  %193 = vmatpush1.msra.mxu0 0.0
  %194 = vmatprep.subr.mxu0 0.0
  %195 = vmatpush1.msra.mxu0 0.0
  %196 = vmatprep.subr.mxu0 0.0
  %197 = vmatpush1.msra.mxu0 0.0
  %198 = vmatprep.subr.mxu0 0.0
  %199 = vmatpush1.msra.mxu0 0.0
  %200 = vmatprep.subr.mxu0 0.0
  %201 = vmatpush1.msra.mxu0 0.0
  %202 = vmatprep.subr.mxu0 0.0
  %203 = vmatpush1.msra.mxu0 0.0
  %204 = vmatprep.subr.mxu0 0.0
  %205 = vmatpush1.msra.mxu0 0.0
  %206 = vmatprep.subr.mxu0 0.0
  %207 = vmatpush1.msra.mxu0 0.0
  %208 = vmatprep.subr.mxu0 0.0
  %209 = vmatpush1.msra.mxu0 0.0
  %210 = vmatprep.subr.mxu0 0.0
  %211 = vmatpush1.msra.mxu0 0.0
  %212 = vmatprep.subr.mxu0 0.0
  %213 = vmatpush1.msra.mxu0 0.0
  %214 = vmatprep.subr.mxu0 0.0
  %215 = vmatpush1.msra.mxu0 0.0
  %216 = vmatprep.subr.mxu0 %v25
  %217 = vmatpush1.msra.mxu0 %v24
  %218 = vmatprep.subr.mxu0 0.0
  %219 = vmatpush2.msra.mxu0 0.0
  %220 = vmatprep.subr.mxu0 0.0
  %221 = vmatpush2.msra.mxu0 0.0
  %222 = vmatprep.subr.mxu0 0.0
  %223 = vmatpush2.msra.mxu0 0.0
  %224 = vmatprep.subr.mxu0 0.0
  %225 = vmatpush2.msra.mxu0 0.0
  %226 = vmatprep.subr.mxu0 0.0
  %227 = vmatpush2.msra.mxu0 0.0
  %228 = vmatprep.subr.mxu0 0.0
  %229 = vmatpush2.msra.mxu0 0.0
  %230 = vmatprep.subr.mxu0 0.0
  %231 = vmatpush2.msra.mxu0 0.0
  %232 = vmatprep.subr.mxu0 0.0
  %233 = vmatpush2.msra.mxu0 0.0
  %234 = vmatprep.subr.mxu0 0.0
  %235 = vmatpush2.msra.mxu0 0.0
  %236 = vmatprep.subr.mxu0 0.0
  %237 = vmatpush2.msra.mxu0 0.0
  %238 = vmatprep.subr.mxu0 0.0
  %239 = vmatpush2.msra.mxu0 0.0
  %240 = vmatprep.subr.mxu0 0.0
  %241 = vmatpush2.msra.mxu0 0.0
  %242 = vmatprep.subr.mxu0 0.0
  %243 = vmatpush2.msra.mxu0 0.0
  %244 = vmatprep.subr.mxu0 0.0
  %245 = vmatpush2.msra.mxu0 0.0
  %246 = vmatprep.subr.mxu0 0.0
  %247 = vmatpush2.msra.mxu0 0.0
  %248 = vmatprep.subr.mxu0 0.0
  %249 = vmatpush2.msra.mxu0 0.0
  %250 = vmatprep.mubr.f32.mxu0 0.0
  %251 = vmatmul.mubr.f32.gmra.mxu0 %v50
  %v252 = vpop.f32.mrf.mxu0
  %v253 = vadd.f32 %v39, %v252
  %v254 = vpop.f32.mrf.mxu0
  %v255 = vadd.f32 %v43, %v254
  %256 = vmatprep.mubr.f32.mxu0 0.0
  %257 = vmatmul.mubr.f32.gmra.mxu0 %v53
  %v258 = vpop.f32.mrf.mxu0
  %v259 = vadd.f32 %v39, %v258
  %v260 = vpop.f32.mrf.mxu0
  %v261 = vadd.f32 %v43, %v260
  %262 = vmatprep.mubr.f32.mxu0 0.0
  %263 = vmatmul.mubr.f32.gmra.mxu0 %v56
  %v264 = vpop.f32.mrf.mxu0
  %v265 = vadd.f32 %v39, %v264
  %v266 = vpop.f32.mrf.mxu0
  %v267 = vadd.f32 %v43, %v266
  %268 = vmatprep.mubr.f32.mxu0 0.0
  %269 = vmatmul.mubr.f32.gmra.mxu0 %v59
  %v270 = vpop.f32.mrf.mxu0
  %v271 = vadd.f32 %v39, %v270
  %v272 = vpop.f32.mrf.mxu0
  %v273 = vadd.f32 %v43, %v272
  %274 = vmatprep.mubr.f32.mxu0 0.0
  %275 = vmatmul.mubr.f32.gmra.mxu0 %v62
  %v276 = vpop.f32.mrf.mxu0
  %v277 = vadd.f32 %v39, %v276
  %v278 = vpop.f32.mrf.mxu0
  %v279 = vadd.f32 %v43, %v278
  %280 = vmatprep.mubr.f32.mxu0 0.0
  %281 = vmatmul.mubr.f32.gmra.mxu0 %v65
  %v282 = vpop.f32.mrf.mxu0
  %v283 = vadd.f32 %v39, %v282
  %v284 = vpop.f32.mrf.mxu0
  %v285 = vadd.f32 %v43, %v284
  %286 = vmatprep.mubr.f32.mxu0 0.0
  %287 = vmatmul.mubr.f32.gmra.mxu0 %v68
  %v288 = vpop.f32.mrf.mxu0
  %v289 = vadd.f32 %v39, %v288
  %v290 = vpop.f32.mrf.mxu0
  %v291 = vadd.f32 %v43, %v290
  %292 = vmatprep.mubr.f32.mxu0 0.0
  %293 = vmatmul.mubr.f32.gmra.mxu0 %v71
  %v294 = vpop.f32.mrf.mxu0
  %v295 = vadd.f32 %v39, %v294
  %v296 = vpop.f32.mrf.mxu0
  %v297 = vadd.f32 %v43, %v296
  %298 = vdwg.mxu0
  %299 = vst [vmem:[%s3] sm:$0xff] %v140
  %300 = vst [vmem:[%s3 + $0x8] sm:$0xff] %v142
  %301 = vst [vmem:[%s3 + $0x10] sm:$0xff] %v253
  %302 = vst [vmem:[%s3 + $0x18] sm:$0xff] %v255
  %303 = vst [vmem:[%s3 + $0x20] sm:$0xff] %v146
  %304 = vst [vmem:[%s3 + $0x28] sm:$0xff] %v148
  %305 = vst [vmem:[%s3 + $0x30] sm:$0xff] %v259
  %306 = vst [vmem:[%s3 + $0x38] sm:$0xff] %v261
  %307 = vst [vmem:[%s3 + $0x40] sm:$0xff] %v152
  %308 = vst [vmem:[%s3 + $0x48] sm:$0xff] %v154
  %309 = vst [vmem:[%s3 + $0x50] sm:$0xff] %v265
  %310 = vst [vmem:[%s3 + $0x58] sm:$0xff] %v267
  %311 = vst [vmem:[%s3 + $0x60] sm:$0xff] %v158
  %312 = vst [vmem:[%s3 + $0x68] sm:$0xff] %v160
  %313 = vst [vmem:[%s3 + $0x70] sm:$0xff] %v271
  %314 = vst [vmem:[%s3 + $0x78] sm:$0xff] %v273
  %315 = vst [vmem:[%s3 + $0x80] sm:$0xff] %v164
  %316 = vst [vmem:[%s3 + $0x88] sm:$0xff] %v166
  %317 = vst [vmem:[%s3 + $0x90] sm:$0xff] %v277
  %318 = vst [vmem:[%s3 + $0x98] sm:$0xff] %v279
  %319 = vst [vmem:[%s3 + $0xa0] sm:$0xff] %v170
  %320 = vst [vmem:[%s3 + $0xa8] sm:$0xff] %v172
  %321 = vst [vmem:[%s3 + $0xb0] sm:$0xff] %v283
  %322 = vst [vmem:[%s3 + $0xb8] sm:$0xff] %v285
  %323 = vst [vmem:[%s3 + $0xc0] sm:$0xff] %v176
  %324 = vst [vmem:[%s3 + $0xc8] sm:$0xff] %v178
  %325 = vst [vmem:[%s3 + $0xd0] sm:$0xff] %v289
  %326 = vst [vmem:[%s3 + $0xd8] sm:$0xff] %v291
  %327 = vst [vmem:[%s3 + $0xe0] sm:$0xff] %v182
  %328 = vst [vmem:[%s3 + $0xe8] sm:$0xff] %v184
  %329 = vst [vmem:[%s3 + $0xf0] sm:$0xff] %v295
  %330 = vst [vmem:[%s3 + $0xf8] sm:$0xff] %v297
  // Predicated region
  $region14: #{lstm_forward.5} parent=0 // pred_check
    _
  $region15: #{lstm_forward.5} parent=0 // pred_check_branch
    %332 = sbr.rel (0) target = $region17
  $region16: #{lstm_forward.5} parent=0 // pred_region
    _
  $region17: #{lstm_forward.5} parent=0 // pred_fallthru
    _
  // Predicated region
  $region18: #{lstm_forward.5} parent=0 // pred_check
    _
  $region19: #{lstm_forward.5} parent=0 // pred_check_branch
    %334 = sbr.rel (0) target = $region21
  $region20: #{lstm_forward.5} parent=0 // pred_region
    _
  $region21: #{lstm_forward.5} parent=0 // pred_fallthru
    _

// kernel: lstm_forward.7
$region0: #{lstm_forward.7}
  #allocation0 [shape = 'u32[]', space=smem, size = 0x4, offset = 0x4, fixed_abs, tag = 'smem constant byte address 0x4 - core index']
  #allocation1 [shape = 'u32[144,128]{1,0:T(1,128)}', space=vmem, size = 0x12000, scoped, tag = 'internal scratch']
  %s0 = inlined_call_operand.vmem [shape: f32[64,128], index: 0, kind: input, shape index: {}]
  %s1 = inlined_call_operand.vmem [shape: f32[128,512], index: 1, kind: input, shape index: {}]
  %s2 = inlined_call_operand.vmem [shape: f32[1,512], index: 2, kind: input, shape index: {}]
  %s3 = inlined_call_operand.vmem [shape: f32[64,512], index: 3, kind: output, shape index: {}]
  %s4 = sld [smem:[#allocation0]]
  $region22: #{lstm_forward.7} parent=0
    _
  %s6 = ssub.s32 1, %s4
  %s7 = scalar_select 0, %s6, %s4
  // Predicated region
  $region2: #{lstm_forward.7} parent=0 // pred_check
    _
  $region3: #{lstm_forward.7} parent=0 // pred_check_branch
    %9 = sbr.rel (0) target = $region5
  $region4: #{lstm_forward.7} parent=0 // pred_region
    _
  $region5: #{lstm_forward.7} parent=0 // pred_fallthru
    _
  // Predicated region
  $region6: #{lstm_forward.7} parent=0 // pred_check
    _
  $region7: #{lstm_forward.7} parent=0 // pred_check_branch
    %11 = sbr.rel (0) target = $region9
  $region8: #{lstm_forward.7} parent=0 // pred_region
    _
  $region9: #{lstm_forward.7} parent=0 // pred_fallthru
    _
  // Predicated region
  $region10: #{lstm_forward.7} parent=0 // pred_check
    _
  $region11: #{lstm_forward.7} parent=0 // pred_check_branch
    %13 = sbr.rel (0) target = $region13
  $region12: #{lstm_forward.7} parent=0 // pred_region
    _
  $region13: #{lstm_forward.7} parent=0 // pred_fallthru
    _
  %v14 = vld [vmem:[%s0] sm:$0xff]
  %v15 = vld [vmem:[%s0 + $0x8] sm:$0xff]
  %v16 = vld [vmem:[%s0 + $0x10] sm:$0xff]
  %v17 = vld [vmem:[%s0 + $0x18] sm:$0xff]
  %v18 = vld [vmem:[%s0 + $0x20] sm:$0xff]
  %v19 = vld [vmem:[%s0 + $0x28] sm:$0xff]
  %v20 = vld [vmem:[%s0 + $0x30] sm:$0xff]
  %v21 = vld [vmem:[%s0 + $0x38] sm:$0xff]
  %v22 = vld [vmem:[%s1] sm:$0xff]
  %v23 = vld [vmem:[%s1 + $0x8] sm:$0xff]
  %v24 = vld [vmem:[%s1 + $0x10] sm:$0xff]
  %v25 = vld [vmem:[%s1 + $0x18] sm:$0xff]
  %v26 = vld [vmem:[%s1 + $0x20] sm:$0xff]
  %v27 = vld [vmem:[%s1 + $0x28] sm:$0xff]
  %v28 = vld [vmem:[%s1 + $0x30] sm:$0xff]
  %v29 = vld [vmem:[%s1 + $0x38] sm:$0xff]
  %v30 = vld [vmem:[%s1 + $0x40] sm:$0xff]
  %v31 = vld [vmem:[%s1 + $0x48] sm:$0xff]
  %v32 = vld [vmem:[%s1 + $0x50] sm:$0xff]
  %v33 = vld [vmem:[%s1 + $0x58] sm:$0xff]
  %v34 = vld [vmem:[%s1 + $0x60] sm:$0xff]
  %v35 = vld [vmem:[%s1 + $0x68] sm:$0xff]
  %v36 = vld [vmem:[%s1 + $0x70] sm:$0xff]
  %v37 = vld [vmem:[%s1 + $0x78] sm:$0xff]
  %v38 = vld [vmem:[%s1 + $0x80] sm:$0xff]
  %v39 = vld [vmem:[%s1 + $0x88] sm:$0xff]
  %v40 = vld [vmem:[%s1 + $0x90] sm:$0xff]
  %v41 = vld [vmem:[%s1 + $0x98] sm:$0xff]
  %v42 = vld [vmem:[%s1 + $0xa0] sm:$0xff]
  %v43 = vld [vmem:[%s1 + $0xa8] sm:$0xff]
  %v44 = vld [vmem:[%s1 + $0xb0] sm:$0xff]
  %v45 = vld [vmem:[%s1 + $0xb8] sm:$0xff]
  %v46 = vld [vmem:[%s1 + $0xc0] sm:$0xff]
  %v47 = vld [vmem:[%s1 + $0xc8] sm:$0xff]
  %v48 = vld [vmem:[%s1 + $0xd0] sm:$0xff]
  %v49 = vld [vmem:[%s1 + $0xd8] sm:$0xff]
  %v50 = vld [vmem:[%s1 + $0xe0] sm:$0xff]
  %v51 = vld [vmem:[%s1 + $0xe8] sm:$0xff]
  %v52 = vld [vmem:[%s1 + $0xf0] sm:$0xff]
  %v53 = vld [vmem:[%s1 + $0xf8] sm:$0xff]
  %v54 = vld [vmem:[%s1 + $0x100] sm:$0xff]
  %v55 = vld [vmem:[%s1 + $0x108] sm:$0xff]
  %v56 = vld [vmem:[%s1 + $0x110] sm:$0xff]
  %v57 = vld [vmem:[%s1 + $0x118] sm:$0xff]
  %v58 = vld [vmem:[%s1 + $0x120] sm:$0xff]
  %v59 = vld [vmem:[%s1 + $0x128] sm:$0xff]
  %v60 = vld [vmem:[%s1 + $0x130] sm:$0xff]
  %v61 = vld [vmem:[%s1 + $0x138] sm:$0xff]
  %v62 = vld [vmem:[%s1 + $0x140] sm:$0xff]
  %v63 = vld [vmem:[%s1 + $0x148] sm:$0xff]
  %v64 = vld [vmem:[%s1 + $0x150] sm:$0xff]
  %v65 = vld [vmem:[%s1 + $0x158] sm:$0xff]
  %v66 = vld [vmem:[%s1 + $0x160] sm:$0xff]
  %v67 = vld [vmem:[%s1 + $0x168] sm:$0xff]
  %v68 = vld [vmem:[%s1 + $0x170] sm:$0xff]
  %v69 = vld [vmem:[%s1 + $0x178] sm:$0xff]
  %v70 = vld [vmem:[%s1 + $0x180] sm:$0xff]
  %v71 = vld [vmem:[%s1 + $0x188] sm:$0xff]
  %v72 = vld [vmem:[%s1 + $0x190] sm:$0xff]
  %v73 = vld [vmem:[%s1 + $0x198] sm:$0xff]
  %v74 = vld [vmem:[%s1 + $0x1a0] sm:$0xff]
  %v75 = vld [vmem:[%s1 + $0x1a8] sm:$0xff]
  %v76 = vld [vmem:[%s1 + $0x1b0] sm:$0xff]
  %v77 = vld [vmem:[%s1 + $0x1b8] sm:$0xff]
  %v78 = vld [vmem:[%s1 + $0x1c0] sm:$0xff]
  %v79 = vld [vmem:[%s1 + $0x1c8] sm:$0xff]
  %v80 = vld [vmem:[%s1 + $0x1d0] sm:$0xff]
  %v81 = vld [vmem:[%s1 + $0x1d8] sm:$0xff]
  %v82 = vld [vmem:[%s1 + $0x1e0] sm:$0xff]
  %v83 = vld [vmem:[%s1 + $0x1e8] sm:$0xff]
  %v84 = vld [vmem:[%s1 + $0x1f0] sm:$0xff]
  %v85 = vld [vmem:[%s1 + $0x1f8] sm:$0xff]
  %v86 = vld [vmem:[%s2] sm:$0xf]
  %v88 = vlaneseq
  %v89 = vshrl.u32 %v88, 7
  %v90 = vsub.s32 0, %v89
  %v91 = vrot.slane %v86, %v90
  %v92 = vlaneseq
  %v93 = vshrl.u32 %v92, 7
  %v94 = vsub.s32 1, %v93
  %v95 = vrot.slane %v86, %v94
  %v96 = vlaneseq
  %v97 = vshrl.u32 %v96, 7
  %v98 = vsub.s32 2, %v97
  %v99 = vrot.slane %v86, %v98
  %v100 = vlaneseq
  %v101 = vshrl.u32 %v100, 7
  %v102 = vsub.s32 3, %v101
  %v103 = vrot.slane %v86, %v102
  %108 = vmatprep.subr.mxu0 %v83
  %109 = vmatpush1.msra.mxu0 %v82
  %110 = vmatprep.subr.mxu0 %v79
  %111 = vmatpush1.msra.mxu0 %v78
  %112 = vmatprep.subr.mxu0 %v75
  %113 = vmatpush1.msra.mxu0 %v74
  %114 = vmatprep.subr.mxu0 %v71
  %115 = vmatpush1.msra.mxu0 %v70
  %116 = vmatprep.subr.mxu0 %v67
  %117 = vmatpush1.msra.mxu0 %v66
  %118 = vmatprep.subr.mxu0 %v63
  %119 = vmatpush1.msra.mxu0 %v62
  %120 = vmatprep.subr.mxu0 %v59
  %121 = vmatpush1.msra.mxu0 %v58
  %122 = vmatprep.subr.mxu0 %v55
  %123 = vmatpush1.msra.mxu0 %v54
  %124 = vmatprep.subr.mxu0 %v51
  %125 = vmatpush1.msra.mxu0 %v50
  %126 = vmatprep.subr.mxu0 %v47
  %127 = vmatpush1.msra.mxu0 %v46
  %128 = vmatprep.subr.mxu0 %v43
  %129 = vmatpush1.msra.mxu0 %v42
  %130 = vmatprep.subr.mxu0 %v39
  %131 = vmatpush1.msra.mxu0 %v38
  %132 = vmatprep.subr.mxu0 %v35
  %133 = vmatpush1.msra.mxu0 %v34
  %134 = vmatprep.subr.mxu0 %v31
  %135 = vmatpush1.msra.mxu0 %v30
  %136 = vmatprep.subr.mxu0 %v27
  %137 = vmatpush1.msra.mxu0 %v26
  %138 = vmatprep.subr.mxu0 %v23
  %139 = vmatpush1.msra.mxu0 %v22
  %140 = vmatprep.subr.mxu0 0.0
  %141 = vmatpush2.msra.mxu0 0.0
  %142 = vmatprep.subr.mxu0 0.0
  %143 = vmatpush2.msra.mxu0 0.0
  %144 = vmatprep.subr.mxu0 0.0
  %145 = vmatpush2.msra.mxu0 0.0
  %146 = vmatprep.subr.mxu0 0.0
  %147 = vmatpush2.msra.mxu0 0.0
  %148 = vmatprep.subr.mxu0 0.0
  %149 = vmatpush2.msra.mxu0 0.0
  %150 = vmatprep.subr.mxu0 0.0
  %151 = vmatpush2.msra.mxu0 0.0
  %152 = vmatprep.subr.mxu0 0.0
  %153 = vmatpush2.msra.mxu0 0.0
  %154 = vmatprep.subr.mxu0 0.0
  %155 = vmatpush2.msra.mxu0 0.0
  %156 = vmatprep.subr.mxu0 0.0
  %157 = vmatpush2.msra.mxu0 0.0
  %158 = vmatprep.subr.mxu0 0.0
  %159 = vmatpush2.msra.mxu0 0.0
  %160 = vmatprep.subr.mxu0 0.0
  %161 = vmatpush2.msra.mxu0 0.0
  %162 = vmatprep.subr.mxu0 0.0
  %163 = vmatpush2.msra.mxu0 0.0
  %164 = vmatprep.subr.mxu0 0.0
  %165 = vmatpush2.msra.mxu0 0.0
  %166 = vmatprep.subr.mxu0 0.0
  %167 = vmatpush2.msra.mxu0 0.0
  %168 = vmatprep.subr.mxu0 0.0
  %169 = vmatpush2.msra.mxu0 0.0
  %170 = vmatprep.subr.mxu0 0.0
  %171 = vmatpush2.msra.mxu0 0.0
  %172 = vmatprep.mubr.f32.mxu0 0.0
  %173 = vmatmul.mubr.f32.gmra.mxu0 %v14
  %v174 = vpop.f32.mrf.mxu0
  %v175 = vadd.f32 %v91, %v174
  %v176 = vpop.f32.mrf.mxu0
  %v177 = vadd.f32 %v95, %v176
  %178 = vmatprep.mubr.f32.mxu0 0.0
  %179 = vmatmul.mubr.f32.gmra.mxu0 %v15
  %v180 = vpop.f32.mrf.mxu0
  %v181 = vadd.f32 %v91, %v180
  %v182 = vpop.f32.mrf.mxu0
  %v183 = vadd.f32 %v95, %v182
  %184 = vmatprep.mubr.f32.mxu0 0.0
  %185 = vmatmul.mubr.f32.gmra.mxu0 %v16
  %v186 = vpop.f32.mrf.mxu0
  %v187 = vadd.f32 %v91, %v186
  %v188 = vpop.f32.mrf.mxu0
  %v189 = vadd.f32 %v95, %v188
  %190 = vmatprep.mubr.f32.mxu0 0.0
  %191 = vmatmul.mubr.f32.gmra.mxu0 %v17
  %v192 = vpop.f32.mrf.mxu0
  %v193 = vadd.f32 %v91, %v192
  %v194 = vpop.f32.mrf.mxu0
  %v195 = vadd.f32 %v95, %v194
  %196 = vmatprep.mubr.f32.mxu0 0.0
  %197 = vmatmul.mubr.f32.gmra.mxu0 %v18
  %v198 = vpop.f32.mrf.mxu0
  %v199 = vadd.f32 %v91, %v198
  %v200 = vpop.f32.mrf.mxu0
  %v201 = vadd.f32 %v95, %v200
  %202 = vmatprep.mubr.f32.mxu0 0.0
  %203 = vmatmul.mubr.f32.gmra.mxu0 %v19
  %v204 = vpop.f32.mrf.mxu0
  %v205 = vadd.f32 %v91, %v204
  %v206 = vpop.f32.mrf.mxu0
  %v207 = vadd.f32 %v95, %v206
  %208 = vmatprep.mubr.f32.mxu0 0.0
  %209 = vmatmul.mubr.f32.gmra.mxu0 %v20
  %v210 = vpop.f32.mrf.mxu0
  %v211 = vadd.f32 %v91, %v210
  %v212 = vpop.f32.mrf.mxu0
  %v213 = vadd.f32 %v95, %v212
  %214 = vmatprep.mubr.f32.mxu0 0.0
  %215 = vmatmul.mubr.f32.gmra.mxu0 %v21
  %v216 = vpop.f32.mrf.mxu0
  %v217 = vadd.f32 %v91, %v216
  %v218 = vpop.f32.mrf.mxu0
  %v219 = vadd.f32 %v95, %v218
  %220 = vdwg.mxu0
  %221 = vmatprep.subr.mxu0 %v85
  %222 = vmatpush1.msra.mxu0 %v84
  %223 = vmatprep.subr.mxu0 %v81
  %224 = vmatpush1.msra.mxu0 %v80
  %225 = vmatprep.subr.mxu0 %v77
  %226 = vmatpush1.msra.mxu0 %v76
  %227 = vmatprep.subr.mxu0 %v73
  %228 = vmatpush1.msra.mxu0 %v72
  %229 = vmatprep.subr.mxu0 %v69
  %230 = vmatpush1.msra.mxu0 %v68
  %231 = vmatprep.subr.mxu0 %v65
  %232 = vmatpush1.msra.mxu0 %v64
  %233 = vmatprep.subr.mxu0 %v61
  %234 = vmatpush1.msra.mxu0 %v60
  %235 = vmatprep.subr.mxu0 %v57
  %236 = vmatpush1.msra.mxu0 %v56
  %237 = vmatprep.subr.mxu0 %v53
  %238 = vmatpush1.msra.mxu0 %v52
  %239 = vmatprep.subr.mxu0 %v49
  %240 = vmatpush1.msra.mxu0 %v48
  %241 = vmatprep.subr.mxu0 %v45
  %242 = vmatpush1.msra.mxu0 %v44
  %243 = vmatprep.subr.mxu0 %v41
  %244 = vmatpush1.msra.mxu0 %v40
  %245 = vmatprep.subr.mxu0 %v37
  %246 = vmatpush1.msra.mxu0 %v36
  %247 = vmatprep.subr.mxu0 %v33
  %248 = vmatpush1.msra.mxu0 %v32
  %249 = vmatprep.subr.mxu0 %v29
  %250 = vmatpush1.msra.mxu0 %v28
  %251 = vmatprep.subr.mxu0 %v25
  %252 = vmatpush1.msra.mxu0 %v24
  %253 = vmatprep.subr.mxu0 0.0
  %254 = vmatpush2.msra.mxu0 0.0
  %255 = vmatprep.subr.mxu0 0.0
  %256 = vmatpush2.msra.mxu0 0.0
  %257 = vmatprep.subr.mxu0 0.0
  %258 = vmatpush2.msra.mxu0 0.0
  %259 = vmatprep.subr.mxu0 0.0
  %260 = vmatpush2.msra.mxu0 0.0
  %261 = vmatprep.subr.mxu0 0.0
  %262 = vmatpush2.msra.mxu0 0.0
  %263 = vmatprep.subr.mxu0 0.0
  %264 = vmatpush2.msra.mxu0 0.0
  %265 = vmatprep.subr.mxu0 0.0
  %266 = vmatpush2.msra.mxu0 0.0
  %267 = vmatprep.subr.mxu0 0.0
  %268 = vmatpush2.msra.mxu0 0.0
  %269 = vmatprep.subr.mxu0 0.0
  %270 = vmatpush2.msra.mxu0 0.0
  %271 = vmatprep.subr.mxu0 0.0
  %272 = vmatpush2.msra.mxu0 0.0
  %273 = vmatprep.subr.mxu0 0.0
  %274 = vmatpush2.msra.mxu0 0.0
  %275 = vmatprep.subr.mxu0 0.0
  %276 = vmatpush2.msra.mxu0 0.0
  %277 = vmatprep.subr.mxu0 0.0
  %278 = vmatpush2.msra.mxu0 0.0
  %279 = vmatprep.subr.mxu0 0.0
  %280 = vmatpush2.msra.mxu0 0.0
  %281 = vmatprep.subr.mxu0 0.0
  %282 = vmatpush2.msra.mxu0 0.0
  %283 = vmatprep.subr.mxu0 0.0
  %284 = vmatpush2.msra.mxu0 0.0
  %285 = vmatprep.mubr.f32.mxu0 0.0
  %286 = vmatmul.mubr.f32.gmra.mxu0 %v14
  %v287 = vpop.f32.mrf.mxu0
  %v288 = vadd.f32 %v99, %v287
  %v289 = vpop.f32.mrf.mxu0
  %v290 = vadd.f32 %v103, %v289
  %291 = vmatprep.mubr.f32.mxu0 0.0
  %292 = vmatmul.mubr.f32.gmra.mxu0 %v15
  %v293 = vpop.f32.mrf.mxu0
  %v294 = vadd.f32 %v99, %v293
  %v295 = vpop.f32.mrf.mxu0
  %v296 = vadd.f32 %v103, %v295
  %297 = vmatprep.mubr.f32.mxu0 0.0
  %298 = vmatmul.mubr.f32.gmra.mxu0 %v16
  %v299 = vpop.f32.mrf.mxu0
  %v300 = vadd.f32 %v99, %v299
  %v301 = vpop.f32.mrf.mxu0
  %v302 = vadd.f32 %v103, %v301
  %303 = vmatprep.mubr.f32.mxu0 0.0
  %304 = vmatmul.mubr.f32.gmra.mxu0 %v17
  %v305 = vpop.f32.mrf.mxu0
  %v306 = vadd.f32 %v99, %v305
  %v307 = vpop.f32.mrf.mxu0
  %v308 = vadd.f32 %v103, %v307
  %309 = vmatprep.mubr.f32.mxu0 0.0
  %310 = vmatmul.mubr.f32.gmra.mxu0 %v18
  %v311 = vpop.f32.mrf.mxu0
  %v312 = vadd.f32 %v99, %v311
  %v313 = vpop.f32.mrf.mxu0
  %v314 = vadd.f32 %v103, %v313
  %315 = vmatprep.mubr.f32.mxu0 0.0
  %316 = vmatmul.mubr.f32.gmra.mxu0 %v19
  %v317 = vpop.f32.mrf.mxu0
  %v318 = vadd.f32 %v99, %v317
  %v319 = vpop.f32.mrf.mxu0
  %v320 = vadd.f32 %v103, %v319
  %321 = vmatprep.mubr.f32.mxu0 0.0
  %322 = vmatmul.mubr.f32.gmra.mxu0 %v20
  %v323 = vpop.f32.mrf.mxu0
  %v324 = vadd.f32 %v99, %v323
  %v325 = vpop.f32.mrf.mxu0
  %v326 = vadd.f32 %v103, %v325
  %327 = vmatprep.mubr.f32.mxu0 0.0
  %328 = vmatmul.mubr.f32.gmra.mxu0 %v21
  %v329 = vpop.f32.mrf.mxu0
  %v330 = vadd.f32 %v99, %v329
  %v331 = vpop.f32.mrf.mxu0
  %v332 = vadd.f32 %v103, %v331
  %333 = vdwg.mxu0
  %334 = vst [vmem:[%s3] sm:$0xff] %v175
  %335 = vst [vmem:[%s3 + $0x8] sm:$0xff] %v177
  %336 = vst [vmem:[%s3 + $0x10] sm:$0xff] %v288
  %337 = vst [vmem:[%s3 + $0x18] sm:$0xff] %v290
  %338 = vst [vmem:[%s3 + $0x20] sm:$0xff] %v181
  %339 = vst [vmem:[%s3 + $0x28] sm:$0xff] %v183
  %340 = vst [vmem:[%s3 + $0x30] sm:$0xff] %v294
  %341 = vst [vmem:[%s3 + $0x38] sm:$0xff] %v296
  %342 = vst [vmem:[%s3 + $0x40] sm:$0xff] %v187
  %343 = vst [vmem:[%s3 + $0x48] sm:$0xff] %v189
  %344 = vst [vmem:[%s3 + $0x50] sm:$0xff] %v300
  %345 = vst [vmem:[%s3 + $0x58] sm:$0xff] %v302
  %346 = vst [vmem:[%s3 + $0x60] sm:$0xff] %v193
  %347 = vst [vmem:[%s3 + $0x68] sm:$0xff] %v195
  %348 = vst [vmem:[%s3 + $0x70] sm:$0xff] %v306
  %349 = vst [vmem:[%s3 + $0x78] sm:$0xff] %v308
  %350 = vst [vmem:[%s3 + $0x80] sm:$0xff] %v199
  %351 = vst [vmem:[%s3 + $0x88] sm:$0xff] %v201
  %352 = vst [vmem:[%s3 + $0x90] sm:$0xff] %v312
  %353 = vst [vmem:[%s3 + $0x98] sm:$0xff] %v314
  %354 = vst [vmem:[%s3 + $0xa0] sm:$0xff] %v205
  %355 = vst [vmem:[%s3 + $0xa8] sm:$0xff] %v207
  %356 = vst [vmem:[%s3 + $0xb0] sm:$0xff] %v318
  %357 = vst [vmem:[%s3 + $0xb8] sm:$0xff] %v320
  %358 = vst [vmem:[%s3 + $0xc0] sm:$0xff] %v211
  %359 = vst [vmem:[%s3 + $0xc8] sm:$0xff] %v213
  %360 = vst [vmem:[%s3 + $0xd0] sm:$0xff] %v324
  %361 = vst [vmem:[%s3 + $0xd8] sm:$0xff] %v326
  %362 = vst [vmem:[%s3 + $0xe0] sm:$0xff] %v217
  %363 = vst [vmem:[%s3 + $0xe8] sm:$0xff] %v219
  %364 = vst [vmem:[%s3 + $0xf0] sm:$0xff] %v330
  %365 = vst [vmem:[%s3 + $0xf8] sm:$0xff] %v332
  // Predicated region
  $region14: #{lstm_forward.7} parent=0 // pred_check
    _
  $region15: #{lstm_forward.7} parent=0 // pred_check_branch
    %367 = sbr.rel (0) target = $region17
  $region16: #{lstm_forward.7} parent=0 // pred_region
    _
  $region17: #{lstm_forward.7} parent=0 // pred_fallthru
    _
  // Predicated region
  $region18: #{lstm_forward.7} parent=0 // pred_check
    _
  $region19: #{lstm_forward.7} parent=0 // pred_check_branch
    %369 = sbr.rel (0) target = $region21
  $region20: #{lstm_forward.7} parent=0 // pred_region
    _
  $region21: #{lstm_forward.7} parent=0 // pred_fallthru
    _

// kernel: lstm_forward.9
$region0: #{lstm_forward.9}
  #allocation0 [shape = 'u32[]', space=smem, size = 0x4, offset = 0x4, fixed_abs, tag = 'smem constant byte address 0x4 - core index']
  #allocation1 [shape = 'u32[144,128]{1,0:T(1,128)}', space=vmem, size = 0x12000, scoped, tag = 'internal scratch']
  %s0 = inlined_call_operand.vmem [shape: f32[8,128], index: 0, kind: input, shape index: {}]
  %s1 = inlined_call_operand.vmem [shape: f32[128,4], index: 1, kind: input, shape index: {}]
  %s2 = inlined_call_operand.vmem [shape: f32[1,4], index: 2, kind: input, shape index: {}]
  %s3 = inlined_call_operand.vmem [shape: f32[8,4], index: 3, kind: output, shape index: {}]
  %s4 = sld [smem:[#allocation0]]
  $region22: #{lstm_forward.9} parent=0
    _
  %s6 = ssub.s32 1, %s4
  %s7 = scalar_select 0, %s6, %s4
  // Predicated region
  $region2: #{lstm_forward.9} parent=0 // pred_check
    _
  $region3: #{lstm_forward.9} parent=0 // pred_check_branch
    %9 = sbr.rel (0) target = $region5
  $region4: #{lstm_forward.9} parent=0 // pred_region
    _
  $region5: #{lstm_forward.9} parent=0 // pred_fallthru
    _
  // Predicated region
  $region6: #{lstm_forward.9} parent=0 // pred_check
    _
  $region7: #{lstm_forward.9} parent=0 // pred_check_branch
    %11 = sbr.rel (0) target = $region9
  $region8: #{lstm_forward.9} parent=0 // pred_region
    _
  $region9: #{lstm_forward.9} parent=0 // pred_fallthru
    _
  // Predicated region
  $region10: #{lstm_forward.9} parent=0 // pred_check
    _
  $region11: #{lstm_forward.9} parent=0 // pred_check_branch
    %13 = sbr.rel (0) target = $region13
  $region12: #{lstm_forward.9} parent=0 // pred_region
    _
  $region13: #{lstm_forward.9} parent=0 // pred_fallthru
    _
  %v14 = vld [vmem:[%s0] sm:$0xff]
  %v15 = vld [vmem:[%s1] sm:$0xff]
  %v16 = vld [vmem:[%s1 + $0x8] sm:$0xff]
  %v17 = vld [vmem:[%s1 + $0x10] sm:$0xff]
  %v18 = vld [vmem:[%s1 + $0x18] sm:$0xff]
  %v19 = vld [vmem:[%s1 + $0x20] sm:$0xff]
  %v20 = vld [vmem:[%s1 + $0x28] sm:$0xff]
  %v21 = vld [vmem:[%s1 + $0x30] sm:$0xff]
  %v22 = vld [vmem:[%s1 + $0x38] sm:$0xff]
  %v23 = vld [vmem:[%s1 + $0x40] sm:$0xff]
  %v24 = vld [vmem:[%s1 + $0x48] sm:$0xff]
  %v25 = vld [vmem:[%s1 + $0x50] sm:$0xff]
  %v26 = vld [vmem:[%s1 + $0x58] sm:$0xff]
  %v27 = vld [vmem:[%s1 + $0x60] sm:$0xff]
  %v28 = vld [vmem:[%s1 + $0x68] sm:$0xff]
  %v29 = vld [vmem:[%s1 + $0x70] sm:$0xff]
  %v30 = vld [vmem:[%s1 + $0x78] sm:$0xff]
  %v31 = vld [vmem:[%s2] sm:$0x1]
  %v33 = vlaneseq
  %v34 = vshrl.u32 %v33, 7
  %v35 = vsub.s32 0, %v34
  %v36 = vrot.slane %v31, %v35
  %38 = vmatprep.subr.mxu0 0.0
  %39 = vmatpush1.msra.mxu0 %v30
  %40 = vmatprep.subr.mxu0 0.0
  %41 = vmatpush1.msra.mxu0 %v29
  %42 = vmatprep.subr.mxu0 0.0
  %43 = vmatpush1.msra.mxu0 %v28
  %44 = vmatprep.subr.mxu0 0.0
  %45 = vmatpush1.msra.mxu0 %v27
  %46 = vmatprep.subr.mxu0 0.0
  %47 = vmatpush1.msra.mxu0 %v26
  %48 = vmatprep.subr.mxu0 0.0
  %49 = vmatpush1.msra.mxu0 %v25
  %50 = vmatprep.subr.mxu0 0.0
  %51 = vmatpush1.msra.mxu0 %v24
  %52 = vmatprep.subr.mxu0 0.0
  %53 = vmatpush1.msra.mxu0 %v23
  %54 = vmatprep.subr.mxu0 0.0
  %55 = vmatpush1.msra.mxu0 %v22
  %56 = vmatprep.subr.mxu0 0.0
  %57 = vmatpush1.msra.mxu0 %v21
  %58 = vmatprep.subr.mxu0 0.0
  %59 = vmatpush1.msra.mxu0 %v20
  %60 = vmatprep.subr.mxu0 0.0
  %61 = vmatpush1.msra.mxu0 %v19
  %62 = vmatprep.subr.mxu0 0.0
  %63 = vmatpush1.msra.mxu0 %v18
  %64 = vmatprep.subr.mxu0 0.0
  %65 = vmatpush1.msra.mxu0 %v17
  %66 = vmatprep.subr.mxu0 0.0
  %67 = vmatpush1.msra.mxu0 %v16
  %68 = vmatprep.subr.mxu0 0.0
  %69 = vmatpush1.msra.mxu0 %v15
  %70 = vmatprep.subr.mxu0 0.0
  %71 = vmatpush2.msra.mxu0 0.0
  %72 = vmatprep.subr.mxu0 0.0
  %73 = vmatpush2.msra.mxu0 0.0
  %74 = vmatprep.subr.mxu0 0.0
  %75 = vmatpush2.msra.mxu0 0.0
  %76 = vmatprep.subr.mxu0 0.0
  %77 = vmatpush2.msra.mxu0 0.0
  %78 = vmatprep.subr.mxu0 0.0
  %79 = vmatpush2.msra.mxu0 0.0
  %80 = vmatprep.subr.mxu0 0.0
  %81 = vmatpush2.msra.mxu0 0.0
  %82 = vmatprep.subr.mxu0 0.0
  %83 = vmatpush2.msra.mxu0 0.0
  %84 = vmatprep.subr.mxu0 0.0
  %85 = vmatpush2.msra.mxu0 0.0
  %86 = vmatprep.subr.mxu0 0.0
  %87 = vmatpush2.msra.mxu0 0.0
  %88 = vmatprep.subr.mxu0 0.0
  %89 = vmatpush2.msra.mxu0 0.0
  %90 = vmatprep.subr.mxu0 0.0
  %91 = vmatpush2.msra.mxu0 0.0
  %92 = vmatprep.subr.mxu0 0.0
  %93 = vmatpush2.msra.mxu0 0.0
  %94 = vmatprep.subr.mxu0 0.0
  %95 = vmatpush2.msra.mxu0 0.0
  %96 = vmatprep.subr.mxu0 0.0
  %97 = vmatpush2.msra.mxu0 0.0
  %98 = vmatprep.subr.mxu0 0.0
  %99 = vmatpush2.msra.mxu0 0.0
  %100 = vmatprep.subr.mxu0 0.0
  %101 = vmatpush2.msra.mxu0 0.0
  %102 = vmatprep.mubr.f32.mxu0 0.0
  %103 = vmatmul.mubr.f32.gmra.mxu0 %v14
  %v104 = vpop.f32.mrf.mxu0
  %v105 = vadd.f32 %v36, %v104
  %v106 = vpop.f32.mrf.mxu0
  %107 = vdwg.mxu0
  %vm108 = vcmask 31744
  %v109 = vsel %vm108, %v105, -inf
  %110 = vmax.xlane.f32.xlu0 %v109
  %v111 = vpop.xlane.xlu0 %110
  %v112 = vsub.f32 %v105, %v111
  %v113 = vmul.f32 %v112, 1.442695
  %v114 = vpow.pop %v113
  %v115 = vsel %vm108, %v114, 0.0
  %116 = vadd.xlane.f32.xlu0 %v115
  %v117 = vpop.xlane.xlu0 %116
  %v118 = vrcp.pop %v117
  %v119 = vmul.f32 %v114, %v118
  %120 = vst.msk [vmem:[%s3] sm:$0xff] %vm108, %v119
  // Predicated region
  $region14: #{lstm_forward.9} parent=0 // pred_check
    _
  $region15: #{lstm_forward.9} parent=0 // pred_check_branch
    %122 = sbr.rel (0) target = $region17
  $region16: #{lstm_forward.9} parent=0 // pred_region
    _
  $region17: #{lstm_forward.9} parent=0 // pred_fallthru
    _
  // Predicated region
  $region18: #{lstm_forward.9} parent=0 // pred_check
    _
  $region19: #{lstm_forward.9} parent=0 // pred_check_branch
    %124 = sbr.rel (0) target = $region21
  $region20: #{lstm_forward.9} parent=0 // pred_region
    _
  $region21: #{lstm_forward.9} parent=0 // pred_fallthru
    _

// kernel: lstm_forward.8
$region0: #{lstm_forward.8}
  #allocation0 [shape = 'u32[]', space=smem, size = 0x4, offset = 0x4, fixed_abs, tag = 'smem constant byte address 0x4 - core index']
  #allocation1 [shape = 'u32[144,128]{1,0:T(1,128)}', space=vmem, size = 0x12000, scoped, tag = 'internal scratch']
  #allocation2 [shape = 'f32[8,128]{1,0:T(8,128)}', space=vmem, size = 0x1000, scoped, tag = 'scratch operand']
  #allocation3 [shape = 'f32[8,128]{1,0:T(8,128)}', space=vmem, size = 0x1000, scoped, tag = 'scratch operand']
  %s0 = inlined_call_operand.vmem [shape: f32[8,8,512], index: 0, kind: input, shape index: {}]
  %s1 = inlined_call_operand.vmem [shape: f32[128,512], index: 1, kind: input, shape index: {}]
  %s2 = inlined_call_operand.vmem [shape: f32[8,128], index: 2, kind: output, shape index: {}]
  %s3 = sld [smem:[#allocation0]]
  $region22: #{lstm_forward.8} parent=0
    _
  %s5 = ssub.s32 1, %s3
  %s6 = scalar_select 0, %s5, %s3
  // Predicated region
  $region2: #{lstm_forward.8} parent=0 // pred_check
    _
  $region3: #{lstm_forward.8} parent=0 // pred_check_branch
    %8 = sbr.rel (0) target = $region5
  $region4: #{lstm_forward.8} parent=0 // pred_region
    _
  $region5: #{lstm_forward.8} parent=0 // pred_fallthru
    _
  // Predicated region
  $region6: #{lstm_forward.8} parent=0 // pred_check
    _
  $region7: #{lstm_forward.8} parent=0 // pred_check_branch
    %10 = sbr.rel (0) target = $region9
  $region8: #{lstm_forward.8} parent=0 // pred_region
    _
  $region9: #{lstm_forward.8} parent=0 // pred_fallthru
    _
  %p11 = scmp.eq.s32.totalorder 0, 0
  // Predicated region
  $region10: #{lstm_forward.8} parent=0 // pred_check
    %p12 = pneg %p11
  $region11: #{lstm_forward.8} parent=0 // pred_check_branch
    %14 = sbr.rel (%p12) target = $region13
  $region12: #{lstm_forward.8} parent=0 // pred_region
    %15 = vst [vmem:[#allocation2] sm:$0xff] 0.0
    %16 = vst [vmem:[#allocation3] sm:$0xff] 0.0
  $region13: #{lstm_forward.8} parent=0 // pred_fallthru
    _
  %v17 = vld [vmem:[%s0] sm:$0xff]
  %v18 = vld [vmem:[%s0 + $0x8] sm:$0xff]
  %v19 = vld [vmem:[%s0 + $0x10] sm:$0xff]
  %v20 = vld [vmem:[%s0 + $0x18] sm:$0xff]
  %v21 = vld [vmem:[#allocation2] sm:$0xff]
  %v22 = vld [vmem:[%s1] sm:$0xff]
  %v23 = vld [vmem:[%s1 + $0x8] sm:$0xff]
  %v24 = vld [vmem:[%s1 + $0x10] sm:$0xff]
  %v25 = vld [vmem:[%s1 + $0x18] sm:$0xff]
  %v26 = vld [vmem:[%s1 + $0x20] sm:$0xff]
  %v27 = vld [vmem:[%s1 + $0x28] sm:$0xff]
  %v28 = vld [vmem:[%s1 + $0x30] sm:$0xff]
  %v29 = vld [vmem:[%s1 + $0x38] sm:$0xff]
  %v30 = vld [vmem:[%s1 + $0x40] sm:$0xff]
  %v31 = vld [vmem:[%s1 + $0x48] sm:$0xff]
  %v32 = vld [vmem:[%s1 + $0x50] sm:$0xff]
  %v33 = vld [vmem:[%s1 + $0x58] sm:$0xff]
  %v34 = vld [vmem:[%s1 + $0x60] sm:$0xff]
  %v35 = vld [vmem:[%s1 + $0x68] sm:$0xff]
  %v36 = vld [vmem:[%s1 + $0x70] sm:$0xff]
  %v37 = vld [vmem:[%s1 + $0x78] sm:$0xff]
  %v38 = vld [vmem:[%s1 + $0x80] sm:$0xff]
  %v39 = vld [vmem:[%s1 + $0x88] sm:$0xff]
  %v40 = vld [vmem:[%s1 + $0x90] sm:$0xff]
  %v41 = vld [vmem:[%s1 + $0x98] sm:$0xff]
  %v42 = vld [vmem:[%s1 + $0xa0] sm:$0xff]
  %v43 = vld [vmem:[%s1 + $0xa8] sm:$0xff]
  %v44 = vld [vmem:[%s1 + $0xb0] sm:$0xff]
  %v45 = vld [vmem:[%s1 + $0xb8] sm:$0xff]
  %v46 = vld [vmem:[%s1 + $0xc0] sm:$0xff]
  %v47 = vld [vmem:[%s1 + $0xc8] sm:$0xff]
  %v48 = vld [vmem:[%s1 + $0xd0] sm:$0xff]
  %v49 = vld [vmem:[%s1 + $0xd8] sm:$0xff]
  %v50 = vld [vmem:[%s1 + $0xe0] sm:$0xff]
  %v51 = vld [vmem:[%s1 + $0xe8] sm:$0xff]
  %v52 = vld [vmem:[%s1 + $0xf0] sm:$0xff]
  %v53 = vld [vmem:[%s1 + $0xf8] sm:$0xff]
  %v54 = vld [vmem:[%s1 + $0x100] sm:$0xff]
  %v55 = vld [vmem:[%s1 + $0x108] sm:$0xff]
  %v56 = vld [vmem:[%s1 + $0x110] sm:$0xff]
  %v57 = vld [vmem:[%s1 + $0x118] sm:$0xff]
  %v58 = vld [vmem:[%s1 + $0x120] sm:$0xff]
  %v59 = vld [vmem:[%s1 + $0x128] sm:$0xff]
  %v60 = vld [vmem:[%s1 + $0x130] sm:$0xff]
  %v61 = vld [vmem:[%s1 + $0x138] sm:$0xff]
  %v62 = vld [vmem:[%s1 + $0x140] sm:$0xff]
  %v63 = vld [vmem:[%s1 + $0x148] sm:$0xff]
  %v64 = vld [vmem:[%s1 + $0x150] sm:$0xff]
  %v65 = vld [vmem:[%s1 + $0x158] sm:$0xff]
  %v66 = vld [vmem:[%s1 + $0x160] sm:$0xff]
  %v67 = vld [vmem:[%s1 + $0x168] sm:$0xff]
  %v68 = vld [vmem:[%s1 + $0x170] sm:$0xff]
  %v69 = vld [vmem:[%s1 + $0x178] sm:$0xff]
  %v70 = vld [vmem:[%s1 + $0x180] sm:$0xff]
  %v71 = vld [vmem:[%s1 + $0x188] sm:$0xff]
  %v72 = vld [vmem:[%s1 + $0x190] sm:$0xff]
  %v73 = vld [vmem:[%s1 + $0x198] sm:$0xff]
  %v74 = vld [vmem:[%s1 + $0x1a0] sm:$0xff]
  %v75 = vld [vmem:[%s1 + $0x1a8] sm:$0xff]
  %v76 = vld [vmem:[%s1 + $0x1b0] sm:$0xff]
  %v77 = vld [vmem:[%s1 + $0x1b8] sm:$0xff]
  %v78 = vld [vmem:[%s1 + $0x1c0] sm:$0xff]
  %v79 = vld [vmem:[%s1 + $0x1c8] sm:$0xff]
  %v80 = vld [vmem:[%s1 + $0x1d0] sm:$0xff]
  %v81 = vld [vmem:[%s1 + $0x1d8] sm:$0xff]
  %v82 = vld [vmem:[%s1 + $0x1e0] sm:$0xff]
  %v83 = vld [vmem:[%s1 + $0x1e8] sm:$0xff]
  %v84 = vld [vmem:[%s1 + $0x1f0] sm:$0xff]
  %v85 = vld [vmem:[%s1 + $0x1f8] sm:$0xff]
  %86 = vmatprep.subr.mxu0 %v83
  %87 = vmatpush1.msra.mxu0 %v82
  %88 = vmatprep.subr.mxu0 %v79
  %89 = vmatpush1.msra.mxu0 %v78
  %90 = vmatprep.subr.mxu0 %v75
  %91 = vmatpush1.msra.mxu0 %v74
  %92 = vmatprep.subr.mxu0 %v71
  %93 = vmatpush1.msra.mxu0 %v70
  %94 = vmatprep.subr.mxu0 %v67
  %95 = vmatpush1.msra.mxu0 %v66
  %96 = vmatprep.subr.mxu0 %v63
  %97 = vmatpush1.msra.mxu0 %v62
  %98 = vmatprep.subr.mxu0 %v59
  %99 = vmatpush1.msra.mxu0 %v58
  %100 = vmatprep.subr.mxu0 %v55
  %101 = vmatpush1.msra.mxu0 %v54
  %102 = vmatprep.subr.mxu0 %v51
  %103 = vmatpush1.msra.mxu0 %v50
  %104 = vmatprep.subr.mxu0 %v47
  %105 = vmatpush1.msra.mxu0 %v46
  %106 = vmatprep.subr.mxu0 %v43
  %107 = vmatpush1.msra.mxu0 %v42
  %108 = vmatprep.subr.mxu0 %v39
  %109 = vmatpush1.msra.mxu0 %v38
  %110 = vmatprep.subr.mxu0 %v35
  %111 = vmatpush1.msra.mxu0 %v34
  %112 = vmatprep.subr.mxu0 %v31
  %113 = vmatpush1.msra.mxu0 %v30
  %114 = vmatprep.subr.mxu0 %v27
  %115 = vmatpush1.msra.mxu0 %v26
  %116 = vmatprep.subr.mxu0 %v23
  %117 = vmatpush1.msra.mxu0 %v22
  %118 = vmatprep.subr.mxu0 0.0
  %119 = vmatpush2.msra.mxu0 0.0
  %120 = vmatprep.subr.mxu0 0.0
  %121 = vmatpush2.msra.mxu0 0.0
  %122 = vmatprep.subr.mxu0 0.0
  %123 = vmatpush2.msra.mxu0 0.0
  %124 = vmatprep.subr.mxu0 0.0
  %125 = vmatpush2.msra.mxu0 0.0
  %126 = vmatprep.subr.mxu0 0.0
  %127 = vmatpush2.msra.mxu0 0.0
  %128 = vmatprep.subr.mxu0 0.0
  %129 = vmatpush2.msra.mxu0 0.0
  %130 = vmatprep.subr.mxu0 0.0
  %131 = vmatpush2.msra.mxu0 0.0
  %132 = vmatprep.subr.mxu0 0.0
  %133 = vmatpush2.msra.mxu0 0.0
  %134 = vmatprep.subr.mxu0 0.0
  %135 = vmatpush2.msra.mxu0 0.0
  %136 = vmatprep.subr.mxu0 0.0
  %137 = vmatpush2.msra.mxu0 0.0
  %138 = vmatprep.subr.mxu0 0.0
  %139 = vmatpush2.msra.mxu0 0.0
  %140 = vmatprep.subr.mxu0 0.0
  %141 = vmatpush2.msra.mxu0 0.0
  %142 = vmatprep.subr.mxu0 0.0
  %143 = vmatpush2.msra.mxu0 0.0
  %144 = vmatprep.subr.mxu0 0.0
  %145 = vmatpush2.msra.mxu0 0.0
  %146 = vmatprep.subr.mxu0 0.0
  %147 = vmatpush2.msra.mxu0 0.0
  %148 = vmatprep.subr.mxu0 0.0
  %149 = vmatpush2.msra.mxu0 0.0
  %150 = vmatprep.mubr.f32.mxu0 0.0
  %151 = vmatmul.mubr.f32.gmra.mxu0 %v21
  %v152 = vpop.f32.mrf.mxu0
  %v153 = vadd.f32 0.0, %v152
  %v154 = vpop.f32.mrf.mxu0
  %v155 = vadd.f32 0.0, %v154
  %156 = vdwg.mxu0
  %157 = vmatprep.subr.mxu0 %v85
  %158 = vmatpush1.msra.mxu0 %v84
  %159 = vmatprep.subr.mxu0 %v81
  %160 = vmatpush1.msra.mxu0 %v80
  %161 = vmatprep.subr.mxu0 %v77
  %162 = vmatpush1.msra.mxu0 %v76
  %163 = vmatprep.subr.mxu0 %v73
  %164 = vmatpush1.msra.mxu0 %v72
  %165 = vmatprep.subr.mxu0 %v69
  %166 = vmatpush1.msra.mxu0 %v68
  %167 = vmatprep.subr.mxu0 %v65
  %168 = vmatpush1.msra.mxu0 %v64
  %169 = vmatprep.subr.mxu0 %v61
  %170 = vmatpush1.msra.mxu0 %v60
  %171 = vmatprep.subr.mxu0 %v57
  %172 = vmatpush1.msra.mxu0 %v56
  %173 = vmatprep.subr.mxu0 %v53
  %174 = vmatpush1.msra.mxu0 %v52
  %175 = vmatprep.subr.mxu0 %v49
  %176 = vmatpush1.msra.mxu0 %v48
  %177 = vmatprep.subr.mxu0 %v45
  %178 = vmatpush1.msra.mxu0 %v44
  %179 = vmatprep.subr.mxu0 %v41
  %180 = vmatpush1.msra.mxu0 %v40
  %181 = vmatprep.subr.mxu0 %v37
  %182 = vmatpush1.msra.mxu0 %v36
  %183 = vmatprep.subr.mxu0 %v33
  %184 = vmatpush1.msra.mxu0 %v32
  %185 = vmatprep.subr.mxu0 %v29
  %186 = vmatpush1.msra.mxu0 %v28
  %187 = vmatprep.subr.mxu0 %v25
  %188 = vmatpush1.msra.mxu0 %v24
  %189 = vmatprep.subr.mxu0 0.0
  %190 = vmatpush2.msra.mxu0 0.0
  %191 = vmatprep.subr.mxu0 0.0
  %192 = vmatpush2.msra.mxu0 0.0
  %193 = vmatprep.subr.mxu0 0.0
  %194 = vmatpush2.msra.mxu0 0.0
  %195 = vmatprep.subr.mxu0 0.0
  %196 = vmatpush2.msra.mxu0 0.0
  %197 = vmatprep.subr.mxu0 0.0
  %198 = vmatpush2.msra.mxu0 0.0
  %199 = vmatprep.subr.mxu0 0.0
  %200 = vmatpush2.msra.mxu0 0.0
  %201 = vmatprep.subr.mxu0 0.0
  %202 = vmatpush2.msra.mxu0 0.0
  %203 = vmatprep.subr.mxu0 0.0
  %204 = vmatpush2.msra.mxu0 0.0
  %205 = vmatprep.subr.mxu0 0.0
  %206 = vmatpush2.msra.mxu0 0.0
  %207 = vmatprep.subr.mxu0 0.0
  %208 = vmatpush2.msra.mxu0 0.0
  %209 = vmatprep.subr.mxu0 0.0
  %210 = vmatpush2.msra.mxu0 0.0
  %211 = vmatprep.subr.mxu0 0.0
  %212 = vmatpush2.msra.mxu0 0.0
  %213 = vmatprep.subr.mxu0 0.0
  %214 = vmatpush2.msra.mxu0 0.0
  %215 = vmatprep.subr.mxu0 0.0
  %216 = vmatpush2.msra.mxu0 0.0
  %217 = vmatprep.subr.mxu0 0.0
  %218 = vmatpush2.msra.mxu0 0.0
  %219 = vmatprep.subr.mxu0 0.0
  %220 = vmatpush2.msra.mxu0 0.0
  %221 = vmatprep.mubr.f32.mxu0 0.0
  %222 = vmatmul.mubr.f32.gmra.mxu0 %v21
  %v223 = vpop.f32.mrf.mxu0
  %v224 = vadd.f32 0.0, %v223
  %v225 = vpop.f32.mrf.mxu0
  %v226 = vadd.f32 0.0, %v225
  %227 = vdwg.mxu0
  %v228 = vadd.f32 %v17, %v153
  %v229 = vadd.f32 %v18, %v155
  %v230 = vadd.f32 %v19, %v224
  %v231 = vadd.f32 %v20, %v226
  %v232 = vxor.u32 %v228, 2147483648
  %v233 = vmul.f32 %v232, 1.442695
  %v234 = vpow.pop %v233
  %v235 = vadd.f32 %v234, 1.0
  %v236 = vrcp.pop %v235
  %v237 = vmul.f32 1.0, %v236
  %v238 = vxor.u32 %v229, 2147483648
  %v239 = vmul.f32 %v238, 1.442695
  %v240 = vpow.pop %v239
  %v241 = vadd.f32 %v240, 1.0
  %v242 = vrcp.pop %v241
  %v243 = vmul.f32 1.0, %v242
  %v244 = vtanh.pop %v230
  %v245 = vxor.u32 %v231, 2147483648
  %v246 = vmul.f32 %v245, 1.442695
  %v247 = vpow.pop %v246
  %v248 = vadd.f32 %v247, 1.0
  %v249 = vrcp.pop %v248
  %v250 = vmul.f32 1.0, %v249
  %v251 = vld [vmem:[#allocation3] sm:$0xff]
  %v252 = vmul.f32 %v243, %v251
  %v253 = vmul.f32 %v237, %v244
  %v254 = vadd.f32 %v252, %v253
  %v255 = vtanh.pop %v254
  %v256 = vmul.f32 %v250, %v255
  %257 = vst [vmem:[#allocation3] sm:$0xff] %v254
  %258 = vst [vmem:[#allocation2] sm:$0xff] %v256
  %s259 = scalar_lea.vmem %s0, 32
  %v260 = vld [vmem:[%s259] sm:$0xff]
  %v261 = vld [vmem:[%s259 + $0x8] sm:$0xff]
  %v262 = vld [vmem:[%s259 + $0x10] sm:$0xff]
  %v263 = vld [vmem:[%s259 + $0x18] sm:$0xff]
  %v264 = vld [vmem:[#allocation2] sm:$0xff]
  %v265 = vld [vmem:[%s1] sm:$0xff]
  %v266 = vld [vmem:[%s1 + $0x8] sm:$0xff]
  %v267 = vld [vmem:[%s1 + $0x10] sm:$0xff]
  %v268 = vld [vmem:[%s1 + $0x18] sm:$0xff]
  %v269 = vld [vmem:[%s1 + $0x20] sm:$0xff]
  %v270 = vld [vmem:[%s1 + $0x28] sm:$0xff]
  %v271 = vld [vmem:[%s1 + $0x30] sm:$0xff]
  %v272 = vld [vmem:[%s1 + $0x38] sm:$0xff]
  %v273 = vld [vmem:[%s1 + $0x40] sm:$0xff]
  %v274 = vld [vmem:[%s1 + $0x48] sm:$0xff]
  %v275 = vld [vmem:[%s1 + $0x50] sm:$0xff]
  %v276 = vld [vmem:[%s1 + $0x58] sm:$0xff]
  %v277 = vld [vmem:[%s1 + $0x60] sm:$0xff]
  %v278 = vld [vmem:[%s1 + $0x68] sm:$0xff]
  %v279 = vld [vmem:[%s1 + $0x70] sm:$0xff]
  %v280 = vld [vmem:[%s1 + $0x78] sm:$0xff]
  %v281 = vld [vmem:[%s1 + $0x80] sm:$0xff]
  %v282 = vld [vmem:[%s1 + $0x88] sm:$0xff]
  %v283 = vld [vmem:[%s1 + $0x90] sm:$0xff]
  %v284 = vld [vmem:[%s1 + $0x98] sm:$0xff]
  %v285 = vld [vmem:[%s1 + $0xa0] sm:$0xff]
  %v286 = vld [vmem:[%s1 + $0xa8] sm:$0xff]
  %v287 = vld [vmem:[%s1 + $0xb0] sm:$0xff]
  %v288 = vld [vmem:[%s1 + $0xb8] sm:$0xff]
  %v289 = vld [vmem:[%s1 + $0xc0] sm:$0xff]
  %v290 = vld [vmem:[%s1 + $0xc8] sm:$0xff]
  %v291 = vld [vmem:[%s1 + $0xd0] sm:$0xff]
  %v292 = vld [vmem:[%s1 + $0xd8] sm:$0xff]
  %v293 = vld [vmem:[%s1 + $0xe0] sm:$0xff]
  %v294 = vld [vmem:[%s1 + $0xe8] sm:$0xff]
  %v295 = vld [vmem:[%s1 + $0xf0] sm:$0xff]
  %v296 = vld [vmem:[%s1 + $0xf8] sm:$0xff]
  %v297 = vld [vmem:[%s1 + $0x100] sm:$0xff]
  %v298 = vld [vmem:[%s1 + $0x108] sm:$0xff]
  %v299 = vld [vmem:[%s1 + $0x110] sm:$0xff]
  %v300 = vld [vmem:[%s1 + $0x118] sm:$0xff]
  %v301 = vld [vmem:[%s1 + $0x120] sm:$0xff]
  %v302 = vld [vmem:[%s1 + $0x128] sm:$0xff]
  %v303 = vld [vmem:[%s1 + $0x130] sm:$0xff]
  %v304 = vld [vmem:[%s1 + $0x138] sm:$0xff]
  %v305 = vld [vmem:[%s1 + $0x140] sm:$0xff]
  %v306 = vld [vmem:[%s1 + $0x148] sm:$0xff]
  %v307 = vld [vmem:[%s1 + $0x150] sm:$0xff]
  %v308 = vld [vmem:[%s1 + $0x158] sm:$0xff]
  %v309 = vld [vmem:[%s1 + $0x160] sm:$0xff]
  %v310 = vld [vmem:[%s1 + $0x168] sm:$0xff]
  %v311 = vld [vmem:[%s1 + $0x170] sm:$0xff]
  %v312 = vld [vmem:[%s1 + $0x178] sm:$0xff]
  %v313 = vld [vmem:[%s1 + $0x180] sm:$0xff]
  %v314 = vld [vmem:[%s1 + $0x188] sm:$0xff]
  %v315 = vld [vmem:[%s1 + $0x190] sm:$0xff]
  %v316 = vld [vmem:[%s1 + $0x198] sm:$0xff]
  %v317 = vld [vmem:[%s1 + $0x1a0] sm:$0xff]
  %v318 = vld [vmem:[%s1 + $0x1a8] sm:$0xff]
  %v319 = vld [vmem:[%s1 + $0x1b0] sm:$0xff]
  %v320 = vld [vmem:[%s1 + $0x1b8] sm:$0xff]
  %v321 = vld [vmem:[%s1 + $0x1c0] sm:$0xff]
  %v322 = vld [vmem:[%s1 + $0x1c8] sm:$0xff]
  %v323 = vld [vmem:[%s1 + $0x1d0] sm:$0xff]
  %v324 = vld [vmem:[%s1 + $0x1d8] sm:$0xff]
  %v325 = vld [vmem:[%s1 + $0x1e0] sm:$0xff]
  %v326 = vld [vmem:[%s1 + $0x1e8] sm:$0xff]
  %v327 = vld [vmem:[%s1 + $0x1f0] sm:$0xff]
  %v328 = vld [vmem:[%s1 + $0x1f8] sm:$0xff]
  %329 = vmatprep.subr.mxu0 %v326
  %330 = vmatpush1.msra.mxu0 %v325
  %331 = vmatprep.subr.mxu0 %v322
  %332 = vmatpush1.msra.mxu0 %v321
  %333 = vmatprep.subr.mxu0 %v318
  %334 = vmatpush1.msra.mxu0 %v317
  %335 = vmatprep.subr.mxu0 %v314
  %336 = vmatpush1.msra.mxu0 %v313
  %337 = vmatprep.subr.mxu0 %v310
  %338 = vmatpush1.msra.mxu0 %v309
  %339 = vmatprep.subr.mxu0 %v306
  %340 = vmatpush1.msra.mxu0 %v305
  %341 = vmatprep.subr.mxu0 %v302
  %342 = vmatpush1.msra.mxu0 %v301
  %343 = vmatprep.subr.mxu0 %v298
  %344 = vmatpush1.msra.mxu0 %v297
  %345 = vmatprep.subr.mxu0 %v294
  %346 = vmatpush1.msra.mxu0 %v293
  %347 = vmatprep.subr.mxu0 %v290
  %348 = vmatpush1.msra.mxu0 %v289
  %349 = vmatprep.subr.mxu0 %v286
  %350 = vmatpush1.msra.mxu0 %v285
  %351 = vmatprep.subr.mxu0 %v282
  %352 = vmatpush1.msra.mxu0 %v281
  %353 = vmatprep.subr.mxu0 %v278
  %354 = vmatpush1.msra.mxu0 %v277
  %355 = vmatprep.subr.mxu0 %v274
  %356 = vmatpush1.msra.mxu0 %v273
  %357 = vmatprep.subr.mxu0 %v270
  %358 = vmatpush1.msra.mxu0 %v269
  %359 = vmatprep.subr.mxu0 %v266
  %360 = vmatpush1.msra.mxu0 %v265
  %361 = vmatprep.subr.mxu0 0.0
  %362 = vmatpush2.msra.mxu0 0.0
  %363 = vmatprep.subr.mxu0 0.0
  %364 = vmatpush2.msra.mxu0 0.0
  %365 = vmatprep.subr.mxu0 0.0
  %366 = vmatpush2.msra.mxu0 0.0
  %367 = vmatprep.subr.mxu0 0.0
  %368 = vmatpush2.msra.mxu0 0.0
  %369 = vmatprep.subr.mxu0 0.0
  %370 = vmatpush2.msra.mxu0 0.0
  %371 = vmatprep.subr.mxu0 0.0
  %372 = vmatpush2.msra.mxu0 0.0
  %373 = vmatprep.subr.mxu0 0.0
  %374 = vmatpush2.msra.mxu0 0.0
  %375 = vmatprep.subr.mxu0 0.0
  %376 = vmatpush2.msra.mxu0 0.0
  %377 = vmatprep.subr.mxu0 0.0
  %378 = vmatpush2.msra.mxu0 0.0
  %379 = vmatprep.subr.mxu0 0.0
  %380 = vmatpush2.msra.mxu0 0.0
  %381 = vmatprep.subr.mxu0 0.0
  %382 = vmatpush2.msra.mxu0 0.0
  %383 = vmatprep.subr.mxu0 0.0
  %384 = vmatpush2.msra.mxu0 0.0
  %385 = vmatprep.subr.mxu0 0.0
  %386 = vmatpush2.msra.mxu0 0.0
  %387 = vmatprep.subr.mxu0 0.0
  %388 = vmatpush2.msra.mxu0 0.0
  %389 = vmatprep.subr.mxu0 0.0
  %390 = vmatpush2.msra.mxu0 0.0
  %391 = vmatprep.subr.mxu0 0.0
  %392 = vmatpush2.msra.mxu0 0.0
  %393 = vmatprep.mubr.f32.mxu0 0.0
  %394 = vmatmul.mubr.f32.gmra.mxu0 %v264
  %v395 = vpop.f32.mrf.mxu0
  %v396 = vadd.f32 0.0, %v395
  %v397 = vpop.f32.mrf.mxu0
  %v398 = vadd.f32 0.0, %v397
  %399 = vdwg.mxu0
  %400 = vmatprep.subr.mxu0 %v328
  %401 = vmatpush1.msra.mxu0 %v327
  %402 = vmatprep.subr.mxu0 %v324
  %403 = vmatpush1.msra.mxu0 %v323
  %404 = vmatprep.subr.mxu0 %v320
  %405 = vmatpush1.msra.mxu0 %v319
  %406 = vmatprep.subr.mxu0 %v316
  %407 = vmatpush1.msra.mxu0 %v315
  %408 = vmatprep.subr.mxu0 %v312
  %409 = vmatpush1.msra.mxu0 %v311
  %410 = vmatprep.subr.mxu0 %v308
  %411 = vmatpush1.msra.mxu0 %v307
  %412 = vmatprep.subr.mxu0 %v304
  %413 = vmatpush1.msra.mxu0 %v303
  %414 = vmatprep.subr.mxu0 %v300
  %415 = vmatpush1.msra.mxu0 %v299
  %416 = vmatprep.subr.mxu0 %v296
  %417 = vmatpush1.msra.mxu0 %v295
  %418 = vmatprep.subr.mxu0 %v292
  %419 = vmatpush1.msra.mxu0 %v291
  %420 = vmatprep.subr.mxu0 %v288
  %421 = vmatpush1.msra.mxu0 %v287
  %422 = vmatprep.subr.mxu0 %v284
  %423 = vmatpush1.msra.mxu0 %v283
  %424 = vmatprep.subr.mxu0 %v280
  %425 = vmatpush1.msra.mxu0 %v279
  %426 = vmatprep.subr.mxu0 %v276
  %427 = vmatpush1.msra.mxu0 %v275
  %428 = vmatprep.subr.mxu0 %v272
  %429 = vmatpush1.msra.mxu0 %v271
  %430 = vmatprep.subr.mxu0 %v268
  %431 = vmatpush1.msra.mxu0 %v267
  %432 = vmatprep.subr.mxu0 0.0
  %433 = vmatpush2.msra.mxu0 0.0
  %434 = vmatprep.subr.mxu0 0.0
  %435 = vmatpush2.msra.mxu0 0.0
  %436 = vmatprep.subr.mxu0 0.0
  %437 = vmatpush2.msra.mxu0 0.0
  %438 = vmatprep.subr.mxu0 0.0
  %439 = vmatpush2.msra.mxu0 0.0
  %440 = vmatprep.subr.mxu0 0.0
  %441 = vmatpush2.msra.mxu0 0.0
  %442 = vmatprep.subr.mxu0 0.0
  %443 = vmatpush2.msra.mxu0 0.0
  %444 = vmatprep.subr.mxu0 0.0
  %445 = vmatpush2.msra.mxu0 0.0
  %446 = vmatprep.subr.mxu0 0.0
  %447 = vmatpush2.msra.mxu0 0.0
  %448 = vmatprep.subr.mxu0 0.0
  %449 = vmatpush2.msra.mxu0 0.0
  %450 = vmatprep.subr.mxu0 0.0
  %451 = vmatpush2.msra.mxu0 0.0
  %452 = vmatprep.subr.mxu0 0.0
  %453 = vmatpush2.msra.mxu0 0.0
  %454 = vmatprep.subr.mxu0 0.0
  %455 = vmatpush2.msra.mxu0 0.0
  %456 = vmatprep.subr.mxu0 0.0
  %457 = vmatpush2.msra.mxu0 0.0
  %458 = vmatprep.subr.mxu0 0.0
  %459 = vmatpush2.msra.mxu0 0.0
  %460 = vmatprep.subr.mxu0 0.0
  %461 = vmatpush2.msra.mxu0 0.0
  %462 = vmatprep.subr.mxu0 0.0
  %463 = vmatpush2.msra.mxu0 0.0
  %464 = vmatprep.mubr.f32.mxu0 0.0
  %465 = vmatmul.mubr.f32.gmra.mxu0 %v264
  %v466 = vpop.f32.mrf.mxu0
  %v467 = vadd.f32 0.0, %v466
  %v468 = vpop.f32.mrf.mxu0
  %v469 = vadd.f32 0.0, %v468
  %470 = vdwg.mxu0
  %v471 = vadd.f32 %v260, %v396
  %v472 = vadd.f32 %v261, %v398
  %v473 = vadd.f32 %v262, %v467
  %v474 = vadd.f32 %v263, %v469
  %v475 = vxor.u32 %v471, 2147483648
  %v476 = vmul.f32 %v475, 1.442695
  %v477 = vpow.pop %v476
  %v478 = vadd.f32 %v477, 1.0
  %v479 = vrcp.pop %v478
  %v480 = vmul.f32 1.0, %v479
  %v481 = vxor.u32 %v472, 2147483648
  %v482 = vmul.f32 %v481, 1.442695
  %v483 = vpow.pop %v482
  %v484 = vadd.f32 %v483, 1.0
  %v485 = vrcp.pop %v484
  %v486 = vmul.f32 1.0, %v485
  %v487 = vtanh.pop %v473
  %v488 = vxor.u32 %v474, 2147483648
  %v489 = vmul.f32 %v488, 1.442695
  %v490 = vpow.pop %v489
  %v491 = vadd.f32 %v490, 1.0
  %v492 = vrcp.pop %v491
  %v493 = vmul.f32 1.0, %v492
  %v494 = vld [vmem:[#allocation3] sm:$0xff]
  %v495 = vmul.f32 %v486, %v494
  %v496 = vmul.f32 %v480, %v487
  %v497 = vadd.f32 %v495, %v496
  %v498 = vtanh.pop %v497
  %v499 = vmul.f32 %v493, %v498
  %500 = vst [vmem:[#allocation3] sm:$0xff] %v497
  %501 = vst [vmem:[#allocation2] sm:$0xff] %v499
  %s502 = scalar_lea.vmem %s0, 64
  %v503 = vld [vmem:[%s502] sm:$0xff]
  %v504 = vld [vmem:[%s502 + $0x8] sm:$0xff]
  %v505 = vld [vmem:[%s502 + $0x10] sm:$0xff]
  %v506 = vld [vmem:[%s502 + $0x18] sm:$0xff]
  %v507 = vld [vmem:[#allocation2] sm:$0xff]
  %v508 = vld [vmem:[%s1] sm:$0xff]
  %v509 = vld [vmem:[%s1 + $0x8] sm:$0xff]
  %v510 = vld [vmem:[%s1 + $0x10] sm:$0xff]
  %v511 = vld [vmem:[%s1 + $0x18] sm:$0xff]
  %v512 = vld [vmem:[%s1 + $0x20] sm:$0xff]
  %v513 = vld [vmem:[%s1 + $0x28] sm:$0xff]
  %v514 = vld [vmem:[%s1 + $0x30] sm:$0xff]
  %v515 = vld [vmem:[%s1 + $0x38] sm:$0xff]
  %v516 = vld [vmem:[%s1 + $0x40] sm:$0xff]
  %v517 = vld [vmem:[%s1 + $0x48] sm:$0xff]
  %v518 = vld [vmem:[%s1 + $0x50] sm:$0xff]
  %v519 = vld [vmem:[%s1 + $0x58] sm:$0xff]
  %v520 = vld [vmem:[%s1 + $0x60] sm:$0xff]
  %v521 = vld [vmem:[%s1 + $0x68] sm:$0xff]
  %v522 = vld [vmem:[%s1 + $0x70] sm:$0xff]
  %v523 = vld [vmem:[%s1 + $0x78] sm:$0xff]
  %v524 = vld [vmem:[%s1 + $0x80] sm:$0xff]
  %v525 = vld [vmem:[%s1 + $0x88] sm:$0xff]
  %v526 = vld [vmem:[%s1 + $0x90] sm:$0xff]
  %v527 = vld [vmem:[%s1 + $0x98] sm:$0xff]
  %v528 = vld [vmem:[%s1 + $0xa0] sm:$0xff]
  %v529 = vld [vmem:[%s1 + $0xa8] sm:$0xff]
  %v530 = vld [vmem:[%s1 + $0xb0] sm:$0xff]
  %v531 = vld [vmem:[%s1 + $0xb8] sm:$0xff]
  %v532 = vld [vmem:[%s1 + $0xc0] sm:$0xff]
  %v533 = vld [vmem:[%s1 + $0xc8] sm:$0xff]
  %v534 = vld [vmem:[%s1 + $0xd0] sm:$0xff]
  %v535 = vld [vmem:[%s1 + $0xd8] sm:$0xff]
  %v536 = vld [vmem:[%s1 + $0xe0] sm:$0xff]
  %v537 = vld [vmem:[%s1 + $0xe8] sm:$0xff]
  %v538 = vld [vmem:[%s1 + $0xf0] sm:$0xff]
  %v539 = vld [vmem:[%s1 + $0xf8] sm:$0xff]
  %v540 = vld [vmem:[%s1 + $0x100] sm:$0xff]
  %v541 = vld [vmem:[%s1 + $0x108] sm:$0xff]
  %v542 = vld [vmem:[%s1 + $0x110] sm:$0xff]
  %v543 = vld [vmem:[%s1 + $0x118] sm:$0xff]
  %v544 = vld [vmem:[%s1 + $0x120] sm:$0xff]
  %v545 = vld [vmem:[%s1 + $0x128] sm:$0xff]
  %v546 = vld [vmem:[%s1 + $0x130] sm:$0xff]
  %v547 = vld [vmem:[%s1 + $0x138] sm:$0xff]
  %v548 = vld [vmem:[%s1 + $0x140] sm:$0xff]
  %v549 = vld [vmem:[%s1 + $0x148] sm:$0xff]
  %v550 = vld [vmem:[%s1 + $0x150] sm:$0xff]
  %v551 = vld [vmem:[%s1 + $0x158] sm:$0xff]
  %v552 = vld [vmem:[%s1 + $0x160] sm:$0xff]
  %v553 = vld [vmem:[%s1 + $0x168] sm:$0xff]
  %v554 = vld [vmem:[%s1 + $0x170] sm:$0xff]
  %v555 = vld [vmem:[%s1 + $0x178] sm:$0xff]
  %v556 = vld [vmem:[%s1 + $0x180] sm:$0xff]
  %v557 = vld [vmem:[%s1 + $0x188] sm:$0xff]
  %v558 = vld [vmem:[%s1 + $0x190] sm:$0xff]
  %v559 = vld [vmem:[%s1 + $0x198] sm:$0xff]
  %v560 = vld [vmem:[%s1 + $0x1a0] sm:$0xff]
  %v561 = vld [vmem:[%s1 + $0x1a8] sm:$0xff]
  %v562 = vld [vmem:[%s1 + $0x1b0] sm:$0xff]
  %v563 = vld [vmem:[%s1 + $0x1b8] sm:$0xff]
  %v564 = vld [vmem:[%s1 + $0x1c0] sm:$0xff]
  %v565 = vld [vmem:[%s1 + $0x1c8] sm:$0xff]
  %v566 = vld [vmem:[%s1 + $0x1d0] sm:$0xff]
  %v567 = vld [vmem:[%s1 + $0x1d8] sm:$0xff]
  %v568 = vld [vmem:[%s1 + $0x1e0] sm:$0xff]
  %v569 = vld [vmem:[%s1 + $0x1e8] sm:$0xff]
  %v570 = vld [vmem:[%s1 + $0x1f0] sm:$0xff]
  %v571 = vld [vmem:[%s1 + $0x1f8] sm:$0xff]
  %572 = vmatprep.subr.mxu0 %v569
  %573 = vmatpush1.msra.mxu0 %v568
  %574 = vmatprep.subr.mxu0 %v565
  %575 = vmatpush1.msra.mxu0 %v564
  %576 = vmatprep.subr.mxu0 %v561
  %577 = vmatpush1.msra.mxu0 %v560
  %578 = vmatprep.subr.mxu0 %v557
  %579 = vmatpush1.msra.mxu0 %v556
  %580 = vmatprep.subr.mxu0 %v553
  %581 = vmatpush1.msra.mxu0 %v552
  %582 = vmatprep.subr.mxu0 %v549
  %583 = vmatpush1.msra.mxu0 %v548
  %584 = vmatprep.subr.mxu0 %v545
  %585 = vmatpush1.msra.mxu0 %v544
  %586 = vmatprep.subr.mxu0 %v541
  %587 = vmatpush1.msra.mxu0 %v540
  %588 = vmatprep.subr.mxu0 %v537
  %589 = vmatpush1.msra.mxu0 %v536
  %590 = vmatprep.subr.mxu0 %v533
  %591 = vmatpush1.msra.mxu0 %v532
  %592 = vmatprep.subr.mxu0 %v529
  %593 = vmatpush1.msra.mxu0 %v528
  %594 = vmatprep.subr.mxu0 %v525
  %595 = vmatpush1.msra.mxu0 %v524
  %596 = vmatprep.subr.mxu0 %v521
  %597 = vmatpush1.msra.mxu0 %v520
  %598 = vmatprep.subr.mxu0 %v517
  %599 = vmatpush1.msra.mxu0 %v516
  %600 = vmatprep.subr.mxu0 %v513
  %601 = vmatpush1.msra.mxu0 %v512
  %602 = vmatprep.subr.mxu0 %v509
  %603 = vmatpush1.msra.mxu0 %v508
  %604 = vmatprep.subr.mxu0 0.0
  %605 = vmatpush2.msra.mxu0 0.0
  %606 = vmatprep.subr.mxu0 0.0
  %607 = vmatpush2.msra.mxu0 0.0
  %608 = vmatprep.subr.mxu0 0.0
  %609 = vmatpush2.msra.mxu0 0.0
  %610 = vmatprep.subr.mxu0 0.0
  %611 = vmatpush2.msra.mxu0 0.0
  %612 = vmatprep.subr.mxu0 0.0
  %613 = vmatpush2.msra.mxu0 0.0
  %614 = vmatprep.subr.mxu0 0.0
  %615 = vmatpush2.msra.mxu0 0.0
  %616 = vmatprep.subr.mxu0 0.0
  %617 = vmatpush2.msra.mxu0 0.0
  %618 = vmatprep.subr.mxu0 0.0
  %619 = vmatpush2.msra.mxu0 0.0
  %620 = vmatprep.subr.mxu0 0.0
  %621 = vmatpush2.msra.mxu0 0.0
  %622 = vmatprep.subr.mxu0 0.0
  %623 = vmatpush2.msra.mxu0 0.0
  %624 = vmatprep.subr.mxu0 0.0
  %625 = vmatpush2.msra.mxu0 0.0
  %626 = vmatprep.subr.mxu0 0.0
  %627 = vmatpush2.msra.mxu0 0.0
  %628 = vmatprep.subr.mxu0 0.0
  %629 = vmatpush2.msra.mxu0 0.0
  %630 = vmatprep.subr.mxu0 0.0
  %631 = vmatpush2.msra.mxu0 0.0
  %632 = vmatprep.subr.mxu0 0.0
  %633 = vmatpush2.msra.mxu0 0.0
  %634 = vmatprep.subr.mxu0 0.0
  %635 = vmatpush2.msra.mxu0 0.0
  %636 = vmatprep.mubr.f32.mxu0 0.0
  %637 = vmatmul.mubr.f32.gmra.mxu0 %v507
  %v638 = vpop.f32.mrf.mxu0
  %v639 = vadd.f32 0.0, %v638
  %v640 = vpop.f32.mrf.mxu0
  %v641 = vadd.f32 0.0, %v640
  %642 = vdwg.mxu0
  %643 = vmatprep.subr.mxu0 %v571
  %644 = vmatpush1.msra.mxu0 %v570
  %645 = vmatprep.subr.mxu0 %v567
  %646 = vmatpush1.msra.mxu0 %v566
  %647 = vmatprep.subr.mxu0 %v563
  %648 = vmatpush1.msra.mxu0 %v562
  %649 = vmatprep.subr.mxu0 %v559
  %650 = vmatpush1.msra.mxu0 %v558
  %651 = vmatprep.subr.mxu0 %v555
  %652 = vmatpush1.msra.mxu0 %v554
  %653 = vmatprep.subr.mxu0 %v551
  %654 = vmatpush1.msra.mxu0 %v550
  %655 = vmatprep.subr.mxu0 %v547
  %656 = vmatpush1.msra.mxu0 %v546
  %657 = vmatprep.subr.mxu0 %v543
  %658 = vmatpush1.msra.mxu0 %v542
  %659 = vmatprep.subr.mxu0 %v539
  %660 = vmatpush1.msra.mxu0 %v538
  %661 = vmatprep.subr.mxu0 %v535
  %662 = vmatpush1.msra.mxu0 %v534
  %663 = vmatprep.subr.mxu0 %v531
  %664 = vmatpush1.msra.mxu0 %v530
  %665 = vmatprep.subr.mxu0 %v527
  %666 = vmatpush1.msra.mxu0 %v526
  %667 = vmatprep.subr.mxu0 %v523
  %668 = vmatpush1.msra.mxu0 %v522
  %669 = vmatprep.subr.mxu0 %v519
  %670 = vmatpush1.msra.mxu0 %v518
  %671 = vmatprep.subr.mxu0 %v515
  %672 = vmatpush1.msra.mxu0 %v514
  %673 = vmatprep.subr.mxu0 %v511
  %674 = vmatpush1.msra.mxu0 %v510
  %675 = vmatprep.subr.mxu0 0.0
  %676 = vmatpush2.msra.mxu0 0.0
  %677 = vmatprep.subr.mxu0 0.0
  %678 = vmatpush2.msra.mxu0 0.0
  %679 = vmatprep.subr.mxu0 0.0
  %680 = vmatpush2.msra.mxu0 0.0
  %681 = vmatprep.subr.mxu0 0.0
  %682 = vmatpush2.msra.mxu0 0.0
  %683 = vmatprep.subr.mxu0 0.0
  %684 = vmatpush2.msra.mxu0 0.0
  %685 = vmatprep.subr.mxu0 0.0
  %686 = vmatpush2.msra.mxu0 0.0
  %687 = vmatprep.subr.mxu0 0.0
  %688 = vmatpush2.msra.mxu0 0.0
  %689 = vmatprep.subr.mxu0 0.0
  %690 = vmatpush2.msra.mxu0 0.0
  %691 = vmatprep.subr.mxu0 0.0
  %692 = vmatpush2.msra.mxu0 0.0
  %693 = vmatprep.subr.mxu0 0.0
  %694 = vmatpush2.msra.mxu0 0.0
  %695 = vmatprep.subr.mxu0 0.0
  %696 = vmatpush2.msra.mxu0 0.0
  %697 = vmatprep.subr.mxu0 0.0
  %698 = vmatpush2.msra.mxu0 0.0
  %699 = vmatprep.subr.mxu0 0.0
  %700 = vmatpush2.msra.mxu0 0.0
  %701 = vmatprep.subr.mxu0 0.0
  %702 = vmatpush2.msra.mxu0 0.0
  %703 = vmatprep.subr.mxu0 0.0
  %704 = vmatpush2.msra.mxu0 0.0
  %705 = vmatprep.subr.mxu0 0.0
  %706 = vmatpush2.msra.mxu0 0.0
  %707 = vmatprep.mubr.f32.mxu0 0.0
  %708 = vmatmul.mubr.f32.gmra.mxu0 %v507
  %v709 = vpop.f32.mrf.mxu0
  %v710 = vadd.f32 0.0, %v709
  %v711 = vpop.f32.mrf.mxu0
  %v712 = vadd.f32 0.0, %v711
  %713 = vdwg.mxu0
  %v714 = vadd.f32 %v503, %v639
  %v715 = vadd.f32 %v504, %v641
  %v716 = vadd.f32 %v505, %v710
  %v717 = vadd.f32 %v506, %v712
  %v718 = vxor.u32 %v714, 2147483648
  %v719 = vmul.f32 %v718, 1.442695
  %v720 = vpow.pop %v719
  %v721 = vadd.f32 %v720, 1.0
  %v722 = vrcp.pop %v721
  %v723 = vmul.f32 1.0, %v722
  %v724 = vxor.u32 %v715, 2147483648
  %v725 = vmul.f32 %v724, 1.442695
  %v726 = vpow.pop %v725
  %v727 = vadd.f32 %v726, 1.0
  %v728 = vrcp.pop %v727
  %v729 = vmul.f32 1.0, %v728
  %v730 = vtanh.pop %v716
  %v731 = vxor.u32 %v717, 2147483648
  %v732 = vmul.f32 %v731, 1.442695
  %v733 = vpow.pop %v732
  %v734 = vadd.f32 %v733, 1.0
  %v735 = vrcp.pop %v734
  %v736 = vmul.f32 1.0, %v735
  %v737 = vld [vmem:[#allocation3] sm:$0xff]
  %v738 = vmul.f32 %v729, %v737
  %v739 = vmul.f32 %v723, %v730
  %v740 = vadd.f32 %v738, %v739
  %v741 = vtanh.pop %v740
  %v742 = vmul.f32 %v736, %v741
  %743 = vst [vmem:[#allocation3] sm:$0xff] %v740
  %744 = vst [vmem:[#allocation2] sm:$0xff] %v742
  %s745 = scalar_lea.vmem %s0, 96
  %v746 = vld [vmem:[%s745] sm:$0xff]
  %v747 = vld [vmem:[%s745 + $0x8] sm:$0xff]
  %v748 = vld [vmem:[%s745 + $0x10] sm:$0xff]
  %v749 = vld [vmem:[%s745 + $0x18] sm:$0xff]
  %v750 = vld [vmem:[#allocation2] sm:$0xff]
  %v751 = vld [vmem:[%s1] sm:$0xff]
  %v752 = vld [vmem:[%s1 + $0x8] sm:$0xff]
  %v753 = vld [vmem:[%s1 + $0x10] sm:$0xff]
  %v754 = vld [vmem:[%s1 + $0x18] sm:$0xff]
  %v755 = vld [vmem:[%s1 + $0x20] sm:$0xff]
  %v756 = vld [vmem:[%s1 + $0x28] sm:$0xff]
  %v757 = vld [vmem:[%s1 + $0x30] sm:$0xff]
  %v758 = vld [vmem:[%s1 + $0x38] sm:$0xff]
  %v759 = vld [vmem:[%s1 + $0x40] sm:$0xff]
  %v760 = vld [vmem:[%s1 + $0x48] sm:$0xff]
  %v761 = vld [vmem:[%s1 + $0x50] sm:$0xff]
  %v762 = vld [vmem:[%s1 + $0x58] sm:$0xff]
  %v763 = vld [vmem:[%s1 + $0x60] sm:$0xff]
  %v764 = vld [vmem:[%s1 + $0x68] sm:$0xff]
  %v765 = vld [vmem:[%s1 + $0x70] sm:$0xff]
  %v766 = vld [vmem:[%s1 + $0x78] sm:$0xff]
  %v767 = vld [vmem:[%s1 + $0x80] sm:$0xff]
  %v768 = vld [vmem:[%s1 + $0x88] sm:$0xff]
  %v769 = vld [vmem:[%s1 + $0x90] sm:$0xff]
  %v770 = vld [vmem:[%s1 + $0x98] sm:$0xff]
  %v771 = vld [vmem:[%s1 + $0xa0] sm:$0xff]
  %v772 = vld [vmem:[%s1 + $0xa8] sm:$0xff]
  %v773 = vld [vmem:[%s1 + $0xb0] sm:$0xff]
  %v774 = vld [vmem:[%s1 + $0xb8] sm:$0xff]
  %v775 = vld [vmem:[%s1 + $0xc0] sm:$0xff]
  %v776 = vld [vmem:[%s1 + $0xc8] sm:$0xff]
  %v777 = vld [vmem:[%s1 + $0xd0] sm:$0xff]
  %v778 = vld [vmem:[%s1 + $0xd8] sm:$0xff]
  %v779 = vld [vmem:[%s1 + $0xe0] sm:$0xff]
  %v780 = vld [vmem:[%s1 + $0xe8] sm:$0xff]
  %v781 = vld [vmem:[%s1 + $0xf0] sm:$0xff]
  %v782 = vld [vmem:[%s1 + $0xf8] sm:$0xff]
  %v783 = vld [vmem:[%s1 + $0x100] sm:$0xff]
  %v784 = vld [vmem:[%s1 + $0x108] sm:$0xff]
  %v785 = vld [vmem:[%s1 + $0x110] sm:$0xff]
  %v786 = vld [vmem:[%s1 + $0x118] sm:$0xff]
  %v787 = vld [vmem:[%s1 + $0x120] sm:$0xff]
  %v788 = vld [vmem:[%s1 + $0x128] sm:$0xff]
  %v789 = vld [vmem:[%s1 + $0x130] sm:$0xff]
  %v790 = vld [vmem:[%s1 + $0x138] sm:$0xff]
  %v791 = vld [vmem:[%s1 + $0x140] sm:$0xff]
  %v792 = vld [vmem:[%s1 + $0x148] sm:$0xff]
  %v793 = vld [vmem:[%s1 + $0x150] sm:$0xff]
  %v794 = vld [vmem:[%s1 + $0x158] sm:$0xff]
  %v795 = vld [vmem:[%s1 + $0x160] sm:$0xff]
  %v796 = vld [vmem:[%s1 + $0x168] sm:$0xff]
  %v797 = vld [vmem:[%s1 + $0x170] sm:$0xff]
  %v798 = vld [vmem:[%s1 + $0x178] sm:$0xff]
  %v799 = vld [vmem:[%s1 + $0x180] sm:$0xff]
  %v800 = vld [vmem:[%s1 + $0x188] sm:$0xff]
  %v801 = vld [vmem:[%s1 + $0x190] sm:$0xff]
  %v802 = vld [vmem:[%s1 + $0x198] sm:$0xff]
  %v803 = vld [vmem:[%s1 + $0x1a0] sm:$0xff]
  %v804 = vld [vmem:[%s1 + $0x1a8] sm:$0xff]
  %v805 = vld [vmem:[%s1 + $0x1b0] sm:$0xff]
  %v806 = vld [vmem:[%s1 + $0x1b8] sm:$0xff]
  %v807 = vld [vmem:[%s1 + $0x1c0] sm:$0xff]
  %v808 = vld [vmem:[%s1 + $0x1c8] sm:$0xff]
  %v809 = vld [vmem:[%s1 + $0x1d0] sm:$0xff]
  %v810 = vld [vmem:[%s1 + $0x1d8] sm:$0xff]
  %v811 = vld [vmem:[%s1 + $0x1e0] sm:$0xff]
  %v812 = vld [vmem:[%s1 + $0x1e8] sm:$0xff]
  %v813 = vld [vmem:[%s1 + $0x1f0] sm:$0xff]
  %v814 = vld [vmem:[%s1 + $0x1f8] sm:$0xff]
  %815 = vmatprep.subr.mxu0 %v812
  %816 = vmatpush1.msra.mxu0 %v811
  %817 = vmatprep.subr.mxu0 %v808
  %818 = vmatpush1.msra.mxu0 %v807
  %819 = vmatprep.subr.mxu0 %v804
  %820 = vmatpush1.msra.mxu0 %v803
  %821 = vmatprep.subr.mxu0 %v800
  %822 = vmatpush1.msra.mxu0 %v799
  %823 = vmatprep.subr.mxu0 %v796
  %824 = vmatpush1.msra.mxu0 %v795
  %825 = vmatprep.subr.mxu0 %v792
  %826 = vmatpush1.msra.mxu0 %v791
  %827 = vmatprep.subr.mxu0 %v788
  %828 = vmatpush1.msra.mxu0 %v787
  %829 = vmatprep.subr.mxu0 %v784
  %830 = vmatpush1.msra.mxu0 %v783
  %831 = vmatprep.subr.mxu0 %v780
  %832 = vmatpush1.msra.mxu0 %v779
  %833 = vmatprep.subr.mxu0 %v776
  %834 = vmatpush1.msra.mxu0 %v775
  %835 = vmatprep.subr.mxu0 %v772
  %836 = vmatpush1.msra.mxu0 %v771
  %837 = vmatprep.subr.mxu0 %v768
  %838 = vmatpush1.msra.mxu0 %v767
  %839 = vmatprep.subr.mxu0 %v764
  %840 = vmatpush1.msra.mxu0 %v763
  %841 = vmatprep.subr.mxu0 %v760
  %842 = vmatpush1.msra.mxu0 %v759
  %843 = vmatprep.subr.mxu0 %v756
  %844 = vmatpush1.msra.mxu0 %v755
  %845 = vmatprep.subr.mxu0 %v752
  %846 = vmatpush1.msra.mxu0 %v751
  %847 = vmatprep.subr.mxu0 0.0
  %848 = vmatpush2.msra.mxu0 0.0
  %849 = vmatprep.subr.mxu0 0.0
  %850 = vmatpush2.msra.mxu0 0.0
  %851 = vmatprep.subr.mxu0 0.0
  %852 = vmatpush2.msra.mxu0 0.0
  %853 = vmatprep.subr.mxu0 0.0
  %854 = vmatpush2.msra.mxu0 0.0
  %855 = vmatprep.subr.mxu0 0.0
  %856 = vmatpush2.msra.mxu0 0.0
  %857 = vmatprep.subr.mxu0 0.0
  %858 = vmatpush2.msra.mxu0 0.0
  %859 = vmatprep.subr.mxu0 0.0
  %860 = vmatpush2.msra.mxu0 0.0
  %861 = vmatprep.subr.mxu0 0.0
  %862 = vmatpush2.msra.mxu0 0.0
  %863 = vmatprep.subr.mxu0 0.0
  %864 = vmatpush2.msra.mxu0 0.0
  %865 = vmatprep.subr.mxu0 0.0
  %866 = vmatpush2.msra.mxu0 0.0
  %867 = vmatprep.subr.mxu0 0.0
  %868 = vmatpush2.msra.mxu0 0.0
  %869 = vmatprep.subr.mxu0 0.0
  %870 = vmatpush2.msra.mxu0 0.0
  %871 = vmatprep.subr.mxu0 0.0
  %872 = vmatpush2.msra.mxu0 0.0
  %873 = vmatprep.subr.mxu0 0.0
  %874 = vmatpush2.msra.mxu0 0.0
  %875 = vmatprep.subr.mxu0 0.0
  %876 = vmatpush2.msra.mxu0 0.0
  %877 = vmatprep.subr.mxu0 0.0
  %878 = vmatpush2.msra.mxu0 0.0
  %879 = vmatprep.mubr.f32.mxu0 0.0
  %880 = vmatmul.mubr.f32.gmra.mxu0 %v750
  %v881 = vpop.f32.mrf.mxu0
  %v882 = vadd.f32 0.0, %v881
  %v883 = vpop.f32.mrf.mxu0
  %v884 = vadd.f32 0.0, %v883
  %885 = vdwg.mxu0
  %886 = vmatprep.subr.mxu0 %v814
  %887 = vmatpush1.msra.mxu0 %v813
  %888 = vmatprep.subr.mxu0 %v810
  %889 = vmatpush1.msra.mxu0 %v809
  %890 = vmatprep.subr.mxu0 %v806
  %891 = vmatpush1.msra.mxu0 %v805
  %892 = vmatprep.subr.mxu0 %v802
  %893 = vmatpush1.msra.mxu0 %v801
  %894 = vmatprep.subr.mxu0 %v798
  %895 = vmatpush1.msra.mxu0 %v797
  %896 = vmatprep.subr.mxu0 %v794
  %897 = vmatpush1.msra.mxu0 %v793
  %898 = vmatprep.subr.mxu0 %v790
  %899 = vmatpush1.msra.mxu0 %v789
  %900 = vmatprep.subr.mxu0 %v786
  %901 = vmatpush1.msra.mxu0 %v785
  %902 = vmatprep.subr.mxu0 %v782
  %903 = vmatpush1.msra.mxu0 %v781
  %904 = vmatprep.subr.mxu0 %v778
  %905 = vmatpush1.msra.mxu0 %v777
  %906 = vmatprep.subr.mxu0 %v774
  %907 = vmatpush1.msra.mxu0 %v773
  %908 = vmatprep.subr.mxu0 %v770
  %909 = vmatpush1.msra.mxu0 %v769
  %910 = vmatprep.subr.mxu0 %v766
  %911 = vmatpush1.msra.mxu0 %v765
  %912 = vmatprep.subr.mxu0 %v762
  %913 = vmatpush1.msra.mxu0 %v761
  %914 = vmatprep.subr.mxu0 %v758
  %915 = vmatpush1.msra.mxu0 %v757
  %916 = vmatprep.subr.mxu0 %v754
  %917 = vmatpush1.msra.mxu0 %v753
  %918 = vmatprep.subr.mxu0 0.0
  %919 = vmatpush2.msra.mxu0 0.0
  %920 = vmatprep.subr.mxu0 0.0
  %921 = vmatpush2.msra.mxu0 0.0
  %922 = vmatprep.subr.mxu0 0.0
  %923 = vmatpush2.msra.mxu0 0.0
  %924 = vmatprep.subr.mxu0 0.0
  %925 = vmatpush2.msra.mxu0 0.0
  %926 = vmatprep.subr.mxu0 0.0
  %927 = vmatpush2.msra.mxu0 0.0
  %928 = vmatprep.subr.mxu0 0.0
  %929 = vmatpush2.msra.mxu0 0.0
  %930 = vmatprep.subr.mxu0 0.0
  %931 = vmatpush2.msra.mxu0 0.0
  %932 = vmatprep.subr.mxu0 0.0
  %933 = vmatpush2.msra.mxu0 0.0
  %934 = vmatprep.subr.mxu0 0.0
  %935 = vmatpush2.msra.mxu0 0.0
  %936 = vmatprep.subr.mxu0 0.0
  %937 = vmatpush2.msra.mxu0 0.0
  %938 = vmatprep.subr.mxu0 0.0
  %939 = vmatpush2.msra.mxu0 0.0
  %940 = vmatprep.subr.mxu0 0.0
  %941 = vmatpush2.msra.mxu0 0.0
  %942 = vmatprep.subr.mxu0 0.0
  %943 = vmatpush2.msra.mxu0 0.0
  %944 = vmatprep.subr.mxu0 0.0
  %945 = vmatpush2.msra.mxu0 0.0
  %946 = vmatprep.subr.mxu0 0.0
  %947 = vmatpush2.msra.mxu0 0.0
  %948 = vmatprep.subr.mxu0 0.0
  %949 = vmatpush2.msra.mxu0 0.0
  %950 = vmatprep.mubr.f32.mxu0 0.0
  %951 = vmatmul.mubr.f32.gmra.mxu0 %v750
  %v952 = vpop.f32.mrf.mxu0
  %v953 = vadd.f32 0.0, %v952
  %v954 = vpop.f32.mrf.mxu0
  %v955 = vadd.f32 0.0, %v954
  %956 = vdwg.mxu0
  %v957 = vadd.f32 %v746, %v882
  %v958 = vadd.f32 %v747, %v884
  %v959 = vadd.f32 %v748, %v953
  %v960 = vadd.f32 %v749, %v955
  %v961 = vxor.u32 %v957, 2147483648
  %v962 = vmul.f32 %v961, 1.442695
  %v963 = vpow.pop %v962
  %v964 = vadd.f32 %v963, 1.0
  %v965 = vrcp.pop %v964
  %v966 = vmul.f32 1.0, %v965
  %v967 = vxor.u32 %v958, 2147483648
  %v968 = vmul.f32 %v967, 1.442695
  %v969 = vpow.pop %v968
  %v970 = vadd.f32 %v969, 1.0
  %v971 = vrcp.pop %v970
  %v972 = vmul.f32 1.0, %v971
  %v973 = vtanh.pop %v959
  %v974 = vxor.u32 %v960, 2147483648
  %v975 = vmul.f32 %v974, 1.442695
  %v976 = vpow.pop %v975
  %v977 = vadd.f32 %v976, 1.0
  %v978 = vrcp.pop %v977
  %v979 = vmul.f32 1.0, %v978
  %v980 = vld [vmem:[#allocation3] sm:$0xff]
  %v981 = vmul.f32 %v972, %v980
  %v982 = vmul.f32 %v966, %v973
  %v983 = vadd.f32 %v981, %v982
  %v984 = vtanh.pop %v983
  %v985 = vmul.f32 %v979, %v984
  %986 = vst [vmem:[#allocation3] sm:$0xff] %v983
  %987 = vst [vmem:[#allocation2] sm:$0xff] %v985
  %s988 = scalar_lea.vmem %s0, 128
  %v989 = vld [vmem:[%s988] sm:$0xff]
  %v990 = vld [vmem:[%s988 + $0x8] sm:$0xff]
  %v991 = vld [vmem:[%s988 + $0x10] sm:$0xff]
  %v992 = vld [vmem:[%s988 + $0x18] sm:$0xff]
  %v993 = vld [vmem:[#allocation2] sm:$0xff]
  %v994 = vld [vmem:[%s1] sm:$0xff]
  %v995 = vld [vmem:[%s1 + $0x8] sm:$0xff]
  %v996 = vld [vmem:[%s1 + $0x10] sm:$0xff]
  %v997 = vld [vmem:[%s1 + $0x18] sm:$0xff]
  %v998 = vld [vmem:[%s1 + $0x20] sm:$0xff]
  %v999 = vld [vmem:[%s1 + $0x28] sm:$0xff]
  %v1000 = vld [vmem:[%s1 + $0x30] sm:$0xff]
  %v1001 = vld [vmem:[%s1 + $0x38] sm:$0xff]
  %v1002 = vld [vmem:[%s1 + $0x40] sm:$0xff]
  %v1003 = vld [vmem:[%s1 + $0x48] sm:$0xff]
  %v1004 = vld [vmem:[%s1 + $0x50] sm:$0xff]
  %v1005 = vld [vmem:[%s1 + $0x58] sm:$0xff]
  %v1006 = vld [vmem:[%s1 + $0x60] sm:$0xff]
  %v1007 = vld [vmem:[%s1 + $0x68] sm:$0xff]
  %v1008 = vld [vmem:[%s1 + $0x70] sm:$0xff]
  %v1009 = vld [vmem:[%s1 + $0x78] sm:$0xff]
  %v1010 = vld [vmem:[%s1 + $0x80] sm:$0xff]
  %v1011 = vld [vmem:[%s1 + $0x88] sm:$0xff]
  %v1012 = vld [vmem:[%s1 + $0x90] sm:$0xff]
  %v1013 = vld [vmem:[%s1 + $0x98] sm:$0xff]
  %v1014 = vld [vmem:[%s1 + $0xa0] sm:$0xff]
  %v1015 = vld [vmem:[%s1 + $0xa8] sm:$0xff]
  %v1016 = vld [vmem:[%s1 + $0xb0] sm:$0xff]
  %v1017 = vld [vmem:[%s1 + $0xb8] sm:$0xff]
  %v1018 = vld [vmem:[%s1 + $0xc0] sm:$0xff]
  %v1019 = vld [vmem:[%s1 + $0xc8] sm:$0xff]
  %v1020 = vld [vmem:[%s1 + $0xd0] sm:$0xff]
  %v1021 = vld [vmem:[%s1 + $0xd8] sm:$0xff]
  %v1022 = vld [vmem:[%s1 + $0xe0] sm:$0xff]
  %v1023 = vld [vmem:[%s1 + $0xe8] sm:$0xff]
  %v1024 = vld [vmem:[%s1 + $0xf0] sm:$0xff]
  %v1025 = vld [vmem:[%s1 + $0xf8] sm:$0xff]
  %v1026 = vld [vmem:[%s1 + $0x100] sm:$0xff]
  %v1027 = vld [vmem:[%s1 + $0x108] sm:$0xff]
  %v1028 = vld [vmem:[%s1 + $0x110] sm:$0xff]
  %v1029 = vld [vmem:[%s1 + $0x118] sm:$0xff]
  %v1030 = vld [vmem:[%s1 + $0x120] sm:$0xff]
  %v1031 = vld [vmem:[%s1 + $0x128] sm:$0xff]
  %v1032 = vld [vmem:[%s1 + $0x130] sm:$0xff]
  %v1033 = vld [vmem:[%s1 + $0x138] sm:$0xff]
  %v1034 = vld [vmem:[%s1 + $0x140] sm:$0xff]
  %v1035 = vld [vmem:[%s1 + $0x148] sm:$0xff]
  %v1036 = vld [vmem:[%s1 + $0x150] sm:$0xff]
  %v1037 = vld [vmem:[%s1 + $0x158] sm:$0xff]
  %v1038 = vld [vmem:[%s1 + $0x160] sm:$0xff]
  %v1039 = vld [vmem:[%s1 + $0x168] sm:$0xff]
  %v1040 = vld [vmem:[%s1 + $0x170] sm:$0xff]
  %v1041 = vld [vmem:[%s1 + $0x178] sm:$0xff]
  %v1042 = vld [vmem:[%s1 + $0x180] sm:$0xff]
  %v1043 = vld [vmem:[%s1 + $0x188] sm:$0xff]
  %v1044 = vld [vmem:[%s1 + $0x190] sm:$0xff]
  %v1045 = vld [vmem:[%s1 + $0x198] sm:$0xff]
  %v1046 = vld [vmem:[%s1 + $0x1a0] sm:$0xff]
  %v1047 = vld [vmem:[%s1 + $0x1a8] sm:$0xff]
  %v1048 = vld [vmem:[%s1 + $0x1b0] sm:$0xff]
  %v1049 = vld [vmem:[%s1 + $0x1b8] sm:$0xff]
  %v1050 = vld [vmem:[%s1 + $0x1c0] sm:$0xff]
  %v1051 = vld [vmem:[%s1 + $0x1c8] sm:$0xff]
  %v1052 = vld [vmem:[%s1 + $0x1d0] sm:$0xff]
  %v1053 = vld [vmem:[%s1 + $0x1d8] sm:$0xff]
  %v1054 = vld [vmem:[%s1 + $0x1e0] sm:$0xff]
  %v1055 = vld [vmem:[%s1 + $0x1e8] sm:$0xff]
  %v1056 = vld [vmem:[%s1 + $0x1f0] sm:$0xff]
  %v1057 = vld [vmem:[%s1 + $0x1f8] sm:$0xff]
  %1058 = vmatprep.subr.mxu0 %v1055
  %1059 = vmatpush1.msra.mxu0 %v1054
  %1060 = vmatprep.subr.mxu0 %v1051
  %1061 = vmatpush1.msra.mxu0 %v1050
  %1062 = vmatprep.subr.mxu0 %v1047
  %1063 = vmatpush1.msra.mxu0 %v1046
  %1064 = vmatprep.subr.mxu0 %v1043
  %1065 = vmatpush1.msra.mxu0 %v1042
  %1066 = vmatprep.subr.mxu0 %v1039
  %1067 = vmatpush1.msra.mxu0 %v1038
  %1068 = vmatprep.subr.mxu0 %v1035
  %1069 = vmatpush1.msra.mxu0 %v1034
  %1070 = vmatprep.subr.mxu0 %v1031
  %1071 = vmatpush1.msra.mxu0 %v1030
  %1072 = vmatprep.subr.mxu0 %v1027
  %1073 = vmatpush1.msra.mxu0 %v1026
  %1074 = vmatprep.subr.mxu0 %v1023
  %1075 = vmatpush1.msra.mxu0 %v1022
  %1076 = vmatprep.subr.mxu0 %v1019
  %1077 = vmatpush1.msra.mxu0 %v1018
  %1078 = vmatprep.subr.mxu0 %v1015
  %1079 = vmatpush1.msra.mxu0 %v1014
  %1080 = vmatprep.subr.mxu0 %v1011
  %1081 = vmatpush1.msra.mxu0 %v1010
  %1082 = vmatprep.subr.mxu0 %v1007
  %1083 = vmatpush1.msra.mxu0 %v1006
  %1084 = vmatprep.subr.mxu0 %v1003
  %1085 = vmatpush1.msra.mxu0 %v1002
  %1086 = vmatprep.subr.mxu0 %v999
  %1087 = vmatpush1.msra.mxu0 %v998
  %1088 = vmatprep.subr.mxu0 %v995
  %1089 = vmatpush1.msra.mxu0 %v994
  %1090 = vmatprep.subr.mxu0 0.0
  %1091 = vmatpush2.msra.mxu0 0.0
  %1092 = vmatprep.subr.mxu0 0.0
  %1093 = vmatpush2.msra.mxu0 0.0
  %1094 = vmatprep.subr.mxu0 0.0
  %1095 = vmatpush2.msra.mxu0 0.0
  %1096 = vmatprep.subr.mxu0 0.0
  %1097 = vmatpush2.msra.mxu0 0.0
  %1098 = vmatprep.subr.mxu0 0.0
  %1099 = vmatpush2.msra.mxu0 0.0
  %1100 = vmatprep.subr.mxu0 0.0
  %1101 = vmatpush2.msra.mxu0 0.0
  %1102 = vmatprep.subr.mxu0 0.0
  %1103 = vmatpush2.msra.mxu0 0.0
  %1104 = vmatprep.subr.mxu0 0.0
  %1105 = vmatpush2.msra.mxu0 0.0
  %1106 = vmatprep.subr.mxu0 0.0
  %1107 = vmatpush2.msra.mxu0 0.0
  %1108 = vmatprep.subr.mxu0 0.0
  %1109 = vmatpush2.msra.mxu0 0.0
  %1110 = vmatprep.subr.mxu0 0.0
  %1111 = vmatpush2.msra.mxu0 0.0
  %1112 = vmatprep.subr.mxu0 0.0
  %1113 = vmatpush2.msra.mxu0 0.0
  %1114 = vmatprep.subr.mxu0 0.0
  %1115 = vmatpush2.msra.mxu0 0.0
  %1116 = vmatprep.subr.mxu0 0.0
  %1117 = vmatpush2.msra.mxu0 0.0
  %1118 = vmatprep.subr.mxu0 0.0
  %1119 = vmatpush2.msra.mxu0 0.0
  %1120 = vmatprep.subr.mxu0 0.0
  %1121 = vmatpush2.msra.mxu0 0.0
  %1122 = vmatprep.mubr.f32.mxu0 0.0
  %1123 = vmatmul.mubr.f32.gmra.mxu0 %v993
  %v1124 = vpop.f32.mrf.mxu0
  %v1125 = vadd.f32 0.0, %v1124
  %v1126 = vpop.f32.mrf.mxu0
  %v1127 = vadd.f32 0.0, %v1126
  %1128 = vdwg.mxu0
  %1129 = vmatprep.subr.mxu0 %v1057
  %1130 = vmatpush1.msra.mxu0 %v1056
  %1131 = vmatprep.subr.mxu0 %v1053
  %1132 = vmatpush1.msra.mxu0 %v1052
  %1133 = vmatprep.subr.mxu0 %v1049
  %1134 = vmatpush1.msra.mxu0 %v1048
  %1135 = vmatprep.subr.mxu0 %v1045
  %1136 = vmatpush1.msra.mxu0 %v1044
  %1137 = vmatprep.subr.mxu0 %v1041
  %1138 = vmatpush1.msra.mxu0 %v1040
  %1139 = vmatprep.subr.mxu0 %v1037
  %1140 = vmatpush1.msra.mxu0 %v1036
  %1141 = vmatprep.subr.mxu0 %v1033
  %1142 = vmatpush1.msra.mxu0 %v1032
  %1143 = vmatprep.subr.mxu0 %v1029
  %1144 = vmatpush1.msra.mxu0 %v1028
  %1145 = vmatprep.subr.mxu0 %v1025
  %1146 = vmatpush1.msra.mxu0 %v1024
  %1147 = vmatprep.subr.mxu0 %v1021
  %1148 = vmatpush1.msra.mxu0 %v1020
  %1149 = vmatprep.subr.mxu0 %v1017
  %1150 = vmatpush1.msra.mxu0 %v1016
  %1151 = vmatprep.subr.mxu0 %v1013
  %1152 = vmatpush1.msra.mxu0 %v1012
  %1153 = vmatprep.subr.mxu0 %v1009
  %1154 = vmatpush1.msra.mxu0 %v1008
  %1155 = vmatprep.subr.mxu0 %v1005
  %1156 = vmatpush1.msra.mxu0 %v1004
  %1157 = vmatprep.subr.mxu0 %v1001
  %1158 = vmatpush1.msra.mxu0 %v1000
  %1159 = vmatprep.subr.mxu0 %v997
  %1160 = vmatpush1.msra.mxu0 %v996
  %1161 = vmatprep.subr.mxu0 0.0
  %1162 = vmatpush2.msra.mxu0 0.0
  %1163 = vmatprep.subr.mxu0 0.0
  %1164 = vmatpush2.msra.mxu0 0.0
  %1165 = vmatprep.subr.mxu0 0.0
  %1166 = vmatpush2.msra.mxu0 0.0
  %1167 = vmatprep.subr.mxu0 0.0
  %1168 = vmatpush2.msra.mxu0 0.0
  %1169 = vmatprep.subr.mxu0 0.0
  %1170 = vmatpush2.msra.mxu0 0.0
  %1171 = vmatprep.subr.mxu0 0.0
  %1172 = vmatpush2.msra.mxu0 0.0
  %1173 = vmatprep.subr.mxu0 0.0
  %1174 = vmatpush2.msra.mxu0 0.0
  %1175 = vmatprep.subr.mxu0 0.0
  %1176 = vmatpush2.msra.mxu0 0.0
  %1177 = vmatprep.subr.mxu0 0.0
  %1178 = vmatpush2.msra.mxu0 0.0
  %1179 = vmatprep.subr.mxu0 0.0
  %1180 = vmatpush2.msra.mxu0 0.0
  %1181 = vmatprep.subr.mxu0 0.0
  %1182 = vmatpush2.msra.mxu0 0.0
  %1183 = vmatprep.subr.mxu0 0.0
  %1184 = vmatpush2.msra.mxu0 0.0
  %1185 = vmatprep.subr.mxu0 0.0
  %1186 = vmatpush2.msra.mxu0 0.0
  %1187 = vmatprep.subr.mxu0 0.0
  %1188 = vmatpush2.msra.mxu0 0.0
  %1189 = vmatprep.subr.mxu0 0.0
  %1190 = vmatpush2.msra.mxu0 0.0
  %1191 = vmatprep.subr.mxu0 0.0
  %1192 = vmatpush2.msra.mxu0 0.0
  %1193 = vmatprep.mubr.f32.mxu0 0.0
  %1194 = vmatmul.mubr.f32.gmra.mxu0 %v993
  %v1195 = vpop.f32.mrf.mxu0
  %v1196 = vadd.f32 0.0, %v1195
  %v1197 = vpop.f32.mrf.mxu0
  %v1198 = vadd.f32 0.0, %v1197
  %1199 = vdwg.mxu0
  %v1200 = vadd.f32 %v989, %v1125
  %v1201 = vadd.f32 %v990, %v1127
  %v1202 = vadd.f32 %v991, %v1196
  %v1203 = vadd.f32 %v992, %v1198
  %v1204 = vxor.u32 %v1200, 2147483648
  %v1205 = vmul.f32 %v1204, 1.442695
  %v1206 = vpow.pop %v1205
  %v1207 = vadd.f32 %v1206, 1.0
  %v1208 = vrcp.pop %v1207
  %v1209 = vmul.f32 1.0, %v1208
  %v1210 = vxor.u32 %v1201, 2147483648
  %v1211 = vmul.f32 %v1210, 1.442695
  %v1212 = vpow.pop %v1211
  %v1213 = vadd.f32 %v1212, 1.0
  %v1214 = vrcp.pop %v1213
  %v1215 = vmul.f32 1.0, %v1214
  %v1216 = vtanh.pop %v1202
  %v1217 = vxor.u32 %v1203, 2147483648
  %v1218 = vmul.f32 %v1217, 1.442695
  %v1219 = vpow.pop %v1218
  %v1220 = vadd.f32 %v1219, 1.0
  %v1221 = vrcp.pop %v1220
  %v1222 = vmul.f32 1.0, %v1221
  %v1223 = vld [vmem:[#allocation3] sm:$0xff]
  %v1224 = vmul.f32 %v1215, %v1223
  %v1225 = vmul.f32 %v1209, %v1216
  %v1226 = vadd.f32 %v1224, %v1225
  %v1227 = vtanh.pop %v1226
  %v1228 = vmul.f32 %v1222, %v1227
  %1229 = vst [vmem:[#allocation3] sm:$0xff] %v1226
  %1230 = vst [vmem:[#allocation2] sm:$0xff] %v1228
  %s1231 = scalar_lea.vmem %s0, 160
  %v1232 = vld [vmem:[%s1231] sm:$0xff]
  %v1233 = vld [vmem:[%s1231 + $0x8] sm:$0xff]
  %v1234 = vld [vmem:[%s1231 + $0x10] sm:$0xff]
  %v1235 = vld [vmem:[%s1231 + $0x18] sm:$0xff]
  %v1236 = vld [vmem:[#allocation2] sm:$0xff]
  %v1237 = vld [vmem:[%s1] sm:$0xff]
  %v1238 = vld [vmem:[%s1 + $0x8] sm:$0xff]
  %v1239 = vld [vmem:[%s1 + $0x10] sm:$0xff]
  %v1240 = vld [vmem:[%s1 + $0x18] sm:$0xff]
  %v1241 = vld [vmem:[%s1 + $0x20] sm:$0xff]
  %v1242 = vld [vmem:[%s1 + $0x28] sm:$0xff]
  %v1243 = vld [vmem:[%s1 + $0x30] sm:$0xff]
  %v1244 = vld [vmem:[%s1 + $0x38] sm:$0xff]
  %v1245 = vld [vmem:[%s1 + $0x40] sm:$0xff]
  %v1246 = vld [vmem:[%s1 + $0x48] sm:$0xff]
  %v1247 = vld [vmem:[%s1 + $0x50] sm:$0xff]
  %v1248 = vld [vmem:[%s1 + $0x58] sm:$0xff]
  %v1249 = vld [vmem:[%s1 + $0x60] sm:$0xff]
  %v1250 = vld [vmem:[%s1 + $0x68] sm:$0xff]
  %v1251 = vld [vmem:[%s1 + $0x70] sm:$0xff]
  %v1252 = vld [vmem:[%s1 + $0x78] sm:$0xff]
  %v1253 = vld [vmem:[%s1 + $0x80] sm:$0xff]
  %v1254 = vld [vmem:[%s1 + $0x88] sm:$0xff]
  %v1255 = vld [vmem:[%s1 + $0x90] sm:$0xff]
  %v1256 = vld [vmem:[%s1 + $0x98] sm:$0xff]
  %v1257 = vld [vmem:[%s1 + $0xa0] sm:$0xff]
  %v1258 = vld [vmem:[%s1 + $0xa8] sm:$0xff]
  %v1259 = vld [vmem:[%s1 + $0xb0] sm:$0xff]
  %v1260 = vld [vmem:[%s1 + $0xb8] sm:$0xff]
  %v1261 = vld [vmem:[%s1 + $0xc0] sm:$0xff]
  %v1262 = vld [vmem:[%s1 + $0xc8] sm:$0xff]
  %v1263 = vld [vmem:[%s1 + $0xd0] sm:$0xff]
  %v1264 = vld [vmem:[%s1 + $0xd8] sm:$0xff]
  %v1265 = vld [vmem:[%s1 + $0xe0] sm:$0xff]
  %v1266 = vld [vmem:[%s1 + $0xe8] sm:$0xff]
  %v1267 = vld [vmem:[%s1 + $0xf0] sm:$0xff]
  %v1268 = vld [vmem:[%s1 + $0xf8] sm:$0xff]
  %v1269 = vld [vmem:[%s1 + $0x100] sm:$0xff]
  %v1270 = vld [vmem:[%s1 + $0x108] sm:$0xff]
  %v1271 = vld [vmem:[%s1 + $0x110] sm:$0xff]
  %v1272 = vld [vmem:[%s1 + $0x118] sm:$0xff]
  %v1273 = vld [vmem:[%s1 + $0x120] sm:$0xff]
  %v1274 = vld [vmem:[%s1 + $0x128] sm:$0xff]
  %v1275 = vld [vmem:[%s1 + $0x130] sm:$0xff]
  %v1276 = vld [vmem:[%s1 + $0x138] sm:$0xff]
  %v1277 = vld [vmem:[%s1 + $0x140] sm:$0xff]
  %v1278 = vld [vmem:[%s1 + $0x148] sm:$0xff]
  %v1279 = vld [vmem:[%s1 + $0x150] sm:$0xff]
  %v1280 = vld [vmem:[%s1 + $0x158] sm:$0xff]
  %v1281 = vld [vmem:[%s1 + $0x160] sm:$0xff]
  %v1282 = vld [vmem:[%s1 + $0x168] sm:$0xff]
  %v1283 = vld [vmem:[%s1 + $0x170] sm:$0xff]
  %v1284 = vld [vmem:[%s1 + $0x178] sm:$0xff]
  %v1285 = vld [vmem:[%s1 + $0x180] sm:$0xff]
  %v1286 = vld [vmem:[%s1 + $0x188] sm:$0xff]
  %v1287 = vld [vmem:[%s1 + $0x190] sm:$0xff]
  %v1288 = vld [vmem:[%s1 + $0x198] sm:$0xff]
  %v1289 = vld [vmem:[%s1 + $0x1a0] sm:$0xff]
  %v1290 = vld [vmem:[%s1 + $0x1a8] sm:$0xff]
  %v1291 = vld [vmem:[%s1 + $0x1b0] sm:$0xff]
  %v1292 = vld [vmem:[%s1 + $0x1b8] sm:$0xff]
  %v1293 = vld [vmem:[%s1 + $0x1c0] sm:$0xff]
  %v1294 = vld [vmem:[%s1 + $0x1c8] sm:$0xff]
  %v1295 = vld [vmem:[%s1 + $0x1d0] sm:$0xff]
  %v1296 = vld [vmem:[%s1 + $0x1d8] sm:$0xff]
  %v1297 = vld [vmem:[%s1 + $0x1e0] sm:$0xff]
  %v1298 = vld [vmem:[%s1 + $0x1e8] sm:$0xff]
  %v1299 = vld [vmem:[%s1 + $0x1f0] sm:$0xff]
  %v1300 = vld [vmem:[%s1 + $0x1f8] sm:$0xff]
  %1301 = vmatprep.subr.mxu0 %v1298
  %1302 = vmatpush1.msra.mxu0 %v1297
  %1303 = vmatprep.subr.mxu0 %v1294
  %1304 = vmatpush1.msra.mxu0 %v1293
  %1305 = vmatprep.subr.mxu0 %v1290
  %1306 = vmatpush1.msra.mxu0 %v1289
  %1307 = vmatprep.subr.mxu0 %v1286
  %1308 = vmatpush1.msra.mxu0 %v1285
  %1309 = vmatprep.subr.mxu0 %v1282
  %1310 = vmatpush1.msra.mxu0 %v1281
  %1311 = vmatprep.subr.mxu0 %v1278
  %1312 = vmatpush1.msra.mxu0 %v1277
  %1313 = vmatprep.subr.mxu0 %v1274
  %1314 = vmatpush1.msra.mxu0 %v1273
  %1315 = vmatprep.subr.mxu0 %v1270
  %1316 = vmatpush1.msra.mxu0 %v1269
  %1317 = vmatprep.subr.mxu0 %v1266
  %1318 = vmatpush1.msra.mxu0 %v1265
  %1319 = vmatprep.subr.mxu0 %v1262
  %1320 = vmatpush1.msra.mxu0 %v1261
  %1321 = vmatprep.subr.mxu0 %v1258
  %1322 = vmatpush1.msra.mxu0 %v1257
  %1323 = vmatprep.subr.mxu0 %v1254
  %1324 = vmatpush1.msra.mxu0 %v1253
  %1325 = vmatprep.subr.mxu0 %v1250
  %1326 = vmatpush1.msra.mxu0 %v1249
  %1327 = vmatprep.subr.mxu0 %v1246
  %1328 = vmatpush1.msra.mxu0 %v1245
  %1329 = vmatprep.subr.mxu0 %v1242
  %1330 = vmatpush1.msra.mxu0 %v1241
  %1331 = vmatprep.subr.mxu0 %v1238
  %1332 = vmatpush1.msra.mxu0 %v1237
  %1333 = vmatprep.subr.mxu0 0.0
  %1334 = vmatpush2.msra.mxu0 0.0
  %1335 = vmatprep.subr.mxu0 0.0
  %1336 = vmatpush2.msra.mxu0 0.0
  %1337 = vmatprep.subr.mxu0 0.0
  %1338 = vmatpush2.msra.mxu0 0.0
  %1339 = vmatprep.subr.mxu0 0.0
  %1340 = vmatpush2.msra.mxu0 0.0
  %1341 = vmatprep.subr.mxu0 0.0
  %1342 = vmatpush2.msra.mxu0 0.0
  %1343 = vmatprep.subr.mxu0 0.0
  %1344 = vmatpush2.msra.mxu0 0.0
  %1345 = vmatprep.subr.mxu0 0.0
  %1346 = vmatpush2.msra.mxu0 0.0
  %1347 = vmatprep.subr.mxu0 0.0
  %1348 = vmatpush2.msra.mxu0 0.0
  %1349 = vmatprep.subr.mxu0 0.0
  %1350 = vmatpush2.msra.mxu0 0.0
  %1351 = vmatprep.subr.mxu0 0.0
  %1352 = vmatpush2.msra.mxu0 0.0
  %1353 = vmatprep.subr.mxu0 0.0
  %1354 = vmatpush2.msra.mxu0 0.0
  %1355 = vmatprep.subr.mxu0 0.0
  %1356 = vmatpush2.msra.mxu0 0.0
  %1357 = vmatprep.subr.mxu0 0.0
  %1358 = vmatpush2.msra.mxu0 0.0
  %1359 = vmatprep.subr.mxu0 0.0
  %1360 = vmatpush2.msra.mxu0 0.0
  %1361 = vmatprep.subr.mxu0 0.0
  %1362 = vmatpush2.msra.mxu0 0.0
  %1363 = vmatprep.subr.mxu0 0.0
  %1364 = vmatpush2.msra.mxu0 0.0
  %1365 = vmatprep.mubr.f32.mxu0 0.0
  %1366 = vmatmul.mubr.f32.gmra.mxu0 %v1236
  %v1367 = vpop.f32.mrf.mxu0
  %v1368 = vadd.f32 0.0, %v1367
  %v1369 = vpop.f32.mrf.mxu0
  %v1370 = vadd.f32 0.0, %v1369
  %1371 = vdwg.mxu0
  %1372 = vmatprep.subr.mxu0 %v1300
  %1373 = vmatpush1.msra.mxu0 %v1299
  %1374 = vmatprep.subr.mxu0 %v1296
  %1375 = vmatpush1.msra.mxu0 %v1295
  %1376 = vmatprep.subr.mxu0 %v1292
  %1377 = vmatpush1.msra.mxu0 %v1291
  %1378 = vmatprep.subr.mxu0 %v1288
  %1379 = vmatpush1.msra.mxu0 %v1287
  %1380 = vmatprep.subr.mxu0 %v1284
  %1381 = vmatpush1.msra.mxu0 %v1283
  %1382 = vmatprep.subr.mxu0 %v1280
  %1383 = vmatpush1.msra.mxu0 %v1279
  %1384 = vmatprep.subr.mxu0 %v1276
  %1385 = vmatpush1.msra.mxu0 %v1275
  %1386 = vmatprep.subr.mxu0 %v1272
  %1387 = vmatpush1.msra.mxu0 %v1271
  %1388 = vmatprep.subr.mxu0 %v1268
  %1389 = vmatpush1.msra.mxu0 %v1267
  %1390 = vmatprep.subr.mxu0 %v1264
  %1391 = vmatpush1.msra.mxu0 %v1263
  %1392 = vmatprep.subr.mxu0 %v1260
  %1393 = vmatpush1.msra.mxu0 %v1259
  %1394 = vmatprep.subr.mxu0 %v1256
  %1395 = vmatpush1.msra.mxu0 %v1255
  %1396 = vmatprep.subr.mxu0 %v1252
  %1397 = vmatpush1.msra.mxu0 %v1251
  %1398 = vmatprep.subr.mxu0 %v1248
  %1399 = vmatpush1.msra.mxu0 %v1247
  %1400 = vmatprep.subr.mxu0 %v1244
  %1401 = vmatpush1.msra.mxu0 %v1243
  %1402 = vmatprep.subr.mxu0 %v1240
  %1403 = vmatpush1.msra.mxu0 %v1239
  %1404 = vmatprep.subr.mxu0 0.0
  %1405 = vmatpush2.msra.mxu0 0.0
  %1406 = vmatprep.subr.mxu0 0.0
  %1407 = vmatpush2.msra.mxu0 0.0
  %1408 = vmatprep.subr.mxu0 0.0
  %1409 = vmatpush2.msra.mxu0 0.0
  %1410 = vmatprep.subr.mxu0 0.0
  %1411 = vmatpush2.msra.mxu0 0.0
  %1412 = vmatprep.subr.mxu0 0.0
  %1413 = vmatpush2.msra.mxu0 0.0
  %1414 = vmatprep.subr.mxu0 0.0
  %1415 = vmatpush2.msra.mxu0 0.0
  %1416 = vmatprep.subr.mxu0 0.0
  %1417 = vmatpush2.msra.mxu0 0.0
  %1418 = vmatprep.subr.mxu0 0.0
  %1419 = vmatpush2.msra.mxu0 0.0
  %1420 = vmatprep.subr.mxu0 0.0
  %1421 = vmatpush2.msra.mxu0 0.0
  %1422 = vmatprep.subr.mxu0 0.0
  %1423 = vmatpush2.msra.mxu0 0.0
  %1424 = vmatprep.subr.mxu0 0.0
  %1425 = vmatpush2.msra.mxu0 0.0
  %1426 = vmatprep.subr.mxu0 0.0
  %1427 = vmatpush2.msra.mxu0 0.0
  %1428 = vmatprep.subr.mxu0 0.0
  %1429 = vmatpush2.msra.mxu0 0.0
  %1430 = vmatprep.subr.mxu0 0.0
  %1431 = vmatpush2.msra.mxu0 0.0
  %1432 = vmatprep.subr.mxu0 0.0
  %1433 = vmatpush2.msra.mxu0 0.0
  %1434 = vmatprep.subr.mxu0 0.0
  %1435 = vmatpush2.msra.mxu0 0.0
  %1436 = vmatprep.mubr.f32.mxu0 0.0
  %1437 = vmatmul.mubr.f32.gmra.mxu0 %v1236
  %v1438 = vpop.f32.mrf.mxu0
  %v1439 = vadd.f32 0.0, %v1438
  %v1440 = vpop.f32.mrf.mxu0
  %v1441 = vadd.f32 0.0, %v1440
  %1442 = vdwg.mxu0
  %v1443 = vadd.f32 %v1232, %v1368
  %v1444 = vadd.f32 %v1233, %v1370
  %v1445 = vadd.f32 %v1234, %v1439
  %v1446 = vadd.f32 %v1235, %v1441
  %v1447 = vxor.u32 %v1443, 2147483648
  %v1448 = vmul.f32 %v1447, 1.442695
  %v1449 = vpow.pop %v1448
  %v1450 = vadd.f32 %v1449, 1.0
  %v1451 = vrcp.pop %v1450
  %v1452 = vmul.f32 1.0, %v1451
  %v1453 = vxor.u32 %v1444, 2147483648
  %v1454 = vmul.f32 %v1453, 1.442695
  %v1455 = vpow.pop %v1454
  %v1456 = vadd.f32 %v1455, 1.0
  %v1457 = vrcp.pop %v1456
  %v1458 = vmul.f32 1.0, %v1457
  %v1459 = vtanh.pop %v1445
  %v1460 = vxor.u32 %v1446, 2147483648
  %v1461 = vmul.f32 %v1460, 1.442695
  %v1462 = vpow.pop %v1461
  %v1463 = vadd.f32 %v1462, 1.0
  %v1464 = vrcp.pop %v1463
  %v1465 = vmul.f32 1.0, %v1464
  %v1466 = vld [vmem:[#allocation3] sm:$0xff]
  %v1467 = vmul.f32 %v1458, %v1466
  %v1468 = vmul.f32 %v1452, %v1459
  %v1469 = vadd.f32 %v1467, %v1468
  %v1470 = vtanh.pop %v1469
  %v1471 = vmul.f32 %v1465, %v1470
  %1472 = vst [vmem:[#allocation3] sm:$0xff] %v1469
  %1473 = vst [vmem:[#allocation2] sm:$0xff] %v1471
  %s1474 = scalar_lea.vmem %s0, 192
  %v1475 = vld [vmem:[%s1474] sm:$0xff]
  %v1476 = vld [vmem:[%s1474 + $0x8] sm:$0xff]
  %v1477 = vld [vmem:[%s1474 + $0x10] sm:$0xff]
  %v1478 = vld [vmem:[%s1474 + $0x18] sm:$0xff]
  %v1479 = vld [vmem:[#allocation2] sm:$0xff]
  %v1480 = vld [vmem:[%s1] sm:$0xff]
  %v1481 = vld [vmem:[%s1 + $0x8] sm:$0xff]
  %v1482 = vld [vmem:[%s1 + $0x10] sm:$0xff]
  %v1483 = vld [vmem:[%s1 + $0x18] sm:$0xff]
  %v1484 = vld [vmem:[%s1 + $0x20] sm:$0xff]
  %v1485 = vld [vmem:[%s1 + $0x28] sm:$0xff]
  %v1486 = vld [vmem:[%s1 + $0x30] sm:$0xff]
  %v1487 = vld [vmem:[%s1 + $0x38] sm:$0xff]
  %v1488 = vld [vmem:[%s1 + $0x40] sm:$0xff]
  %v1489 = vld [vmem:[%s1 + $0x48] sm:$0xff]
  %v1490 = vld [vmem:[%s1 + $0x50] sm:$0xff]
  %v1491 = vld [vmem:[%s1 + $0x58] sm:$0xff]
  %v1492 = vld [vmem:[%s1 + $0x60] sm:$0xff]
  %v1493 = vld [vmem:[%s1 + $0x68] sm:$0xff]
  %v1494 = vld [vmem:[%s1 + $0x70] sm:$0xff]
  %v1495 = vld [vmem:[%s1 + $0x78] sm:$0xff]
  %v1496 = vld [vmem:[%s1 + $0x80] sm:$0xff]
  %v1497 = vld [vmem:[%s1 + $0x88] sm:$0xff]
  %v1498 = vld [vmem:[%s1 + $0x90] sm:$0xff]
  %v1499 = vld [vmem:[%s1 + $0x98] sm:$0xff]
  %v1500 = vld [vmem:[%s1 + $0xa0] sm:$0xff]
  %v1501 = vld [vmem:[%s1 + $0xa8] sm:$0xff]
  %v1502 = vld [vmem:[%s1 + $0xb0] sm:$0xff]
  %v1503 = vld [vmem:[%s1 + $0xb8] sm:$0xff]
  %v1504 = vld [vmem:[%s1 + $0xc0] sm:$0xff]
  %v1505 = vld [vmem:[%s1 + $0xc8] sm:$0xff]
  %v1506 = vld [vmem:[%s1 + $0xd0] sm:$0xff]
  %v1507 = vld [vmem:[%s1 + $0xd8] sm:$0xff]
  %v1508 = vld [vmem:[%s1 + $0xe0] sm:$0xff]
  %v1509 = vld [vmem:[%s1 + $0xe8] sm:$0xff]
  %v1510 = vld [vmem:[%s1 + $0xf0] sm:$0xff]
  %v1511 = vld [vmem:[%s1 + $0xf8] sm:$0xff]
  %v1512 = vld [vmem:[%s1 + $0x100] sm:$0xff]
  %v1513 = vld [vmem:[%s1 + $0x108] sm:$0xff]
  %v1514 = vld [vmem:[%s1 + $0x110] sm:$0xff]
  %v1515 = vld [vmem:[%s1 + $0x118] sm:$0xff]
  %v1516 = vld [vmem:[%s1 + $0x120] sm:$0xff]
  %v1517 = vld [vmem:[%s1 + $0x128] sm:$0xff]
  %v1518 = vld [vmem:[%s1 + $0x130] sm:$0xff]
  %v1519 = vld [vmem:[%s1 + $0x138] sm:$0xff]
  %v1520 = vld [vmem:[%s1 + $0x140] sm:$0xff]
  %v1521 = vld [vmem:[%s1 + $0x148] sm:$0xff]
  %v1522 = vld [vmem:[%s1 + $0x150] sm:$0xff]
  %v1523 = vld [vmem:[%s1 + $0x158] sm:$0xff]
  %v1524 = vld [vmem:[%s1 + $0x160] sm:$0xff]
  %v1525 = vld [vmem:[%s1 + $0x168] sm:$0xff]
  %v1526 = vld [vmem:[%s1 + $0x170] sm:$0xff]
  %v1527 = vld [vmem:[%s1 + $0x178] sm:$0xff]
  %v1528 = vld [vmem:[%s1 + $0x180] sm:$0xff]
  %v1529 = vld [vmem:[%s1 + $0x188] sm:$0xff]
  %v1530 = vld [vmem:[%s1 + $0x190] sm:$0xff]
  %v1531 = vld [vmem:[%s1 + $0x198] sm:$0xff]
  %v1532 = vld [vmem:[%s1 + $0x1a0] sm:$0xff]
  %v1533 = vld [vmem:[%s1 + $0x1a8] sm:$0xff]
  %v1534 = vld [vmem:[%s1 + $0x1b0] sm:$0xff]
  %v1535 = vld [vmem:[%s1 + $0x1b8] sm:$0xff]
  %v1536 = vld [vmem:[%s1 + $0x1c0] sm:$0xff]
  %v1537 = vld [vmem:[%s1 + $0x1c8] sm:$0xff]
  %v1538 = vld [vmem:[%s1 + $0x1d0] sm:$0xff]
  %v1539 = vld [vmem:[%s1 + $0x1d8] sm:$0xff]
  %v1540 = vld [vmem:[%s1 + $0x1e0] sm:$0xff]
  %v1541 = vld [vmem:[%s1 + $0x1e8] sm:$0xff]
  %v1542 = vld [vmem:[%s1 + $0x1f0] sm:$0xff]
  %v1543 = vld [vmem:[%s1 + $0x1f8] sm:$0xff]
  %1544 = vmatprep.subr.mxu0 %v1541
  %1545 = vmatpush1.msra.mxu0 %v1540
  %1546 = vmatprep.subr.mxu0 %v1537
  %1547 = vmatpush1.msra.mxu0 %v1536
  %1548 = vmatprep.subr.mxu0 %v1533
  %1549 = vmatpush1.msra.mxu0 %v1532
  %1550 = vmatprep.subr.mxu0 %v1529
  %1551 = vmatpush1.msra.mxu0 %v1528
  %1552 = vmatprep.subr.mxu0 %v1525
  %1553 = vmatpush1.msra.mxu0 %v1524
  %1554 = vmatprep.subr.mxu0 %v1521
  %1555 = vmatpush1.msra.mxu0 %v1520
  %1556 = vmatprep.subr.mxu0 %v1517
  %1557 = vmatpush1.msra.mxu0 %v1516
  %1558 = vmatprep.subr.mxu0 %v1513
  %1559 = vmatpush1.msra.mxu0 %v1512
  %1560 = vmatprep.subr.mxu0 %v1509
  %1561 = vmatpush1.msra.mxu0 %v1508
  %1562 = vmatprep.subr.mxu0 %v1505
  %1563 = vmatpush1.msra.mxu0 %v1504
  %1564 = vmatprep.subr.mxu0 %v1501
  %1565 = vmatpush1.msra.mxu0 %v1500
  %1566 = vmatprep.subr.mxu0 %v1497
  %1567 = vmatpush1.msra.mxu0 %v1496
  %1568 = vmatprep.subr.mxu0 %v1493
  %1569 = vmatpush1.msra.mxu0 %v1492
  %1570 = vmatprep.subr.mxu0 %v1489
  %1571 = vmatpush1.msra.mxu0 %v1488
  %1572 = vmatprep.subr.mxu0 %v1485
  %1573 = vmatpush1.msra.mxu0 %v1484
  %1574 = vmatprep.subr.mxu0 %v1481
  %1575 = vmatpush1.msra.mxu0 %v1480
  %1576 = vmatprep.subr.mxu0 0.0
  %1577 = vmatpush2.msra.mxu0 0.0
  %1578 = vmatprep.subr.mxu0 0.0
  %1579 = vmatpush2.msra.mxu0 0.0
  %1580 = vmatprep.subr.mxu0 0.0
  %1581 = vmatpush2.msra.mxu0 0.0
  %1582 = vmatprep.subr.mxu0 0.0
  %1583 = vmatpush2.msra.mxu0 0.0
  %1584 = vmatprep.subr.mxu0 0.0
  %1585 = vmatpush2.msra.mxu0 0.0
  %1586 = vmatprep.subr.mxu0 0.0
  %1587 = vmatpush2.msra.mxu0 0.0
  %1588 = vmatprep.subr.mxu0 0.0
  %1589 = vmatpush2.msra.mxu0 0.0
  %1590 = vmatprep.subr.mxu0 0.0
  %1591 = vmatpush2.msra.mxu0 0.0
  %1592 = vmatprep.subr.mxu0 0.0
  %1593 = vmatpush2.msra.mxu0 0.0
  %1594 = vmatprep.subr.mxu0 0.0
  %1595 = vmatpush2.msra.mxu0 0.0
  %1596 = vmatprep.subr.mxu0 0.0
  %1597 = vmatpush2.msra.mxu0 0.0
  %1598 = vmatprep.subr.mxu0 0.0
  %1599 = vmatpush2.msra.mxu0 0.0
  %1600 = vmatprep.subr.mxu0 0.0
  %1601 = vmatpush2.msra.mxu0 0.0
  %1602 = vmatprep.subr.mxu0 0.0
  %1603 = vmatpush2.msra.mxu0 0.0
  %1604 = vmatprep.subr.mxu0 0.0
  %1605 = vmatpush2.msra.mxu0 0.0
  %1606 = vmatprep.subr.mxu0 0.0
  %1607 = vmatpush2.msra.mxu0 0.0
  %1608 = vmatprep.mubr.f32.mxu0 0.0
  %1609 = vmatmul.mubr.f32.gmra.mxu0 %v1479
  %v1610 = vpop.f32.mrf.mxu0
  %v1611 = vadd.f32 0.0, %v1610
  %v1612 = vpop.f32.mrf.mxu0
  %v1613 = vadd.f32 0.0, %v1612
  %1614 = vdwg.mxu0
  %1615 = vmatprep.subr.mxu0 %v1543
  %1616 = vmatpush1.msra.mxu0 %v1542
  %1617 = vmatprep.subr.mxu0 %v1539
  %1618 = vmatpush1.msra.mxu0 %v1538
  %1619 = vmatprep.subr.mxu0 %v1535
  %1620 = vmatpush1.msra.mxu0 %v1534
  %1621 = vmatprep.subr.mxu0 %v1531
  %1622 = vmatpush1.msra.mxu0 %v1530
  %1623 = vmatprep.subr.mxu0 %v1527
  %1624 = vmatpush1.msra.mxu0 %v1526
  %1625 = vmatprep.subr.mxu0 %v1523
  %1626 = vmatpush1.msra.mxu0 %v1522
  %1627 = vmatprep.subr.mxu0 %v1519
  %1628 = vmatpush1.msra.mxu0 %v1518
  %1629 = vmatprep.subr.mxu0 %v1515
  %1630 = vmatpush1.msra.mxu0 %v1514
  %1631 = vmatprep.subr.mxu0 %v1511
  %1632 = vmatpush1.msra.mxu0 %v1510
  %1633 = vmatprep.subr.mxu0 %v1507
  %1634 = vmatpush1.msra.mxu0 %v1506
  %1635 = vmatprep.subr.mxu0 %v1503
  %1636 = vmatpush1.msra.mxu0 %v1502
  %1637 = vmatprep.subr.mxu0 %v1499
  %1638 = vmatpush1.msra.mxu0 %v1498
  %1639 = vmatprep.subr.mxu0 %v1495
  %1640 = vmatpush1.msra.mxu0 %v1494
  %1641 = vmatprep.subr.mxu0 %v1491
  %1642 = vmatpush1.msra.mxu0 %v1490
  %1643 = vmatprep.subr.mxu0 %v1487
  %1644 = vmatpush1.msra.mxu0 %v1486
  %1645 = vmatprep.subr.mxu0 %v1483
  %1646 = vmatpush1.msra.mxu0 %v1482
  %1647 = vmatprep.subr.mxu0 0.0
  %1648 = vmatpush2.msra.mxu0 0.0
  %1649 = vmatprep.subr.mxu0 0.0
  %1650 = vmatpush2.msra.mxu0 0.0
  %1651 = vmatprep.subr.mxu0 0.0
  %1652 = vmatpush2.msra.mxu0 0.0
  %1653 = vmatprep.subr.mxu0 0.0
  %1654 = vmatpush2.msra.mxu0 0.0
  %1655 = vmatprep.subr.mxu0 0.0
  %1656 = vmatpush2.msra.mxu0 0.0
  %1657 = vmatprep.subr.mxu0 0.0
  %1658 = vmatpush2.msra.mxu0 0.0
  %1659 = vmatprep.subr.mxu0 0.0
  %1660 = vmatpush2.msra.mxu0 0.0
  %1661 = vmatprep.subr.mxu0 0.0
  %1662 = vmatpush2.msra.mxu0 0.0
  %1663 = vmatprep.subr.mxu0 0.0
  %1664 = vmatpush2.msra.mxu0 0.0
  %1665 = vmatprep.subr.mxu0 0.0
  %1666 = vmatpush2.msra.mxu0 0.0
  %1667 = vmatprep.subr.mxu0 0.0
  %1668 = vmatpush2.msra.mxu0 0.0
  %1669 = vmatprep.subr.mxu0 0.0
  %1670 = vmatpush2.msra.mxu0 0.0
  %1671 = vmatprep.subr.mxu0 0.0
  %1672 = vmatpush2.msra.mxu0 0.0
  %1673 = vmatprep.subr.mxu0 0.0
  %1674 = vmatpush2.msra.mxu0 0.0
  %1675 = vmatprep.subr.mxu0 0.0
  %1676 = vmatpush2.msra.mxu0 0.0
  %1677 = vmatprep.subr.mxu0 0.0
  %1678 = vmatpush2.msra.mxu0 0.0
  %1679 = vmatprep.mubr.f32.mxu0 0.0
  %1680 = vmatmul.mubr.f32.gmra.mxu0 %v1479
  %v1681 = vpop.f32.mrf.mxu0
  %v1682 = vadd.f32 0.0, %v1681
  %v1683 = vpop.f32.mrf.mxu0
  %v1684 = vadd.f32 0.0, %v1683
  %1685 = vdwg.mxu0
  %v1686 = vadd.f32 %v1475, %v1611
  %v1687 = vadd.f32 %v1476, %v1613
  %v1688 = vadd.f32 %v1477, %v1682
  %v1689 = vadd.f32 %v1478, %v1684
  %v1690 = vxor.u32 %v1686, 2147483648
  %v1691 = vmul.f32 %v1690, 1.442695
  %v1692 = vpow.pop %v1691
  %v1693 = vadd.f32 %v1692, 1.0
  %v1694 = vrcp.pop %v1693
  %v1695 = vmul.f32 1.0, %v1694
  %v1696 = vxor.u32 %v1687, 2147483648
  %v1697 = vmul.f32 %v1696, 1.442695
  %v1698 = vpow.pop %v1697
  %v1699 = vadd.f32 %v1698, 1.0
  %v1700 = vrcp.pop %v1699
  %v1701 = vmul.f32 1.0, %v1700
  %v1702 = vtanh.pop %v1688
  %v1703 = vxor.u32 %v1689, 2147483648
  %v1704 = vmul.f32 %v1703, 1.442695
  %v1705 = vpow.pop %v1704
  %v1706 = vadd.f32 %v1705, 1.0
  %v1707 = vrcp.pop %v1706
  %v1708 = vmul.f32 1.0, %v1707
  %v1709 = vld [vmem:[#allocation3] sm:$0xff]
  %v1710 = vmul.f32 %v1701, %v1709
  %v1711 = vmul.f32 %v1695, %v1702
  %v1712 = vadd.f32 %v1710, %v1711
  %v1713 = vtanh.pop %v1712
  %v1714 = vmul.f32 %v1708, %v1713
  %1715 = vst [vmem:[#allocation3] sm:$0xff] %v1712
  %1716 = vst [vmem:[#allocation2] sm:$0xff] %v1714
  %s1717 = scalar_lea.vmem %s0, 224
  %v1718 = vld [vmem:[%s1717] sm:$0xff]
  %v1719 = vld [vmem:[%s1717 + $0x8] sm:$0xff]
  %v1720 = vld [vmem:[%s1717 + $0x10] sm:$0xff]
  %v1721 = vld [vmem:[%s1717 + $0x18] sm:$0xff]
  %v1722 = vld [vmem:[#allocation2] sm:$0xff]
  %v1723 = vld [vmem:[%s1] sm:$0xff]
  %v1724 = vld [vmem:[%s1 + $0x8] sm:$0xff]
  %v1725 = vld [vmem:[%s1 + $0x10] sm:$0xff]
  %v1726 = vld [vmem:[%s1 + $0x18] sm:$0xff]
  %v1727 = vld [vmem:[%s1 + $0x20] sm:$0xff]
  %v1728 = vld [vmem:[%s1 + $0x28] sm:$0xff]
  %v1729 = vld [vmem:[%s1 + $0x30] sm:$0xff]
  %v1730 = vld [vmem:[%s1 + $0x38] sm:$0xff]
  %v1731 = vld [vmem:[%s1 + $0x40] sm:$0xff]
  %v1732 = vld [vmem:[%s1 + $0x48] sm:$0xff]
  %v1733 = vld [vmem:[%s1 + $0x50] sm:$0xff]
  %v1734 = vld [vmem:[%s1 + $0x58] sm:$0xff]
  %v1735 = vld [vmem:[%s1 + $0x60] sm:$0xff]
  %v1736 = vld [vmem:[%s1 + $0x68] sm:$0xff]
  %v1737 = vld [vmem:[%s1 + $0x70] sm:$0xff]
  %v1738 = vld [vmem:[%s1 + $0x78] sm:$0xff]
  %v1739 = vld [vmem:[%s1 + $0x80] sm:$0xff]
  %v1740 = vld [vmem:[%s1 + $0x88] sm:$0xff]
  %v1741 = vld [vmem:[%s1 + $0x90] sm:$0xff]
  %v1742 = vld [vmem:[%s1 + $0x98] sm:$0xff]
  %v1743 = vld [vmem:[%s1 + $0xa0] sm:$0xff]
  %v1744 = vld [vmem:[%s1 + $0xa8] sm:$0xff]
  %v1745 = vld [vmem:[%s1 + $0xb0] sm:$0xff]
  %v1746 = vld [vmem:[%s1 + $0xb8] sm:$0xff]
  %v1747 = vld [vmem:[%s1 + $0xc0] sm:$0xff]
  %v1748 = vld [vmem:[%s1 + $0xc8] sm:$0xff]
  %v1749 = vld [vmem:[%s1 + $0xd0] sm:$0xff]
  %v1750 = vld [vmem:[%s1 + $0xd8] sm:$0xff]
  %v1751 = vld [vmem:[%s1 + $0xe0] sm:$0xff]
  %v1752 = vld [vmem:[%s1 + $0xe8] sm:$0xff]
  %v1753 = vld [vmem:[%s1 + $0xf0] sm:$0xff]
  %v1754 = vld [vmem:[%s1 + $0xf8] sm:$0xff]
  %v1755 = vld [vmem:[%s1 + $0x100] sm:$0xff]
  %v1756 = vld [vmem:[%s1 + $0x108] sm:$0xff]
  %v1757 = vld [vmem:[%s1 + $0x110] sm:$0xff]
  %v1758 = vld [vmem:[%s1 + $0x118] sm:$0xff]
  %v1759 = vld [vmem:[%s1 + $0x120] sm:$0xff]
  %v1760 = vld [vmem:[%s1 + $0x128] sm:$0xff]
  %v1761 = vld [vmem:[%s1 + $0x130] sm:$0xff]
  %v1762 = vld [vmem:[%s1 + $0x138] sm:$0xff]
  %v1763 = vld [vmem:[%s1 + $0x140] sm:$0xff]
  %v1764 = vld [vmem:[%s1 + $0x148] sm:$0xff]
  %v1765 = vld [vmem:[%s1 + $0x150] sm:$0xff]
  %v1766 = vld [vmem:[%s1 + $0x158] sm:$0xff]
  %v1767 = vld [vmem:[%s1 + $0x160] sm:$0xff]
  %v1768 = vld [vmem:[%s1 + $0x168] sm:$0xff]
  %v1769 = vld [vmem:[%s1 + $0x170] sm:$0xff]
  %v1770 = vld [vmem:[%s1 + $0x178] sm:$0xff]
  %v1771 = vld [vmem:[%s1 + $0x180] sm:$0xff]
  %v1772 = vld [vmem:[%s1 + $0x188] sm:$0xff]
  %v1773 = vld [vmem:[%s1 + $0x190] sm:$0xff]
  %v1774 = vld [vmem:[%s1 + $0x198] sm:$0xff]
  %v1775 = vld [vmem:[%s1 + $0x1a0] sm:$0xff]
  %v1776 = vld [vmem:[%s1 + $0x1a8] sm:$0xff]
  %v1777 = vld [vmem:[%s1 + $0x1b0] sm:$0xff]
  %v1778 = vld [vmem:[%s1 + $0x1b8] sm:$0xff]
  %v1779 = vld [vmem:[%s1 + $0x1c0] sm:$0xff]
  %v1780 = vld [vmem:[%s1 + $0x1c8] sm:$0xff]
  %v1781 = vld [vmem:[%s1 + $0x1d0] sm:$0xff]
  %v1782 = vld [vmem:[%s1 + $0x1d8] sm:$0xff]
  %v1783 = vld [vmem:[%s1 + $0x1e0] sm:$0xff]
  %v1784 = vld [vmem:[%s1 + $0x1e8] sm:$0xff]
  %v1785 = vld [vmem:[%s1 + $0x1f0] sm:$0xff]
  %v1786 = vld [vmem:[%s1 + $0x1f8] sm:$0xff]
  %1787 = vmatprep.subr.mxu0 %v1784
  %1788 = vmatpush1.msra.mxu0 %v1783
  %1789 = vmatprep.subr.mxu0 %v1780
  %1790 = vmatpush1.msra.mxu0 %v1779
  %1791 = vmatprep.subr.mxu0 %v1776
  %1792 = vmatpush1.msra.mxu0 %v1775
  %1793 = vmatprep.subr.mxu0 %v1772
  %1794 = vmatpush1.msra.mxu0 %v1771
  %1795 = vmatprep.subr.mxu0 %v1768
  %1796 = vmatpush1.msra.mxu0 %v1767
  %1797 = vmatprep.subr.mxu0 %v1764
  %1798 = vmatpush1.msra.mxu0 %v1763
  %1799 = vmatprep.subr.mxu0 %v1760
  %1800 = vmatpush1.msra.mxu0 %v1759
  %1801 = vmatprep.subr.mxu0 %v1756
  %1802 = vmatpush1.msra.mxu0 %v1755
  %1803 = vmatprep.subr.mxu0 %v1752
  %1804 = vmatpush1.msra.mxu0 %v1751
  %1805 = vmatprep.subr.mxu0 %v1748
  %1806 = vmatpush1.msra.mxu0 %v1747
  %1807 = vmatprep.subr.mxu0 %v1744
  %1808 = vmatpush1.msra.mxu0 %v1743
  %1809 = vmatprep.subr.mxu0 %v1740
  %1810 = vmatpush1.msra.mxu0 %v1739
  %1811 = vmatprep.subr.mxu0 %v1736
  %1812 = vmatpush1.msra.mxu0 %v1735
  %1813 = vmatprep.subr.mxu0 %v1732
  %1814 = vmatpush1.msra.mxu0 %v1731
  %1815 = vmatprep.subr.mxu0 %v1728
  %1816 = vmatpush1.msra.mxu0 %v1727
  %1817 = vmatprep.subr.mxu0 %v1724
  %1818 = vmatpush1.msra.mxu0 %v1723
  %1819 = vmatprep.subr.mxu0 0.0
  %1820 = vmatpush2.msra.mxu0 0.0
  %1821 = vmatprep.subr.mxu0 0.0
  %1822 = vmatpush2.msra.mxu0 0.0
  %1823 = vmatprep.subr.mxu0 0.0
  %1824 = vmatpush2.msra.mxu0 0.0
  %1825 = vmatprep.subr.mxu0 0.0
  %1826 = vmatpush2.msra.mxu0 0.0
  %1827 = vmatprep.subr.mxu0 0.0
  %1828 = vmatpush2.msra.mxu0 0.0
  %1829 = vmatprep.subr.mxu0 0.0
  %1830 = vmatpush2.msra.mxu0 0.0
  %1831 = vmatprep.subr.mxu0 0.0
  %1832 = vmatpush2.msra.mxu0 0.0
  %1833 = vmatprep.subr.mxu0 0.0
  %1834 = vmatpush2.msra.mxu0 0.0
  %1835 = vmatprep.subr.mxu0 0.0
  %1836 = vmatpush2.msra.mxu0 0.0
  %1837 = vmatprep.subr.mxu0 0.0
  %1838 = vmatpush2.msra.mxu0 0.0
  %1839 = vmatprep.subr.mxu0 0.0
  %1840 = vmatpush2.msra.mxu0 0.0
  %1841 = vmatprep.subr.mxu0 0.0
  %1842 = vmatpush2.msra.mxu0 0.0
  %1843 = vmatprep.subr.mxu0 0.0
  %1844 = vmatpush2.msra.mxu0 0.0
  %1845 = vmatprep.subr.mxu0 0.0
  %1846 = vmatpush2.msra.mxu0 0.0
  %1847 = vmatprep.subr.mxu0 0.0
  %1848 = vmatpush2.msra.mxu0 0.0
  %1849 = vmatprep.subr.mxu0 0.0
  %1850 = vmatpush2.msra.mxu0 0.0
  %1851 = vmatprep.mubr.f32.mxu0 0.0
  %1852 = vmatmul.mubr.f32.gmra.mxu0 %v1722
  %v1853 = vpop.f32.mrf.mxu0
  %v1854 = vadd.f32 0.0, %v1853
  %v1855 = vpop.f32.mrf.mxu0
  %v1856 = vadd.f32 0.0, %v1855
  %1857 = vdwg.mxu0
  %1858 = vmatprep.subr.mxu0 %v1786
  %1859 = vmatpush1.msra.mxu0 %v1785
  %1860 = vmatprep.subr.mxu0 %v1782
  %1861 = vmatpush1.msra.mxu0 %v1781
  %1862 = vmatprep.subr.mxu0 %v1778
  %1863 = vmatpush1.msra.mxu0 %v1777
  %1864 = vmatprep.subr.mxu0 %v1774
  %1865 = vmatpush1.msra.mxu0 %v1773
  %1866 = vmatprep.subr.mxu0 %v1770
  %1867 = vmatpush1.msra.mxu0 %v1769
  %1868 = vmatprep.subr.mxu0 %v1766
  %1869 = vmatpush1.msra.mxu0 %v1765
  %1870 = vmatprep.subr.mxu0 %v1762
  %1871 = vmatpush1.msra.mxu0 %v1761
  %1872 = vmatprep.subr.mxu0 %v1758
  %1873 = vmatpush1.msra.mxu0 %v1757
  %1874 = vmatprep.subr.mxu0 %v1754
  %1875 = vmatpush1.msra.mxu0 %v1753
  %1876 = vmatprep.subr.mxu0 %v1750
  %1877 = vmatpush1.msra.mxu0 %v1749
  %1878 = vmatprep.subr.mxu0 %v1746
  %1879 = vmatpush1.msra.mxu0 %v1745
  %1880 = vmatprep.subr.mxu0 %v1742
  %1881 = vmatpush1.msra.mxu0 %v1741
  %1882 = vmatprep.subr.mxu0 %v1738
  %1883 = vmatpush1.msra.mxu0 %v1737
  %1884 = vmatprep.subr.mxu0 %v1734
  %1885 = vmatpush1.msra.mxu0 %v1733
  %1886 = vmatprep.subr.mxu0 %v1730
  %1887 = vmatpush1.msra.mxu0 %v1729
  %1888 = vmatprep.subr.mxu0 %v1726
  %1889 = vmatpush1.msra.mxu0 %v1725
  %1890 = vmatprep.subr.mxu0 0.0
  %1891 = vmatpush2.msra.mxu0 0.0
  %1892 = vmatprep.subr.mxu0 0.0
  %1893 = vmatpush2.msra.mxu0 0.0
  %1894 = vmatprep.subr.mxu0 0.0
  %1895 = vmatpush2.msra.mxu0 0.0
  %1896 = vmatprep.subr.mxu0 0.0
  %1897 = vmatpush2.msra.mxu0 0.0
  %1898 = vmatprep.subr.mxu0 0.0
  %1899 = vmatpush2.msra.mxu0 0.0
  %1900 = vmatprep.subr.mxu0 0.0
  %1901 = vmatpush2.msra.mxu0 0.0
  %1902 = vmatprep.subr.mxu0 0.0
  %1903 = vmatpush2.msra.mxu0 0.0
  %1904 = vmatprep.subr.mxu0 0.0
  %1905 = vmatpush2.msra.mxu0 0.0
  %1906 = vmatprep.subr.mxu0 0.0
  %1907 = vmatpush2.msra.mxu0 0.0
  %1908 = vmatprep.subr.mxu0 0.0
  %1909 = vmatpush2.msra.mxu0 0.0
  %1910 = vmatprep.subr.mxu0 0.0
  %1911 = vmatpush2.msra.mxu0 0.0
  %1912 = vmatprep.subr.mxu0 0.0
  %1913 = vmatpush2.msra.mxu0 0.0
  %1914 = vmatprep.subr.mxu0 0.0
  %1915 = vmatpush2.msra.mxu0 0.0
  %1916 = vmatprep.subr.mxu0 0.0
  %1917 = vmatpush2.msra.mxu0 0.0
  %1918 = vmatprep.subr.mxu0 0.0
  %1919 = vmatpush2.msra.mxu0 0.0
  %1920 = vmatprep.subr.mxu0 0.0
  %1921 = vmatpush2.msra.mxu0 0.0
  %1922 = vmatprep.mubr.f32.mxu0 0.0
  %1923 = vmatmul.mubr.f32.gmra.mxu0 %v1722
  %v1924 = vpop.f32.mrf.mxu0
  %v1925 = vadd.f32 0.0, %v1924
  %v1926 = vpop.f32.mrf.mxu0
  %v1927 = vadd.f32 0.0, %v1926
  %1928 = vdwg.mxu0
  %v1929 = vadd.f32 %v1718, %v1854
  %v1930 = vadd.f32 %v1719, %v1856
  %v1931 = vadd.f32 %v1720, %v1925
  %v1932 = vadd.f32 %v1721, %v1927
  %v1933 = vxor.u32 %v1929, 2147483648
  %v1934 = vmul.f32 %v1933, 1.442695
  %v1935 = vpow.pop %v1934
  %v1936 = vadd.f32 %v1935, 1.0
  %v1937 = vrcp.pop %v1936
  %v1938 = vmul.f32 1.0, %v1937
  %v1939 = vxor.u32 %v1930, 2147483648
  %v1940 = vmul.f32 %v1939, 1.442695
  %v1941 = vpow.pop %v1940
  %v1942 = vadd.f32 %v1941, 1.0
  %v1943 = vrcp.pop %v1942
  %v1944 = vmul.f32 1.0, %v1943
  %v1945 = vtanh.pop %v1931
  %v1946 = vxor.u32 %v1932, 2147483648
  %v1947 = vmul.f32 %v1946, 1.442695
  %v1948 = vpow.pop %v1947
  %v1949 = vadd.f32 %v1948, 1.0
  %v1950 = vrcp.pop %v1949
  %v1951 = vmul.f32 1.0, %v1950
  %v1952 = vld [vmem:[#allocation3] sm:$0xff]
  %v1953 = vmul.f32 %v1944, %v1952
  %v1954 = vmul.f32 %v1938, %v1945
  %v1955 = vadd.f32 %v1953, %v1954
  %v1956 = vtanh.pop %v1955
  %v1957 = vmul.f32 %v1951, %v1956
  %1958 = vst [vmem:[#allocation3] sm:$0xff] %v1955
  %1959 = vst [vmem:[#allocation2] sm:$0xff] %v1957
  %v1960 = vld [vmem:[#allocation2] sm:$0xff]
  %1961 = vst [vmem:[%s2] sm:$0xff] %v1960
  // Predicated region
  $region14: #{lstm_forward.8} parent=0 // pred_check
    _
  $region15: #{lstm_forward.8} parent=0 // pred_check_branch
    %1963 = sbr.rel (0) target = $region17
  $region16: #{lstm_forward.8} parent=0 // pred_region
    _
  $region17: #{lstm_forward.8} parent=0 // pred_fallthru
    _
  // Predicated region
  $region18: #{lstm_forward.8} parent=0 // pred_check
    _
  $region19: #{lstm_forward.8} parent=0 // pred_check_branch
    %1965 = sbr.rel (0) target = $region21
  $region20: #{lstm_forward.8} parent=0 // pred_region
    _
  $region21: #{lstm_forward.8} parent=0 // pred_fallthru
    _

// kernel: lstm_forward.6
$region0: #{lstm_forward.6}
  #allocation0 [shape = 'u32[]', space=smem, size = 0x4, offset = 0x4, fixed_abs, tag = 'smem constant byte address 0x4 - core index']
  #allocation1 [shape = 'u32[144,128]{1,0:T(1,128)}', space=vmem, size = 0x12000, scoped, tag = 'internal scratch']
  #allocation2 [shape = 'f32[8,128]{1,0:T(8,128)}', space=vmem, size = 0x1000, scoped, tag = 'scratch operand']
  #allocation3 [shape = 'f32[8,128]{1,0:T(8,128)}', space=vmem, size = 0x1000, scoped, tag = 'scratch operand']
  %s0 = inlined_call_operand.vmem [shape: f32[8,8,512], index: 0, kind: input, shape index: {}]
  %s1 = inlined_call_operand.vmem [shape: f32[128,512], index: 1, kind: input, shape index: {}]
  %s2 = inlined_call_operand.vmem [shape: f32[8,8,128], index: 2, kind: output, shape index: {}]
  %s3 = sld [smem:[#allocation0]]
  $region22: #{lstm_forward.6} parent=0
    _
  %s5 = ssub.s32 1, %s3
  %s6 = scalar_select 0, %s5, %s3
  // Predicated region
  $region2: #{lstm_forward.6} parent=0 // pred_check
    _
  $region3: #{lstm_forward.6} parent=0 // pred_check_branch
    %8 = sbr.rel (0) target = $region5
  $region4: #{lstm_forward.6} parent=0 // pred_region
    _
  $region5: #{lstm_forward.6} parent=0 // pred_fallthru
    _
  // Predicated region
  $region6: #{lstm_forward.6} parent=0 // pred_check
    _
  $region7: #{lstm_forward.6} parent=0 // pred_check_branch
    %10 = sbr.rel (0) target = $region9
  $region8: #{lstm_forward.6} parent=0 // pred_region
    _
  $region9: #{lstm_forward.6} parent=0 // pred_fallthru
    _
  %p11 = scmp.eq.s32.totalorder 0, 0
  // Predicated region
  $region10: #{lstm_forward.6} parent=0 // pred_check
    %p12 = pneg %p11
  $region11: #{lstm_forward.6} parent=0 // pred_check_branch
    %14 = sbr.rel (%p12) target = $region13
  $region12: #{lstm_forward.6} parent=0 // pred_region
    %15 = vst [vmem:[#allocation2] sm:$0xff] 0.0
    %16 = vst [vmem:[#allocation3] sm:$0xff] 0.0
  $region13: #{lstm_forward.6} parent=0 // pred_fallthru
    _
  %v17 = vld [vmem:[%s0] sm:$0xff]
  %v18 = vld [vmem:[%s0 + $0x8] sm:$0xff]
  %v19 = vld [vmem:[%s0 + $0x10] sm:$0xff]
  %v20 = vld [vmem:[%s0 + $0x18] sm:$0xff]
  %v21 = vld [vmem:[#allocation2] sm:$0xff]
  %v22 = vld [vmem:[%s1] sm:$0xff]
  %v23 = vld [vmem:[%s1 + $0x8] sm:$0xff]
  %v24 = vld [vmem:[%s1 + $0x10] sm:$0xff]
  %v25 = vld [vmem:[%s1 + $0x18] sm:$0xff]
  %v26 = vld [vmem:[%s1 + $0x20] sm:$0xff]
  %v27 = vld [vmem:[%s1 + $0x28] sm:$0xff]
  %v28 = vld [vmem:[%s1 + $0x30] sm:$0xff]
  %v29 = vld [vmem:[%s1 + $0x38] sm:$0xff]
  %v30 = vld [vmem:[%s1 + $0x40] sm:$0xff]
  %v31 = vld [vmem:[%s1 + $0x48] sm:$0xff]
  %v32 = vld [vmem:[%s1 + $0x50] sm:$0xff]
  %v33 = vld [vmem:[%s1 + $0x58] sm:$0xff]
  %v34 = vld [vmem:[%s1 + $0x60] sm:$0xff]
  %v35 = vld [vmem:[%s1 + $0x68] sm:$0xff]
  %v36 = vld [vmem:[%s1 + $0x70] sm:$0xff]
  %v37 = vld [vmem:[%s1 + $0x78] sm:$0xff]
  %v38 = vld [vmem:[%s1 + $0x80] sm:$0xff]
  %v39 = vld [vmem:[%s1 + $0x88] sm:$0xff]
  %v40 = vld [vmem:[%s1 + $0x90] sm:$0xff]
  %v41 = vld [vmem:[%s1 + $0x98] sm:$0xff]
  %v42 = vld [vmem:[%s1 + $0xa0] sm:$0xff]
  %v43 = vld [vmem:[%s1 + $0xa8] sm:$0xff]
  %v44 = vld [vmem:[%s1 + $0xb0] sm:$0xff]
  %v45 = vld [vmem:[%s1 + $0xb8] sm:$0xff]
  %v46 = vld [vmem:[%s1 + $0xc0] sm:$0xff]
  %v47 = vld [vmem:[%s1 + $0xc8] sm:$0xff]
  %v48 = vld [vmem:[%s1 + $0xd0] sm:$0xff]
  %v49 = vld [vmem:[%s1 + $0xd8] sm:$0xff]
  %v50 = vld [vmem:[%s1 + $0xe0] sm:$0xff]
  %v51 = vld [vmem:[%s1 + $0xe8] sm:$0xff]
  %v52 = vld [vmem:[%s1 + $0xf0] sm:$0xff]
  %v53 = vld [vmem:[%s1 + $0xf8] sm:$0xff]
  %v54 = vld [vmem:[%s1 + $0x100] sm:$0xff]
  %v55 = vld [vmem:[%s1 + $0x108] sm:$0xff]
  %v56 = vld [vmem:[%s1 + $0x110] sm:$0xff]
  %v57 = vld [vmem:[%s1 + $0x118] sm:$0xff]
  %v58 = vld [vmem:[%s1 + $0x120] sm:$0xff]
  %v59 = vld [vmem:[%s1 + $0x128] sm:$0xff]
  %v60 = vld [vmem:[%s1 + $0x130] sm:$0xff]
  %v61 = vld [vmem:[%s1 + $0x138] sm:$0xff]
  %v62 = vld [vmem:[%s1 + $0x140] sm:$0xff]
  %v63 = vld [vmem:[%s1 + $0x148] sm:$0xff]
  %v64 = vld [vmem:[%s1 + $0x150] sm:$0xff]
  %v65 = vld [vmem:[%s1 + $0x158] sm:$0xff]
  %v66 = vld [vmem:[%s1 + $0x160] sm:$0xff]
  %v67 = vld [vmem:[%s1 + $0x168] sm:$0xff]
  %v68 = vld [vmem:[%s1 + $0x170] sm:$0xff]
  %v69 = vld [vmem:[%s1 + $0x178] sm:$0xff]
  %v70 = vld [vmem:[%s1 + $0x180] sm:$0xff]
  %v71 = vld [vmem:[%s1 + $0x188] sm:$0xff]
  %v72 = vld [vmem:[%s1 + $0x190] sm:$0xff]
  %v73 = vld [vmem:[%s1 + $0x198] sm:$0xff]
  %v74 = vld [vmem:[%s1 + $0x1a0] sm:$0xff]
  %v75 = vld [vmem:[%s1 + $0x1a8] sm:$0xff]
  %v76 = vld [vmem:[%s1 + $0x1b0] sm:$0xff]
  %v77 = vld [vmem:[%s1 + $0x1b8] sm:$0xff]
  %v78 = vld [vmem:[%s1 + $0x1c0] sm:$0xff]
  %v79 = vld [vmem:[%s1 + $0x1c8] sm:$0xff]
  %v80 = vld [vmem:[%s1 + $0x1d0] sm:$0xff]
  %v81 = vld [vmem:[%s1 + $0x1d8] sm:$0xff]
  %v82 = vld [vmem:[%s1 + $0x1e0] sm:$0xff]
  %v83 = vld [vmem:[%s1 + $0x1e8] sm:$0xff]
  %v84 = vld [vmem:[%s1 + $0x1f0] sm:$0xff]
  %v85 = vld [vmem:[%s1 + $0x1f8] sm:$0xff]
  %86 = vmatprep.subr.mxu0 %v83
  %87 = vmatpush1.msra.mxu0 %v82
  %88 = vmatprep.subr.mxu0 %v79
  %89 = vmatpush1.msra.mxu0 %v78
  %90 = vmatprep.subr.mxu0 %v75
  %91 = vmatpush1.msra.mxu0 %v74
  %92 = vmatprep.subr.mxu0 %v71
  %93 = vmatpush1.msra.mxu0 %v70
  %94 = vmatprep.subr.mxu0 %v67
  %95 = vmatpush1.msra.mxu0 %v66
  %96 = vmatprep.subr.mxu0 %v63
  %97 = vmatpush1.msra.mxu0 %v62
  %98 = vmatprep.subr.mxu0 %v59
  %99 = vmatpush1.msra.mxu0 %v58
  %100 = vmatprep.subr.mxu0 %v55
  %101 = vmatpush1.msra.mxu0 %v54
  %102 = vmatprep.subr.mxu0 %v51
  %103 = vmatpush1.msra.mxu0 %v50
  %104 = vmatprep.subr.mxu0 %v47
  %105 = vmatpush1.msra.mxu0 %v46
  %106 = vmatprep.subr.mxu0 %v43
  %107 = vmatpush1.msra.mxu0 %v42
  %108 = vmatprep.subr.mxu0 %v39
  %109 = vmatpush1.msra.mxu0 %v38
  %110 = vmatprep.subr.mxu0 %v35
  %111 = vmatpush1.msra.mxu0 %v34
  %112 = vmatprep.subr.mxu0 %v31
  %113 = vmatpush1.msra.mxu0 %v30
  %114 = vmatprep.subr.mxu0 %v27
  %115 = vmatpush1.msra.mxu0 %v26
  %116 = vmatprep.subr.mxu0 %v23
  %117 = vmatpush1.msra.mxu0 %v22
  %118 = vmatprep.subr.mxu0 0.0
  %119 = vmatpush2.msra.mxu0 0.0
  %120 = vmatprep.subr.mxu0 0.0
  %121 = vmatpush2.msra.mxu0 0.0
  %122 = vmatprep.subr.mxu0 0.0
  %123 = vmatpush2.msra.mxu0 0.0
  %124 = vmatprep.subr.mxu0 0.0
  %125 = vmatpush2.msra.mxu0 0.0
  %126 = vmatprep.subr.mxu0 0.0
  %127 = vmatpush2.msra.mxu0 0.0
  %128 = vmatprep.subr.mxu0 0.0
  %129 = vmatpush2.msra.mxu0 0.0
  %130 = vmatprep.subr.mxu0 0.0
  %131 = vmatpush2.msra.mxu0 0.0
  %132 = vmatprep.subr.mxu0 0.0
  %133 = vmatpush2.msra.mxu0 0.0
  %134 = vmatprep.subr.mxu0 0.0
  %135 = vmatpush2.msra.mxu0 0.0
  %136 = vmatprep.subr.mxu0 0.0
  %137 = vmatpush2.msra.mxu0 0.0
  %138 = vmatprep.subr.mxu0 0.0
  %139 = vmatpush2.msra.mxu0 0.0
  %140 = vmatprep.subr.mxu0 0.0
  %141 = vmatpush2.msra.mxu0 0.0
  %142 = vmatprep.subr.mxu0 0.0
  %143 = vmatpush2.msra.mxu0 0.0
  %144 = vmatprep.subr.mxu0 0.0
  %145 = vmatpush2.msra.mxu0 0.0
  %146 = vmatprep.subr.mxu0 0.0
  %147 = vmatpush2.msra.mxu0 0.0
  %148 = vmatprep.subr.mxu0 0.0
  %149 = vmatpush2.msra.mxu0 0.0
  %150 = vmatprep.mubr.f32.mxu0 0.0
  %151 = vmatmul.mubr.f32.gmra.mxu0 %v21
  %v152 = vpop.f32.mrf.mxu0
  %v153 = vadd.f32 0.0, %v152
  %v154 = vpop.f32.mrf.mxu0
  %v155 = vadd.f32 0.0, %v154
  %156 = vdwg.mxu0
  %157 = vmatprep.subr.mxu0 %v85
  %158 = vmatpush1.msra.mxu0 %v84
  %159 = vmatprep.subr.mxu0 %v81
  %160 = vmatpush1.msra.mxu0 %v80
  %161 = vmatprep.subr.mxu0 %v77
  %162 = vmatpush1.msra.mxu0 %v76
  %163 = vmatprep.subr.mxu0 %v73
  %164 = vmatpush1.msra.mxu0 %v72
  %165 = vmatprep.subr.mxu0 %v69
  %166 = vmatpush1.msra.mxu0 %v68
  %167 = vmatprep.subr.mxu0 %v65
  %168 = vmatpush1.msra.mxu0 %v64
  %169 = vmatprep.subr.mxu0 %v61
  %170 = vmatpush1.msra.mxu0 %v60
  %171 = vmatprep.subr.mxu0 %v57
  %172 = vmatpush1.msra.mxu0 %v56
  %173 = vmatprep.subr.mxu0 %v53
  %174 = vmatpush1.msra.mxu0 %v52
  %175 = vmatprep.subr.mxu0 %v49
  %176 = vmatpush1.msra.mxu0 %v48
  %177 = vmatprep.subr.mxu0 %v45
  %178 = vmatpush1.msra.mxu0 %v44
  %179 = vmatprep.subr.mxu0 %v41
  %180 = vmatpush1.msra.mxu0 %v40
  %181 = vmatprep.subr.mxu0 %v37
  %182 = vmatpush1.msra.mxu0 %v36
  %183 = vmatprep.subr.mxu0 %v33
  %184 = vmatpush1.msra.mxu0 %v32
  %185 = vmatprep.subr.mxu0 %v29
  %186 = vmatpush1.msra.mxu0 %v28
  %187 = vmatprep.subr.mxu0 %v25
  %188 = vmatpush1.msra.mxu0 %v24
  %189 = vmatprep.subr.mxu0 0.0
  %190 = vmatpush2.msra.mxu0 0.0
  %191 = vmatprep.subr.mxu0 0.0
  %192 = vmatpush2.msra.mxu0 0.0
  %193 = vmatprep.subr.mxu0 0.0
  %194 = vmatpush2.msra.mxu0 0.0
  %195 = vmatprep.subr.mxu0 0.0
  %196 = vmatpush2.msra.mxu0 0.0
  %197 = vmatprep.subr.mxu0 0.0
  %198 = vmatpush2.msra.mxu0 0.0
  %199 = vmatprep.subr.mxu0 0.0
  %200 = vmatpush2.msra.mxu0 0.0
  %201 = vmatprep.subr.mxu0 0.0
  %202 = vmatpush2.msra.mxu0 0.0
  %203 = vmatprep.subr.mxu0 0.0
  %204 = vmatpush2.msra.mxu0 0.0
  %205 = vmatprep.subr.mxu0 0.0
  %206 = vmatpush2.msra.mxu0 0.0
  %207 = vmatprep.subr.mxu0 0.0
  %208 = vmatpush2.msra.mxu0 0.0
  %209 = vmatprep.subr.mxu0 0.0
  %210 = vmatpush2.msra.mxu0 0.0
  %211 = vmatprep.subr.mxu0 0.0
  %212 = vmatpush2.msra.mxu0 0.0
  %213 = vmatprep.subr.mxu0 0.0
  %214 = vmatpush2.msra.mxu0 0.0
  %215 = vmatprep.subr.mxu0 0.0
  %216 = vmatpush2.msra.mxu0 0.0
  %217 = vmatprep.subr.mxu0 0.0
  %218 = vmatpush2.msra.mxu0 0.0
  %219 = vmatprep.subr.mxu0 0.0
  %220 = vmatpush2.msra.mxu0 0.0
  %221 = vmatprep.mubr.f32.mxu0 0.0
  %222 = vmatmul.mubr.f32.gmra.mxu0 %v21
  %v223 = vpop.f32.mrf.mxu0
  %v224 = vadd.f32 0.0, %v223
  %v225 = vpop.f32.mrf.mxu0
  %v226 = vadd.f32 0.0, %v225
  %227 = vdwg.mxu0
  %v228 = vadd.f32 %v17, %v153
  %v229 = vadd.f32 %v18, %v155
  %v230 = vadd.f32 %v19, %v224
  %v231 = vadd.f32 %v20, %v226
  %v232 = vxor.u32 %v228, 2147483648
  %v233 = vmul.f32 %v232, 1.442695
  %v234 = vpow.pop %v233
  %v235 = vadd.f32 %v234, 1.0
  %v236 = vrcp.pop %v235
  %v237 = vmul.f32 1.0, %v236
  %v238 = vxor.u32 %v229, 2147483648
  %v239 = vmul.f32 %v238, 1.442695
  %v240 = vpow.pop %v239
  %v241 = vadd.f32 %v240, 1.0
  %v242 = vrcp.pop %v241
  %v243 = vmul.f32 1.0, %v242
  %v244 = vtanh.pop %v230
  %v245 = vxor.u32 %v231, 2147483648
  %v246 = vmul.f32 %v245, 1.442695
  %v247 = vpow.pop %v246
  %v248 = vadd.f32 %v247, 1.0
  %v249 = vrcp.pop %v248
  %v250 = vmul.f32 1.0, %v249
  %v251 = vld [vmem:[#allocation3] sm:$0xff]
  %v252 = vmul.f32 %v243, %v251
  %v253 = vmul.f32 %v237, %v244
  %v254 = vadd.f32 %v252, %v253
  %v255 = vtanh.pop %v254
  %v256 = vmul.f32 %v250, %v255
  %257 = vst [vmem:[#allocation3] sm:$0xff] %v254
  %258 = vst [vmem:[#allocation2] sm:$0xff] %v256
  %259 = vst [vmem:[%s2] sm:$0xff] %v256
  %s260 = scalar_lea.vmem %s0, 32
  %v261 = vld [vmem:[%s260] sm:$0xff]
  %v262 = vld [vmem:[%s260 + $0x8] sm:$0xff]
  %v263 = vld [vmem:[%s260 + $0x10] sm:$0xff]
  %v264 = vld [vmem:[%s260 + $0x18] sm:$0xff]
  %v265 = vld [vmem:[#allocation2] sm:$0xff]
  %v266 = vld [vmem:[%s1] sm:$0xff]
  %v267 = vld [vmem:[%s1 + $0x8] sm:$0xff]
  %v268 = vld [vmem:[%s1 + $0x10] sm:$0xff]
  %v269 = vld [vmem:[%s1 + $0x18] sm:$0xff]
  %v270 = vld [vmem:[%s1 + $0x20] sm:$0xff]
  %v271 = vld [vmem:[%s1 + $0x28] sm:$0xff]
  %v272 = vld [vmem:[%s1 + $0x30] sm:$0xff]
  %v273 = vld [vmem:[%s1 + $0x38] sm:$0xff]
  %v274 = vld [vmem:[%s1 + $0x40] sm:$0xff]
  %v275 = vld [vmem:[%s1 + $0x48] sm:$0xff]
  %v276 = vld [vmem:[%s1 + $0x50] sm:$0xff]
  %v277 = vld [vmem:[%s1 + $0x58] sm:$0xff]
  %v278 = vld [vmem:[%s1 + $0x60] sm:$0xff]
  %v279 = vld [vmem:[%s1 + $0x68] sm:$0xff]
  %v280 = vld [vmem:[%s1 + $0x70] sm:$0xff]
  %v281 = vld [vmem:[%s1 + $0x78] sm:$0xff]
  %v282 = vld [vmem:[%s1 + $0x80] sm:$0xff]
  %v283 = vld [vmem:[%s1 + $0x88] sm:$0xff]
  %v284 = vld [vmem:[%s1 + $0x90] sm:$0xff]
  %v285 = vld [vmem:[%s1 + $0x98] sm:$0xff]
  %v286 = vld [vmem:[%s1 + $0xa0] sm:$0xff]
  %v287 = vld [vmem:[%s1 + $0xa8] sm:$0xff]
  %v288 = vld [vmem:[%s1 + $0xb0] sm:$0xff]
  %v289 = vld [vmem:[%s1 + $0xb8] sm:$0xff]
  %v290 = vld [vmem:[%s1 + $0xc0] sm:$0xff]
  %v291 = vld [vmem:[%s1 + $0xc8] sm:$0xff]
  %v292 = vld [vmem:[%s1 + $0xd0] sm:$0xff]
  %v293 = vld [vmem:[%s1 + $0xd8] sm:$0xff]
  %v294 = vld [vmem:[%s1 + $0xe0] sm:$0xff]
  %v295 = vld [vmem:[%s1 + $0xe8] sm:$0xff]
  %v296 = vld [vmem:[%s1 + $0xf0] sm:$0xff]
  %v297 = vld [vmem:[%s1 + $0xf8] sm:$0xff]
  %v298 = vld [vmem:[%s1 + $0x100] sm:$0xff]
  %v299 = vld [vmem:[%s1 + $0x108] sm:$0xff]
  %v300 = vld [vmem:[%s1 + $0x110] sm:$0xff]
  %v301 = vld [vmem:[%s1 + $0x118] sm:$0xff]
  %v302 = vld [vmem:[%s1 + $0x120] sm:$0xff]
  %v303 = vld [vmem:[%s1 + $0x128] sm:$0xff]
  %v304 = vld [vmem:[%s1 + $0x130] sm:$0xff]
  %v305 = vld [vmem:[%s1 + $0x138] sm:$0xff]
  %v306 = vld [vmem:[%s1 + $0x140] sm:$0xff]
  %v307 = vld [vmem:[%s1 + $0x148] sm:$0xff]
  %v308 = vld [vmem:[%s1 + $0x150] sm:$0xff]
  %v309 = vld [vmem:[%s1 + $0x158] sm:$0xff]
  %v310 = vld [vmem:[%s1 + $0x160] sm:$0xff]
  %v311 = vld [vmem:[%s1 + $0x168] sm:$0xff]
  %v312 = vld [vmem:[%s1 + $0x170] sm:$0xff]
  %v313 = vld [vmem:[%s1 + $0x178] sm:$0xff]
  %v314 = vld [vmem:[%s1 + $0x180] sm:$0xff]
  %v315 = vld [vmem:[%s1 + $0x188] sm:$0xff]
  %v316 = vld [vmem:[%s1 + $0x190] sm:$0xff]
  %v317 = vld [vmem:[%s1 + $0x198] sm:$0xff]
  %v318 = vld [vmem:[%s1 + $0x1a0] sm:$0xff]
  %v319 = vld [vmem:[%s1 + $0x1a8] sm:$0xff]
  %v320 = vld [vmem:[%s1 + $0x1b0] sm:$0xff]
  %v321 = vld [vmem:[%s1 + $0x1b8] sm:$0xff]
  %v322 = vld [vmem:[%s1 + $0x1c0] sm:$0xff]
  %v323 = vld [vmem:[%s1 + $0x1c8] sm:$0xff]
  %v324 = vld [vmem:[%s1 + $0x1d0] sm:$0xff]
  %v325 = vld [vmem:[%s1 + $0x1d8] sm:$0xff]
  %v326 = vld [vmem:[%s1 + $0x1e0] sm:$0xff]
  %v327 = vld [vmem:[%s1 + $0x1e8] sm:$0xff]
  %v328 = vld [vmem:[%s1 + $0x1f0] sm:$0xff]
  %v329 = vld [vmem:[%s1 + $0x1f8] sm:$0xff]
  %330 = vmatprep.subr.mxu0 %v327
  %331 = vmatpush1.msra.mxu0 %v326
  %332 = vmatprep.subr.mxu0 %v323
  %333 = vmatpush1.msra.mxu0 %v322
  %334 = vmatprep.subr.mxu0 %v319
  %335 = vmatpush1.msra.mxu0 %v318
  %336 = vmatprep.subr.mxu0 %v315
  %337 = vmatpush1.msra.mxu0 %v314
  %338 = vmatprep.subr.mxu0 %v311
  %339 = vmatpush1.msra.mxu0 %v310
  %340 = vmatprep.subr.mxu0 %v307
  %341 = vmatpush1.msra.mxu0 %v306
  %342 = vmatprep.subr.mxu0 %v303
  %343 = vmatpush1.msra.mxu0 %v302
  %344 = vmatprep.subr.mxu0 %v299
  %345 = vmatpush1.msra.mxu0 %v298
  %346 = vmatprep.subr.mxu0 %v295
  %347 = vmatpush1.msra.mxu0 %v294
  %348 = vmatprep.subr.mxu0 %v291
  %349 = vmatpush1.msra.mxu0 %v290
  %350 = vmatprep.subr.mxu0 %v287
  %351 = vmatpush1.msra.mxu0 %v286
  %352 = vmatprep.subr.mxu0 %v283
  %353 = vmatpush1.msra.mxu0 %v282
  %354 = vmatprep.subr.mxu0 %v279
  %355 = vmatpush1.msra.mxu0 %v278
  %356 = vmatprep.subr.mxu0 %v275
  %357 = vmatpush1.msra.mxu0 %v274
  %358 = vmatprep.subr.mxu0 %v271
  %359 = vmatpush1.msra.mxu0 %v270
  %360 = vmatprep.subr.mxu0 %v267
  %361 = vmatpush1.msra.mxu0 %v266
  %362 = vmatprep.subr.mxu0 0.0
  %363 = vmatpush2.msra.mxu0 0.0
  %364 = vmatprep.subr.mxu0 0.0
  %365 = vmatpush2.msra.mxu0 0.0
  %366 = vmatprep.subr.mxu0 0.0
  %367 = vmatpush2.msra.mxu0 0.0
  %368 = vmatprep.subr.mxu0 0.0
  %369 = vmatpush2.msra.mxu0 0.0
  %370 = vmatprep.subr.mxu0 0.0
  %371 = vmatpush2.msra.mxu0 0.0
  %372 = vmatprep.subr.mxu0 0.0
  %373 = vmatpush2.msra.mxu0 0.0
  %374 = vmatprep.subr.mxu0 0.0
  %375 = vmatpush2.msra.mxu0 0.0
  %376 = vmatprep.subr.mxu0 0.0
  %377 = vmatpush2.msra.mxu0 0.0
  %378 = vmatprep.subr.mxu0 0.0
  %379 = vmatpush2.msra.mxu0 0.0
  %380 = vmatprep.subr.mxu0 0.0
  %381 = vmatpush2.msra.mxu0 0.0
  %382 = vmatprep.subr.mxu0 0.0
  %383 = vmatpush2.msra.mxu0 0.0
  %384 = vmatprep.subr.mxu0 0.0
  %385 = vmatpush2.msra.mxu0 0.0
  %386 = vmatprep.subr.mxu0 0.0
  %387 = vmatpush2.msra.mxu0 0.0
  %388 = vmatprep.subr.mxu0 0.0
  %389 = vmatpush2.msra.mxu0 0.0
  %390 = vmatprep.subr.mxu0 0.0
  %391 = vmatpush2.msra.mxu0 0.0
  %392 = vmatprep.subr.mxu0 0.0
  %393 = vmatpush2.msra.mxu0 0.0
  %394 = vmatprep.mubr.f32.mxu0 0.0
  %395 = vmatmul.mubr.f32.gmra.mxu0 %v265
  %v396 = vpop.f32.mrf.mxu0
  %v397 = vadd.f32 0.0, %v396
  %v398 = vpop.f32.mrf.mxu0
  %v399 = vadd.f32 0.0, %v398
  %400 = vdwg.mxu0
  %401 = vmatprep.subr.mxu0 %v329
  %402 = vmatpush1.msra.mxu0 %v328
  %403 = vmatprep.subr.mxu0 %v325
  %404 = vmatpush1.msra.mxu0 %v324
  %405 = vmatprep.subr.mxu0 %v321
  %406 = vmatpush1.msra.mxu0 %v320
  %407 = vmatprep.subr.mxu0 %v317
  %408 = vmatpush1.msra.mxu0 %v316
  %409 = vmatprep.subr.mxu0 %v313
  %410 = vmatpush1.msra.mxu0 %v312
  %411 = vmatprep.subr.mxu0 %v309
  %412 = vmatpush1.msra.mxu0 %v308
  %413 = vmatprep.subr.mxu0 %v305
  %414 = vmatpush1.msra.mxu0 %v304
  %415 = vmatprep.subr.mxu0 %v301
  %416 = vmatpush1.msra.mxu0 %v300
  %417 = vmatprep.subr.mxu0 %v297
  %418 = vmatpush1.msra.mxu0 %v296
  %419 = vmatprep.subr.mxu0 %v293
  %420 = vmatpush1.msra.mxu0 %v292
  %421 = vmatprep.subr.mxu0 %v289
  %422 = vmatpush1.msra.mxu0 %v288
  %423 = vmatprep.subr.mxu0 %v285
  %424 = vmatpush1.msra.mxu0 %v284
  %425 = vmatprep.subr.mxu0 %v281
  %426 = vmatpush1.msra.mxu0 %v280
  %427 = vmatprep.subr.mxu0 %v277
  %428 = vmatpush1.msra.mxu0 %v276
  %429 = vmatprep.subr.mxu0 %v273
  %430 = vmatpush1.msra.mxu0 %v272
  %431 = vmatprep.subr.mxu0 %v269
  %432 = vmatpush1.msra.mxu0 %v268
  %433 = vmatprep.subr.mxu0 0.0
  %434 = vmatpush2.msra.mxu0 0.0
  %435 = vmatprep.subr.mxu0 0.0
  %436 = vmatpush2.msra.mxu0 0.0
  %437 = vmatprep.subr.mxu0 0.0
  %438 = vmatpush2.msra.mxu0 0.0
  %439 = vmatprep.subr.mxu0 0.0
  %440 = vmatpush2.msra.mxu0 0.0
  %441 = vmatprep.subr.mxu0 0.0
  %442 = vmatpush2.msra.mxu0 0.0
  %443 = vmatprep.subr.mxu0 0.0
  %444 = vmatpush2.msra.mxu0 0.0
  %445 = vmatprep.subr.mxu0 0.0
  %446 = vmatpush2.msra.mxu0 0.0
  %447 = vmatprep.subr.mxu0 0.0
  %448 = vmatpush2.msra.mxu0 0.0
  %449 = vmatprep.subr.mxu0 0.0
  %450 = vmatpush2.msra.mxu0 0.0
  %451 = vmatprep.subr.mxu0 0.0
  %452 = vmatpush2.msra.mxu0 0.0
  %453 = vmatprep.subr.mxu0 0.0
  %454 = vmatpush2.msra.mxu0 0.0
  %455 = vmatprep.subr.mxu0 0.0
  %456 = vmatpush2.msra.mxu0 0.0
  %457 = vmatprep.subr.mxu0 0.0
  %458 = vmatpush2.msra.mxu0 0.0
  %459 = vmatprep.subr.mxu0 0.0
  %460 = vmatpush2.msra.mxu0 0.0
  %461 = vmatprep.subr.mxu0 0.0
  %462 = vmatpush2.msra.mxu0 0.0
  %463 = vmatprep.subr.mxu0 0.0
  %464 = vmatpush2.msra.mxu0 0.0
  %465 = vmatprep.mubr.f32.mxu0 0.0
  %466 = vmatmul.mubr.f32.gmra.mxu0 %v265
  %v467 = vpop.f32.mrf.mxu0
  %v468 = vadd.f32 0.0, %v467
  %v469 = vpop.f32.mrf.mxu0
  %v470 = vadd.f32 0.0, %v469
  %471 = vdwg.mxu0
  %v472 = vadd.f32 %v261, %v397
  %v473 = vadd.f32 %v262, %v399
  %v474 = vadd.f32 %v263, %v468
  %v475 = vadd.f32 %v264, %v470
  %v476 = vxor.u32 %v472, 2147483648
  %v477 = vmul.f32 %v476, 1.442695
  %v478 = vpow.pop %v477
  %v479 = vadd.f32 %v478, 1.0
  %v480 = vrcp.pop %v479
  %v481 = vmul.f32 1.0, %v480
  %v482 = vxor.u32 %v473, 2147483648
  %v483 = vmul.f32 %v482, 1.442695
  %v484 = vpow.pop %v483
  %v485 = vadd.f32 %v484, 1.0
  %v486 = vrcp.pop %v485
  %v487 = vmul.f32 1.0, %v486
  %v488 = vtanh.pop %v474
  %v489 = vxor.u32 %v475, 2147483648
  %v490 = vmul.f32 %v489, 1.442695
  %v491 = vpow.pop %v490
  %v492 = vadd.f32 %v491, 1.0
  %v493 = vrcp.pop %v492
  %v494 = vmul.f32 1.0, %v493
  %v495 = vld [vmem:[#allocation3] sm:$0xff]
  %v496 = vmul.f32 %v487, %v495
  %v497 = vmul.f32 %v481, %v488
  %v498 = vadd.f32 %v496, %v497
  %v499 = vtanh.pop %v498
  %v500 = vmul.f32 %v494, %v499
  %501 = vst [vmem:[#allocation3] sm:$0xff] %v498
  %502 = vst [vmem:[#allocation2] sm:$0xff] %v500
  %s503 = scalar_lea.vmem %s2, 8
  %504 = vst [vmem:[%s503] sm:$0xff] %v500
  %s505 = scalar_lea.vmem %s0, 64
  %v506 = vld [vmem:[%s505] sm:$0xff]
  %v507 = vld [vmem:[%s505 + $0x8] sm:$0xff]
  %v508 = vld [vmem:[%s505 + $0x10] sm:$0xff]
  %v509 = vld [vmem:[%s505 + $0x18] sm:$0xff]
  %v510 = vld [vmem:[#allocation2] sm:$0xff]
  %v511 = vld [vmem:[%s1] sm:$0xff]
  %v512 = vld [vmem:[%s1 + $0x8] sm:$0xff]
  %v513 = vld [vmem:[%s1 + $0x10] sm:$0xff]
  %v514 = vld [vmem:[%s1 + $0x18] sm:$0xff]
  %v515 = vld [vmem:[%s1 + $0x20] sm:$0xff]
  %v516 = vld [vmem:[%s1 + $0x28] sm:$0xff]
  %v517 = vld [vmem:[%s1 + $0x30] sm:$0xff]
  %v518 = vld [vmem:[%s1 + $0x38] sm:$0xff]
  %v519 = vld [vmem:[%s1 + $0x40] sm:$0xff]
  %v520 = vld [vmem:[%s1 + $0x48] sm:$0xff]
  %v521 = vld [vmem:[%s1 + $0x50] sm:$0xff]
  %v522 = vld [vmem:[%s1 + $0x58] sm:$0xff]
  %v523 = vld [vmem:[%s1 + $0x60] sm:$0xff]
  %v524 = vld [vmem:[%s1 + $0x68] sm:$0xff]
  %v525 = vld [vmem:[%s1 + $0x70] sm:$0xff]
  %v526 = vld [vmem:[%s1 + $0x78] sm:$0xff]
  %v527 = vld [vmem:[%s1 + $0x80] sm:$0xff]
  %v528 = vld [vmem:[%s1 + $0x88] sm:$0xff]
  %v529 = vld [vmem:[%s1 + $0x90] sm:$0xff]
  %v530 = vld [vmem:[%s1 + $0x98] sm:$0xff]
  %v531 = vld [vmem:[%s1 + $0xa0] sm:$0xff]
  %v532 = vld [vmem:[%s1 + $0xa8] sm:$0xff]
  %v533 = vld [vmem:[%s1 + $0xb0] sm:$0xff]
  %v534 = vld [vmem:[%s1 + $0xb8] sm:$0xff]
  %v535 = vld [vmem:[%s1 + $0xc0] sm:$0xff]
  %v536 = vld [vmem:[%s1 + $0xc8] sm:$0xff]
  %v537 = vld [vmem:[%s1 + $0xd0] sm:$0xff]
  %v538 = vld [vmem:[%s1 + $0xd8] sm:$0xff]
  %v539 = vld [vmem:[%s1 + $0xe0] sm:$0xff]
  %v540 = vld [vmem:[%s1 + $0xe8] sm:$0xff]
  %v541 = vld [vmem:[%s1 + $0xf0] sm:$0xff]
  %v542 = vld [vmem:[%s1 + $0xf8] sm:$0xff]
  %v543 = vld [vmem:[%s1 + $0x100] sm:$0xff]
  %v544 = vld [vmem:[%s1 + $0x108] sm:$0xff]
  %v545 = vld [vmem:[%s1 + $0x110] sm:$0xff]
  %v546 = vld [vmem:[%s1 + $0x118] sm:$0xff]
  %v547 = vld [vmem:[%s1 + $0x120] sm:$0xff]
  %v548 = vld [vmem:[%s1 + $0x128] sm:$0xff]
  %v549 = vld [vmem:[%s1 + $0x130] sm:$0xff]
  %v550 = vld [vmem:[%s1 + $0x138] sm:$0xff]
  %v551 = vld [vmem:[%s1 + $0x140] sm:$0xff]
  %v552 = vld [vmem:[%s1 + $0x148] sm:$0xff]
  %v553 = vld [vmem:[%s1 + $0x150] sm:$0xff]
  %v554 = vld [vmem:[%s1 + $0x158] sm:$0xff]
  %v555 = vld [vmem:[%s1 + $0x160] sm:$0xff]
  %v556 = vld [vmem:[%s1 + $0x168] sm:$0xff]
  %v557 = vld [vmem:[%s1 + $0x170] sm:$0xff]
  %v558 = vld [vmem:[%s1 + $0x178] sm:$0xff]
  %v559 = vld [vmem:[%s1 + $0x180] sm:$0xff]
  %v560 = vld [vmem:[%s1 + $0x188] sm:$0xff]
  %v561 = vld [vmem:[%s1 + $0x190] sm:$0xff]
  %v562 = vld [vmem:[%s1 + $0x198] sm:$0xff]
  %v563 = vld [vmem:[%s1 + $0x1a0] sm:$0xff]
  %v564 = vld [vmem:[%s1 + $0x1a8] sm:$0xff]
  %v565 = vld [vmem:[%s1 + $0x1b0] sm:$0xff]
  %v566 = vld [vmem:[%s1 + $0x1b8] sm:$0xff]
  %v567 = vld [vmem:[%s1 + $0x1c0] sm:$0xff]
  %v568 = vld [vmem:[%s1 + $0x1c8] sm:$0xff]
  %v569 = vld [vmem:[%s1 + $0x1d0] sm:$0xff]
  %v570 = vld [vmem:[%s1 + $0x1d8] sm:$0xff]
  %v571 = vld [vmem:[%s1 + $0x1e0] sm:$0xff]
  %v572 = vld [vmem:[%s1 + $0x1e8] sm:$0xff]
  %v573 = vld [vmem:[%s1 + $0x1f0] sm:$0xff]
  %v574 = vld [vmem:[%s1 + $0x1f8] sm:$0xff]
  %575 = vmatprep.subr.mxu0 %v572
  %576 = vmatpush1.msra.mxu0 %v571
  %577 = vmatprep.subr.mxu0 %v568
  %578 = vmatpush1.msra.mxu0 %v567
  %579 = vmatprep.subr.mxu0 %v564
  %580 = vmatpush1.msra.mxu0 %v563
  %581 = vmatprep.subr.mxu0 %v560
  %582 = vmatpush1.msra.mxu0 %v559
  %583 = vmatprep.subr.mxu0 %v556
  %584 = vmatpush1.msra.mxu0 %v555
  %585 = vmatprep.subr.mxu0 %v552
  %586 = vmatpush1.msra.mxu0 %v551
  %587 = vmatprep.subr.mxu0 %v548
  %588 = vmatpush1.msra.mxu0 %v547
  %589 = vmatprep.subr.mxu0 %v544
  %590 = vmatpush1.msra.mxu0 %v543
  %591 = vmatprep.subr.mxu0 %v540
  %592 = vmatpush1.msra.mxu0 %v539
  %593 = vmatprep.subr.mxu0 %v536
  %594 = vmatpush1.msra.mxu0 %v535
  %595 = vmatprep.subr.mxu0 %v532
  %596 = vmatpush1.msra.mxu0 %v531
  %597 = vmatprep.subr.mxu0 %v528
  %598 = vmatpush1.msra.mxu0 %v527
  %599 = vmatprep.subr.mxu0 %v524
  %600 = vmatpush1.msra.mxu0 %v523
  %601 = vmatprep.subr.mxu0 %v520
  %602 = vmatpush1.msra.mxu0 %v519
  %603 = vmatprep.subr.mxu0 %v516
  %604 = vmatpush1.msra.mxu0 %v515
  %605 = vmatprep.subr.mxu0 %v512
  %606 = vmatpush1.msra.mxu0 %v511
  %607 = vmatprep.subr.mxu0 0.0
  %608 = vmatpush2.msra.mxu0 0.0
  %609 = vmatprep.subr.mxu0 0.0
  %610 = vmatpush2.msra.mxu0 0.0
  %611 = vmatprep.subr.mxu0 0.0
  %612 = vmatpush2.msra.mxu0 0.0
  %613 = vmatprep.subr.mxu0 0.0
  %614 = vmatpush2.msra.mxu0 0.0
  %615 = vmatprep.subr.mxu0 0.0
  %616 = vmatpush2.msra.mxu0 0.0
  %617 = vmatprep.subr.mxu0 0.0
  %618 = vmatpush2.msra.mxu0 0.0
  %619 = vmatprep.subr.mxu0 0.0
  %620 = vmatpush2.msra.mxu0 0.0
  %621 = vmatprep.subr.mxu0 0.0
  %622 = vmatpush2.msra.mxu0 0.0
  %623 = vmatprep.subr.mxu0 0.0
  %624 = vmatpush2.msra.mxu0 0.0
  %625 = vmatprep.subr.mxu0 0.0
  %626 = vmatpush2.msra.mxu0 0.0
  %627 = vmatprep.subr.mxu0 0.0
  %628 = vmatpush2.msra.mxu0 0.0
  %629 = vmatprep.subr.mxu0 0.0
  %630 = vmatpush2.msra.mxu0 0.0
  %631 = vmatprep.subr.mxu0 0.0
  %632 = vmatpush2.msra.mxu0 0.0
  %633 = vmatprep.subr.mxu0 0.0
  %634 = vmatpush2.msra.mxu0 0.0
  %635 = vmatprep.subr.mxu0 0.0
  %636 = vmatpush2.msra.mxu0 0.0
  %637 = vmatprep.subr.mxu0 0.0
  %638 = vmatpush2.msra.mxu0 0.0
  %639 = vmatprep.mubr.f32.mxu0 0.0
  %640 = vmatmul.mubr.f32.gmra.mxu0 %v510
  %v641 = vpop.f32.mrf.mxu0
  %v642 = vadd.f32 0.0, %v641
  %v643 = vpop.f32.mrf.mxu0
  %v644 = vadd.f32 0.0, %v643
  %645 = vdwg.mxu0
  %646 = vmatprep.subr.mxu0 %v574
  %647 = vmatpush1.msra.mxu0 %v573
  %648 = vmatprep.subr.mxu0 %v570
  %649 = vmatpush1.msra.mxu0 %v569
  %650 = vmatprep.subr.mxu0 %v566
  %651 = vmatpush1.msra.mxu0 %v565
  %652 = vmatprep.subr.mxu0 %v562
  %653 = vmatpush1.msra.mxu0 %v561
  %654 = vmatprep.subr.mxu0 %v558
  %655 = vmatpush1.msra.mxu0 %v557
  %656 = vmatprep.subr.mxu0 %v554
  %657 = vmatpush1.msra.mxu0 %v553
  %658 = vmatprep.subr.mxu0 %v550
  %659 = vmatpush1.msra.mxu0 %v549
  %660 = vmatprep.subr.mxu0 %v546
  %661 = vmatpush1.msra.mxu0 %v545
  %662 = vmatprep.subr.mxu0 %v542
  %663 = vmatpush1.msra.mxu0 %v541
  %664 = vmatprep.subr.mxu0 %v538
  %665 = vmatpush1.msra.mxu0 %v537
  %666 = vmatprep.subr.mxu0 %v534
  %667 = vmatpush1.msra.mxu0 %v533
  %668 = vmatprep.subr.mxu0 %v530
  %669 = vmatpush1.msra.mxu0 %v529
  %670 = vmatprep.subr.mxu0 %v526
  %671 = vmatpush1.msra.mxu0 %v525
  %672 = vmatprep.subr.mxu0 %v522
  %673 = vmatpush1.msra.mxu0 %v521
  %674 = vmatprep.subr.mxu0 %v518
  %675 = vmatpush1.msra.mxu0 %v517
  %676 = vmatprep.subr.mxu0 %v514
  %677 = vmatpush1.msra.mxu0 %v513
  %678 = vmatprep.subr.mxu0 0.0
  %679 = vmatpush2.msra.mxu0 0.0
  %680 = vmatprep.subr.mxu0 0.0
  %681 = vmatpush2.msra.mxu0 0.0
  %682 = vmatprep.subr.mxu0 0.0
  %683 = vmatpush2.msra.mxu0 0.0
  %684 = vmatprep.subr.mxu0 0.0
  %685 = vmatpush2.msra.mxu0 0.0
  %686 = vmatprep.subr.mxu0 0.0
  %687 = vmatpush2.msra.mxu0 0.0
  %688 = vmatprep.subr.mxu0 0.0
  %689 = vmatpush2.msra.mxu0 0.0
  %690 = vmatprep.subr.mxu0 0.0
  %691 = vmatpush2.msra.mxu0 0.0
  %692 = vmatprep.subr.mxu0 0.0
  %693 = vmatpush2.msra.mxu0 0.0
  %694 = vmatprep.subr.mxu0 0.0
  %695 = vmatpush2.msra.mxu0 0.0
  %696 = vmatprep.subr.mxu0 0.0
  %697 = vmatpush2.msra.mxu0 0.0
  %698 = vmatprep.subr.mxu0 0.0
  %699 = vmatpush2.msra.mxu0 0.0
  %700 = vmatprep.subr.mxu0 0.0
  %701 = vmatpush2.msra.mxu0 0.0
  %702 = vmatprep.subr.mxu0 0.0
  %703 = vmatpush2.msra.mxu0 0.0
  %704 = vmatprep.subr.mxu0 0.0
  %705 = vmatpush2.msra.mxu0 0.0
  %706 = vmatprep.subr.mxu0 0.0
  %707 = vmatpush2.msra.mxu0 0.0
  %708 = vmatprep.subr.mxu0 0.0
  %709 = vmatpush2.msra.mxu0 0.0
  %710 = vmatprep.mubr.f32.mxu0 0.0
  %711 = vmatmul.mubr.f32.gmra.mxu0 %v510
  %v712 = vpop.f32.mrf.mxu0
  %v713 = vadd.f32 0.0, %v712
  %v714 = vpop.f32.mrf.mxu0
  %v715 = vadd.f32 0.0, %v714
  %716 = vdwg.mxu0
  %v717 = vadd.f32 %v506, %v642
  %v718 = vadd.f32 %v507, %v644
  %v719 = vadd.f32 %v508, %v713
  %v720 = vadd.f32 %v509, %v715
  %v721 = vxor.u32 %v717, 2147483648
  %v722 = vmul.f32 %v721, 1.442695
  %v723 = vpow.pop %v722
  %v724 = vadd.f32 %v723, 1.0
  %v725 = vrcp.pop %v724
  %v726 = vmul.f32 1.0, %v725
  %v727 = vxor.u32 %v718, 2147483648
  %v728 = vmul.f32 %v727, 1.442695
  %v729 = vpow.pop %v728
  %v730 = vadd.f32 %v729, 1.0
  %v731 = vrcp.pop %v730
  %v732 = vmul.f32 1.0, %v731
  %v733 = vtanh.pop %v719
  %v734 = vxor.u32 %v720, 2147483648
  %v735 = vmul.f32 %v734, 1.442695
  %v736 = vpow.pop %v735
  %v737 = vadd.f32 %v736, 1.0
  %v738 = vrcp.pop %v737
  %v739 = vmul.f32 1.0, %v738
  %v740 = vld [vmem:[#allocation3] sm:$0xff]
  %v741 = vmul.f32 %v732, %v740
  %v742 = vmul.f32 %v726, %v733
  %v743 = vadd.f32 %v741, %v742
  %v744 = vtanh.pop %v743
  %v745 = vmul.f32 %v739, %v744
  %746 = vst [vmem:[#allocation3] sm:$0xff] %v743
  %747 = vst [vmem:[#allocation2] sm:$0xff] %v745
  %s748 = scalar_lea.vmem %s2, 16
  %749 = vst [vmem:[%s748] sm:$0xff] %v745
  %s750 = scalar_lea.vmem %s0, 96
  %v751 = vld [vmem:[%s750] sm:$0xff]
  %v752 = vld [vmem:[%s750 + $0x8] sm:$0xff]
  %v753 = vld [vmem:[%s750 + $0x10] sm:$0xff]
  %v754 = vld [vmem:[%s750 + $0x18] sm:$0xff]
  %v755 = vld [vmem:[#allocation2] sm:$0xff]
  %v756 = vld [vmem:[%s1] sm:$0xff]
  %v757 = vld [vmem:[%s1 + $0x8] sm:$0xff]
  %v758 = vld [vmem:[%s1 + $0x10] sm:$0xff]
  %v759 = vld [vmem:[%s1 + $0x18] sm:$0xff]
  %v760 = vld [vmem:[%s1 + $0x20] sm:$0xff]
  %v761 = vld [vmem:[%s1 + $0x28] sm:$0xff]
  %v762 = vld [vmem:[%s1 + $0x30] sm:$0xff]
  %v763 = vld [vmem:[%s1 + $0x38] sm:$0xff]
  %v764 = vld [vmem:[%s1 + $0x40] sm:$0xff]
  %v765 = vld [vmem:[%s1 + $0x48] sm:$0xff]
  %v766 = vld [vmem:[%s1 + $0x50] sm:$0xff]
  %v767 = vld [vmem:[%s1 + $0x58] sm:$0xff]
  %v768 = vld [vmem:[%s1 + $0x60] sm:$0xff]
  %v769 = vld [vmem:[%s1 + $0x68] sm:$0xff]
  %v770 = vld [vmem:[%s1 + $0x70] sm:$0xff]
  %v771 = vld [vmem:[%s1 + $0x78] sm:$0xff]
  %v772 = vld [vmem:[%s1 + $0x80] sm:$0xff]
  %v773 = vld [vmem:[%s1 + $0x88] sm:$0xff]
  %v774 = vld [vmem:[%s1 + $0x90] sm:$0xff]
  %v775 = vld [vmem:[%s1 + $0x98] sm:$0xff]
  %v776 = vld [vmem:[%s1 + $0xa0] sm:$0xff]
  %v777 = vld [vmem:[%s1 + $0xa8] sm:$0xff]
  %v778 = vld [vmem:[%s1 + $0xb0] sm:$0xff]
  %v779 = vld [vmem:[%s1 + $0xb8] sm:$0xff]
  %v780 = vld [vmem:[%s1 + $0xc0] sm:$0xff]
  %v781 = vld [vmem:[%s1 + $0xc8] sm:$0xff]
  %v782 = vld [vmem:[%s1 + $0xd0] sm:$0xff]
  %v783 = vld [vmem:[%s1 + $0xd8] sm:$0xff]
  %v784 = vld [vmem:[%s1 + $0xe0] sm:$0xff]
  %v785 = vld [vmem:[%s1 + $0xe8] sm:$0xff]
  %v786 = vld [vmem:[%s1 + $0xf0] sm:$0xff]
  %v787 = vld [vmem:[%s1 + $0xf8] sm:$0xff]
  %v788 = vld [vmem:[%s1 + $0x100] sm:$0xff]
  %v789 = vld [vmem:[%s1 + $0x108] sm:$0xff]
  %v790 = vld [vmem:[%s1 + $0x110] sm:$0xff]
  %v791 = vld [vmem:[%s1 + $0x118] sm:$0xff]
  %v792 = vld [vmem:[%s1 + $0x120] sm:$0xff]
  %v793 = vld [vmem:[%s1 + $0x128] sm:$0xff]
  %v794 = vld [vmem:[%s1 + $0x130] sm:$0xff]
  %v795 = vld [vmem:[%s1 + $0x138] sm:$0xff]
  %v796 = vld [vmem:[%s1 + $0x140] sm:$0xff]
  %v797 = vld [vmem:[%s1 + $0x148] sm:$0xff]
  %v798 = vld [vmem:[%s1 + $0x150] sm:$0xff]
  %v799 = vld [vmem:[%s1 + $0x158] sm:$0xff]
  %v800 = vld [vmem:[%s1 + $0x160] sm:$0xff]
  %v801 = vld [vmem:[%s1 + $0x168] sm:$0xff]
  %v802 = vld [vmem:[%s1 + $0x170] sm:$0xff]
  %v803 = vld [vmem:[%s1 + $0x178] sm:$0xff]
  %v804 = vld [vmem:[%s1 + $0x180] sm:$0xff]
  %v805 = vld [vmem:[%s1 + $0x188] sm:$0xff]
  %v806 = vld [vmem:[%s1 + $0x190] sm:$0xff]
  %v807 = vld [vmem:[%s1 + $0x198] sm:$0xff]
  %v808 = vld [vmem:[%s1 + $0x1a0] sm:$0xff]
  %v809 = vld [vmem:[%s1 + $0x1a8] sm:$0xff]
  %v810 = vld [vmem:[%s1 + $0x1b0] sm:$0xff]
  %v811 = vld [vmem:[%s1 + $0x1b8] sm:$0xff]
  %v812 = vld [vmem:[%s1 + $0x1c0] sm:$0xff]
  %v813 = vld [vmem:[%s1 + $0x1c8] sm:$0xff]
  %v814 = vld [vmem:[%s1 + $0x1d0] sm:$0xff]
  %v815 = vld [vmem:[%s1 + $0x1d8] sm:$0xff]
  %v816 = vld [vmem:[%s1 + $0x1e0] sm:$0xff]
  %v817 = vld [vmem:[%s1 + $0x1e8] sm:$0xff]
  %v818 = vld [vmem:[%s1 + $0x1f0] sm:$0xff]
  %v819 = vld [vmem:[%s1 + $0x1f8] sm:$0xff]
  %820 = vmatprep.subr.mxu0 %v817
  %821 = vmatpush1.msra.mxu0 %v816
  %822 = vmatprep.subr.mxu0 %v813
  %823 = vmatpush1.msra.mxu0 %v812
  %824 = vmatprep.subr.mxu0 %v809
  %825 = vmatpush1.msra.mxu0 %v808
  %826 = vmatprep.subr.mxu0 %v805
  %827 = vmatpush1.msra.mxu0 %v804
  %828 = vmatprep.subr.mxu0 %v801
  %829 = vmatpush1.msra.mxu0 %v800
  %830 = vmatprep.subr.mxu0 %v797
  %831 = vmatpush1.msra.mxu0 %v796
  %832 = vmatprep.subr.mxu0 %v793
  %833 = vmatpush1.msra.mxu0 %v792
  %834 = vmatprep.subr.mxu0 %v789
  %835 = vmatpush1.msra.mxu0 %v788
  %836 = vmatprep.subr.mxu0 %v785
  %837 = vmatpush1.msra.mxu0 %v784
  %838 = vmatprep.subr.mxu0 %v781
  %839 = vmatpush1.msra.mxu0 %v780
  %840 = vmatprep.subr.mxu0 %v777
  %841 = vmatpush1.msra.mxu0 %v776
  %842 = vmatprep.subr.mxu0 %v773
  %843 = vmatpush1.msra.mxu0 %v772
  %844 = vmatprep.subr.mxu0 %v769
  %845 = vmatpush1.msra.mxu0 %v768
  %846 = vmatprep.subr.mxu0 %v765
  %847 = vmatpush1.msra.mxu0 %v764
  %848 = vmatprep.subr.mxu0 %v761
  %849 = vmatpush1.msra.mxu0 %v760
  %850 = vmatprep.subr.mxu0 %v757
  %851 = vmatpush1.msra.mxu0 %v756
  %852 = vmatprep.subr.mxu0 0.0
  %853 = vmatpush2.msra.mxu0 0.0
  %854 = vmatprep.subr.mxu0 0.0
  %855 = vmatpush2.msra.mxu0 0.0
  %856 = vmatprep.subr.mxu0 0.0
  %857 = vmatpush2.msra.mxu0 0.0
  %858 = vmatprep.subr.mxu0 0.0
  %859 = vmatpush2.msra.mxu0 0.0
  %860 = vmatprep.subr.mxu0 0.0
  %861 = vmatpush2.msra.mxu0 0.0
  %862 = vmatprep.subr.mxu0 0.0
  %863 = vmatpush2.msra.mxu0 0.0
  %864 = vmatprep.subr.mxu0 0.0
  %865 = vmatpush2.msra.mxu0 0.0
  %866 = vmatprep.subr.mxu0 0.0
  %867 = vmatpush2.msra.mxu0 0.0
  %868 = vmatprep.subr.mxu0 0.0
  %869 = vmatpush2.msra.mxu0 0.0
  %870 = vmatprep.subr.mxu0 0.0
  %871 = vmatpush2.msra.mxu0 0.0
  %872 = vmatprep.subr.mxu0 0.0
  %873 = vmatpush2.msra.mxu0 0.0
  %874 = vmatprep.subr.mxu0 0.0
  %875 = vmatpush2.msra.mxu0 0.0
  %876 = vmatprep.subr.mxu0 0.0
  %877 = vmatpush2.msra.mxu0 0.0
  %878 = vmatprep.subr.mxu0 0.0
  %879 = vmatpush2.msra.mxu0 0.0
  %880 = vmatprep.subr.mxu0 0.0
  %881 = vmatpush2.msra.mxu0 0.0
  %882 = vmatprep.subr.mxu0 0.0
  %883 = vmatpush2.msra.mxu0 0.0
  %884 = vmatprep.mubr.f32.mxu0 0.0
  %885 = vmatmul.mubr.f32.gmra.mxu0 %v755
  %v886 = vpop.f32.mrf.mxu0
  %v887 = vadd.f32 0.0, %v886
  %v888 = vpop.f32.mrf.mxu0
  %v889 = vadd.f32 0.0, %v888
  %890 = vdwg.mxu0
  %891 = vmatprep.subr.mxu0 %v819
  %892 = vmatpush1.msra.mxu0 %v818
  %893 = vmatprep.subr.mxu0 %v815
  %894 = vmatpush1.msra.mxu0 %v814
  %895 = vmatprep.subr.mxu0 %v811
  %896 = vmatpush1.msra.mxu0 %v810
  %897 = vmatprep.subr.mxu0 %v807
  %898 = vmatpush1.msra.mxu0 %v806
  %899 = vmatprep.subr.mxu0 %v803
  %900 = vmatpush1.msra.mxu0 %v802
  %901 = vmatprep.subr.mxu0 %v799
  %902 = vmatpush1.msra.mxu0 %v798
  %903 = vmatprep.subr.mxu0 %v795
  %904 = vmatpush1.msra.mxu0 %v794
  %905 = vmatprep.subr.mxu0 %v791
  %906 = vmatpush1.msra.mxu0 %v790
  %907 = vmatprep.subr.mxu0 %v787
  %908 = vmatpush1.msra.mxu0 %v786
  %909 = vmatprep.subr.mxu0 %v783
  %910 = vmatpush1.msra.mxu0 %v782
  %911 = vmatprep.subr.mxu0 %v779
  %912 = vmatpush1.msra.mxu0 %v778
  %913 = vmatprep.subr.mxu0 %v775
  %914 = vmatpush1.msra.mxu0 %v774
  %915 = vmatprep.subr.mxu0 %v771
  %916 = vmatpush1.msra.mxu0 %v770
  %917 = vmatprep.subr.mxu0 %v767
  %918 = vmatpush1.msra.mxu0 %v766
  %919 = vmatprep.subr.mxu0 %v763
  %920 = vmatpush1.msra.mxu0 %v762
  %921 = vmatprep.subr.mxu0 %v759
  %922 = vmatpush1.msra.mxu0 %v758
  %923 = vmatprep.subr.mxu0 0.0
  %924 = vmatpush2.msra.mxu0 0.0
  %925 = vmatprep.subr.mxu0 0.0
  %926 = vmatpush2.msra.mxu0 0.0
  %927 = vmatprep.subr.mxu0 0.0
  %928 = vmatpush2.msra.mxu0 0.0
  %929 = vmatprep.subr.mxu0 0.0
  %930 = vmatpush2.msra.mxu0 0.0
  %931 = vmatprep.subr.mxu0 0.0
  %932 = vmatpush2.msra.mxu0 0.0
  %933 = vmatprep.subr.mxu0 0.0
  %934 = vmatpush2.msra.mxu0 0.0
  %935 = vmatprep.subr.mxu0 0.0
  %936 = vmatpush2.msra.mxu0 0.0
  %937 = vmatprep.subr.mxu0 0.0
  %938 = vmatpush2.msra.mxu0 0.0
  %939 = vmatprep.subr.mxu0 0.0
  %940 = vmatpush2.msra.mxu0 0.0
  %941 = vmatprep.subr.mxu0 0.0
  %942 = vmatpush2.msra.mxu0 0.0
  %943 = vmatprep.subr.mxu0 0.0
  %944 = vmatpush2.msra.mxu0 0.0
  %945 = vmatprep.subr.mxu0 0.0
  %946 = vmatpush2.msra.mxu0 0.0
  %947 = vmatprep.subr.mxu0 0.0
  %948 = vmatpush2.msra.mxu0 0.0
  %949 = vmatprep.subr.mxu0 0.0
  %950 = vmatpush2.msra.mxu0 0.0
  %951 = vmatprep.subr.mxu0 0.0
  %952 = vmatpush2.msra.mxu0 0.0
  %953 = vmatprep.subr.mxu0 0.0
  %954 = vmatpush2.msra.mxu0 0.0
  %955 = vmatprep.mubr.f32.mxu0 0.0
  %956 = vmatmul.mubr.f32.gmra.mxu0 %v755
  %v957 = vpop.f32.mrf.mxu0
  %v958 = vadd.f32 0.0, %v957
  %v959 = vpop.f32.mrf.mxu0
  %v960 = vadd.f32 0.0, %v959
  %961 = vdwg.mxu0
  %v962 = vadd.f32 %v751, %v887
  %v963 = vadd.f32 %v752, %v889
  %v964 = vadd.f32 %v753, %v958
  %v965 = vadd.f32 %v754, %v960
  %v966 = vxor.u32 %v962, 2147483648
  %v967 = vmul.f32 %v966, 1.442695
  %v968 = vpow.pop %v967
  %v969 = vadd.f32 %v968, 1.0
  %v970 = vrcp.pop %v969
  %v971 = vmul.f32 1.0, %v970
  %v972 = vxor.u32 %v963, 2147483648
  %v973 = vmul.f32 %v972, 1.442695
  %v974 = vpow.pop %v973
  %v975 = vadd.f32 %v974, 1.0
  %v976 = vrcp.pop %v975
  %v977 = vmul.f32 1.0, %v976
  %v978 = vtanh.pop %v964
  %v979 = vxor.u32 %v965, 2147483648
  %v980 = vmul.f32 %v979, 1.442695
  %v981 = vpow.pop %v980
  %v982 = vadd.f32 %v981, 1.0
  %v983 = vrcp.pop %v982
  %v984 = vmul.f32 1.0, %v983
  %v985 = vld [vmem:[#allocation3] sm:$0xff]
  %v986 = vmul.f32 %v977, %v985
  %v987 = vmul.f32 %v971, %v978
  %v988 = vadd.f32 %v986, %v987
  %v989 = vtanh.pop %v988
  %v990 = vmul.f32 %v984, %v989
  %991 = vst [vmem:[#allocation3] sm:$0xff] %v988
  %992 = vst [vmem:[#allocation2] sm:$0xff] %v990
  %s993 = scalar_lea.vmem %s2, 24
  %994 = vst [vmem:[%s993] sm:$0xff] %v990
  %s995 = scalar_lea.vmem %s0, 128
  %v996 = vld [vmem:[%s995] sm:$0xff]
  %v997 = vld [vmem:[%s995 + $0x8] sm:$0xff]
  %v998 = vld [vmem:[%s995 + $0x10] sm:$0xff]
  %v999 = vld [vmem:[%s995 + $0x18] sm:$0xff]
  %v1000 = vld [vmem:[#allocation2] sm:$0xff]
  %v1001 = vld [vmem:[%s1] sm:$0xff]
  %v1002 = vld [vmem:[%s1 + $0x8] sm:$0xff]
  %v1003 = vld [vmem:[%s1 + $0x10] sm:$0xff]
  %v1004 = vld [vmem:[%s1 + $0x18] sm:$0xff]
  %v1005 = vld [vmem:[%s1 + $0x20] sm:$0xff]
  %v1006 = vld [vmem:[%s1 + $0x28] sm:$0xff]
  %v1007 = vld [vmem:[%s1 + $0x30] sm:$0xff]
  %v1008 = vld [vmem:[%s1 + $0x38] sm:$0xff]
  %v1009 = vld [vmem:[%s1 + $0x40] sm:$0xff]
  %v1010 = vld [vmem:[%s1 + $0x48] sm:$0xff]
  %v1011 = vld [vmem:[%s1 + $0x50] sm:$0xff]
  %v1012 = vld [vmem:[%s1 + $0x58] sm:$0xff]
  %v1013 = vld [vmem:[%s1 + $0x60] sm:$0xff]
  %v1014 = vld [vmem:[%s1 + $0x68] sm:$0xff]
  %v1015 = vld [vmem:[%s1 + $0x70] sm:$0xff]
  %v1016 = vld [vmem:[%s1 + $0x78] sm:$0xff]
  %v1017 = vld [vmem:[%s1 + $0x80] sm:$0xff]
  %v1018 = vld [vmem:[%s1 + $0x88] sm:$0xff]
  %v1019 = vld [vmem:[%s1 + $0x90] sm:$0xff]
  %v1020 = vld [vmem:[%s1 + $0x98] sm:$0xff]
  %v1021 = vld [vmem:[%s1 + $0xa0] sm:$0xff]
  %v1022 = vld [vmem:[%s1 + $0xa8] sm:$0xff]
  %v1023 = vld [vmem:[%s1 + $0xb0] sm:$0xff]
  %v1024 = vld [vmem:[%s1 + $0xb8] sm:$0xff]
  %v1025 = vld [vmem:[%s1 + $0xc0] sm:$0xff]
  %v1026 = vld [vmem:[%s1 + $0xc8] sm:$0xff]
  %v1027 = vld [vmem:[%s1 + $0xd0] sm:$0xff]
  %v1028 = vld [vmem:[%s1 + $0xd8] sm:$0xff]
  %v1029 = vld [vmem:[%s1 + $0xe0] sm:$0xff]
  %v1030 = vld [vmem:[%s1 + $0xe8] sm:$0xff]
  %v1031 = vld [vmem:[%s1 + $0xf0] sm:$0xff]
  %v1032 = vld [vmem:[%s1 + $0xf8] sm:$0xff]
  %v1033 = vld [vmem:[%s1 + $0x100] sm:$0xff]
  %v1034 = vld [vmem:[%s1 + $0x108] sm:$0xff]
  %v1035 = vld [vmem:[%s1 + $0x110] sm:$0xff]
  %v1036 = vld [vmem:[%s1 + $0x118] sm:$0xff]
  %v1037 = vld [vmem:[%s1 + $0x120] sm:$0xff]
  %v1038 = vld [vmem:[%s1 + $0x128] sm:$0xff]
  %v1039 = vld [vmem:[%s1 + $0x130] sm:$0xff]
  %v1040 = vld [vmem:[%s1 + $0x138] sm:$0xff]
  %v1041 = vld [vmem:[%s1 + $0x140] sm:$0xff]
  %v1042 = vld [vmem:[%s1 + $0x148] sm:$0xff]
  %v1043 = vld [vmem:[%s1 + $0x150] sm:$0xff]
  %v1044 = vld [vmem:[%s1 + $0x158] sm:$0xff]
  %v1045 = vld [vmem:[%s1 + $0x160] sm:$0xff]
  %v1046 = vld [vmem:[%s1 + $0x168] sm:$0xff]
  %v1047 = vld [vmem:[%s1 + $0x170] sm:$0xff]
  %v1048 = vld [vmem:[%s1 + $0x178] sm:$0xff]
  %v1049 = vld [vmem:[%s1 + $0x180] sm:$0xff]
  %v1050 = vld [vmem:[%s1 + $0x188] sm:$0xff]
  %v1051 = vld [vmem:[%s1 + $0x190] sm:$0xff]
  %v1052 = vld [vmem:[%s1 + $0x198] sm:$0xff]
  %v1053 = vld [vmem:[%s1 + $0x1a0] sm:$0xff]
  %v1054 = vld [vmem:[%s1 + $0x1a8] sm:$0xff]
  %v1055 = vld [vmem:[%s1 + $0x1b0] sm:$0xff]
  %v1056 = vld [vmem:[%s1 + $0x1b8] sm:$0xff]
  %v1057 = vld [vmem:[%s1 + $0x1c0] sm:$0xff]
  %v1058 = vld [vmem:[%s1 + $0x1c8] sm:$0xff]
  %v1059 = vld [vmem:[%s1 + $0x1d0] sm:$0xff]
  %v1060 = vld [vmem:[%s1 + $0x1d8] sm:$0xff]
  %v1061 = vld [vmem:[%s1 + $0x1e0] sm:$0xff]
  %v1062 = vld [vmem:[%s1 + $0x1e8] sm:$0xff]
  %v1063 = vld [vmem:[%s1 + $0x1f0] sm:$0xff]
  %v1064 = vld [vmem:[%s1 + $0x1f8] sm:$0xff]
  %1065 = vmatprep.subr.mxu0 %v1062
  %1066 = vmatpush1.msra.mxu0 %v1061
  %1067 = vmatprep.subr.mxu0 %v1058
  %1068 = vmatpush1.msra.mxu0 %v1057
  %1069 = vmatprep.subr.mxu0 %v1054
  %1070 = vmatpush1.msra.mxu0 %v1053
  %1071 = vmatprep.subr.mxu0 %v1050
  %1072 = vmatpush1.msra.mxu0 %v1049
  %1073 = vmatprep.subr.mxu0 %v1046
  %1074 = vmatpush1.msra.mxu0 %v1045
  %1075 = vmatprep.subr.mxu0 %v1042
  %1076 = vmatpush1.msra.mxu0 %v1041
  %1077 = vmatprep.subr.mxu0 %v1038
  %1078 = vmatpush1.msra.mxu0 %v1037
  %1079 = vmatprep.subr.mxu0 %v1034
  %1080 = vmatpush1.msra.mxu0 %v1033
  %1081 = vmatprep.subr.mxu0 %v1030
  %1082 = vmatpush1.msra.mxu0 %v1029
  %1083 = vmatprep.subr.mxu0 %v1026
  %1084 = vmatpush1.msra.mxu0 %v1025
  %1085 = vmatprep.subr.mxu0 %v1022
  %1086 = vmatpush1.msra.mxu0 %v1021
  %1087 = vmatprep.subr.mxu0 %v1018
  %1088 = vmatpush1.msra.mxu0 %v1017
  %1089 = vmatprep.subr.mxu0 %v1014
  %1090 = vmatpush1.msra.mxu0 %v1013
  %1091 = vmatprep.subr.mxu0 %v1010
  %1092 = vmatpush1.msra.mxu0 %v1009
  %1093 = vmatprep.subr.mxu0 %v1006
  %1094 = vmatpush1.msra.mxu0 %v1005
  %1095 = vmatprep.subr.mxu0 %v1002
  %1096 = vmatpush1.msra.mxu0 %v1001
  %1097 = vmatprep.subr.mxu0 0.0
  %1098 = vmatpush2.msra.mxu0 0.0
  %1099 = vmatprep.subr.mxu0 0.0
  %1100 = vmatpush2.msra.mxu0 0.0
  %1101 = vmatprep.subr.mxu0 0.0
  %1102 = vmatpush2.msra.mxu0 0.0
  %1103 = vmatprep.subr.mxu0 0.0
  %1104 = vmatpush2.msra.mxu0 0.0
  %1105 = vmatprep.subr.mxu0 0.0
  %1106 = vmatpush2.msra.mxu0 0.0
  %1107 = vmatprep.subr.mxu0 0.0
  %1108 = vmatpush2.msra.mxu0 0.0
  %1109 = vmatprep.subr.mxu0 0.0
  %1110 = vmatpush2.msra.mxu0 0.0
  %1111 = vmatprep.subr.mxu0 0.0
  %1112 = vmatpush2.msra.mxu0 0.0
  %1113 = vmatprep.subr.mxu0 0.0
  %1114 = vmatpush2.msra.mxu0 0.0
  %1115 = vmatprep.subr.mxu0 0.0
  %1116 = vmatpush2.msra.mxu0 0.0
  %1117 = vmatprep.subr.mxu0 0.0
  %1118 = vmatpush2.msra.mxu0 0.0
  %1119 = vmatprep.subr.mxu0 0.0
  %1120 = vmatpush2.msra.mxu0 0.0
  %1121 = vmatprep.subr.mxu0 0.0
  %1122 = vmatpush2.msra.mxu0 0.0
  %1123 = vmatprep.subr.mxu0 0.0
  %1124 = vmatpush2.msra.mxu0 0.0
  %1125 = vmatprep.subr.mxu0 0.0
  %1126 = vmatpush2.msra.mxu0 0.0
  %1127 = vmatprep.subr.mxu0 0.0
  %1128 = vmatpush2.msra.mxu0 0.0
  %1129 = vmatprep.mubr.f32.mxu0 0.0
  %1130 = vmatmul.mubr.f32.gmra.mxu0 %v1000
  %v1131 = vpop.f32.mrf.mxu0
  %v1132 = vadd.f32 0.0, %v1131
  %v1133 = vpop.f32.mrf.mxu0
  %v1134 = vadd.f32 0.0, %v1133
  %1135 = vdwg.mxu0
  %1136 = vmatprep.subr.mxu0 %v1064
  %1137 = vmatpush1.msra.mxu0 %v1063
  %1138 = vmatprep.subr.mxu0 %v1060
  %1139 = vmatpush1.msra.mxu0 %v1059
  %1140 = vmatprep.subr.mxu0 %v1056
  %1141 = vmatpush1.msra.mxu0 %v1055
  %1142 = vmatprep.subr.mxu0 %v1052
  %1143 = vmatpush1.msra.mxu0 %v1051
  %1144 = vmatprep.subr.mxu0 %v1048
  %1145 = vmatpush1.msra.mxu0 %v1047
  %1146 = vmatprep.subr.mxu0 %v1044
  %1147 = vmatpush1.msra.mxu0 %v1043
  %1148 = vmatprep.subr.mxu0 %v1040
  %1149 = vmatpush1.msra.mxu0 %v1039
  %1150 = vmatprep.subr.mxu0 %v1036
  %1151 = vmatpush1.msra.mxu0 %v1035
  %1152 = vmatprep.subr.mxu0 %v1032
  %1153 = vmatpush1.msra.mxu0 %v1031
  %1154 = vmatprep.subr.mxu0 %v1028
  %1155 = vmatpush1.msra.mxu0 %v1027
  %1156 = vmatprep.subr.mxu0 %v1024
  %1157 = vmatpush1.msra.mxu0 %v1023
  %1158 = vmatprep.subr.mxu0 %v1020
  %1159 = vmatpush1.msra.mxu0 %v1019
  %1160 = vmatprep.subr.mxu0 %v1016
  %1161 = vmatpush1.msra.mxu0 %v1015
  %1162 = vmatprep.subr.mxu0 %v1012
  %1163 = vmatpush1.msra.mxu0 %v1011
  %1164 = vmatprep.subr.mxu0 %v1008
  %1165 = vmatpush1.msra.mxu0 %v1007
  %1166 = vmatprep.subr.mxu0 %v1004
  %1167 = vmatpush1.msra.mxu0 %v1003
  %1168 = vmatprep.subr.mxu0 0.0
  %1169 = vmatpush2.msra.mxu0 0.0
  %1170 = vmatprep.subr.mxu0 0.0
  %1171 = vmatpush2.msra.mxu0 0.0
  %1172 = vmatprep.subr.mxu0 0.0
  %1173 = vmatpush2.msra.mxu0 0.0
  %1174 = vmatprep.subr.mxu0 0.0
  %1175 = vmatpush2.msra.mxu0 0.0
  %1176 = vmatprep.subr.mxu0 0.0
  %1177 = vmatpush2.msra.mxu0 0.0
  %1178 = vmatprep.subr.mxu0 0.0
  %1179 = vmatpush2.msra.mxu0 0.0
  %1180 = vmatprep.subr.mxu0 0.0
  %1181 = vmatpush2.msra.mxu0 0.0
  %1182 = vmatprep.subr.mxu0 0.0
  %1183 = vmatpush2.msra.mxu0 0.0
  %1184 = vmatprep.subr.mxu0 0.0
  %1185 = vmatpush2.msra.mxu0 0.0
  %1186 = vmatprep.subr.mxu0 0.0
  %1187 = vmatpush2.msra.mxu0 0.0
  %1188 = vmatprep.subr.mxu0 0.0
  %1189 = vmatpush2.msra.mxu0 0.0
  %1190 = vmatprep.subr.mxu0 0.0
  %1191 = vmatpush2.msra.mxu0 0.0
  %1192 = vmatprep.subr.mxu0 0.0
  %1193 = vmatpush2.msra.mxu0 0.0
  %1194 = vmatprep.subr.mxu0 0.0
  %1195 = vmatpush2.msra.mxu0 0.0
  %1196 = vmatprep.subr.mxu0 0.0
  %1197 = vmatpush2.msra.mxu0 0.0
  %1198 = vmatprep.subr.mxu0 0.0
  %1199 = vmatpush2.msra.mxu0 0.0
  %1200 = vmatprep.mubr.f32.mxu0 0.0
  %1201 = vmatmul.mubr.f32.gmra.mxu0 %v1000
  %v1202 = vpop.f32.mrf.mxu0
  %v1203 = vadd.f32 0.0, %v1202
  %v1204 = vpop.f32.mrf.mxu0
  %v1205 = vadd.f32 0.0, %v1204
  %1206 = vdwg.mxu0
  %v1207 = vadd.f32 %v996, %v1132
  %v1208 = vadd.f32 %v997, %v1134
  %v1209 = vadd.f32 %v998, %v1203
  %v1210 = vadd.f32 %v999, %v1205
  %v1211 = vxor.u32 %v1207, 2147483648
  %v1212 = vmul.f32 %v1211, 1.442695
  %v1213 = vpow.pop %v1212
  %v1214 = vadd.f32 %v1213, 1.0
  %v1215 = vrcp.pop %v1214
  %v1216 = vmul.f32 1.0, %v1215
  %v1217 = vxor.u32 %v1208, 2147483648
  %v1218 = vmul.f32 %v1217, 1.442695
  %v1219 = vpow.pop %v1218
  %v1220 = vadd.f32 %v1219, 1.0
  %v1221 = vrcp.pop %v1220
  %v1222 = vmul.f32 1.0, %v1221
  %v1223 = vtanh.pop %v1209
  %v1224 = vxor.u32 %v1210, 2147483648
  %v1225 = vmul.f32 %v1224, 1.442695
  %v1226 = vpow.pop %v1225
  %v1227 = vadd.f32 %v1226, 1.0
  %v1228 = vrcp.pop %v1227
  %v1229 = vmul.f32 1.0, %v1228
  %v1230 = vld [vmem:[#allocation3] sm:$0xff]
  %v1231 = vmul.f32 %v1222, %v1230
  %v1232 = vmul.f32 %v1216, %v1223
  %v1233 = vadd.f32 %v1231, %v1232
  %v1234 = vtanh.pop %v1233
  %v1235 = vmul.f32 %v1229, %v1234
  %1236 = vst [vmem:[#allocation3] sm:$0xff] %v1233
  %1237 = vst [vmem:[#allocation2] sm:$0xff] %v1235
  %s1238 = scalar_lea.vmem %s2, 32
  %1239 = vst [vmem:[%s1238] sm:$0xff] %v1235
  %s1240 = scalar_lea.vmem %s0, 160
  %v1241 = vld [vmem:[%s1240] sm:$0xff]
  %v1242 = vld [vmem:[%s1240 + $0x8] sm:$0xff]
  %v1243 = vld [vmem:[%s1240 + $0x10] sm:$0xff]
  %v1244 = vld [vmem:[%s1240 + $0x18] sm:$0xff]
  %v1245 = vld [vmem:[#allocation2] sm:$0xff]
  %v1246 = vld [vmem:[%s1] sm:$0xff]
  %v1247 = vld [vmem:[%s1 + $0x8] sm:$0xff]
  %v1248 = vld [vmem:[%s1 + $0x10] sm:$0xff]
  %v1249 = vld [vmem:[%s1 + $0x18] sm:$0xff]
  %v1250 = vld [vmem:[%s1 + $0x20] sm:$0xff]
  %v1251 = vld [vmem:[%s1 + $0x28] sm:$0xff]
  %v1252 = vld [vmem:[%s1 + $0x30] sm:$0xff]
  %v1253 = vld [vmem:[%s1 + $0x38] sm:$0xff]
  %v1254 = vld [vmem:[%s1 + $0x40] sm:$0xff]
  %v1255 = vld [vmem:[%s1 + $0x48] sm:$0xff]
  %v1256 = vld [vmem:[%s1 + $0x50] sm:$0xff]
  %v1257 = vld [vmem:[%s1 + $0x58] sm:$0xff]
  %v1258 = vld [vmem:[%s1 + $0x60] sm:$0xff]
  %v1259 = vld [vmem:[%s1 + $0x68] sm:$0xff]
  %v1260 = vld [vmem:[%s1 + $0x70] sm:$0xff]
  %v1261 = vld [vmem:[%s1 + $0x78] sm:$0xff]
  %v1262 = vld [vmem:[%s1 + $0x80] sm:$0xff]
  %v1263 = vld [vmem:[%s1 + $0x88] sm:$0xff]
  %v1264 = vld [vmem:[%s1 + $0x90] sm:$0xff]
  %v1265 = vld [vmem:[%s1 + $0x98] sm:$0xff]
  %v1266 = vld [vmem:[%s1 + $0xa0] sm:$0xff]
  %v1267 = vld [vmem:[%s1 + $0xa8] sm:$0xff]
  %v1268 = vld [vmem:[%s1 + $0xb0] sm:$0xff]
  %v1269 = vld [vmem:[%s1 + $0xb8] sm:$0xff]
  %v1270 = vld [vmem:[%s1 + $0xc0] sm:$0xff]
  %v1271 = vld [vmem:[%s1 + $0xc8] sm:$0xff]
  %v1272 = vld [vmem:[%s1 + $0xd0] sm:$0xff]
  %v1273 = vld [vmem:[%s1 + $0xd8] sm:$0xff]
  %v1274 = vld [vmem:[%s1 + $0xe0] sm:$0xff]
  %v1275 = vld [vmem:[%s1 + $0xe8] sm:$0xff]
  %v1276 = vld [vmem:[%s1 + $0xf0] sm:$0xff]
  %v1277 = vld [vmem:[%s1 + $0xf8] sm:$0xff]
  %v1278 = vld [vmem:[%s1 + $0x100] sm:$0xff]
  %v1279 = vld [vmem:[%s1 + $0x108] sm:$0xff]
  %v1280 = vld [vmem:[%s1 + $0x110] sm:$0xff]
  %v1281 = vld [vmem:[%s1 + $0x118] sm:$0xff]
  %v1282 = vld [vmem:[%s1 + $0x120] sm:$0xff]
  %v1283 = vld [vmem:[%s1 + $0x128] sm:$0xff]
  %v1284 = vld [vmem:[%s1 + $0x130] sm:$0xff]
  %v1285 = vld [vmem:[%s1 + $0x138] sm:$0xff]
  %v1286 = vld [vmem:[%s1 + $0x140] sm:$0xff]
  %v1287 = vld [vmem:[%s1 + $0x148] sm:$0xff]
  %v1288 = vld [vmem:[%s1 + $0x150] sm:$0xff]
  %v1289 = vld [vmem:[%s1 + $0x158] sm:$0xff]
  %v1290 = vld [vmem:[%s1 + $0x160] sm:$0xff]
  %v1291 = vld [vmem:[%s1 + $0x168] sm:$0xff]
  %v1292 = vld [vmem:[%s1 + $0x170] sm:$0xff]
  %v1293 = vld [vmem:[%s1 + $0x178] sm:$0xff]
  %v1294 = vld [vmem:[%s1 + $0x180] sm:$0xff]
  %v1295 = vld [vmem:[%s1 + $0x188] sm:$0xff]
  %v1296 = vld [vmem:[%s1 + $0x190] sm:$0xff]
  %v1297 = vld [vmem:[%s1 + $0x198] sm:$0xff]
  %v1298 = vld [vmem:[%s1 + $0x1a0] sm:$0xff]
  %v1299 = vld [vmem:[%s1 + $0x1a8] sm:$0xff]
  %v1300 = vld [vmem:[%s1 + $0x1b0] sm:$0xff]
  %v1301 = vld [vmem:[%s1 + $0x1b8] sm:$0xff]
  %v1302 = vld [vmem:[%s1 + $0x1c0] sm:$0xff]
  %v1303 = vld [vmem:[%s1 + $0x1c8] sm:$0xff]
  %v1304 = vld [vmem:[%s1 + $0x1d0] sm:$0xff]
  %v1305 = vld [vmem:[%s1 + $0x1d8] sm:$0xff]
  %v1306 = vld [vmem:[%s1 + $0x1e0] sm:$0xff]
  %v1307 = vld [vmem:[%s1 + $0x1e8] sm:$0xff]
  %v1308 = vld [vmem:[%s1 + $0x1f0] sm:$0xff]
  %v1309 = vld [vmem:[%s1 + $0x1f8] sm:$0xff]
  %1310 = vmatprep.subr.mxu0 %v1307
  %1311 = vmatpush1.msra.mxu0 %v1306
  %1312 = vmatprep.subr.mxu0 %v1303
  %1313 = vmatpush1.msra.mxu0 %v1302
  %1314 = vmatprep.subr.mxu0 %v1299
  %1315 = vmatpush1.msra.mxu0 %v1298
  %1316 = vmatprep.subr.mxu0 %v1295
  %1317 = vmatpush1.msra.mxu0 %v1294
  %1318 = vmatprep.subr.mxu0 %v1291
  %1319 = vmatpush1.msra.mxu0 %v1290
  %1320 = vmatprep.subr.mxu0 %v1287
  %1321 = vmatpush1.msra.mxu0 %v1286
  %1322 = vmatprep.subr.mxu0 %v1283
  %1323 = vmatpush1.msra.mxu0 %v1282
  %1324 = vmatprep.subr.mxu0 %v1279
  %1325 = vmatpush1.msra.mxu0 %v1278
  %1326 = vmatprep.subr.mxu0 %v1275
  %1327 = vmatpush1.msra.mxu0 %v1274
  %1328 = vmatprep.subr.mxu0 %v1271
  %1329 = vmatpush1.msra.mxu0 %v1270
  %1330 = vmatprep.subr.mxu0 %v1267
  %1331 = vmatpush1.msra.mxu0 %v1266
  %1332 = vmatprep.subr.mxu0 %v1263
  %1333 = vmatpush1.msra.mxu0 %v1262
  %1334 = vmatprep.subr.mxu0 %v1259
  %1335 = vmatpush1.msra.mxu0 %v1258
  %1336 = vmatprep.subr.mxu0 %v1255
  %1337 = vmatpush1.msra.mxu0 %v1254
  %1338 = vmatprep.subr.mxu0 %v1251
  %1339 = vmatpush1.msra.mxu0 %v1250
  %1340 = vmatprep.subr.mxu0 %v1247
  %1341 = vmatpush1.msra.mxu0 %v1246
  %1342 = vmatprep.subr.mxu0 0.0
  %1343 = vmatpush2.msra.mxu0 0.0
  %1344 = vmatprep.subr.mxu0 0.0
  %1345 = vmatpush2.msra.mxu0 0.0
  %1346 = vmatprep.subr.mxu0 0.0
  %1347 = vmatpush2.msra.mxu0 0.0
  %1348 = vmatprep.subr.mxu0 0.0
  %1349 = vmatpush2.msra.mxu0 0.0
  %1350 = vmatprep.subr.mxu0 0.0
  %1351 = vmatpush2.msra.mxu0 0.0
  %1352 = vmatprep.subr.mxu0 0.0
  %1353 = vmatpush2.msra.mxu0 0.0
  %1354 = vmatprep.subr.mxu0 0.0
  %1355 = vmatpush2.msra.mxu0 0.0
  %1356 = vmatprep.subr.mxu0 0.0
  %1357 = vmatpush2.msra.mxu0 0.0
  %1358 = vmatprep.subr.mxu0 0.0
  %1359 = vmatpush2.msra.mxu0 0.0
  %1360 = vmatprep.subr.mxu0 0.0
  %1361 = vmatpush2.msra.mxu0 0.0
  %1362 = vmatprep.subr.mxu0 0.0
  %1363 = vmatpush2.msra.mxu0 0.0
  %1364 = vmatprep.subr.mxu0 0.0
  %1365 = vmatpush2.msra.mxu0 0.0
  %1366 = vmatprep.subr.mxu0 0.0
  %1367 = vmatpush2.msra.mxu0 0.0
  %1368 = vmatprep.subr.mxu0 0.0
  %1369 = vmatpush2.msra.mxu0 0.0
  %1370 = vmatprep.subr.mxu0 0.0
  %1371 = vmatpush2.msra.mxu0 0.0
  %1372 = vmatprep.subr.mxu0 0.0
  %1373 = vmatpush2.msra.mxu0 0.0
  %1374 = vmatprep.mubr.f32.mxu0 0.0
  %1375 = vmatmul.mubr.f32.gmra.mxu0 %v1245
  %v1376 = vpop.f32.mrf.mxu0
  %v1377 = vadd.f32 0.0, %v1376
  %v1378 = vpop.f32.mrf.mxu0
  %v1379 = vadd.f32 0.0, %v1378
  %1380 = vdwg.mxu0
  %1381 = vmatprep.subr.mxu0 %v1309
  %1382 = vmatpush1.msra.mxu0 %v1308
  %1383 = vmatprep.subr.mxu0 %v1305
  %1384 = vmatpush1.msra.mxu0 %v1304
  %1385 = vmatprep.subr.mxu0 %v1301
  %1386 = vmatpush1.msra.mxu0 %v1300
  %1387 = vmatprep.subr.mxu0 %v1297
  %1388 = vmatpush1.msra.mxu0 %v1296
  %1389 = vmatprep.subr.mxu0 %v1293
  %1390 = vmatpush1.msra.mxu0 %v1292
  %1391 = vmatprep.subr.mxu0 %v1289
  %1392 = vmatpush1.msra.mxu0 %v1288
  %1393 = vmatprep.subr.mxu0 %v1285
  %1394 = vmatpush1.msra.mxu0 %v1284
  %1395 = vmatprep.subr.mxu0 %v1281
  %1396 = vmatpush1.msra.mxu0 %v1280
  %1397 = vmatprep.subr.mxu0 %v1277
  %1398 = vmatpush1.msra.mxu0 %v1276
  %1399 = vmatprep.subr.mxu0 %v1273
  %1400 = vmatpush1.msra.mxu0 %v1272
  %1401 = vmatprep.subr.mxu0 %v1269
  %1402 = vmatpush1.msra.mxu0 %v1268
  %1403 = vmatprep.subr.mxu0 %v1265
  %1404 = vmatpush1.msra.mxu0 %v1264
  %1405 = vmatprep.subr.mxu0 %v1261
  %1406 = vmatpush1.msra.mxu0 %v1260
  %1407 = vmatprep.subr.mxu0 %v1257
  %1408 = vmatpush1.msra.mxu0 %v1256
  %1409 = vmatprep.subr.mxu0 %v1253
  %1410 = vmatpush1.msra.mxu0 %v1252
  %1411 = vmatprep.subr.mxu0 %v1249
  %1412 = vmatpush1.msra.mxu0 %v1248
  %1413 = vmatprep.subr.mxu0 0.0
  %1414 = vmatpush2.msra.mxu0 0.0
  %1415 = vmatprep.subr.mxu0 0.0
  %1416 = vmatpush2.msra.mxu0 0.0
  %1417 = vmatprep.subr.mxu0 0.0
  %1418 = vmatpush2.msra.mxu0 0.0
  %1419 = vmatprep.subr.mxu0 0.0
  %1420 = vmatpush2.msra.mxu0 0.0
  %1421 = vmatprep.subr.mxu0 0.0
  %1422 = vmatpush2.msra.mxu0 0.0
  %1423 = vmatprep.subr.mxu0 0.0
  %1424 = vmatpush2.msra.mxu0 0.0
  %1425 = vmatprep.subr.mxu0 0.0
  %1426 = vmatpush2.msra.mxu0 0.0
  %1427 = vmatprep.subr.mxu0 0.0
  %1428 = vmatpush2.msra.mxu0 0.0
  %1429 = vmatprep.subr.mxu0 0.0
  %1430 = vmatpush2.msra.mxu0 0.0
  %1431 = vmatprep.subr.mxu0 0.0
  %1432 = vmatpush2.msra.mxu0 0.0
  %1433 = vmatprep.subr.mxu0 0.0
  %1434 = vmatpush2.msra.mxu0 0.0
  %1435 = vmatprep.subr.mxu0 0.0
  %1436 = vmatpush2.msra.mxu0 0.0
  %1437 = vmatprep.subr.mxu0 0.0
  %1438 = vmatpush2.msra.mxu0 0.0
  %1439 = vmatprep.subr.mxu0 0.0
  %1440 = vmatpush2.msra.mxu0 0.0
  %1441 = vmatprep.subr.mxu0 0.0
  %1442 = vmatpush2.msra.mxu0 0.0
  %1443 = vmatprep.subr.mxu0 0.0
  %1444 = vmatpush2.msra.mxu0 0.0
  %1445 = vmatprep.mubr.f32.mxu0 0.0
  %1446 = vmatmul.mubr.f32.gmra.mxu0 %v1245
  %v1447 = vpop.f32.mrf.mxu0
  %v1448 = vadd.f32 0.0, %v1447
  %v1449 = vpop.f32.mrf.mxu0
  %v1450 = vadd.f32 0.0, %v1449
  %1451 = vdwg.mxu0
  %v1452 = vadd.f32 %v1241, %v1377
  %v1453 = vadd.f32 %v1242, %v1379
  %v1454 = vadd.f32 %v1243, %v1448
  %v1455 = vadd.f32 %v1244, %v1450
  %v1456 = vxor.u32 %v1452, 2147483648
  %v1457 = vmul.f32 %v1456, 1.442695
  %v1458 = vpow.pop %v1457
  %v1459 = vadd.f32 %v1458, 1.0
  %v1460 = vrcp.pop %v1459
  %v1461 = vmul.f32 1.0, %v1460
  %v1462 = vxor.u32 %v1453, 2147483648
  %v1463 = vmul.f32 %v1462, 1.442695
  %v1464 = vpow.pop %v1463
  %v1465 = vadd.f32 %v1464, 1.0
  %v1466 = vrcp.pop %v1465
  %v1467 = vmul.f32 1.0, %v1466
  %v1468 = vtanh.pop %v1454
  %v1469 = vxor.u32 %v1455, 2147483648
  %v1470 = vmul.f32 %v1469, 1.442695
  %v1471 = vpow.pop %v1470
  %v1472 = vadd.f32 %v1471, 1.0
  %v1473 = vrcp.pop %v1472
  %v1474 = vmul.f32 1.0, %v1473
  %v1475 = vld [vmem:[#allocation3] sm:$0xff]
  %v1476 = vmul.f32 %v1467, %v1475
  %v1477 = vmul.f32 %v1461, %v1468
  %v1478 = vadd.f32 %v1476, %v1477
  %v1479 = vtanh.pop %v1478
  %v1480 = vmul.f32 %v1474, %v1479
  %1481 = vst [vmem:[#allocation3] sm:$0xff] %v1478
  %1482 = vst [vmem:[#allocation2] sm:$0xff] %v1480
  %s1483 = scalar_lea.vmem %s2, 40
  %1484 = vst [vmem:[%s1483] sm:$0xff] %v1480
  %s1485 = scalar_lea.vmem %s0, 192
  %v1486 = vld [vmem:[%s1485] sm:$0xff]
  %v1487 = vld [vmem:[%s1485 + $0x8] sm:$0xff]
  %v1488 = vld [vmem:[%s1485 + $0x10] sm:$0xff]
  %v1489 = vld [vmem:[%s1485 + $0x18] sm:$0xff]
  %v1490 = vld [vmem:[#allocation2] sm:$0xff]
  %v1491 = vld [vmem:[%s1] sm:$0xff]
  %v1492 = vld [vmem:[%s1 + $0x8] sm:$0xff]
  %v1493 = vld [vmem:[%s1 + $0x10] sm:$0xff]
  %v1494 = vld [vmem:[%s1 + $0x18] sm:$0xff]
  %v1495 = vld [vmem:[%s1 + $0x20] sm:$0xff]
  %v1496 = vld [vmem:[%s1 + $0x28] sm:$0xff]
  %v1497 = vld [vmem:[%s1 + $0x30] sm:$0xff]
  %v1498 = vld [vmem:[%s1 + $0x38] sm:$0xff]
  %v1499 = vld [vmem:[%s1 + $0x40] sm:$0xff]
  %v1500 = vld [vmem:[%s1 + $0x48] sm:$0xff]
  %v1501 = vld [vmem:[%s1 + $0x50] sm:$0xff]
  %v1502 = vld [vmem:[%s1 + $0x58] sm:$0xff]
  %v1503 = vld [vmem:[%s1 + $0x60] sm:$0xff]
  %v1504 = vld [vmem:[%s1 + $0x68] sm:$0xff]
  %v1505 = vld [vmem:[%s1 + $0x70] sm:$0xff]
  %v1506 = vld [vmem:[%s1 + $0x78] sm:$0xff]
  %v1507 = vld [vmem:[%s1 + $0x80] sm:$0xff]
  %v1508 = vld [vmem:[%s1 + $0x88] sm:$0xff]
  %v1509 = vld [vmem:[%s1 + $0x90] sm:$0xff]
  %v1510 = vld [vmem:[%s1 + $0x98] sm:$0xff]
  %v1511 = vld [vmem:[%s1 + $0xa0] sm:$0xff]
  %v1512 = vld [vmem:[%s1 + $0xa8] sm:$0xff]
  %v1513 = vld [vmem:[%s1 + $0xb0] sm:$0xff]
  %v1514 = vld [vmem:[%s1 + $0xb8] sm:$0xff]
  %v1515 = vld [vmem:[%s1 + $0xc0] sm:$0xff]
  %v1516 = vld [vmem:[%s1 + $0xc8] sm:$0xff]
  %v1517 = vld [vmem:[%s1 + $0xd0] sm:$0xff]
  %v1518 = vld [vmem:[%s1 + $0xd8] sm:$0xff]
  %v1519 = vld [vmem:[%s1 + $0xe0] sm:$0xff]
  %v1520 = vld [vmem:[%s1 + $0xe8] sm:$0xff]
  %v1521 = vld [vmem:[%s1 + $0xf0] sm:$0xff]
  %v1522 = vld [vmem:[%s1 + $0xf8] sm:$0xff]
  %v1523 = vld [vmem:[%s1 + $0x100] sm:$0xff]
  %v1524 = vld [vmem:[%s1 + $0x108] sm:$0xff]
  %v1525 = vld [vmem:[%s1 + $0x110] sm:$0xff]
  %v1526 = vld [vmem:[%s1 + $0x118] sm:$0xff]
  %v1527 = vld [vmem:[%s1 + $0x120] sm:$0xff]
  %v1528 = vld [vmem:[%s1 + $0x128] sm:$0xff]
  %v1529 = vld [vmem:[%s1 + $0x130] sm:$0xff]
  %v1530 = vld [vmem:[%s1 + $0x138] sm:$0xff]
  %v1531 = vld [vmem:[%s1 + $0x140] sm:$0xff]
  %v1532 = vld [vmem:[%s1 + $0x148] sm:$0xff]
  %v1533 = vld [vmem:[%s1 + $0x150] sm:$0xff]
  %v1534 = vld [vmem:[%s1 + $0x158] sm:$0xff]
  %v1535 = vld [vmem:[%s1 + $0x160] sm:$0xff]
  %v1536 = vld [vmem:[%s1 + $0x168] sm:$0xff]
  %v1537 = vld [vmem:[%s1 + $0x170] sm:$0xff]
  %v1538 = vld [vmem:[%s1 + $0x178] sm:$0xff]
  %v1539 = vld [vmem:[%s1 + $0x180] sm:$0xff]
  %v1540 = vld [vmem:[%s1 + $0x188] sm:$0xff]
  %v1541 = vld [vmem:[%s1 + $0x190] sm:$0xff]
  %v1542 = vld [vmem:[%s1 + $0x198] sm:$0xff]
  %v1543 = vld [vmem:[%s1 + $0x1a0] sm:$0xff]
  %v1544 = vld [vmem:[%s1 + $0x1a8] sm:$0xff]
  %v1545 = vld [vmem:[%s1 + $0x1b0] sm:$0xff]
  %v1546 = vld [vmem:[%s1 + $0x1b8] sm:$0xff]
  %v1547 = vld [vmem:[%s1 + $0x1c0] sm:$0xff]
  %v1548 = vld [vmem:[%s1 + $0x1c8] sm:$0xff]
  %v1549 = vld [vmem:[%s1 + $0x1d0] sm:$0xff]
  %v1550 = vld [vmem:[%s1 + $0x1d8] sm:$0xff]
  %v1551 = vld [vmem:[%s1 + $0x1e0] sm:$0xff]
  %v1552 = vld [vmem:[%s1 + $0x1e8] sm:$0xff]
  %v1553 = vld [vmem:[%s1 + $0x1f0] sm:$0xff]
  %v1554 = vld [vmem:[%s1 + $0x1f8] sm:$0xff]
  %1555 = vmatprep.subr.mxu0 %v1552
  %1556 = vmatpush1.msra.mxu0 %v1551
  %1557 = vmatprep.subr.mxu0 %v1548
  %1558 = vmatpush1.msra.mxu0 %v1547
  %1559 = vmatprep.subr.mxu0 %v1544
  %1560 = vmatpush1.msra.mxu0 %v1543
  %1561 = vmatprep.subr.mxu0 %v1540
  %1562 = vmatpush1.msra.mxu0 %v1539
  %1563 = vmatprep.subr.mxu0 %v1536
  %1564 = vmatpush1.msra.mxu0 %v1535
  %1565 = vmatprep.subr.mxu0 %v1532
  %1566 = vmatpush1.msra.mxu0 %v1531
  %1567 = vmatprep.subr.mxu0 %v1528
  %1568 = vmatpush1.msra.mxu0 %v1527
  %1569 = vmatprep.subr.mxu0 %v1524
  %1570 = vmatpush1.msra.mxu0 %v1523
  %1571 = vmatprep.subr.mxu0 %v1520
  %1572 = vmatpush1.msra.mxu0 %v1519
  %1573 = vmatprep.subr.mxu0 %v1516
  %1574 = vmatpush1.msra.mxu0 %v1515
  %1575 = vmatprep.subr.mxu0 %v1512
  %1576 = vmatpush1.msra.mxu0 %v1511
  %1577 = vmatprep.subr.mxu0 %v1508
  %1578 = vmatpush1.msra.mxu0 %v1507
  %1579 = vmatprep.subr.mxu0 %v1504
  %1580 = vmatpush1.msra.mxu0 %v1503
  %1581 = vmatprep.subr.mxu0 %v1500
  %1582 = vmatpush1.msra.mxu0 %v1499
  %1583 = vmatprep.subr.mxu0 %v1496
  %1584 = vmatpush1.msra.mxu0 %v1495
  %1585 = vmatprep.subr.mxu0 %v1492
  %1586 = vmatpush1.msra.mxu0 %v1491
  %1587 = vmatprep.subr.mxu0 0.0
  %1588 = vmatpush2.msra.mxu0 0.0
  %1589 = vmatprep.subr.mxu0 0.0
  %1590 = vmatpush2.msra.mxu0 0.0
  %1591 = vmatprep.subr.mxu0 0.0
  %1592 = vmatpush2.msra.mxu0 0.0
  %1593 = vmatprep.subr.mxu0 0.0
  %1594 = vmatpush2.msra.mxu0 0.0
  %1595 = vmatprep.subr.mxu0 0.0
  %1596 = vmatpush2.msra.mxu0 0.0
  %1597 = vmatprep.subr.mxu0 0.0
  %1598 = vmatpush2.msra.mxu0 0.0
  %1599 = vmatprep.subr.mxu0 0.0
  %1600 = vmatpush2.msra.mxu0 0.0
  %1601 = vmatprep.subr.mxu0 0.0
  %1602 = vmatpush2.msra.mxu0 0.0
  %1603 = vmatprep.subr.mxu0 0.0
  %1604 = vmatpush2.msra.mxu0 0.0
  %1605 = vmatprep.subr.mxu0 0.0
  %1606 = vmatpush2.msra.mxu0 0.0
  %1607 = vmatprep.subr.mxu0 0.0
  %1608 = vmatpush2.msra.mxu0 0.0
  %1609 = vmatprep.subr.mxu0 0.0
  %1610 = vmatpush2.msra.mxu0 0.0
  %1611 = vmatprep.subr.mxu0 0.0
  %1612 = vmatpush2.msra.mxu0 0.0
  %1613 = vmatprep.subr.mxu0 0.0
  %1614 = vmatpush2.msra.mxu0 0.0
  %1615 = vmatprep.subr.mxu0 0.0
  %1616 = vmatpush2.msra.mxu0 0.0
  %1617 = vmatprep.subr.mxu0 0.0
  %1618 = vmatpush2.msra.mxu0 0.0
  %1619 = vmatprep.mubr.f32.mxu0 0.0
  %1620 = vmatmul.mubr.f32.gmra.mxu0 %v1490
  %v1621 = vpop.f32.mrf.mxu0
  %v1622 = vadd.f32 0.0, %v1621
  %v1623 = vpop.f32.mrf.mxu0
  %v1624 = vadd.f32 0.0, %v1623
  %1625 = vdwg.mxu0
  %1626 = vmatprep.subr.mxu0 %v1554
  %1627 = vmatpush1.msra.mxu0 %v1553
  %1628 = vmatprep.subr.mxu0 %v1550
  %1629 = vmatpush1.msra.mxu0 %v1549
  %1630 = vmatprep.subr.mxu0 %v1546
  %1631 = vmatpush1.msra.mxu0 %v1545
  %1632 = vmatprep.subr.mxu0 %v1542
  %1633 = vmatpush1.msra.mxu0 %v1541
  %1634 = vmatprep.subr.mxu0 %v1538
  %1635 = vmatpush1.msra.mxu0 %v1537
  %1636 = vmatprep.subr.mxu0 %v1534
  %1637 = vmatpush1.msra.mxu0 %v1533
  %1638 = vmatprep.subr.mxu0 %v1530
  %1639 = vmatpush1.msra.mxu0 %v1529
  %1640 = vmatprep.subr.mxu0 %v1526
  %1641 = vmatpush1.msra.mxu0 %v1525
  %1642 = vmatprep.subr.mxu0 %v1522
  %1643 = vmatpush1.msra.mxu0 %v1521
  %1644 = vmatprep.subr.mxu0 %v1518
  %1645 = vmatpush1.msra.mxu0 %v1517
  %1646 = vmatprep.subr.mxu0 %v1514
  %1647 = vmatpush1.msra.mxu0 %v1513
  %1648 = vmatprep.subr.mxu0 %v1510
  %1649 = vmatpush1.msra.mxu0 %v1509
  %1650 = vmatprep.subr.mxu0 %v1506
  %1651 = vmatpush1.msra.mxu0 %v1505
  %1652 = vmatprep.subr.mxu0 %v1502
  %1653 = vmatpush1.msra.mxu0 %v1501
  %1654 = vmatprep.subr.mxu0 %v1498
  %1655 = vmatpush1.msra.mxu0 %v1497
  %1656 = vmatprep.subr.mxu0 %v1494
  %1657 = vmatpush1.msra.mxu0 %v1493
  %1658 = vmatprep.subr.mxu0 0.0
  %1659 = vmatpush2.msra.mxu0 0.0
  %1660 = vmatprep.subr.mxu0 0.0
  %1661 = vmatpush2.msra.mxu0 0.0
  %1662 = vmatprep.subr.mxu0 0.0
  %1663 = vmatpush2.msra.mxu0 0.0
  %1664 = vmatprep.subr.mxu0 0.0
  %1665 = vmatpush2.msra.mxu0 0.0
  %1666 = vmatprep.subr.mxu0 0.0
  %1667 = vmatpush2.msra.mxu0 0.0
  %1668 = vmatprep.subr.mxu0 0.0
  %1669 = vmatpush2.msra.mxu0 0.0
  %1670 = vmatprep.subr.mxu0 0.0
  %1671 = vmatpush2.msra.mxu0 0.0
  %1672 = vmatprep.subr.mxu0 0.0
  %1673 = vmatpush2.msra.mxu0 0.0
  %1674 = vmatprep.subr.mxu0 0.0
  %1675 = vmatpush2.msra.mxu0 0.0
  %1676 = vmatprep.subr.mxu0 0.0
  %1677 = vmatpush2.msra.mxu0 0.0
  %1678 = vmatprep.subr.mxu0 0.0
  %1679 = vmatpush2.msra.mxu0 0.0
  %1680 = vmatprep.subr.mxu0 0.0
  %1681 = vmatpush2.msra.mxu0 0.0
  %1682 = vmatprep.subr.mxu0 0.0
  %1683 = vmatpush2.msra.mxu0 0.0
  %1684 = vmatprep.subr.mxu0 0.0
  %1685 = vmatpush2.msra.mxu0 0.0
  %1686 = vmatprep.subr.mxu0 0.0
  %1687 = vmatpush2.msra.mxu0 0.0
  %1688 = vmatprep.subr.mxu0 0.0
  %1689 = vmatpush2.msra.mxu0 0.0
  %1690 = vmatprep.mubr.f32.mxu0 0.0
  %1691 = vmatmul.mubr.f32.gmra.mxu0 %v1490
  %v1692 = vpop.f32.mrf.mxu0
  %v1693 = vadd.f32 0.0, %v1692
  %v1694 = vpop.f32.mrf.mxu0
  %v1695 = vadd.f32 0.0, %v1694
  %1696 = vdwg.mxu0
  %v1697 = vadd.f32 %v1486, %v1622
  %v1698 = vadd.f32 %v1487, %v1624
  %v1699 = vadd.f32 %v1488, %v1693
  %v1700 = vadd.f32 %v1489, %v1695
  %v1701 = vxor.u32 %v1697, 2147483648
  %v1702 = vmul.f32 %v1701, 1.442695
  %v1703 = vpow.pop %v1702
  %v1704 = vadd.f32 %v1703, 1.0
  %v1705 = vrcp.pop %v1704
  %v1706 = vmul.f32 1.0, %v1705
  %v1707 = vxor.u32 %v1698, 2147483648
  %v1708 = vmul.f32 %v1707, 1.442695
  %v1709 = vpow.pop %v1708
  %v1710 = vadd.f32 %v1709, 1.0
  %v1711 = vrcp.pop %v1710
  %v1712 = vmul.f32 1.0, %v1711
  %v1713 = vtanh.pop %v1699
  %v1714 = vxor.u32 %v1700, 2147483648
  %v1715 = vmul.f32 %v1714, 1.442695
  %v1716 = vpow.pop %v1715
  %v1717 = vadd.f32 %v1716, 1.0
  %v1718 = vrcp.pop %v1717
  %v1719 = vmul.f32 1.0, %v1718
  %v1720 = vld [vmem:[#allocation3] sm:$0xff]
  %v1721 = vmul.f32 %v1712, %v1720
  %v1722 = vmul.f32 %v1706, %v1713
  %v1723 = vadd.f32 %v1721, %v1722
  %v1724 = vtanh.pop %v1723
  %v1725 = vmul.f32 %v1719, %v1724
  %1726 = vst [vmem:[#allocation3] sm:$0xff] %v1723
  %1727 = vst [vmem:[#allocation2] sm:$0xff] %v1725
  %s1728 = scalar_lea.vmem %s2, 48
  %1729 = vst [vmem:[%s1728] sm:$0xff] %v1725
  %s1730 = scalar_lea.vmem %s0, 224
  %v1731 = vld [vmem:[%s1730] sm:$0xff]
  %v1732 = vld [vmem:[%s1730 + $0x8] sm:$0xff]
  %v1733 = vld [vmem:[%s1730 + $0x10] sm:$0xff]
  %v1734 = vld [vmem:[%s1730 + $0x18] sm:$0xff]
  %v1735 = vld [vmem:[#allocation2] sm:$0xff]
  %v1736 = vld [vmem:[%s1] sm:$0xff]
  %v1737 = vld [vmem:[%s1 + $0x8] sm:$0xff]
  %v1738 = vld [vmem:[%s1 + $0x10] sm:$0xff]
  %v1739 = vld [vmem:[%s1 + $0x18] sm:$0xff]
  %v1740 = vld [vmem:[%s1 + $0x20] sm:$0xff]
  %v1741 = vld [vmem:[%s1 + $0x28] sm:$0xff]
  %v1742 = vld [vmem:[%s1 + $0x30] sm:$0xff]
  %v1743 = vld [vmem:[%s1 + $0x38] sm:$0xff]
  %v1744 = vld [vmem:[%s1 + $0x40] sm:$0xff]
  %v1745 = vld [vmem:[%s1 + $0x48] sm:$0xff]
  %v1746 = vld [vmem:[%s1 + $0x50] sm:$0xff]
  %v1747 = vld [vmem:[%s1 + $0x58] sm:$0xff]
  %v1748 = vld [vmem:[%s1 + $0x60] sm:$0xff]
  %v1749 = vld [vmem:[%s1 + $0x68] sm:$0xff]
  %v1750 = vld [vmem:[%s1 + $0x70] sm:$0xff]
  %v1751 = vld [vmem:[%s1 + $0x78] sm:$0xff]
  %v1752 = vld [vmem:[%s1 + $0x80] sm:$0xff]
  %v1753 = vld [vmem:[%s1 + $0x88] sm:$0xff]
  %v1754 = vld [vmem:[%s1 + $0x90] sm:$0xff]
  %v1755 = vld [vmem:[%s1 + $0x98] sm:$0xff]
  %v1756 = vld [vmem:[%s1 + $0xa0] sm:$0xff]
  %v1757 = vld [vmem:[%s1 + $0xa8] sm:$0xff]
  %v1758 = vld [vmem:[%s1 + $0xb0] sm:$0xff]
  %v1759 = vld [vmem:[%s1 + $0xb8] sm:$0xff]
  %v1760 = vld [vmem:[%s1 + $0xc0] sm:$0xff]
  %v1761 = vld [vmem:[%s1 + $0xc8] sm:$0xff]
  %v1762 = vld [vmem:[%s1 + $0xd0] sm:$0xff]
  %v1763 = vld [vmem:[%s1 + $0xd8] sm:$0xff]
  %v1764 = vld [vmem:[%s1 + $0xe0] sm:$0xff]
  %v1765 = vld [vmem:[%s1 + $0xe8] sm:$0xff]
  %v1766 = vld [vmem:[%s1 + $0xf0] sm:$0xff]
  %v1767 = vld [vmem:[%s1 + $0xf8] sm:$0xff]
  %v1768 = vld [vmem:[%s1 + $0x100] sm:$0xff]
  %v1769 = vld [vmem:[%s1 + $0x108] sm:$0xff]
  %v1770 = vld [vmem:[%s1 + $0x110] sm:$0xff]
  %v1771 = vld [vmem:[%s1 + $0x118] sm:$0xff]
  %v1772 = vld [vmem:[%s1 + $0x120] sm:$0xff]
  %v1773 = vld [vmem:[%s1 + $0x128] sm:$0xff]
  %v1774 = vld [vmem:[%s1 + $0x130] sm:$0xff]
  %v1775 = vld [vmem:[%s1 + $0x138] sm:$0xff]
  %v1776 = vld [vmem:[%s1 + $0x140] sm:$0xff]
  %v1777 = vld [vmem:[%s1 + $0x148] sm:$0xff]
  %v1778 = vld [vmem:[%s1 + $0x150] sm:$0xff]
  %v1779 = vld [vmem:[%s1 + $0x158] sm:$0xff]
  %v1780 = vld [vmem:[%s1 + $0x160] sm:$0xff]
  %v1781 = vld [vmem:[%s1 + $0x168] sm:$0xff]
  %v1782 = vld [vmem:[%s1 + $0x170] sm:$0xff]
  %v1783 = vld [vmem:[%s1 + $0x178] sm:$0xff]
  %v1784 = vld [vmem:[%s1 + $0x180] sm:$0xff]
  %v1785 = vld [vmem:[%s1 + $0x188] sm:$0xff]
  %v1786 = vld [vmem:[%s1 + $0x190] sm:$0xff]
  %v1787 = vld [vmem:[%s1 + $0x198] sm:$0xff]
  %v1788 = vld [vmem:[%s1 + $0x1a0] sm:$0xff]
  %v1789 = vld [vmem:[%s1 + $0x1a8] sm:$0xff]
  %v1790 = vld [vmem:[%s1 + $0x1b0] sm:$0xff]
  %v1791 = vld [vmem:[%s1 + $0x1b8] sm:$0xff]
  %v1792 = vld [vmem:[%s1 + $0x1c0] sm:$0xff]
  %v1793 = vld [vmem:[%s1 + $0x1c8] sm:$0xff]
  %v1794 = vld [vmem:[%s1 + $0x1d0] sm:$0xff]
  %v1795 = vld [vmem:[%s1 + $0x1d8] sm:$0xff]
  %v1796 = vld [vmem:[%s1 + $0x1e0] sm:$0xff]
  %v1797 = vld [vmem:[%s1 + $0x1e8] sm:$0xff]
  %v1798 = vld [vmem:[%s1 + $0x1f0] sm:$0xff]
  %v1799 = vld [vmem:[%s1 + $0x1f8] sm:$0xff]
  %1800 = vmatprep.subr.mxu0 %v1797
  %1801 = vmatpush1.msra.mxu0 %v1796
  %1802 = vmatprep.subr.mxu0 %v1793
  %1803 = vmatpush1.msra.mxu0 %v1792
  %1804 = vmatprep.subr.mxu0 %v1789
  %1805 = vmatpush1.msra.mxu0 %v1788
  %1806 = vmatprep.subr.mxu0 %v1785
  %1807 = vmatpush1.msra.mxu0 %v1784
  %1808 = vmatprep.subr.mxu0 %v1781
  %1809 = vmatpush1.msra.mxu0 %v1780
  %1810 = vmatprep.subr.mxu0 %v1777
  %1811 = vmatpush1.msra.mxu0 %v1776
  %1812 = vmatprep.subr.mxu0 %v1773
  %1813 = vmatpush1.msra.mxu0 %v1772
  %1814 = vmatprep.subr.mxu0 %v1769
  %1815 = vmatpush1.msra.mxu0 %v1768
  %1816 = vmatprep.subr.mxu0 %v1765
  %1817 = vmatpush1.msra.mxu0 %v1764
  %1818 = vmatprep.subr.mxu0 %v1761
  %1819 = vmatpush1.msra.mxu0 %v1760
  %1820 = vmatprep.subr.mxu0 %v1757
  %1821 = vmatpush1.msra.mxu0 %v1756
  %1822 = vmatprep.subr.mxu0 %v1753
  %1823 = vmatpush1.msra.mxu0 %v1752
  %1824 = vmatprep.subr.mxu0 %v1749
  %1825 = vmatpush1.msra.mxu0 %v1748
  %1826 = vmatprep.subr.mxu0 %v1745
  %1827 = vmatpush1.msra.mxu0 %v1744
  %1828 = vmatprep.subr.mxu0 %v1741
  %1829 = vmatpush1.msra.mxu0 %v1740
  %1830 = vmatprep.subr.mxu0 %v1737
  %1831 = vmatpush1.msra.mxu0 %v1736
  %1832 = vmatprep.subr.mxu0 0.0
  %1833 = vmatpush2.msra.mxu0 0.0
  %1834 = vmatprep.subr.mxu0 0.0
  %1835 = vmatpush2.msra.mxu0 0.0
  %1836 = vmatprep.subr.mxu0 0.0
  %1837 = vmatpush2.msra.mxu0 0.0
  %1838 = vmatprep.subr.mxu0 0.0
  %1839 = vmatpush2.msra.mxu0 0.0
  %1840 = vmatprep.subr.mxu0 0.0
  %1841 = vmatpush2.msra.mxu0 0.0
  %1842 = vmatprep.subr.mxu0 0.0
  %1843 = vmatpush2.msra.mxu0 0.0
  %1844 = vmatprep.subr.mxu0 0.0
  %1845 = vmatpush2.msra.mxu0 0.0
  %1846 = vmatprep.subr.mxu0 0.0
  %1847 = vmatpush2.msra.mxu0 0.0
  %1848 = vmatprep.subr.mxu0 0.0
  %1849 = vmatpush2.msra.mxu0 0.0
  %1850 = vmatprep.subr.mxu0 0.0
  %1851 = vmatpush2.msra.mxu0 0.0
  %1852 = vmatprep.subr.mxu0 0.0
  %1853 = vmatpush2.msra.mxu0 0.0
  %1854 = vmatprep.subr.mxu0 0.0
  %1855 = vmatpush2.msra.mxu0 0.0
  %1856 = vmatprep.subr.mxu0 0.0
  %1857 = vmatpush2.msra.mxu0 0.0
  %1858 = vmatprep.subr.mxu0 0.0
  %1859 = vmatpush2.msra.mxu0 0.0
  %1860 = vmatprep.subr.mxu0 0.0
  %1861 = vmatpush2.msra.mxu0 0.0
  %1862 = vmatprep.subr.mxu0 0.0
  %1863 = vmatpush2.msra.mxu0 0.0
  %1864 = vmatprep.mubr.f32.mxu0 0.0
  %1865 = vmatmul.mubr.f32.gmra.mxu0 %v1735
  %v1866 = vpop.f32.mrf.mxu0
  %v1867 = vadd.f32 0.0, %v1866
  %v1868 = vpop.f32.mrf.mxu0
  %v1869 = vadd.f32 0.0, %v1868
  %1870 = vdwg.mxu0
  %1871 = vmatprep.subr.mxu0 %v1799
  %1872 = vmatpush1.msra.mxu0 %v1798
  %1873 = vmatprep.subr.mxu0 %v1795
  %1874 = vmatpush1.msra.mxu0 %v1794
  %1875 = vmatprep.subr.mxu0 %v1791
  %1876 = vmatpush1.msra.mxu0 %v1790
  %1877 = vmatprep.subr.mxu0 %v1787
  %1878 = vmatpush1.msra.mxu0 %v1786
  %1879 = vmatprep.subr.mxu0 %v1783
  %1880 = vmatpush1.msra.mxu0 %v1782
  %1881 = vmatprep.subr.mxu0 %v1779
  %1882 = vmatpush1.msra.mxu0 %v1778
  %1883 = vmatprep.subr.mxu0 %v1775
  %1884 = vmatpush1.msra.mxu0 %v1774
  %1885 = vmatprep.subr.mxu0 %v1771
  %1886 = vmatpush1.msra.mxu0 %v1770
  %1887 = vmatprep.subr.mxu0 %v1767
  %1888 = vmatpush1.msra.mxu0 %v1766
  %1889 = vmatprep.subr.mxu0 %v1763
  %1890 = vmatpush1.msra.mxu0 %v1762
  %1891 = vmatprep.subr.mxu0 %v1759
  %1892 = vmatpush1.msra.mxu0 %v1758
  %1893 = vmatprep.subr.mxu0 %v1755
  %1894 = vmatpush1.msra.mxu0 %v1754
  %1895 = vmatprep.subr.mxu0 %v1751
  %1896 = vmatpush1.msra.mxu0 %v1750
  %1897 = vmatprep.subr.mxu0 %v1747
  %1898 = vmatpush1.msra.mxu0 %v1746
  %1899 = vmatprep.subr.mxu0 %v1743
  %1900 = vmatpush1.msra.mxu0 %v1742
  %1901 = vmatprep.subr.mxu0 %v1739
  %1902 = vmatpush1.msra.mxu0 %v1738
  %1903 = vmatprep.subr.mxu0 0.0
  %1904 = vmatpush2.msra.mxu0 0.0
  %1905 = vmatprep.subr.mxu0 0.0
  %1906 = vmatpush2.msra.mxu0 0.0
  %1907 = vmatprep.subr.mxu0 0.0
  %1908 = vmatpush2.msra.mxu0 0.0
  %1909 = vmatprep.subr.mxu0 0.0
  %1910 = vmatpush2.msra.mxu0 0.0
  %1911 = vmatprep.subr.mxu0 0.0
  %1912 = vmatpush2.msra.mxu0 0.0
  %1913 = vmatprep.subr.mxu0 0.0
  %1914 = vmatpush2.msra.mxu0 0.0
  %1915 = vmatprep.subr.mxu0 0.0
  %1916 = vmatpush2.msra.mxu0 0.0
  %1917 = vmatprep.subr.mxu0 0.0
  %1918 = vmatpush2.msra.mxu0 0.0
  %1919 = vmatprep.subr.mxu0 0.0
  %1920 = vmatpush2.msra.mxu0 0.0
  %1921 = vmatprep.subr.mxu0 0.0
  %1922 = vmatpush2.msra.mxu0 0.0
  %1923 = vmatprep.subr.mxu0 0.0
  %1924 = vmatpush2.msra.mxu0 0.0
  %1925 = vmatprep.subr.mxu0 0.0
  %1926 = vmatpush2.msra.mxu0 0.0
  %1927 = vmatprep.subr.mxu0 0.0
  %1928 = vmatpush2.msra.mxu0 0.0
  %1929 = vmatprep.subr.mxu0 0.0
  %1930 = vmatpush2.msra.mxu0 0.0
  %1931 = vmatprep.subr.mxu0 0.0
  %1932 = vmatpush2.msra.mxu0 0.0
  %1933 = vmatprep.subr.mxu0 0.0
  %1934 = vmatpush2.msra.mxu0 0.0
  %1935 = vmatprep.mubr.f32.mxu0 0.0
  %1936 = vmatmul.mubr.f32.gmra.mxu0 %v1735
  %v1937 = vpop.f32.mrf.mxu0
  %v1938 = vadd.f32 0.0, %v1937
  %v1939 = vpop.f32.mrf.mxu0
  %v1940 = vadd.f32 0.0, %v1939
  %1941 = vdwg.mxu0
  %v1942 = vadd.f32 %v1731, %v1867
  %v1943 = vadd.f32 %v1732, %v1869
  %v1944 = vadd.f32 %v1733, %v1938
  %v1945 = vadd.f32 %v1734, %v1940
  %v1946 = vxor.u32 %v1942, 2147483648
  %v1947 = vmul.f32 %v1946, 1.442695
  %v1948 = vpow.pop %v1947
  %v1949 = vadd.f32 %v1948, 1.0
  %v1950 = vrcp.pop %v1949
  %v1951 = vmul.f32 1.0, %v1950
  %v1952 = vxor.u32 %v1943, 2147483648
  %v1953 = vmul.f32 %v1952, 1.442695
  %v1954 = vpow.pop %v1953
  %v1955 = vadd.f32 %v1954, 1.0
  %v1956 = vrcp.pop %v1955
  %v1957 = vmul.f32 1.0, %v1956
  %v1958 = vtanh.pop %v1944
  %v1959 = vxor.u32 %v1945, 2147483648
  %v1960 = vmul.f32 %v1959, 1.442695
  %v1961 = vpow.pop %v1960
  %v1962 = vadd.f32 %v1961, 1.0
  %v1963 = vrcp.pop %v1962
  %v1964 = vmul.f32 1.0, %v1963
  %v1965 = vld [vmem:[#allocation3] sm:$0xff]
  %v1966 = vmul.f32 %v1957, %v1965
  %v1967 = vmul.f32 %v1951, %v1958
  %v1968 = vadd.f32 %v1966, %v1967
  %v1969 = vtanh.pop %v1968
  %v1970 = vmul.f32 %v1964, %v1969
  %1971 = vst [vmem:[#allocation3] sm:$0xff] %v1968
  %1972 = vst [vmem:[#allocation2] sm:$0xff] %v1970
  %s1973 = scalar_lea.vmem %s2, 56
  %1974 = vst [vmem:[%s1973] sm:$0xff] %v1970
  // Predicated region
  $region14: #{lstm_forward.6} parent=0 // pred_check
    _
  $region15: #{lstm_forward.6} parent=0 // pred_check_branch
    %1976 = sbr.rel (0) target = $region17
  $region16: #{lstm_forward.6} parent=0 // pred_region
    _
  $region17: #{lstm_forward.6} parent=0 // pred_fallthru
    _
  // Predicated region
  $region18: #{lstm_forward.6} parent=0 // pred_check
    _
  $region19: #{lstm_forward.6} parent=0 // pred_check_branch
    %1978 = sbr.rel (0) target = $region21
  $region20: #{lstm_forward.6} parent=0 // pred_region
    _
  $region21: #{lstm_forward.6} parent=0 // pred_fallthru
    _

</llo_original>
